<compile_context>
chip_gen: v7x
topology: tpu7x:2x2x1
jax: 0.10.0
libtpu: 0.0.40
codegen_flags: <defaults>
</compile_context>

<pallas_src>
import math
from functools import partial

import numpy as np
import jax
import jax.numpy as jnp
from jax.experimental import pallas as pl
from jax.experimental.pallas import tpu as pltpu

_VMEM = pl.BlockSpec(memory_space=pltpu.MemorySpace.VMEM)
_HIGH = jax.lax.Precision.HIGHEST
_COUT_PAD = 8          # final conv Cout padded so the output lane dim is W*8


def _round_up(n, m):
    return ((n + m - 1) // m) * m


# ------------------------- MLP kernel (predict_coords) ----------------------

def _mlp_kernel(*refs, acts):
    """Fused dense stack; refs = (x, w0, b0, ..., wL, bL, out)."""
    x_ref = refs[0]
    o_ref = refs[-1]
    layer_refs = refs[1:-1]
    h = x_ref[...]
    for i, act in enumerate(acts):
        w = layer_refs[2 * i][...]
        b = layer_refs[2 * i + 1][...]
        h = jnp.dot(h, w, preferred_element_type=jnp.float32) + b
        if act == "tanh":
            h = jnp.tanh(h)
        elif act == "relu":
            h = jnp.maximum(h, 0.0)
    o_ref[...] = h


def mlp_forward(x, weights, biases, acts, block_rows=512, lane_pad=128):
    """(N, Din) -> (N, Dout). Row-tiled grid; weights broadcast; lane-dense out."""
    N, din = x.shape
    out_dim = weights[-1].shape[1]
    dout = max(out_dim, lane_pad)

    ws = [w.astype(jnp.float32) for w in weights]
    bs = [b.reshape(1, -1).astype(jnp.float32) for b in biases]
    if dout != out_dim:                                    # lane-dense final store
        ws[-1] = jnp.pad(ws[-1], ((0, 0), (0, dout - out_dim)))
        bs[-1] = jnp.pad(bs[-1], ((0, 0), (0, dout - out_dim)))

    tn = min(block_rows, _round_up(N, 8))
    n_pad = _round_up(N, tn)
    xp = x.astype(jnp.float32)
    if n_pad != N:
        xp = jnp.pad(xp, ((0, n_pad - N), (0, 0)))

    args = [xp]
    in_specs = [pl.BlockSpec((tn, din), lambda i: (i, 0))]
    for w, b in zip(ws, bs):
        args += [w, b]
        in_specs += [pl.BlockSpec(w.shape, lambda i: (0, 0)),
                     pl.BlockSpec(b.shape, lambda i: (0, 0))]

    out = pl.pallas_call(
        partial(_mlp_kernel, acts=tuple(acts)),
        out_shape=jax.ShapeDtypeStruct((n_pad, dout), jnp.float32),
        grid=(n_pad // tn,),
        in_specs=in_specs,
        out_specs=pl.BlockSpec((tn, dout), lambda i: (i, 0)),
        compiler_params=pltpu.CompilerParams(dimension_semantics=("parallel",)),
    )(*args)
    return out[:N, :out_dim]


# --------------------- fused encoder-decoder kernel (state) -----------------

def _state_kernel(x_ref, t_ref, wt1_ref, bt1_ref, wt2_ref, bt2_ref,
                  tsc_ref, repb_ref,
                  l1_ref, r1_ref, b1_ref, sd1_ref, sw1_ref,
                  l2_ref, r2_ref, b2_ref, sd2_ref, sw2_ref,
                  l3_ref, r3_ref, b3_ref,
                  l4_ref, r4_ref, b4_ref,
                  l5_ref, r5_ref, b5_ref,
                  l6_ref, r6_ref, b6_ref,
                  o_ref):
    def mm(a, b):
        return jnp.dot(a, b, preferred_element_type=jnp.float32)

    def conv(x, l_ref, r_ref, bias_ref, relu=True):
        # 3x3 SAME conv: sum over the 3 H-taps of (row-shift @ x @ W-band)
        y = mm(mm(l_ref[0], x), r_ref[0])
        y = y + mm(mm(l_ref[1], x), r_ref[1])
        y = y + mm(mm(l_ref[2], x), r_ref[2])
        y = y + bias_ref[...]
        return jnp.maximum(y, 0.0) if relu else y

    def pool_w(y, sd_ref, sw_ref):
        # 2x2 max-pool: pair-max with the row below, then even/odd W-column
        # selection matmuls + max (row compaction folded into the next conv).
        a = jnp.maximum(y, mm(sd_ref[...], y))
        return jnp.maximum(mm(a, sw_ref[0]), mm(a, sw_ref[1]))

    x = x_ref[...]
    # ---- encoder: Conv-ReLU-Pool, Conv-ReLU-Pool, Conv-ReLU ----
    y = conv(x, l1_ref, r1_ref, b1_ref)                 # (B*H,   W  *32)
    y = pool_w(y, sd1_ref, sw1_ref)                     # (B*H,   W/2*32) valid @ even rows
    y = conv(y, l2_ref, r2_ref, b2_ref)                 # (B*H/2, W/2*64)
    y = pool_w(y, sd2_ref, sw2_ref)                     # (B*H/2, W/4*64) valid @ even rows
    y = conv(y, l3_ref, r3_ref, b3_ref)                 # (B*H/4, W/4*128)
    # ---- time encoder (Linear-ReLU-Linear-ReLU) + fuse into first channels ----
    tf = jnp.maximum(t_ref[...] * wt1_ref[...] + bt1_ref[...], 0.0)   # (B, 32)
    tf = jnp.maximum(mm(tf, wt2_ref[...]) + bt2_ref[...], 0.0)        # (B, 64)
    y = y + mm(repb_ref[...], mm(tf, tsc_ref[...]))
    # ---- decoder: Conv-ReLU, [Up+Conv]-ReLU, [Up+Conv] ----
    y = conv(y, l4_ref, r4_ref, b4_ref)                 # (B*H/4, W/4*64)
    y = conv(y, l5_ref, r5_ref, b5_ref)                 # (B*H/2, W/2*32)
    o_ref[...] = conv(y, l6_ref, r6_ref, b6_ref, relu=False)   # (B*H, W*Cpad)


# ----------------- constant operator construction (glue, once) --------------

def _np_shift(n, dh):
    """(n, n): out[i] = in[i + dh - 1], zero outside (SAME zero padding)."""
    m = np.zeros((n, n), np.float32)
    for i in range(n):
        j = i + dh - 1
        if 0 <= j < n:
            m[i, j] = 1.0
    return m


def _np_sel_even_rows(n):
    m = np.zeros((n // 2, n), np.float32)
    m[np.arange(n // 2), 2 * np.arange(n // 2)] = 1.0
    return m


def _np_up1d(n):
    """(2n, n): exact 2x bilinear upsample weights (align_corners=False)."""
    m = np.zeros((2 * n, n), np.float32)
    for i in range(n):
        m[2 * i, i] += 0.75
        m[2 * i, max(i - 1, 0)] += 0.25
        m[2 * i + 1, i] += 0.75
        m[2 * i + 1, min(i + 1, n - 1)] += 0.25
    return m


def _np_bdiag(m, b):
    return np.kron(np.eye(b, dtype=np.float32), m)


def _np_selw(w, c, parity):
    """(w*c, (w//2)*c): pick channel-blocks of even/odd W columns."""
    s = np.zeros((w // 2, w), np.float32)
    s[np.arange(w // 2), 2 * np.arange(w // 2) + parity] = 1.0
    return np.kron(s.T, np.eye(c, dtype=np.float32))


def _np_upw(ws, c):
    """(ws*c, 2*ws*c): lane-axis 2x bilinear upsample (interleave included)."""
    return np.kron(_np_up1d(ws).T, np.eye(c, dtype=np.float32))


def _band_stack(k, w, cout_pad=None):
    """Conv weights (3,3,Cin,Cout) -> (3, w*Cin, w*Cp) banded lane matrices."""
    cin, cout = k.shape[2], k.shape[3]
    cp = cout if cout_pad is None else cout_pad
    kj = k.astype(jnp.float32)
    if cp != cout:
        kj = jnp.pad(kj, ((0, 0), (0, 0), (0, 0), (0, cp - cout)))
    a = np.stack([_np_shift(w, dw).T for dw in range(3)])      # A[dw, w_in, w_out]
    m = jnp.einsum('dvw,hdio->hviwo', jnp.asarray(a), kj, precision=_HIGH)
    return m.reshape(3, w * cin, w * cp)


def _bias_flat(b, w, cout_pad=None):
    b = b.astype(jnp.float32)
    if cout_pad is not None and cout_pad != b.shape[0]:
        b = jnp.pad(b, (0, cout_pad - b.shape[0]))
    return jnp.tile(b, w).reshape(1, -1)


def pack_state_operands(params, B, H, W):
    """Precompute all constant matmul operands for the fused state kernel."""
    assert H % 4 == 0 and W % 4 == 0, "grid H and W must be divisible by 4"
    H2, H3, W2, W3 = H // 2, H // 4, W // 2, W // 4
    enc, dec, tenc = params["enc"], params["dec"], params["time"]
    c1 = enc[0]["w"].shape[3]
    c2 = enc[1]["w"].shape[3]
    c3 = enc[2]["w"].shape[3]
    d1 = dec[0]["w"].shape[3]
    d2 = dec[1]["w"].shape[3]
    out_dim = dec[2]["w"].shape[3]
    cpad = max(_COUT_PAD, out_dim)
    f = jnp.asarray

    # left (row) operators: H conv taps, folded pool-row-selection / upsample-H
    l1 = f(np.stack([_np_bdiag(_np_shift(H, d), B) for d in range(3)]))
    l2 = f(np.stack([_np_bdiag(_np_shift(H2, d) @ _np_sel_even_rows(H), B) for d in range(3)]))
    l3 = f(np.stack([_np_bdiag(_np_shift(H3, d) @ _np_sel_even_rows(H2), B) for d in range(3)]))
    l4 = f(np.stack([_np_bdiag(_np_shift(H3, d), B) for d in range(3)]))
    l5 = f(np.stack([_np_bdiag(_np_shift(H2, d) @ _np_up1d(H3), B) for d in range(3)]))
    l6 = f(np.stack([_np_bdiag(_np_shift(H, d) @ _np_up1d(H2), B) for d in range(3)]))
    sd1 = f(_np_bdiag(_np_shift(H, 2), B))      # row h -> row h+1
    sd2 = f(_np_bdiag(_np_shift(H2, 2), B))
    sw1 = f(np.stack([_np_selw(W, c1, 0), _np_selw(W, c1, 1)]))
    sw2 = f(np.stack([_np_selw(W2, c2, 0), _np_selw(W2, c2, 1)]))

    # right (lane) operators: conv bands, decoder upsample-W folded in
    r1 = _band_stack(enc[0]["w"], W)
    r2 = _band_stack(enc[1]["w"], W2)
    r3 = _band_stack(enc[2]["w"], W3)
    r4 = _band_stack(dec[0]["w"], W3)
    r5 = jnp.einsum('kn,dnm->dkm', f(_np_upw(W3, d1)),
                    _band_stack(dec[1]["w"], W2), precision=_HIGH)
    r6 = jnp.einsum('kn,dnm->dkm', f(_np_upw(W2, d2)),
                    _band_stack(dec[2]["w"], W, cout_pad=cpad), precision=_HIGH)

    b1 = _bias_flat(enc[0]["b"], W)
    b2 = _bias_flat(enc[1]["b"], W2)
    b3 = _bias_flat(enc[2]["b"], W3)
    b4 = _bias_flat(dec[0]["b"], W3)
    b5 = _bias_flat(dec[1]["b"], W2)
    b6 = _bias_flat(dec[2]["b"], W, cout_pad=cpad)

    # time encoder weights + scatter (first n_add channels) + per-row replicate
    wt1 = tenc[0]["w"].astype(jnp.float32).reshape(1, -1)
    bt1 = tenc[0]["b"].astype(jnp.float32).reshape(1, -1)
    wt2 = tenc[1]["w"].astype(jnp.float32)
    bt2 = tenc[1]["b"].astype(jnp.float32).reshape(1, -1)
    tdim = wt2.shape[1]
    n_add = min(tdim, c3)
    e = np.zeros((tdim, c3), np.float32)
    e[np.arange(n_add), np.arange(n_add)] = 1.0
    tsc = f(np.tile(e, (1, W3)))                                 # (tdim, W3*c3)
    repb = f(np.kron(np.eye(B, dtype=np.float32), np.ones((H3, 1), np.float32)))

    ops = (wt1, bt1, wt2, bt2, tsc, repb,
           l1, r1, b1, sd1, sw1,
           l2, r2, b2, sd2, sw2,
           l3, r3, b3,
           l4, r4, b4,
           l5, r5, b5,
           l6, r6, b6)
    return ops, cpad, out_dim


# --------------------------- parameter construction -------------------------

def init_fastscape_pinn_params(key, input_dim=3, output_dim=1, hidden_dim=32,
                               num_layers=3, grid_height=16, grid_width=16,
                               num_param_channels=3):
    keys = iter(jax.random.split(key, 64))

    def xavier(k, din, dout, gain):
        lim = gain * math.sqrt(6.0 / (din + dout))
        return jax.random.uniform(k, (din, dout), jnp.float32, -lim, lim)

    def linear_default(k, din, dout):
        bound = 1.0 / math.sqrt(din)
        kw, kb = jax.random.split(k)
        return (jax.random.uniform(kw, (din, dout), jnp.float32, -bound, bound),
                jax.random.uniform(kb, (dout,), jnp.float32, -bound, bound))

    def conv_default(k, cin, cout):
        bound = 1.0 / math.sqrt(cin * 9)
        kw, kb = jax.random.split(k)
        return (jax.random.uniform(kw, (3, 3, cin, cout), jnp.float32, -bound, bound),
                jax.random.uniform(kb, (cout,), jnp.float32, -bound, bound))

    tanh_gain = 5.0 / 3.0  # nn.init.calculate_gain('tanh')
    mlp_dims = [input_dim] + [hidden_dim] * num_layers + [output_dim]
    mlp = [{"w": xavier(next(keys), din, dout, tanh_gain),
            "b": jnp.zeros((dout,), jnp.float32)}
           for din, dout in zip(mlp_dims[:-1], mlp_dims[1:])]

    enc_ch = [1 + num_param_channels, 32, 64, 128]
    enc = []
    for cin, cout in zip(enc_ch[:-1], enc_ch[1:]):
        w, b = conv_default(next(keys), cin, cout)
        enc.append({"w": w, "b": b})

    dec_ch = [128, 64, 32, output_dim]
    dec = []
    for cin, cout in zip(dec_ch[:-1], dec_ch[1:]):
        w, b = conv_default(next(keys), cin, cout)
        dec.append({"w": w, "b": b})

    time_enc = []
    for din, dout in [(1, 32), (32, 64)]:
        w, b = linear_default(next(keys), din, dout)
        time_enc.append({"w": w, "b": b})

    return {"mlp": mlp, "enc": enc, "dec": dec, "time": time_enc,
            "config": {"grid_height": grid_height, "grid_width": grid_width,
                       "output_dim": output_dim,
                       "num_param_channels": num_param_channels}}


# --------------------------------- forward ----------------------------------

def predict_coords(params, coords):
    model_input = jnp.concatenate(
        [coords["x"], coords["y"], coords["t"]], axis=-1).astype(jnp.float32)
    ws = [l["w"] for l in params["mlp"]]
    bs = [l["b"] for l in params["mlp"]]
    acts = ("tanh",) * (len(ws) - 1) + ("none",)
    return mlp_forward(model_input, ws, bs, acts)


def _param_grid(p, B, H, W):
    """Mirror of _ensure_param_grid_shape, producing NHWC (B, H, W, 1)."""
    if p is None:
        return jnp.zeros((B, H, W, 1), jnp.float32)
    p = jnp.asarray(p, jnp.float32)
    if p.ndim == 0:
        return jnp.full((B, H, W, 1), p)
    if p.ndim == 1 and p.shape[0] == B:
        return jnp.broadcast_to(p.reshape(B, 1, 1, 1), (B, H, W, 1))
    if p.ndim == 2 and p.shape == (H, W):
        return jnp.broadcast_to(p.reshape(1, H, W, 1), (B, H, W, 1))
    if p.ndim == 3 and p.shape == (B, H, W):
        return p[..., None]
    if p.ndim == 4 and p.shape == (B, 1, H, W):
        return jnp.transpose(p, (0, 2, 3, 1))
    raise ValueError(f"unsupported parameter shape {p.shape}")


def predict_state(params, initial_state, phys_params, t_target):
    cfg = params["config"]
    initial_state = jnp.asarray(initial_state, jnp.float32)
    if initial_state.ndim == 3:
        x0 = initial_state[..., None]                    # (B,H,W)   -> NHWC
    else:
        x0 = jnp.transpose(initial_state, (0, 2, 3, 1))  # (B,1,H,W) -> NHWC
    B, H, W, _ = x0.shape

    grids = [_param_grid(phys_params.get(k), B, H, W)
             for k in ["K", "D", "U"][:cfg["num_param_channels"]]]
    enc_in = jnp.concatenate([x0] + grids, axis=-1)      # (B, H, W, 1+num_params)
    c0 = enc_in.shape[-1]
    x2 = enc_in.reshape(B * H, W * c0)                   # free reshape: W*C on lanes

    t = jnp.asarray(t_target, jnp.float32)
    if t.size == 1:
        t_tensor = jnp.full((B, 1), t.reshape(()))
    else:
        t_tensor = t.reshape(B, 1)

    ops, cpad, out_dim = pack_state_operands(params, B, H, W)

    out2 = pl.pallas_call(
        _state_kernel,
        out_shape=jax.ShapeDtypeStruct((B * H, W * cpad), jnp.float32),
        in_specs=[_VMEM] * (2 + len(ops)),
        out_specs=_VMEM,
        compiler_params=pltpu.CompilerParams(vmem_limit_bytes=32 * 1024 * 1024),
    )(x2, t_tensor, *ops)

    pred = out2.reshape(B, H, W, cpad)[..., :out_dim]    # NHWC, drop lane padding
    return jnp.transpose(pred, (0, 3, 1, 2))             # NCHW like torch


def fastscape_pinn_forward(params, x, mode="predict_coords"):
    if mode == "predict_coords":
        return predict_coords(params, x)
    if mode == "predict_state":
        if isinstance(x, (tuple, list)):
            initial_state, phys_params, t_target = x
        else:
            initial_state, phys_params, t_target = (
                x["initial_state"], x["params"], x["t_target"])
        return predict_state(params, initial_state, phys_params, t_target)
    raise ValueError(f"unknown forward mode: {mode}")


# ------------------------ numpy self-test of operators ----------------------

def _self_test_operator_algebra():
    """Check the matmul reformulation reproduces conv / pool / upsample exactly."""
    rng = np.random.RandomState(0)
    B, H, W, Cin, Cout = 2, 8, 8, 3, 5
    x = rng.randn(B, H, W, Cin).astype(np.float32)
    k = rng.randn(3, 3, Cin, Cout).astype(np.float32)
    b = rng.randn(Cout).astype(np.float32)

    # 3x3 SAME conv reference (zero padding)
    xp = np.pad(x, ((0, 0), (1, 1), (1, 1), (0, 0)))
    ref = np.zeros((B, H, W, Cout), np.float32)
    for dh in range(3):
        for dw in range(3):
            ref += np.einsum('bhwi,io->bhwo', xp[:, dh:dh + H, dw:dw + W, :], k[dh, dw])
    ref += b
    x2 = x.reshape(B * H, W * Cin)
    bands = np.asarray(_band_stack(jnp.asarray(k), W))
    ls = [_np_bdiag(_np_shift(H, d), B) for d in range(3)]
    got = sum(ls[d] @ x2 @ bands[d] for d in range(3)) + np.asarray(_bias_flat(jnp.asarray(b), W))
    assert np.allclose(got.reshape(B, H, W, Cout), ref, atol=1e-3, rtol=1e-3), "conv operator mismatch"

    # 2x2 max pool reference
    pooled_ref = ref.reshape(B, H // 2, 2, W // 2, 2, Cout).max(axis=(2, 4))
    y2 = ref.reshape(B * H, W * Cout)
    a = np.maximum(y2, _np_bdiag(_np_shift(H, 2), B) @ y2)
    c = np.maximum(a @ _np_selw(W, Cout, 0), a @ _np_selw(W, Cout, 1))
    got_pool = (_np_bdiag(_np_sel_even_rows(H), B) @ c).reshape(B, H // 2, W // 2, Cout)
    assert np.allclose(got_pool, pooled_ref, atol=1e-4), "pool operator mismatch"

    # 2x bilinear upsample reference (align_corners=False, separable)
    hs, ws = H // 2, W // 2
    mid = np.zeros((B, 2 * hs, ws, Cout), np.float32)
    for o in range(2 * hs):
        i = o // 2
        j = max(i - 1, 0) if o % 2 == 0 else min(i + 1, hs - 1)
        mid[:, o] = 0.75 * pooled_ref[:, i] + 0.25 * pooled_ref[:, j]
    up_ref = np.zeros((B, 2 * hs, 2 * ws, Cout), np.float32)
    for o in range(2 * ws):
        i = o // 2
        j = max(i - 1, 0) if o % 2 == 0 else min(i + 1, ws - 1)
        up_ref[:, :, o] = 0.75 * mid[:, :, i] + 0.25 * mid[:, :, j]
    got_up = (_np_bdiag(_np_up1d(hs), B) @ pooled_ref.reshape(B * hs, ws * Cout)
              @ _np_upw(ws, Cout)).reshape(B, 2 * hs, 2 * ws, Cout)
    assert np.allclose(got_up, up_ref, atol=1e-4), "upsample operator mismatch"


# ----------------------------------- demo -----------------------------------

if __name__ == "__main__":
    _self_test_operator_algebra()

    key = jax.random.PRNGKey(0)
    kp, k1, k2, k3, k4 = jax.random.split(key, 5)
    B, H, W = 2, 16, 16

    params = init_fastscape_pinn_params(
        kp, input_dim=3, output_dim=1, hidden_dim=32, num_layers=3,
        grid_height=H, grid_width=W, num_param_channels=3)

    # mode='predict_state' (CNN encoder-decoder path, one fused Pallas kernel)
    initial_state = jax.random.normal(k1, (B, 1, H, W), jnp.float32)   # NCHW like torch
    phys_params = {"K": 2e-5, "D": 0.01,
                   "U": jax.random.uniform(k2, (B,), jnp.float32)}
    t_target = jnp.full((B,), 100.0, jnp.float32)
    pred_state = fastscape_pinn_forward(
        params,
        {"initial_state": initial_state, "params": phys_params, "t_target": t_target},
        mode="predict_state")
    assert pred_state.shape == (B, 1, H, W)

    # mode='predict_coords' (row-tiled MLP kernel)
    N = 64
    coords = {"x": jax.random.uniform(k3, (N, 1), jnp.float32),
              "y": jax.random.uniform(k4, (N, 1), jnp.float32),
              "t": jnp.full((N, 1), 0.5, jnp.float32)}
    pred_coords = fastscape_pinn_forward(params, coords, mode="predict_coords")
    assert pred_coords.shape == (N, 1)

    jax.block_until_ready((pred_state, pred_coords))
    print("KERNEL_OK")
</pallas_src>

<mosaic_0001>
module attributes {stable_mosaic.version = 11 : i64} {
  func.func @_state_kernel(%arg0: memref<32x64xf32, #tpu.memory_space<vmem>>, %arg1: memref<2x1xf32, #tpu.memory_space<vmem>>, %arg2: memref<1x32xf32, #tpu.memory_space<vmem>>, %arg3: memref<1x32xf32, #tpu.memory_space<vmem>>, %arg4: memref<32x64xf32, #tpu.memory_space<vmem>>, %arg5: memref<1x64xf32, #tpu.memory_space<vmem>>, %arg6: memref<64x512xf32, #tpu.memory_space<vmem>>, %arg7: memref<8x2xf32, #tpu.memory_space<vmem>>, %arg8: memref<3x32x32xf32, #tpu.memory_space<vmem>>, %arg9: memref<3x64x512xf32, #tpu.memory_space<vmem>>, %arg10: memref<1x512xf32, #tpu.memory_space<vmem>>, %arg11: memref<32x32xf32, #tpu.memory_space<vmem>>, %arg12: memref<2x512x256xf32, #tpu.memory_space<vmem>>, %arg13: memref<3x16x32xf32, #tpu.memory_space<vmem>>, %arg14: memref<3x256x512xf32, #tpu.memory_space<vmem>>, %arg15: memref<1x512xf32, #tpu.memory_space<vmem>>, %arg16: memref<16x16xf32, #tpu.memory_space<vmem>>, %arg17: memref<2x512x256xf32, #tpu.memory_space<vmem>>, %arg18: memref<3x8x16xf32, #tpu.memory_space<vmem>>, %arg19: memref<3x256x512xf32, #tpu.memory_space<vmem>>, %arg20: memref<1x512xf32, #tpu.memory_space<vmem>>, %arg21: memref<3x8x8xf32, #tpu.memory_space<vmem>>, %arg22: memref<3x512x256xf32, #tpu.memory_space<vmem>>, %arg23: memref<1x256xf32, #tpu.memory_space<vmem>>, %arg24: memref<3x16x8xf32, #tpu.memory_space<vmem>>, %arg25: memref<3x256x256xf32, #tpu.memory_space<vmem>>, %arg26: memref<1x256xf32, #tpu.memory_space<vmem>>, %arg27: memref<3x32x16xf32, #tpu.memory_space<vmem>>, %arg28: memref<3x256x128xf32, #tpu.memory_space<vmem>>, %arg29: memref<1x128xf32, #tpu.memory_space<vmem>>, %arg30: memref<32x128xf32, #tpu.memory_space<vmem>>) attributes {dimension_semantics = [], scalar_prefetch = 0 : i64, scratch_operands = 0 : i64, tpu.core_type = #tpu.core_type<tc>} {
    %c0 = arith.constant 0 : index
    %c0_0 = arith.constant 0 : index
    %0 = vector.load %arg0[%c0, %c0_0] : memref<32x64xf32, #tpu.memory_space<vmem>>, vector<32x64xf32>
    %c0_1 = arith.constant 0 : index
    %c0_2 = arith.constant 0 : index
    %c0_3 = arith.constant 0 : index
    %1 = vector.load %arg8[%c0_1, %c0_2, %c0_3] : memref<3x32x32xf32, #tpu.memory_space<vmem>>, vector<1x32x32xf32>
    %2 = vector.shape_cast %1 : vector<1x32x32xf32> to vector<32x32xf32>
    %cst = arith.constant dense<0.000000e+00> : vector<32x64xf32>
    %3 = tpu.matmul %2, %0, %cst {dimension_numbers = #tpu.dot_dimension_numbers<[1], [0], [0], [1], [0, 0, 1, 1], [], []>} : vector<32x32xf32>, vector<32x64xf32>, vector<32x64xf32> -> vector<32x64xf32>
    %c0_4 = arith.constant 0 : index
    %c0_5 = arith.constant 0 : index
    %c0_6 = arith.constant 0 : index
    %4 = vector.load %arg9[%c0_4, %c0_5, %c0_6] : memref<3x64x512xf32, #tpu.memory_space<vmem>>, vector<1x64x512xf32>
    %5 = vector.shape_cast %4 : vector<1x64x512xf32> to vector<64x512xf32>
    %cst_7 = arith.constant dense<0.000000e+00> : vector<32x512xf32>
    %6 = tpu.matmul %3, %5, %cst_7 {dimension_numbers = #tpu.dot_dimension_numbers<[1], [0], [0], [1], [0, 0, 1, 1], [], []>} : vector<32x64xf32>, vector<64x512xf32>, vector<32x512xf32> -> vector<32x512xf32>
    %c1 = arith.constant 1 : index
    %c0_8 = arith.constant 0 : index
    %c0_9 = arith.constant 0 : index
    %7 = vector.load %arg8[%c1, %c0_8, %c0_9] : memref<3x32x32xf32, #tpu.memory_space<vmem>>, vector<1x32x32xf32>
    %8 = vector.shape_cast %7 : vector<1x32x32xf32> to vector<32x32xf32>
    %cst_10 = arith.constant dense<0.000000e+00> : vector<32x64xf32>
    %9 = tpu.matmul %8, %0, %cst_10 {dimension_numbers = #tpu.dot_dimension_numbers<[1], [0], [0], [1], [0, 0, 1, 1], [], []>} : vector<32x32xf32>, vector<32x64xf32>, vector<32x64xf32> -> vector<32x64xf32>
    %c1_11 = arith.constant 1 : index
    %c0_12 = arith.constant 0 : index
    %c0_13 = arith.constant 0 : index
    %10 = vector.load %arg9[%c1_11, %c0_12, %c0_13] : memref<3x64x512xf32, #tpu.memory_space<vmem>>, vector<1x64x512xf32>
    %11 = vector.shape_cast %10 : vector<1x64x512xf32> to vector<64x512xf32>
    %cst_14 = arith.constant dense<0.000000e+00> : vector<32x512xf32>
    %12 = tpu.matmul %9, %11, %cst_14 {dimension_numbers = #tpu.dot_dimension_numbers<[1], [0], [0], [1], [0, 0, 1, 1], [], []>} : vector<32x64xf32>, vector<64x512xf32>, vector<32x512xf32> -> vector<32x512xf32>
    %13 = arith.addf %6, %12 : vector<32x512xf32>
    %c2 = arith.constant 2 : index
    %c0_15 = arith.constant 0 : index
    %c0_16 = arith.constant 0 : index
    %14 = vector.load %arg8[%c2, %c0_15, %c0_16] : memref<3x32x32xf32, #tpu.memory_space<vmem>>, vector<1x32x32xf32>
    %15 = vector.shape_cast %14 : vector<1x32x32xf32> to vector<32x32xf32>
    %cst_17 = arith.constant dense<0.000000e+00> : vector<32x64xf32>
    %16 = tpu.matmul %15, %0, %cst_17 {dimension_numbers = #tpu.dot_dimension_numbers<[1], [0], [0], [1], [0, 0, 1, 1], [], []>} : vector<32x32xf32>, vector<32x64xf32>, vector<32x64xf32> -> vector<32x64xf32>
    %c2_18 = arith.constant 2 : index
    %c0_19 = arith.constant 0 : index
    %c0_20 = arith.constant 0 : index
    %17 = vector.load %arg9[%c2_18, %c0_19, %c0_20] : memref<3x64x512xf32, #tpu.memory_space<vmem>>, vector<1x64x512xf32>
    %18 = vector.shape_cast %17 : vector<1x64x512xf32> to vector<64x512xf32>
    %cst_21 = arith.constant dense<0.000000e+00> : vector<32x512xf32>
    %19 = tpu.matmul %16, %18, %cst_21 {dimension_numbers = #tpu.dot_dimension_numbers<[1], [0], [0], [1], [0, 0, 1, 1], [], []>} : vector<32x64xf32>, vector<64x512xf32>, vector<32x512xf32> -> vector<32x512xf32>
    %20 = arith.addf %13, %19 : vector<32x512xf32>
    %c0_22 = arith.constant 0 : index
    %c0_23 = arith.constant 0 : index
    %21 = vector.load %arg10[%c0_22, %c0_23] : memref<1x512xf32, #tpu.memory_space<vmem>>, vector<1x512xf32>
    %22 = vector.broadcast %21 : vector<1x512xf32> to vector<32x512xf32>
    %23 = arith.addf %20, %22 : vector<32x512xf32>
    %cst_24 = arith.constant 0.000000e+00 : f32
    %24 = vector.broadcast %cst_24 : f32 to vector<32x512xf32>
    %25 = arith.maximumf %23, %24 : vector<32x512xf32>
    %c0_25 = arith.constant 0 : index
    %c0_26 = arith.constant 0 : index
    %26 = vector.load %arg11[%c0_25, %c0_26] : memref<32x32xf32, #tpu.memory_space<vmem>>, vector<32x32xf32>
    %cst_27 = arith.constant dense<0.000000e+00> : vector<32x512xf32>
    %27 = tpu.matmul %26, %25, %cst_27 {dimension_numbers = #tpu.dot_dimension_numbers<[1], [0], [0], [1], [0, 0, 1, 1], [], []>} : vector<32x32xf32>, vector<32x512xf32>, vector<32x512xf32> -> vector<32x512xf32>
    %28 = arith.maximumf %25, %27 : vector<32x512xf32>
    %c0_28 = arith.constant 0 : index
    %c0_29 = arith.constant 0 : index
    %c0_30 = arith.constant 0 : index
    %29 = vector.load %arg12[%c0_28, %c0_29, %c0_30] : memref<2x512x256xf32, #tpu.memory_space<vmem>>, vector<1x512x256xf32>
    %30 = vector.shape_cast %29 : vector<1x512x256xf32> to vector<512x256xf32>
    %cst_31 = arith.constant dense<0.000000e+00> : vector<32x256xf32>
    %31 = tpu.matmul %28, %30, %cst_31 {dimension_numbers = #tpu.dot_dimension_numbers<[1], [0], [0], [1], [0, 0, 1, 1], [], []>} : vector<32x512xf32>, vector<512x256xf32>, vector<32x256xf32> -> vector<32x256xf32>
    %c1_32 = arith.constant 1 : index
    %c0_33 = arith.constant 0 : index
    %c0_34 = arith.constant 0 : index
    %32 = vector.load %arg12[%c1_32, %c0_33, %c0_34] : memref<2x512x256xf32, #tpu.memory_space<vmem>>, vector<1x512x256xf32>
    %33 = vector.shape_cast %32 : vector<1x512x256xf32> to vector<512x256xf32>
    %cst_35 = arith.constant dense<0.000000e+00> : vector<32x256xf32>
    %34 = tpu.matmul %28, %33, %cst_35 {dimension_numbers = #tpu.dot_dimension_numbers<[1], [0], [0], [1], [0, 0, 1, 1], [], []>} : vector<32x512xf32>, vector<512x256xf32>, vector<32x256xf32> -> vector<32x256xf32>
    %35 = arith.maximumf %31, %34 : vector<32x256xf32>
    %c0_36 = arith.constant 0 : index
    %c0_37 = arith.constant 0 : index
    %c0_38 = arith.constant 0 : index
    %36 = vector.load %arg13[%c0_36, %c0_37, %c0_38] : memref<3x16x32xf32, #tpu.memory_space<vmem>>, vector<1x16x32xf32>
    %37 = vector.shape_cast %36 : vector<1x16x32xf32> to vector<16x32xf32>
    %cst_39 = arith.constant dense<0.000000e+00> : vector<16x256xf32>
    %38 = tpu.matmul %37, %35, %cst_39 {dimension_numbers = #tpu.dot_dimension_numbers<[1], [0], [0], [1], [0, 0, 1, 1], [], []>} : vector<16x32xf32>, vector<32x256xf32>, vector<16x256xf32> -> vector<16x256xf32>
    %c0_40 = arith.constant 0 : index
    %c0_41 = arith.constant 0 : index
    %c0_42 = arith.constant 0 : index
    %39 = vector.load %arg14[%c0_40, %c0_41, %c0_42] : memref<3x256x512xf32, #tpu.memory_space<vmem>>, vector<1x256x512xf32>
    %40 = vector.shape_cast %39 : vector<1x256x512xf32> to vector<256x512xf32>
    %cst_43 = arith.constant dense<0.000000e+00> : vector<16x512xf32>
    %41 = tpu.matmul %38, %40, %cst_43 {dimension_numbers = #tpu.dot_dimension_numbers<[1], [0], [0], [1], [0, 0, 1, 1], [], []>} : vector<16x256xf32>, vector<256x512xf32>, vector<16x512xf32> -> vector<16x512xf32>
    %c1_44 = arith.constant 1 : index
    %c0_45 = arith.constant 0 : index
    %c0_46 = arith.constant 0 : index
    %42 = vector.load %arg13[%c1_44, %c0_45, %c0_46] : memref<3x16x32xf32, #tpu.memory_space<vmem>>, vector<1x16x32xf32>
    %43 = vector.shape_cast %42 : vector<1x16x32xf32> to vector<16x32xf32>
    %cst_47 = arith.constant dense<0.000000e+00> : vector<16x256xf32>
    %44 = tpu.matmul %43, %35, %cst_47 {dimension_numbers = #tpu.dot_dimension_numbers<[1], [0], [0], [1], [0, 0, 1, 1], [], []>} : vector<16x32xf32>, vector<32x256xf32>, vector<16x256xf32> -> vector<16x256xf32>
    %c1_48 = arith.constant 1 : index
    %c0_49 = arith.constant 0 : index
    %c0_50 = arith.constant 0 : index
    %45 = vector.load %arg14[%c1_48, %c0_49, %c0_50] : memref<3x256x512xf32, #tpu.memory_space<vmem>>, vector<1x256x512xf32>
    %46 = vector.shape_cast %45 : vector<1x256x512xf32> to vector<256x512xf32>
    %cst_51 = arith.constant dense<0.000000e+00> : vector<16x512xf32>
    %47 = tpu.matmul %44, %46, %cst_51 {dimension_numbers = #tpu.dot_dimension_numbers<[1], [0], [0], [1], [0, 0, 1, 1], [], []>} : vector<16x256xf32>, vector<256x512xf32>, vector<16x512xf32> -> vector<16x512xf32>
    %48 = arith.addf %41, %47 : vector<16x512xf32>
    %c2_52 = arith.constant 2 : index
    %c0_53 = arith.constant 0 : index
    %c0_54 = arith.constant 0 : index
    %49 = vector.load %arg13[%c2_52, %c0_53, %c0_54] : memref<3x16x32xf32, #tpu.memory_space<vmem>>, vector<1x16x32xf32>
    %50 = vector.shape_cast %49 : vector<1x16x32xf32> to vector<16x32xf32>
    %cst_55 = arith.constant dense<0.000000e+00> : vector<16x256xf32>
    %51 = tpu.matmul %50, %35, %cst_55 {dimension_numbers = #tpu.dot_dimension_numbers<[1], [0], [0], [1], [0, 0, 1, 1], [], []>} : vector<16x32xf32>, vector<32x256xf32>, vector<16x256xf32> -> vector<16x256xf32>
    %c2_56 = arith.constant 2 : index
    %c0_57 = arith.constant 0 : index
    %c0_58 = arith.constant 0 : index
    %52 = vector.load %arg14[%c2_56, %c0_57, %c0_58] : memref<3x256x512xf32, #tpu.memory_space<vmem>>, vector<1x256x512xf32>
    %53 = vector.shape_cast %52 : vector<1x256x512xf32> to vector<256x512xf32>
    %cst_59 = arith.constant dense<0.000000e+00> : vector<16x512xf32>
    %54 = tpu.matmul %51, %53, %cst_59 {dimension_numbers = #tpu.dot_dimension_numbers<[1], [0], [0], [1], [0, 0, 1, 1], [], []>} : vector<16x256xf32>, vector<256x512xf32>, vector<16x512xf32> -> vector<16x512xf32>
    %55 = arith.addf %48, %54 : vector<16x512xf32>
    %c0_60 = arith.constant 0 : index
    %c0_61 = arith.constant 0 : index
    %56 = vector.load %arg15[%c0_60, %c0_61] : memref<1x512xf32, #tpu.memory_space<vmem>>, vector<1x512xf32>
    %57 = vector.broadcast %56 : vector<1x512xf32> to vector<16x512xf32>
    %58 = arith.addf %55, %57 : vector<16x512xf32>
    %cst_62 = arith.constant 0.000000e+00 : f32
    %59 = vector.broadcast %cst_62 : f32 to vector<16x512xf32>
    %60 = arith.maximumf %58, %59 : vector<16x512xf32>
    %c0_63 = arith.constant 0 : index
    %c0_64 = arith.constant 0 : index
    %61 = vector.load %arg16[%c0_63, %c0_64] : memref<16x16xf32, #tpu.memory_space<vmem>>, vector<16x16xf32>
    %cst_65 = arith.constant dense<0.000000e+00> : vector<16x512xf32>
    %62 = tpu.matmul %61, %60, %cst_65 {dimension_numbers = #tpu.dot_dimension_numbers<[1], [0], [0], [1], [0, 0, 1, 1], [], []>} : vector<16x16xf32>, vector<16x512xf32>, vector<16x512xf32> -> vector<16x512xf32>
    %63 = arith.maximumf %60, %62 : vector<16x512xf32>
    %c0_66 = arith.constant 0 : index
    %c0_67 = arith.constant 0 : index
    %c0_68 = arith.constant 0 : index
    %64 = vector.load %arg17[%c0_66, %c0_67, %c0_68] : memref<2x512x256xf32, #tpu.memory_space<vmem>>, vector<1x512x256xf32>
    %65 = vector.shape_cast %64 : vector<1x512x256xf32> to vector<512x256xf32>
    %cst_69 = arith.constant dense<0.000000e+00> : vector<16x256xf32>
    %66 = tpu.matmul %63, %65, %cst_69 {dimension_numbers = #tpu.dot_dimension_numbers<[1], [0], [0], [1], [0, 0, 1, 1], [], []>} : vector<16x512xf32>, vector<512x256xf32>, vector<16x256xf32> -> vector<16x256xf32>
    %c1_70 = arith.constant 1 : index
    %c0_71 = arith.constant 0 : index
    %c0_72 = arith.constant 0 : index
    %67 = vector.load %arg17[%c1_70, %c0_71, %c0_72] : memref<2x512x256xf32, #tpu.memory_space<vmem>>, vector<1x512x256xf32>
    %68 = vector.shape_cast %67 : vector<1x512x256xf32> to vector<512x256xf32>
    %cst_73 = arith.constant dense<0.000000e+00> : vector<16x256xf32>
    %69 = tpu.matmul %63, %68, %cst_73 {dimension_numbers = #tpu.dot_dimension_numbers<[1], [0], [0], [1], [0, 0, 1, 1], [], []>} : vector<16x512xf32>, vector<512x256xf32>, vector<16x256xf32> -> vector<16x256xf32>
    %70 = arith.maximumf %66, %69 : vector<16x256xf32>
    %c0_74 = arith.constant 0 : index
    %c0_75 = arith.constant 0 : index
    %c0_76 = arith.constant 0 : index
    %71 = vector.load %arg18[%c0_74, %c0_75, %c0_76] : memref<3x8x16xf32, #tpu.memory_space<vmem>>, vector<1x8x16xf32>
    %72 = vector.shape_cast %71 : vector<1x8x16xf32> to vector<8x16xf32>
    %cst_77 = arith.constant dense<0.000000e+00> : vector<8x256xf32>
    %73 = tpu.matmul %72, %70, %cst_77 {dimension_numbers = #tpu.dot_dimension_numbers<[1], [0], [0], [1], [0, 0, 1, 1], [], []>} : vector<8x16xf32>, vector<16x256xf32>, vector<8x256xf32> -> vector<8x256xf32>
    %c0_78 = arith.constant 0 : index
    %c0_79 = arith.constant 0 : index
    %c0_80 = arith.constant 0 : index
    %74 = vector.load %arg19[%c0_78, %c0_79, %c0_80] : memref<3x256x512xf32, #tpu.memory_space<vmem>>, vector<1x256x512xf32>
    %75 = vector.shape_cast %74 : vector<1x256x512xf32> to vector<256x512xf32>
    %cst_81 = arith.constant dense<0.000000e+00> : vector<8x512xf32>
    %76 = tpu.matmul %73, %75, %cst_81 {dimension_numbers = #tpu.dot_dimension_numbers<[1], [0], [0], [1], [0, 0, 1, 1], [], []>} : vector<8x256xf32>, vector<256x512xf32>, vector<8x512xf32> -> vector<8x512xf32>
    %c1_82 = arith.constant 1 : index
    %c0_83 = arith.constant 0 : index
    %c0_84 = arith.constant 0 : index
    %77 = vector.load %arg18[%c1_82, %c0_83, %c0_84] : memref<3x8x16xf32, #tpu.memory_space<vmem>>, vector<1x8x16xf32>
    %78 = vector.shape_cast %77 : vector<1x8x16xf32> to vector<8x16xf32>
    %cst_85 = arith.constant dense<0.000000e+00> : vector<8x256xf32>
    %79 = tpu.matmul %78, %70, %cst_85 {dimension_numbers = #tpu.dot_dimension_numbers<[1], [0], [0], [1], [0, 0, 1, 1], [], []>} : vector<8x16xf32>, vector<16x256xf32>, vector<8x256xf32> -> vector<8x256xf32>
    %c1_86 = arith.constant 1 : index
    %c0_87 = arith.constant 0 : index
    %c0_88 = arith.constant 0 : index
    %80 = vector.load %arg19[%c1_86, %c0_87, %c0_88] : memref<3x256x512xf32, #tpu.memory_space<vmem>>, vector<1x256x512xf32>
    %81 = vector.shape_cast %80 : vector<1x256x512xf32> to vector<256x512xf32>
    %cst_89 = arith.constant dense<0.000000e+00> : vector<8x512xf32>
    %82 = tpu.matmul %79, %81, %cst_89 {dimension_numbers = #tpu.dot_dimension_numbers<[1], [0], [0], [1], [0, 0, 1, 1], [], []>} : vector<8x256xf32>, vector<256x512xf32>, vector<8x512xf32> -> vector<8x512xf32>
    %83 = arith.addf %76, %82 : vector<8x512xf32>
    %c2_90 = arith.constant 2 : index
    %c0_91 = arith.constant 0 : index
    %c0_92 = arith.constant 0 : index
    %84 = vector.load %arg18[%c2_90, %c0_91, %c0_92] : memref<3x8x16xf32, #tpu.memory_space<vmem>>, vector<1x8x16xf32>
    %85 = vector.shape_cast %84 : vector<1x8x16xf32> to vector<8x16xf32>
    %cst_93 = arith.constant dense<0.000000e+00> : vector<8x256xf32>
    %86 = tpu.matmul %85, %70, %cst_93 {dimension_numbers = #tpu.dot_dimension_numbers<[1], [0], [0], [1], [0, 0, 1, 1], [], []>} : vector<8x16xf32>, vector<16x256xf32>, vector<8x256xf32> -> vector<8x256xf32>
    %c2_94 = arith.constant 2 : index
    %c0_95 = arith.constant 0 : index
    %c0_96 = arith.constant 0 : index
    %87 = vector.load %arg19[%c2_94, %c0_95, %c0_96] : memref<3x256x512xf32, #tpu.memory_space<vmem>>, vector<1x256x512xf32>
    %88 = vector.shape_cast %87 : vector<1x256x512xf32> to vector<256x512xf32>
    %cst_97 = arith.constant dense<0.000000e+00> : vector<8x512xf32>
    %89 = tpu.matmul %86, %88, %cst_97 {dimension_numbers = #tpu.dot_dimension_numbers<[1], [0], [0], [1], [0, 0, 1, 1], [], []>} : vector<8x256xf32>, vector<256x512xf32>, vector<8x512xf32> -> vector<8x512xf32>
    %90 = arith.addf %83, %89 : vector<8x512xf32>
    %c0_98 = arith.constant 0 : index
    %c0_99 = arith.constant 0 : index
    %91 = vector.load %arg20[%c0_98, %c0_99] : memref<1x512xf32, #tpu.memory_space<vmem>>, vector<1x512xf32>
    %92 = vector.broadcast %91 : vector<1x512xf32> to vector<8x512xf32>
    %93 = arith.addf %90, %92 : vector<8x512xf32>
    %cst_100 = arith.constant 0.000000e+00 : f32
    %94 = vector.broadcast %cst_100 : f32 to vector<8x512xf32>
    %95 = arith.maximumf %93, %94 : vector<8x512xf32>
    %c0_101 = arith.constant 0 : index
    %c0_102 = arith.constant 0 : index
    %96 = vector.load %arg1[%c0_101, %c0_102] : memref<2x1xf32, #tpu.memory_space<vmem>>, vector<2x1xf32>
    %c0_103 = arith.constant 0 : index
    %c0_104 = arith.constant 0 : index
    %97 = vector.load %arg2[%c0_103, %c0_104] : memref<1x32xf32, #tpu.memory_space<vmem>>, vector<1x32xf32>
    %98 = vector.broadcast %96 : vector<2x1xf32> to vector<2x32xf32>
    %99 = vector.broadcast %97 : vector<1x32xf32> to vector<2x32xf32>
    %100 = arith.mulf %98, %99 : vector<2x32xf32>
    %c0_105 = arith.constant 0 : index
    %c0_106 = arith.constant 0 : index
    %101 = vector.load %arg3[%c0_105, %c0_106] : memref<1x32xf32, #tpu.memory_space<vmem>>, vector<1x32xf32>
    %102 = vector.broadcast %101 : vector<1x32xf32> to vector<2x32xf32>
    %103 = arith.addf %100, %102 : vector<2x32xf32>
    %cst_107 = arith.constant 0.000000e+00 : f32
    %104 = vector.broadcast %cst_107 : f32 to vector<2x32xf32>
    %105 = arith.maximumf %103, %104 : vector<2x32xf32>
    %c0_108 = arith.constant 0 : index
    %c0_109 = arith.constant 0 : index
    %106 = vector.load %arg4[%c0_108, %c0_109] : memref<32x64xf32, #tpu.memory_space<vmem>>, vector<32x64xf32>
    %cst_110 = arith.constant dense<0.000000e+00> : vector<2x64xf32>
    %107 = tpu.matmul %105, %106, %cst_110 {dimension_numbers = #tpu.dot_dimension_numbers<[1], [0], [0], [1], [0, 0, 1, 1], [], []>} : vector<2x32xf32>, vector<32x64xf32>, vector<2x64xf32> -> vector<2x64xf32>
    %c0_111 = arith.constant 0 : index
    %c0_112 = arith.constant 0 : index
    %108 = vector.load %arg5[%c0_111, %c0_112] : memref<1x64xf32, #tpu.memory_space<vmem>>, vector<1x64xf32>
    %109 = vector.broadcast %108 : vector<1x64xf32> to vector<2x64xf32>
    %110 = arith.addf %107, %109 : vector<2x64xf32>
    %cst_113 = arith.constant 0.000000e+00 : f32
    %111 = vector.broadcast %cst_113 : f32 to vector<2x64xf32>
    %112 = arith.maximumf %110, %111 : vector<2x64xf32>
    %c0_114 = arith.constant 0 : index
    %c0_115 = arith.constant 0 : index
    %113 = vector.load %arg7[%c0_114, %c0_115] : memref<8x2xf32, #tpu.memory_space<vmem>>, vector<8x2xf32>
    %c0_116 = arith.constant 0 : index
    %c0_117 = arith.constant 0 : index
    %114 = vector.load %arg6[%c0_116, %c0_117] : memref<64x512xf32, #tpu.memory_space<vmem>>, vector<64x512xf32>
    %cst_118 = arith.constant dense<0.000000e+00> : vector<2x512xf32>
    %115 = tpu.matmul %112, %114, %cst_118 {dimension_numbers = #tpu.dot_dimension_numbers<[1], [0], [0], [1], [0, 0, 1, 1], [], []>} : vector<2x64xf32>, vector<64x512xf32>, vector<2x512xf32> -> vector<2x512xf32>
    %cst_119 = arith.constant dense<0.000000e+00> : vector<8x512xf32>
    %116 = tpu.matmul %113, %115, %cst_119 {dimension_numbers = #tpu.dot_dimension_numbers<[1], [0], [0], [1], [0, 0, 1, 1], [], []>} : vector<8x2xf32>, vector<2x512xf32>, vector<8x512xf32> -> vector<8x512xf32>
    %117 = arith.addf %95, %116 : vector<8x512xf32>
    %c0_120 = arith.constant 0 : index
    %c0_121 = arith.constant 0 : index
    %c0_122 = arith.constant 0 : index
    %118 = vector.load %arg21[%c0_120, %c0_121, %c0_122] : memref<3x8x8xf32, #tpu.memory_space<vmem>>, vector<1x8x8xf32>
    %119 = vector.shape_cast %118 : vector<1x8x8xf32> to vector<8x8xf32>
    %cst_123 = arith.constant dense<0.000000e+00> : vector<8x512xf32>
    %120 = tpu.matmul %119, %117, %cst_123 {dimension_numbers = #tpu.dot_dimension_numbers<[1], [0], [0], [1], [0, 0, 1, 1], [], []>} : vector<8x8xf32>, vector<8x512xf32>, vector<8x512xf32> -> vector<8x512xf32>
    %c0_124 = arith.constant 0 : index
    %c0_125 = arith.constant 0 : index
    %c0_126 = arith.constant 0 : index
    %121 = vector.load %arg22[%c0_124, %c0_125, %c0_126] : memref<3x512x256xf32, #tpu.memory_space<vmem>>, vector<1x512x256xf32>
    %122 = vector.shape_cast %121 : vector<1x512x256xf32> to vector<512x256xf32>
    %cst_127 = arith.constant dense<0.000000e+00> : vector<8x256xf32>
    %123 = tpu.matmul %120, %122, %cst_127 {dimension_numbers = #tpu.dot_dimension_numbers<[1], [0], [0], [1], [0, 0, 1, 1], [], []>} : vector<8x512xf32>, vector<512x256xf32>, vector<8x256xf32> -> vector<8x256xf32>
    %c1_128 = arith.constant 1 : index
    %c0_129 = arith.constant 0 : index
    %c0_130 = arith.constant 0 : index
    %124 = vector.load %arg21[%c1_128, %c0_129, %c0_130] : memref<3x8x8xf32, #tpu.memory_space<vmem>>, vector<1x8x8xf32>
    %125 = vector.shape_cast %124 : vector<1x8x8xf32> to vector<8x8xf32>
    %cst_131 = arith.constant dense<0.000000e+00> : vector<8x512xf32>
    %126 = tpu.matmul %125, %117, %cst_131 {dimension_numbers = #tpu.dot_dimension_numbers<[1], [0], [0], [1], [0, 0, 1, 1], [], []>} : vector<8x8xf32>, vector<8x512xf32>, vector<8x512xf32> -> vector<8x512xf32>
    %c1_132 = arith.constant 1 : index
    %c0_133 = arith.constant 0 : index
    %c0_134 = arith.constant 0 : index
    %127 = vector.load %arg22[%c1_132, %c0_133, %c0_134] : memref<3x512x256xf32, #tpu.memory_space<vmem>>, vector<1x512x256xf32>
    %128 = vector.shape_cast %127 : vector<1x512x256xf32> to vector<512x256xf32>
    %cst_135 = arith.constant dense<0.000000e+00> : vector<8x256xf32>
    %129 = tpu.matmul %126, %128, %cst_135 {dimension_numbers = #tpu.dot_dimension_numbers<[1], [0], [0], [1], [0, 0, 1, 1], [], []>} : vector<8x512xf32>, vector<512x256xf32>, vector<8x256xf32> -> vector<8x256xf32>
    %130 = arith.addf %123, %129 : vector<8x256xf32>
    %c2_136 = arith.constant 2 : index
    %c0_137 = arith.constant 0 : index
    %c0_138 = arith.constant 0 : index
    %131 = vector.load %arg21[%c2_136, %c0_137, %c0_138] : memref<3x8x8xf32, #tpu.memory_space<vmem>>, vector<1x8x8xf32>
    %132 = vector.shape_cast %131 : vector<1x8x8xf32> to vector<8x8xf32>
    %cst_139 = arith.constant dense<0.000000e+00> : vector<8x512xf32>
    %133 = tpu.matmul %132, %117, %cst_139 {dimension_numbers = #tpu.dot_dimension_numbers<[1], [0], [0], [1], [0, 0, 1, 1], [], []>} : vector<8x8xf32>, vector<8x512xf32>, vector<8x512xf32> -> vector<8x512xf32>
    %c2_140 = arith.constant 2 : index
    %c0_141 = arith.constant 0 : index
    %c0_142 = arith.constant 0 : index
    %134 = vector.load %arg22[%c2_140, %c0_141, %c0_142] : memref<3x512x256xf32, #tpu.memory_space<vmem>>, vector<1x512x256xf32>
    %135 = vector.shape_cast %134 : vector<1x512x256xf32> to vector<512x256xf32>
    %cst_143 = arith.constant dense<0.000000e+00> : vector<8x256xf32>
    %136 = tpu.matmul %133, %135, %cst_143 {dimension_numbers = #tpu.dot_dimension_numbers<[1], [0], [0], [1], [0, 0, 1, 1], [], []>} : vector<8x512xf32>, vector<512x256xf32>, vector<8x256xf32> -> vector<8x256xf32>
    %137 = arith.addf %130, %136 : vector<8x256xf32>
    %c0_144 = arith.constant 0 : index
    %c0_145 = arith.constant 0 : index
    %138 = vector.load %arg23[%c0_144, %c0_145] : memref<1x256xf32, #tpu.memory_space<vmem>>, vector<1x256xf32>
    %139 = vector.broadcast %138 : vector<1x256xf32> to vector<8x256xf32>
    %140 = arith.addf %137, %139 : vector<8x256xf32>
    %cst_146 = arith.constant 0.000000e+00 : f32
    %141 = vector.broadcast %cst_146 : f32 to vector<8x256xf32>
    %142 = arith.maximumf %140, %141 : vector<8x256xf32>
    %c0_147 = arith.constant 0 : index
    %c0_148 = arith.constant 0 : index
    %c0_149 = arith.constant 0 : index
    %143 = vector.load %arg24[%c0_147, %c0_148, %c0_149] : memref<3x16x8xf32, #tpu.memory_space<vmem>>, vector<1x16x8xf32>
    %144 = vector.shape_cast %143 : vector<1x16x8xf32> to vector<16x8xf32>
    %cst_150 = arith.constant dense<0.000000e+00> : vector<16x256xf32>
    %145 = tpu.matmul %144, %142, %cst_150 {dimension_numbers = #tpu.dot_dimension_numbers<[1], [0], [0], [1], [0, 0, 1, 1], [], []>} : vector<16x8xf32>, vector<8x256xf32>, vector<16x256xf32> -> vector<16x256xf32>
    %c0_151 = arith.constant 0 : index
    %c0_152 = arith.constant 0 : index
    %c0_153 = arith.constant 0 : index
    %146 = vector.load %arg25[%c0_151, %c0_152, %c0_153] : memref<3x256x256xf32, #tpu.memory_space<vmem>>, vector<1x256x256xf32>
    %147 = vector.shape_cast %146 : vector<1x256x256xf32> to vector<256x256xf32>
    %cst_154 = arith.constant dense<0.000000e+00> : vector<16x256xf32>
    %148 = tpu.matmul %145, %147, %cst_154 {dimension_numbers = #tpu.dot_dimension_numbers<[1], [0], [0], [1], [0, 0, 1, 1], [], []>} : vector<16x256xf32>, vector<256x256xf32>, vector<16x256xf32> -> vector<16x256xf32>
    %c1_155 = arith.constant 1 : index
    %c0_156 = arith.constant 0 : index
    %c0_157 = arith.constant 0 : index
    %149 = vector.load %arg24[%c1_155, %c0_156, %c0_157] : memref<3x16x8xf32, #tpu.memory_space<vmem>>, vector<1x16x8xf32>
    %150 = vector.shape_cast %149 : vector<1x16x8xf32> to vector<16x8xf32>
    %cst_158 = arith.constant dense<0.000000e+00> : vector<16x256xf32>
    %151 = tpu.matmul %150, %142, %cst_158 {dimension_numbers = #tpu.dot_dimension_numbers<[1], [0], [0], [1], [0, 0, 1, 1], [], []>} : vector<16x8xf32>, vector<8x256xf32>, vector<16x256xf32> -> vector<16x256xf32>
    %c1_159 = arith.constant 1 : index
    %c0_160 = arith.constant 0 : index
    %c0_161 = arith.constant 0 : index
    %152 = vector.load %arg25[%c1_159, %c0_160, %c0_161] : memref<3x256x256xf32, #tpu.memory_space<vmem>>, vector<1x256x256xf32>
    %153 = vector.shape_cast %152 : vector<1x256x256xf32> to vector<256x256xf32>
    %cst_162 = arith.constant dense<0.000000e+00> : vector<16x256xf32>
    %154 = tpu.matmul %151, %153, %cst_162 {dimension_numbers = #tpu.dot_dimension_numbers<[1], [0], [0], [1], [0, 0, 1, 1], [], []>} : vector<16x256xf32>, vector<256x256xf32>, vector<16x256xf32> -> vector<16x256xf32>
    %155 = arith.addf %148, %154 : vector<16x256xf32>
    %c2_163 = arith.constant 2 : index
    %c0_164 = arith.constant 0 : index
    %c0_165 = arith.constant 0 : index
    %156 = vector.load %arg24[%c2_163, %c0_164, %c0_165] : memref<3x16x8xf32, #tpu.memory_space<vmem>>, vector<1x16x8xf32>
    %157 = vector.shape_cast %156 : vector<1x16x8xf32> to vector<16x8xf32>
    %cst_166 = arith.constant dense<0.000000e+00> : vector<16x256xf32>
    %158 = tpu.matmul %157, %142, %cst_166 {dimension_numbers = #tpu.dot_dimension_numbers<[1], [0], [0], [1], [0, 0, 1, 1], [], []>} : vector<16x8xf32>, vector<8x256xf32>, vector<16x256xf32> -> vector<16x256xf32>
    %c2_167 = arith.constant 2 : index
    %c0_168 = arith.constant 0 : index
    %c0_169 = arith.constant 0 : index
    %159 = vector.load %arg25[%c2_167, %c0_168, %c0_169] : memref<3x256x256xf32, #tpu.memory_space<vmem>>, vector<1x256x256xf32>
    %160 = vector.shape_cast %159 : vector<1x256x256xf32> to vector<256x256xf32>
    %cst_170 = arith.constant dense<0.000000e+00> : vector<16x256xf32>
    %161 = tpu.matmul %158, %160, %cst_170 {dimension_numbers = #tpu.dot_dimension_numbers<[1], [0], [0], [1], [0, 0, 1, 1], [], []>} : vector<16x256xf32>, vector<256x256xf32>, vector<16x256xf32> -> vector<16x256xf32>
    %162 = arith.addf %155, %161 : vector<16x256xf32>
    %c0_171 = arith.constant 0 : index
    %c0_172 = arith.constant 0 : index
    %163 = vector.load %arg26[%c0_171, %c0_172] : memref<1x256xf32, #tpu.memory_space<vmem>>, vector<1x256xf32>
    %164 = vector.broadcast %163 : vector<1x256xf32> to vector<16x256xf32>
    %165 = arith.addf %162, %164 : vector<16x256xf32>
    %cst_173 = arith.constant 0.000000e+00 : f32
    %166 = vector.broadcast %cst_173 : f32 to vector<16x256xf32>
    %167 = arith.maximumf %165, %166 : vector<16x256xf32>
    %c0_174 = arith.constant 0 : index
    %c0_175 = arith.constant 0 : index
    %c0_176 = arith.constant 0 : index
    %168 = vector.load %arg27[%c0_174, %c0_175, %c0_176] : memref<3x32x16xf32, #tpu.memory_space<vmem>>, vector<1x32x16xf32>
    %169 = vector.shape_cast %168 : vector<1x32x16xf32> to vector<32x16xf32>
    %cst_177 = arith.constant dense<0.000000e+00> : vector<32x256xf32>
    %170 = tpu.matmul %169, %167, %cst_177 {dimension_numbers = #tpu.dot_dimension_numbers<[1], [0], [0], [1], [0, 0, 1, 1], [], []>} : vector<32x16xf32>, vector<16x256xf32>, vector<32x256xf32> -> vector<32x256xf32>
    %c0_178 = arith.constant 0 : index
    %c0_179 = arith.constant 0 : index
    %c0_180 = arith.constant 0 : index
    %171 = vector.load %arg28[%c0_178, %c0_179, %c0_180] : memref<3x256x128xf32, #tpu.memory_space<vmem>>, vector<1x256x128xf32>
    %172 = vector.shape_cast %171 : vector<1x256x128xf32> to vector<256x128xf32>
    %cst_181 = arith.constant dense<0.000000e+00> : vector<32x128xf32>
    %173 = tpu.matmul %170, %172, %cst_181 {dimension_numbers = #tpu.dot_dimension_numbers<[1], [0], [0], [1], [0, 0, 1, 1], [], []>} : vector<32x256xf32>, vector<256x128xf32>, vector<32x128xf32> -> vector<32x128xf32>
    %c1_182 = arith.constant 1 : index
    %c0_183 = arith.constant 0 : index
    %c0_184 = arith.constant 0 : index
    %174 = vector.load %arg27[%c1_182, %c0_183, %c0_184] : memref<3x32x16xf32, #tpu.memory_space<vmem>>, vector<1x32x16xf32>
    %175 = vector.shape_cast %174 : vector<1x32x16xf32> to vector<32x16xf32>
    %cst_185 = arith.constant dense<0.000000e+00> : vector<32x256xf32>
    %176 = tpu.matmul %175, %167, %cst_185 {dimension_numbers = #tpu.dot_dimension_numbers<[1], [0], [0], [1], [0, 0, 1, 1], [], []>} : vector<32x16xf32>, vector<16x256xf32>, vector<32x256xf32> -> vector<32x256xf32>
    %c1_186 = arith.constant 1 : index
    %c0_187 = arith.constant 0 : index
    %c0_188 = arith.constant 0 : index
    %177 = vector.load %arg28[%c1_186, %c0_187, %c0_188] : memref<3x256x128xf32, #tpu.memory_space<vmem>>, vector<1x256x128xf32>
    %178 = vector.shape_cast %177 : vector<1x256x128xf32> to vector<256x128xf32>
    %cst_189 = arith.constant dense<0.000000e+00> : vector<32x128xf32>
    %179 = tpu.matmul %176, %178, %cst_189 {dimension_numbers = #tpu.dot_dimension_numbers<[1], [0], [0], [1], [0, 0, 1, 1], [], []>} : vector<32x256xf32>, vector<256x128xf32>, vector<32x128xf32> -> vector<32x128xf32>
    %180 = arith.addf %173, %179 : vector<32x128xf32>
    %c2_190 = arith.constant 2 : index
    %c0_191 = arith.constant 0 : index
    %c0_192 = arith.constant 0 : index
    %181 = vector.load %arg27[%c2_190, %c0_191, %c0_192] : memref<3x32x16xf32, #tpu.memory_space<vmem>>, vector<1x32x16xf32>
    %182 = vector.shape_cast %181 : vector<1x32x16xf32> to vector<32x16xf32>
    %cst_193 = arith.constant dense<0.000000e+00> : vector<32x256xf32>
    %183 = tpu.matmul %182, %167, %cst_193 {dimension_numbers = #tpu.dot_dimension_numbers<[1], [0], [0], [1], [0, 0, 1, 1], [], []>} : vector<32x16xf32>, vector<16x256xf32>, vector<32x256xf32> -> vector<32x256xf32>
    %c2_194 = arith.constant 2 : index
    %c0_195 = arith.constant 0 : index
    %c0_196 = arith.constant 0 : index
    %184 = vector.load %arg28[%c2_194, %c0_195, %c0_196] : memref<3x256x128xf32, #tpu.memory_space<vmem>>, vector<1x256x128xf32>
    %185 = vector.shape_cast %184 : vector<1x256x128xf32> to vector<256x128xf32>
    %cst_197 = arith.constant dense<0.000000e+00> : vector<32x128xf32>
    %186 = tpu.matmul %183, %185, %cst_197 {dimension_numbers = #tpu.dot_dimension_numbers<[1], [0], [0], [1], [0, 0, 1, 1], [], []>} : vector<32x256xf32>, vector<256x128xf32>, vector<32x128xf32> -> vector<32x128xf32>
    %187 = arith.addf %180, %186 : vector<32x128xf32>
    %c0_198 = arith.constant 0 : index
    %c0_199 = arith.constant 0 : index
    %188 = vector.load %arg29[%c0_198, %c0_199] : memref<1x128xf32, #tpu.memory_space<vmem>>, vector<1x128xf32>
    %189 = vector.broadcast %188 : vector<1x128xf32> to vector<32x128xf32>
    %190 = arith.addf %187, %189 : vector<32x128xf32>
    %c0_200 = arith.constant 0 : index
    %c0_201 = arith.constant 0 : index
    %191 = vector.load %arg30[%c0_200, %c0_201] : memref<32x128xf32, #tpu.memory_space<vmem>>, vector<32x128xf32>
    tpu.vector_store %arg30[%c0_200, %c0_201], %190 {strides = array<i32>} : memref<32x128xf32, #tpu.memory_space<vmem>>, vector<32x128xf32>,
    return
  }
}

</mosaic_0001>

<llo_original>
// kernel: tpu_custom_call.1
$region0: #{tpu_custom_call.1}
  #allocation0 [shape = 'u32[]', space=smem, size = 0x4, offset = 0x4, fixed_abs, tag = 'smem constant byte address 0x4 - core index']
  #allocation1 [shape = 'u32[144,128]{1,0:T(1,128)}', space=vmem, size = 0x12000, scoped, tag = 'internal scratch']
  %s0 = inlined_call_operand.smem [shape: u32[31], index: -1, kind: input, shape index: {}]
  %s1 = sld [smem:[%s0]]
  %s2 = scalar_lea.smem %s0, 1
  %s3 = sld [smem:[%s2]]
  %s4 = scalar_lea.smem %s0, 2
  %s5 = sld [smem:[%s4]]
  %s6 = scalar_lea.smem %s0, 3
  %s7 = sld [smem:[%s6]]
  %s8 = scalar_lea.smem %s0, 4
  %s9 = sld [smem:[%s8]]
  %s10 = scalar_lea.smem %s0, 5
  %s11 = sld [smem:[%s10]]
  %s12 = scalar_lea.smem %s0, 6
  %s13 = sld [smem:[%s12]]
  %s14 = scalar_lea.smem %s0, 7
  %s15 = sld [smem:[%s14]]
  %s16 = scalar_lea.smem %s0, 8
  %s17 = sld [smem:[%s16]]
  %s18 = scalar_lea.smem %s0, 9
  %s19 = sld [smem:[%s18]]
  %s20 = scalar_lea.smem %s0, 10
  %s21 = sld [smem:[%s20]]
  %s22 = scalar_lea.smem %s0, 11
  %s23 = sld [smem:[%s22]]
  %s24 = scalar_lea.smem %s0, 12
  %s25 = sld [smem:[%s24]]
  %s26 = scalar_lea.smem %s0, 13
  %s27 = sld [smem:[%s26]]
  %s28 = scalar_lea.smem %s0, 14
  %s29 = sld [smem:[%s28]]
  %s30 = scalar_lea.smem %s0, 15
  %s31 = sld [smem:[%s30]]
  %s32 = scalar_lea.smem %s0, 16
  %s33 = sld [smem:[%s32]]
  %s34 = scalar_lea.smem %s0, 17
  %s35 = sld [smem:[%s34]]
  %s36 = scalar_lea.smem %s0, 18
  %s37 = sld [smem:[%s36]]
  %s38 = scalar_lea.smem %s0, 19
  %s39 = sld [smem:[%s38]]
  %s40 = scalar_lea.smem %s0, 20
  %s41 = sld [smem:[%s40]]
  %s42 = scalar_lea.smem %s0, 21
  %s43 = sld [smem:[%s42]]
  %s44 = scalar_lea.smem %s0, 22
  %s45 = sld [smem:[%s44]]
  %s46 = scalar_lea.smem %s0, 23
  %s47 = sld [smem:[%s46]]
  %s48 = scalar_lea.smem %s0, 24
  %s49 = sld [smem:[%s48]]
  %s50 = scalar_lea.smem %s0, 25
  %s51 = sld [smem:[%s50]]
  %s52 = scalar_lea.smem %s0, 26
  %s53 = sld [smem:[%s52]]
  %s54 = scalar_lea.smem %s0, 27
  %s55 = sld [smem:[%s54]]
  %s56 = scalar_lea.smem %s0, 28
  %s57 = sld [smem:[%s56]]
  %s58 = scalar_lea.smem %s0, 29
  %s59 = sld [smem:[%s58]]
  %s60 = scalar_lea.smem %s0, 30
  %s61 = sld [smem:[%s60]]
  %s62 = sld [smem:[#allocation0]]
  $region234: #{tpu_custom_call.1} parent=0
    _
  %s64 = ssub.s32 1, %s62
  %s65 = scalar_select 0, %s64, %s62
  $region1: #{tpu_custom_call.1} parent=0
    #allocation2 [shape = 'u8[16384]{0}', space=vmem, size = 0x4000, scoped, tag = 'input window, operand 0, single buffered']
    #allocation3 [shape = 's32[1]{0}', space=sflag, size = 0x4, scoped, tag = 'scoped memory for tpu_custom_call.1']
    #allocation4 [shape = 's32[1]{0}', space=sflag, size = 0x4, scoped, tag = 'scoped memory for tpu_custom_call.1']
    #allocation5 [shape = 'u8[512]{0}', space=vmem, size = 0x400, scoped, tag = 'input window, operand 2, single buffered']
    #allocation6 [shape = 's32[1]{0}', space=sflag, size = 0x4, scoped, tag = 'scoped memory for tpu_custom_call.1']
    #allocation7 [shape = 'u8[512]{0}', space=vmem, size = 0x400, scoped, tag = 'input window, operand 3, single buffered']
    #allocation8 [shape = 'u8[16384]{0}', space=vmem, size = 0x4000, scoped, tag = 'input window, operand 4, single buffered']
    #allocation9 [shape = 's32[1]{0}', space=sflag, size = 0x4, scoped, tag = 'scoped memory for tpu_custom_call.1']
    #allocation10 [shape = 'u8[512]{0}', space=vmem, size = 0x400, scoped, tag = 'input window, operand 5, single buffered']
    #allocation11 [shape = 'u8[131072]{0}', space=vmem, size = 0x20000, scoped, tag = 'input window, operand 6, single buffered']
    #allocation12 [shape = 's32[1]{0}', space=sflag, size = 0x4, scoped, tag = 'scoped memory for tpu_custom_call.1']
    #allocation13 [shape = 'u8[49152]{0}', space=vmem, size = 0xc000, scoped, tag = 'input window, operand 8, single buffered']
    #allocation14 [shape = 'u8[393216]{0}', space=vmem, size = 0x60000, scoped, tag = 'input window, operand 9, single buffered']
    #allocation15 [shape = 's32[1]{0}', space=sflag, size = 0x4, scoped, tag = 'scoped memory for tpu_custom_call.1']
    #allocation16 [shape = 'u8[2048]{0}', space=vmem, size = 0x800, scoped, tag = 'input window, operand 10, single buffered']
    #allocation17 [shape = 'u8[16384]{0}', space=vmem, size = 0x4000, scoped, tag = 'input window, operand 11, single buffered']
    #allocation18 [shape = 's32[1]{0}', space=sflag, size = 0x4, scoped, tag = 'scoped memory for tpu_custom_call.1']
    #allocation19 [shape = 'u8[1048576]{0}', space=vmem, size = 0x100000, scoped, tag = 'input window, operand 12, single buffered']
    #allocation20 [shape = 'u8[24576]{0}', space=vmem, size = 0x6000, scoped, tag = 'input window, operand 13, single buffered']
    #allocation21 [shape = 's32[1]{0}', space=sflag, size = 0x4, scoped, tag = 'scoped memory for tpu_custom_call.1']
    #allocation22 [shape = 'u8[1572864]{0}', space=vmem, size = 0x180000, scoped, tag = 'input window, operand 14, single buffered']
    #allocation23 [shape = 'u8[2048]{0}', space=vmem, size = 0x800, scoped, tag = 'input window, operand 15, single buffered']
    #allocation24 [shape = 's32[1]{0}', space=sflag, size = 0x4, scoped, tag = 'scoped memory for tpu_custom_call.1']
    #allocation25 [shape = 'u8[8192]{0}', space=vmem, size = 0x2000, scoped, tag = 'input window, operand 16, single buffered']
    #allocation26 [shape = 'u8[1048576]{0}', space=vmem, size = 0x100000, scoped, tag = 'input window, operand 17, single buffered']
    #allocation27 [shape = 's32[1]{0}', space=sflag, size = 0x4, scoped, tag = 'scoped memory for tpu_custom_call.1']
    #allocation28 [shape = 'u8[12288]{0}', space=vmem, size = 0x3000, scoped, tag = 'input window, operand 18, single buffered']
    #allocation29 [shape = 'u8[1572864]{0}', space=vmem, size = 0x180000, scoped, tag = 'input window, operand 19, single buffered']
    #allocation30 [shape = 's32[1]{0}', space=sflag, size = 0x4, scoped, tag = 'scoped memory for tpu_custom_call.1']
    #allocation31 [shape = 'u8[2048]{0}', space=vmem, size = 0x800, scoped, tag = 'input window, operand 20, single buffered']
    #allocation32 [shape = 'u8[12288]{0}', space=vmem, size = 0x3000, scoped, tag = 'input window, operand 21, single buffered']
    #allocation33 [shape = 's32[1]{0}', space=sflag, size = 0x4, scoped, tag = 'scoped memory for tpu_custom_call.1']
    #allocation34 [shape = 'u8[1572864]{0}', space=vmem, size = 0x180000, scoped, tag = 'input window, operand 22, single buffered']
    #allocation35 [shape = 'u8[1024]{0}', space=vmem, size = 0x400, scoped, tag = 'input window, operand 23, single buffered']
    #allocation36 [shape = 's32[1]{0}', space=sflag, size = 0x4, scoped, tag = 'scoped memory for tpu_custom_call.1']
    #allocation37 [shape = 'u8[786432]{0}', space=vmem, size = 0xc0000, scoped, tag = 'input window, operand 25, single buffered']
    #allocation38 [shape = 'u8[1024]{0}', space=vmem, size = 0x400, scoped, tag = 'input window, operand 26, single buffered']
    #allocation39 [shape = 's32[1]{0}', space=sflag, size = 0x4, scoped, tag = 'scoped memory for tpu_custom_call.1']
    #allocation40 [shape = 'u8[393216]{0}', space=vmem, size = 0x60000, scoped, tag = 'input window, operand 28, single buffered']
    #allocation41 [shape = 'u8[512]{0}', space=vmem, size = 0x400, scoped, tag = 'input window, operand 29, single buffered']
    #allocation42 [shape = 's32[1]{0}', space=sflag, size = 0x4, scoped, tag = 'scoped memory for tpu_custom_call.1']
    #allocation43 [shape = 'u8[16384]{0}', space=vmem, size = 0x4000, scoped, tag = 'output window, operand 0, single buffered']
    %66 = vsyncpa [#allocation3], 0
    %67 = vsyncpa [#allocation6], 0
    %68 = vsyncpa [#allocation9], 0
    %69 = vsyncpa [#allocation12], 0
    %70 = vsyncpa [#allocation15], 0
    %71 = vsyncpa [#allocation18], 0
    %72 = vsyncpa [#allocation21], 0
    %73 = vsyncpa [#allocation24], 0
    %74 = vsyncpa [#allocation27], 0
    %75 = vsyncpa [#allocation30], 0
    %76 = vsyncpa [#allocation33], 0
    %77 = vsyncpa [#allocation36], 0
    %78 = vsyncpa [#allocation39], 0
    %79 = vsyncpa [#allocation42], 0
    %80 = vsyncpa [#allocation4], 0
    // Predicated region
    $region2: #{tpu_custom_call.1} parent=1 // pred_check
      _
    $region3: #{tpu_custom_call.1} parent=1 // pred_check_branch
      %82 = sbr.rel (0) target = $region5
    $region4: #{tpu_custom_call.1} parent=1 // pred_region
      %s84 = ssub.s32 512, 512
      %85 = vsyncadd [#allocation3], %s84
      %s86 = sshll.u32 [#allocation2], 4
      %s87 = int_to_ptr.vmem [resolvable:$true] %s86
      %92 = dma.hbm_to_vmem [thread:$0]  %s1, 512, %s87, [#allocation3], 128, 128, 8
    $region5: #{tpu_custom_call.1} parent=1 // pred_fallthru
      _
    // Predicated region
    $region6: #{tpu_custom_call.1} parent=1 // pred_check
      _
    $region7: #{tpu_custom_call.1} parent=1 // pred_check_branch
      %94 = sbr.rel (0) target = $region9
    $region8: #{tpu_custom_call.1} parent=1 // pred_region
      _
    $region9: #{tpu_custom_call.1} parent=1 // pred_fallthru
      _
    // Predicated region
    $region10: #{tpu_custom_call.1} parent=1 // pred_check
      _
    $region11: #{tpu_custom_call.1} parent=1 // pred_check_branch
      %96 = sbr.rel (0) target = $region13
    $region12: #{tpu_custom_call.1} parent=1 // pred_region
      %s98 = ssub.s32 16, 16
      %99 = vsyncadd [#allocation6], %s98
      %s101 = sshll.u32 [#allocation5], 4
      %s102 = int_to_ptr.vmem [resolvable:$true] %s101
      %104 = dma.hbm_to_vmem [thread:$0]  %s5, 16, %s102, [#allocation6]
    $region13: #{tpu_custom_call.1} parent=1 // pred_fallthru
      _
    // Predicated region
    $region14: #{tpu_custom_call.1} parent=1 // pred_check
      _
    $region15: #{tpu_custom_call.1} parent=1 // pred_check_branch
      %106 = sbr.rel (0) target = $region17
    $region16: #{tpu_custom_call.1} parent=1 // pred_region
      %s108 = ssub.s32 16, 16
      %109 = vsyncadd [#allocation6], %s108
      %s111 = sshll.u32 [#allocation7], 4
      %s112 = int_to_ptr.vmem [resolvable:$true] %s111
      %114 = dma.hbm_to_vmem [thread:$0]  %s7, 16, %s112, [#allocation6]
    $region17: #{tpu_custom_call.1} parent=1 // pred_fallthru
      _
    // Predicated region
    $region18: #{tpu_custom_call.1} parent=1 // pred_check
      _
    $region19: #{tpu_custom_call.1} parent=1 // pred_check_branch
      %116 = sbr.rel (0) target = $region21
    $region20: #{tpu_custom_call.1} parent=1 // pred_region
      %s118 = ssub.s32 512, 512
      %119 = vsyncadd [#allocation9], %s118
      %s120 = sshll.u32 [#allocation8], 4
      %s121 = int_to_ptr.vmem [resolvable:$true] %s120
      %126 = dma.hbm_to_vmem [thread:$0]  %s9, 512, %s121, [#allocation9], 128, 128, 8
    $region21: #{tpu_custom_call.1} parent=1 // pred_fallthru
      _
    // Predicated region
    $region22: #{tpu_custom_call.1} parent=1 // pred_check
      _
    $region23: #{tpu_custom_call.1} parent=1 // pred_check_branch
      %128 = sbr.rel (0) target = $region25
    $region24: #{tpu_custom_call.1} parent=1 // pred_region
      %s130 = ssub.s32 16, 16
      %131 = vsyncadd [#allocation9], %s130
      %s133 = sshll.u32 [#allocation10], 4
      %s134 = int_to_ptr.vmem [resolvable:$true] %s133
      %136 = dma.hbm_to_vmem [thread:$0]  %s11, 16, %s134, [#allocation9]
    $region25: #{tpu_custom_call.1} parent=1 // pred_fallthru
      _
    // Predicated region
    $region26: #{tpu_custom_call.1} parent=1 // pred_check
      _
    $region27: #{tpu_custom_call.1} parent=1 // pred_check_branch
      %138 = sbr.rel (0) target = $region29
    $region28: #{tpu_custom_call.1} parent=1 // pred_region
      %s140 = ssub.s32 4096, 4096
      %141 = vsyncadd [#allocation12], %s140
      %s142 = sshll.u32 [#allocation11], 4
      %s143 = int_to_ptr.vmem [resolvable:$true] %s142
      %148 = dma.hbm_to_vmem [thread:$0]  %s13, 4096, %s143, [#allocation12], 512, 512, 32
    $region29: #{tpu_custom_call.1} parent=1 // pred_fallthru
      _
    // Predicated region
    $region30: #{tpu_custom_call.1} parent=1 // pred_check
      _
    $region31: #{tpu_custom_call.1} parent=1 // pred_check_branch
      %150 = sbr.rel (0) target = $region33
    $region32: #{tpu_custom_call.1} parent=1 // pred_region
      _
    $region33: #{tpu_custom_call.1} parent=1 // pred_fallthru
      _
    // Predicated region
    $region34: #{tpu_custom_call.1} parent=1 // pred_check
      _
    $region35: #{tpu_custom_call.1} parent=1 // pred_check_branch
      %152 = sbr.rel (0) target = $region37
    $region36: #{tpu_custom_call.1} parent=1 // pred_region
      %s154 = ssub.s32 1536, 1536
      %155 = vsyncadd [#allocation12], %s154
      %s156 = sshll.u32 [#allocation13], 4
      %s157 = int_to_ptr.vmem [resolvable:$true] %s156
      %162 = dma.hbm_to_vmem [thread:$0]  %s17, 1536, %s157, [#allocation12], 128, 128, 8
    $region37: #{tpu_custom_call.1} parent=1 // pred_fallthru
      _
    // Predicated region
    $region38: #{tpu_custom_call.1} parent=1 // pred_check
      _
    $region39: #{tpu_custom_call.1} parent=1 // pred_check_branch
      %164 = sbr.rel (0) target = $region41
    $region40: #{tpu_custom_call.1} parent=1 // pred_region
      %s166 = ssub.s32 12288, 12288
      %167 = vsyncadd [#allocation15], %s166
      %s168 = sshll.u32 [#allocation14], 4
      %s169 = int_to_ptr.vmem [resolvable:$true] %s168
      %174 = dma.hbm_to_vmem [thread:$0]  %s19, 12288, %s169, [#allocation15], 512, 512, 32
    $region41: #{tpu_custom_call.1} parent=1 // pred_fallthru
      _
    // Predicated region
    $region42: #{tpu_custom_call.1} parent=1 // pred_check
      _
    $region43: #{tpu_custom_call.1} parent=1 // pred_check_branch
      %176 = sbr.rel (0) target = $region45
    $region44: #{tpu_custom_call.1} parent=1 // pred_region
      %s178 = ssub.s32 64, 64
      %179 = vsyncadd [#allocation15], %s178
      %s181 = sshll.u32 [#allocation16], 4
      %s182 = int_to_ptr.vmem [resolvable:$true] %s181
      %184 = dma.hbm_to_vmem [thread:$0]  %s21, 64, %s182, [#allocation15]
    $region45: #{tpu_custom_call.1} parent=1 // pred_fallthru
      _
    // Predicated region
    $region46: #{tpu_custom_call.1} parent=1 // pred_check
      _
    $region47: #{tpu_custom_call.1} parent=1 // pred_check_branch
      %186 = sbr.rel (0) target = $region49
    $region48: #{tpu_custom_call.1} parent=1 // pred_region
      %s188 = ssub.s32 512, 512
      %189 = vsyncadd [#allocation18], %s188
      %s190 = sshll.u32 [#allocation17], 4
      %s191 = int_to_ptr.vmem [resolvable:$true] %s190
      %196 = dma.hbm_to_vmem [thread:$0]  %s23, 512, %s191, [#allocation18], 128, 128, 8
    $region49: #{tpu_custom_call.1} parent=1 // pred_fallthru
      _
    // Predicated region
    $region50: #{tpu_custom_call.1} parent=1 // pred_check
      _
    $region51: #{tpu_custom_call.1} parent=1 // pred_check_branch
      %198 = sbr.rel (0) target = $region53
    $region52: #{tpu_custom_call.1} parent=1 // pred_region
      %s200 = ssub.s32 32768, 32768
      %201 = vsyncadd [#allocation18], %s200
      %s202 = sshll.u32 [#allocation19], 4
      %s203 = int_to_ptr.vmem [resolvable:$true] %s202
      %208 = dma.hbm_to_vmem [thread:$0]  %s25, 32768, %s203, [#allocation18], 256, 256, 16
    $region53: #{tpu_custom_call.1} parent=1 // pred_fallthru
      _
    // Predicated region
    $region54: #{tpu_custom_call.1} parent=1 // pred_check
      _
    $region55: #{tpu_custom_call.1} parent=1 // pred_check_branch
      %210 = sbr.rel (0) target = $region57
    $region56: #{tpu_custom_call.1} parent=1 // pred_region
      %s212 = ssub.s32 768, 768
      %213 = vsyncadd [#allocation21], %s212
      %s214 = sshll.u32 [#allocation20], 4
      %s215 = int_to_ptr.vmem [resolvable:$true] %s214
      %220 = dma.hbm_to_vmem [thread:$0]  %s27, 768, %s215, [#allocation21], 128, 128, 8
    $region57: #{tpu_custom_call.1} parent=1 // pred_fallthru
      _
    // Predicated region
    $region58: #{tpu_custom_call.1} parent=1 // pred_check
      _
    $region59: #{tpu_custom_call.1} parent=1 // pred_check_branch
      %222 = sbr.rel (0) target = $region61
    $region60: #{tpu_custom_call.1} parent=1 // pred_region
      %s224 = ssub.s32 49152, 49152
      %225 = vsyncadd [#allocation21], %s224
      %s226 = sshll.u32 [#allocation22], 4
      %s227 = int_to_ptr.vmem [resolvable:$true] %s226
      %232 = dma.hbm_to_vmem [thread:$0]  %s29, 49152, %s227, [#allocation21], 512, 512, 32
    $region61: #{tpu_custom_call.1} parent=1 // pred_fallthru
      _
    // Predicated region
    $region62: #{tpu_custom_call.1} parent=1 // pred_check
      _
    $region63: #{tpu_custom_call.1} parent=1 // pred_check_branch
      %234 = sbr.rel (0) target = $region65
    $region64: #{tpu_custom_call.1} parent=1 // pred_region
      %s236 = ssub.s32 64, 64
      %237 = vsyncadd [#allocation24], %s236
      %s239 = sshll.u32 [#allocation23], 4
      %s240 = int_to_ptr.vmem [resolvable:$true] %s239
      %242 = dma.hbm_to_vmem [thread:$0]  %s31, 64, %s240, [#allocation24]
    $region65: #{tpu_custom_call.1} parent=1 // pred_fallthru
      _
    // Predicated region
    $region66: #{tpu_custom_call.1} parent=1 // pred_check
      _
    $region67: #{tpu_custom_call.1} parent=1 // pred_check_branch
      %244 = sbr.rel (0) target = $region69
    $region68: #{tpu_custom_call.1} parent=1 // pred_region
      %s246 = ssub.s32 256, 256
      %247 = vsyncadd [#allocation24], %s246
      %s248 = sshll.u32 [#allocation25], 4
      %s249 = int_to_ptr.vmem [resolvable:$true] %s248
      %254 = dma.hbm_to_vmem [thread:$0]  %s33, 256, %s249, [#allocation24], 128, 128, 8
    $region69: #{tpu_custom_call.1} parent=1 // pred_fallthru
      _
    // Predicated region
    $region70: #{tpu_custom_call.1} parent=1 // pred_check
      _
    $region71: #{tpu_custom_call.1} parent=1 // pred_check_branch
      %256 = sbr.rel (0) target = $region73
    $region72: #{tpu_custom_call.1} parent=1 // pred_region
      %s258 = ssub.s32 32768, 32768
      %259 = vsyncadd [#allocation27], %s258
      %s260 = sshll.u32 [#allocation26], 4
      %s261 = int_to_ptr.vmem [resolvable:$true] %s260
      %266 = dma.hbm_to_vmem [thread:$0]  %s35, 32768, %s261, [#allocation27], 256, 256, 16
    $region73: #{tpu_custom_call.1} parent=1 // pred_fallthru
      _
    // Predicated region
    $region74: #{tpu_custom_call.1} parent=1 // pred_check
      _
    $region75: #{tpu_custom_call.1} parent=1 // pred_check_branch
      %268 = sbr.rel (0) target = $region77
    $region76: #{tpu_custom_call.1} parent=1 // pred_region
      %s270 = ssub.s32 384, 384
      %271 = vsyncadd [#allocation27], %s270
      %s272 = sshll.u32 [#allocation28], 4
      %s273 = int_to_ptr.vmem [resolvable:$true] %s272
      %278 = dma.hbm_to_vmem [thread:$0]  %s37, 384, %s273, [#allocation27], 128, 128, 8
    $region77: #{tpu_custom_call.1} parent=1 // pred_fallthru
      _
    // Predicated region
    $region78: #{tpu_custom_call.1} parent=1 // pred_check
      _
    $region79: #{tpu_custom_call.1} parent=1 // pred_check_branch
      %280 = sbr.rel (0) target = $region81
    $region80: #{tpu_custom_call.1} parent=1 // pred_region
      %s282 = ssub.s32 49152, 49152
      %283 = vsyncadd [#allocation30], %s282
      %s284 = sshll.u32 [#allocation29], 4
      %s285 = int_to_ptr.vmem [resolvable:$true] %s284
      %290 = dma.hbm_to_vmem [thread:$0]  %s39, 49152, %s285, [#allocation30], 512, 512, 32
    $region81: #{tpu_custom_call.1} parent=1 // pred_fallthru
      _
    // Predicated region
    $region82: #{tpu_custom_call.1} parent=1 // pred_check
      _
    $region83: #{tpu_custom_call.1} parent=1 // pred_check_branch
      %292 = sbr.rel (0) target = $region85
    $region84: #{tpu_custom_call.1} parent=1 // pred_region
      %s294 = ssub.s32 64, 64
      %295 = vsyncadd [#allocation30], %s294
      %s297 = sshll.u32 [#allocation31], 4
      %s298 = int_to_ptr.vmem [resolvable:$true] %s297
      %300 = dma.hbm_to_vmem [thread:$0]  %s41, 64, %s298, [#allocation30]
    $region85: #{tpu_custom_call.1} parent=1 // pred_fallthru
      _
    // Predicated region
    $region86: #{tpu_custom_call.1} parent=1 // pred_check
      _
    $region87: #{tpu_custom_call.1} parent=1 // pred_check_branch
      %302 = sbr.rel (0) target = $region89
    $region88: #{tpu_custom_call.1} parent=1 // pred_region
      %s304 = ssub.s32 384, 384
      %305 = vsyncadd [#allocation33], %s304
      %s306 = sshll.u32 [#allocation32], 4
      %s307 = int_to_ptr.vmem [resolvable:$true] %s306
      %312 = dma.hbm_to_vmem [thread:$0]  %s43, 384, %s307, [#allocation33], 128, 128, 8
    $region89: #{tpu_custom_call.1} parent=1 // pred_fallthru
      _
    // Predicated region
    $region90: #{tpu_custom_call.1} parent=1 // pred_check
      _
    $region91: #{tpu_custom_call.1} parent=1 // pred_check_branch
      %314 = sbr.rel (0) target = $region93
    $region92: #{tpu_custom_call.1} parent=1 // pred_region
      %s316 = ssub.s32 49152, 49152
      %317 = vsyncadd [#allocation33], %s316
      %s318 = sshll.u32 [#allocation34], 4
      %s319 = int_to_ptr.vmem [resolvable:$true] %s318
      %324 = dma.hbm_to_vmem [thread:$0]  %s45, 49152, %s319, [#allocation33], 256, 256, 16
    $region93: #{tpu_custom_call.1} parent=1 // pred_fallthru
      _
    // Predicated region
    $region94: #{tpu_custom_call.1} parent=1 // pred_check
      _
    $region95: #{tpu_custom_call.1} parent=1 // pred_check_branch
      %326 = sbr.rel (0) target = $region97
    $region96: #{tpu_custom_call.1} parent=1 // pred_region
      %s328 = ssub.s32 32, 32
      %329 = vsyncadd [#allocation36], %s328
      %s331 = sshll.u32 [#allocation35], 4
      %s332 = int_to_ptr.vmem [resolvable:$true] %s331
      %334 = dma.hbm_to_vmem [thread:$0]  %s47, 32, %s332, [#allocation36]
    $region97: #{tpu_custom_call.1} parent=1 // pred_fallthru
      _
    // Predicated region
    $region98: #{tpu_custom_call.1} parent=1 // pred_check
      _
    $region99: #{tpu_custom_call.1} parent=1 // pred_check_branch
      %336 = sbr.rel (0) target = $region101
    $region100: #{tpu_custom_call.1} parent=1 // pred_region
      _
    $region101: #{tpu_custom_call.1} parent=1 // pred_fallthru
      _
    // Predicated region
    $region102: #{tpu_custom_call.1} parent=1 // pred_check
      _
    $region103: #{tpu_custom_call.1} parent=1 // pred_check_branch
      %338 = sbr.rel (0) target = $region105
    $region104: #{tpu_custom_call.1} parent=1 // pred_region
      %s340 = ssub.s32 24576, 24576
      %341 = vsyncadd [#allocation36], %s340
      %s342 = sshll.u32 [#allocation37], 4
      %s343 = int_to_ptr.vmem [resolvable:$true] %s342
      %348 = dma.hbm_to_vmem [thread:$0]  %s51, 24576, %s343, [#allocation36], 256, 256, 16
    $region105: #{tpu_custom_call.1} parent=1 // pred_fallthru
      _
    // Predicated region
    $region106: #{tpu_custom_call.1} parent=1 // pred_check
      _
    $region107: #{tpu_custom_call.1} parent=1 // pred_check_branch
      %350 = sbr.rel (0) target = $region109
    $region108: #{tpu_custom_call.1} parent=1 // pred_region
      %s352 = ssub.s32 32, 32
      %353 = vsyncadd [#allocation39], %s352
      %s355 = sshll.u32 [#allocation38], 4
      %s356 = int_to_ptr.vmem [resolvable:$true] %s355
      %358 = dma.hbm_to_vmem [thread:$0]  %s53, 32, %s356, [#allocation39]
    $region109: #{tpu_custom_call.1} parent=1 // pred_fallthru
      _
    // Predicated region
    $region110: #{tpu_custom_call.1} parent=1 // pred_check
      _
    $region111: #{tpu_custom_call.1} parent=1 // pred_check_branch
      %360 = sbr.rel (0) target = $region113
    $region112: #{tpu_custom_call.1} parent=1 // pred_region
      _
    $region113: #{tpu_custom_call.1} parent=1 // pred_fallthru
      _
    // Predicated region
    $region114: #{tpu_custom_call.1} parent=1 // pred_check
      _
    $region115: #{tpu_custom_call.1} parent=1 // pred_check_branch
      %362 = sbr.rel (0) target = $region117
    $region116: #{tpu_custom_call.1} parent=1 // pred_region
      %s364 = ssub.s32 12288, 12288
      %365 = vsyncadd [#allocation39], %s364
      %s366 = sshll.u32 [#allocation40], 4
      %s367 = int_to_ptr.vmem [resolvable:$true] %s366
      %372 = dma.hbm_to_vmem [thread:$0]  %s57, 12288, %s367, [#allocation39], 128, 128, 8
    $region117: #{tpu_custom_call.1} parent=1 // pred_fallthru
      _
    // Predicated region
    $region118: #{tpu_custom_call.1} parent=1 // pred_check
      _
    $region119: #{tpu_custom_call.1} parent=1 // pred_check_branch
      %374 = sbr.rel (0) target = $region121
    $region120: #{tpu_custom_call.1} parent=1 // pred_region
      %s376 = ssub.s32 16, 16
      %377 = vsyncadd [#allocation42], %s376
      %s379 = sshll.u32 [#allocation41], 4
      %s380 = int_to_ptr.vmem [resolvable:$true] %s379
      %382 = dma.hbm_to_vmem [thread:$0]  %s59, 16, %s380, [#allocation42]
    $region121: #{tpu_custom_call.1} parent=1 // pred_fallthru
      _
    // Predicated region
    $region122: #{tpu_custom_call.1} parent=1 // pred_check
      _
    $region123: #{tpu_custom_call.1} parent=1 // pred_check_branch
      %384 = sbr.rel (0) target = $region125
    $region124: #{tpu_custom_call.1} parent=1 // pred_region
      %385 = dma.done [#allocation3], 512
    $region125: #{tpu_custom_call.1} parent=1 // pred_fallthru
      _
    // Predicated region
    $region126: #{tpu_custom_call.1} parent=1 // pred_check
      _
    $region127: #{tpu_custom_call.1} parent=1 // pred_check_branch
      %387 = sbr.rel (0) target = $region129
    $region128: #{tpu_custom_call.1} parent=1 // pred_region
      %388 = dma.done [#allocation6], 16
    $region129: #{tpu_custom_call.1} parent=1 // pred_fallthru
      _
    // Predicated region
    $region130: #{tpu_custom_call.1} parent=1 // pred_check
      _
    $region131: #{tpu_custom_call.1} parent=1 // pred_check_branch
      %390 = sbr.rel (0) target = $region133
    $region132: #{tpu_custom_call.1} parent=1 // pred_region
      %391 = dma.done [#allocation6], 16
    $region133: #{tpu_custom_call.1} parent=1 // pred_fallthru
      _
    // Predicated region
    $region134: #{tpu_custom_call.1} parent=1 // pred_check
      _
    $region135: #{tpu_custom_call.1} parent=1 // pred_check_branch
      %393 = sbr.rel (0) target = $region137
    $region136: #{tpu_custom_call.1} parent=1 // pred_region
      %394 = dma.done [#allocation9], 512
    $region137: #{tpu_custom_call.1} parent=1 // pred_fallthru
      _
    // Predicated region
    $region138: #{tpu_custom_call.1} parent=1 // pred_check
      _
    $region139: #{tpu_custom_call.1} parent=1 // pred_check_branch
      %396 = sbr.rel (0) target = $region141
    $region140: #{tpu_custom_call.1} parent=1 // pred_region
      %397 = dma.done [#allocation9], 16
    $region141: #{tpu_custom_call.1} parent=1 // pred_fallthru
      _
    // Predicated region
    $region142: #{tpu_custom_call.1} parent=1 // pred_check
      _
    $region143: #{tpu_custom_call.1} parent=1 // pred_check_branch
      %399 = sbr.rel (0) target = $region145
    $region144: #{tpu_custom_call.1} parent=1 // pred_region
      %400 = dma.done [#allocation12], 4096
    $region145: #{tpu_custom_call.1} parent=1 // pred_fallthru
      _
    // Predicated region
    $region146: #{tpu_custom_call.1} parent=1 // pred_check
      _
    $region147: #{tpu_custom_call.1} parent=1 // pred_check_branch
      %402 = sbr.rel (0) target = $region149
    $region148: #{tpu_custom_call.1} parent=1 // pred_region
      %403 = dma.done [#allocation12], 1536
    $region149: #{tpu_custom_call.1} parent=1 // pred_fallthru
      _
    // Predicated region
    $region150: #{tpu_custom_call.1} parent=1 // pred_check
      _
    $region151: #{tpu_custom_call.1} parent=1 // pred_check_branch
      %405 = sbr.rel (0) target = $region153
    $region152: #{tpu_custom_call.1} parent=1 // pred_region
      %406 = dma.done [#allocation15], 12288
    $region153: #{tpu_custom_call.1} parent=1 // pred_fallthru
      _
    // Predicated region
    $region154: #{tpu_custom_call.1} parent=1 // pred_check
      _
    $region155: #{tpu_custom_call.1} parent=1 // pred_check_branch
      %408 = sbr.rel (0) target = $region157
    $region156: #{tpu_custom_call.1} parent=1 // pred_region
      %409 = dma.done [#allocation15], 64
    $region157: #{tpu_custom_call.1} parent=1 // pred_fallthru
      _
    // Predicated region
    $region158: #{tpu_custom_call.1} parent=1 // pred_check
      _
    $region159: #{tpu_custom_call.1} parent=1 // pred_check_branch
      %411 = sbr.rel (0) target = $region161
    $region160: #{tpu_custom_call.1} parent=1 // pred_region
      %412 = dma.done [#allocation18], 512
    $region161: #{tpu_custom_call.1} parent=1 // pred_fallthru
      _
    // Predicated region
    $region162: #{tpu_custom_call.1} parent=1 // pred_check
      _
    $region163: #{tpu_custom_call.1} parent=1 // pred_check_branch
      %414 = sbr.rel (0) target = $region165
    $region164: #{tpu_custom_call.1} parent=1 // pred_region
      %415 = dma.done [#allocation18], 32768
    $region165: #{tpu_custom_call.1} parent=1 // pred_fallthru
      _
    // Predicated region
    $region166: #{tpu_custom_call.1} parent=1 // pred_check
      _
    $region167: #{tpu_custom_call.1} parent=1 // pred_check_branch
      %417 = sbr.rel (0) target = $region169
    $region168: #{tpu_custom_call.1} parent=1 // pred_region
      %418 = dma.done [#allocation21], 768
    $region169: #{tpu_custom_call.1} parent=1 // pred_fallthru
      _
    // Predicated region
    $region170: #{tpu_custom_call.1} parent=1 // pred_check
      _
    $region171: #{tpu_custom_call.1} parent=1 // pred_check_branch
      %420 = sbr.rel (0) target = $region173
    $region172: #{tpu_custom_call.1} parent=1 // pred_region
      %421 = dma.done [#allocation21], 49152
    $region173: #{tpu_custom_call.1} parent=1 // pred_fallthru
      _
    // Predicated region
    $region174: #{tpu_custom_call.1} parent=1 // pred_check
      _
    $region175: #{tpu_custom_call.1} parent=1 // pred_check_branch
      %423 = sbr.rel (0) target = $region177
    $region176: #{tpu_custom_call.1} parent=1 // pred_region
      %424 = dma.done [#allocation24], 64
    $region177: #{tpu_custom_call.1} parent=1 // pred_fallthru
      _
    // Predicated region
    $region178: #{tpu_custom_call.1} parent=1 // pred_check
      _
    $region179: #{tpu_custom_call.1} parent=1 // pred_check_branch
      %426 = sbr.rel (0) target = $region181
    $region180: #{tpu_custom_call.1} parent=1 // pred_region
      %427 = dma.done [#allocation24], 256
    $region181: #{tpu_custom_call.1} parent=1 // pred_fallthru
      _
    // Predicated region
    $region182: #{tpu_custom_call.1} parent=1 // pred_check
      _
    $region183: #{tpu_custom_call.1} parent=1 // pred_check_branch
      %429 = sbr.rel (0) target = $region185
    $region184: #{tpu_custom_call.1} parent=1 // pred_region
      %430 = dma.done [#allocation27], 32768
    $region185: #{tpu_custom_call.1} parent=1 // pred_fallthru
      _
    // Predicated region
    $region186: #{tpu_custom_call.1} parent=1 // pred_check
      _
    $region187: #{tpu_custom_call.1} parent=1 // pred_check_branch
      %432 = sbr.rel (0) target = $region189
    $region188: #{tpu_custom_call.1} parent=1 // pred_region
      %433 = dma.done [#allocation27], 384
    $region189: #{tpu_custom_call.1} parent=1 // pred_fallthru
      _
    // Predicated region
    $region190: #{tpu_custom_call.1} parent=1 // pred_check
      _
    $region191: #{tpu_custom_call.1} parent=1 // pred_check_branch
      %435 = sbr.rel (0) target = $region193
    $region192: #{tpu_custom_call.1} parent=1 // pred_region
      %436 = dma.done [#allocation30], 49152
    $region193: #{tpu_custom_call.1} parent=1 // pred_fallthru
      _
    // Predicated region
    $region194: #{tpu_custom_call.1} parent=1 // pred_check
      _
    $region195: #{tpu_custom_call.1} parent=1 // pred_check_branch
      %438 = sbr.rel (0) target = $region197
    $region196: #{tpu_custom_call.1} parent=1 // pred_region
      %439 = dma.done [#allocation30], 64
    $region197: #{tpu_custom_call.1} parent=1 // pred_fallthru
      _
    // Predicated region
    $region198: #{tpu_custom_call.1} parent=1 // pred_check
      _
    $region199: #{tpu_custom_call.1} parent=1 // pred_check_branch
      %441 = sbr.rel (0) target = $region201
    $region200: #{tpu_custom_call.1} parent=1 // pred_region
      %442 = dma.done [#allocation33], 384
    $region201: #{tpu_custom_call.1} parent=1 // pred_fallthru
      _
    // Predicated region
    $region202: #{tpu_custom_call.1} parent=1 // pred_check
      _
    $region203: #{tpu_custom_call.1} parent=1 // pred_check_branch
      %444 = sbr.rel (0) target = $region205
    $region204: #{tpu_custom_call.1} parent=1 // pred_region
      %445 = dma.done [#allocation33], 49152
    $region205: #{tpu_custom_call.1} parent=1 // pred_fallthru
      _
    // Predicated region
    $region206: #{tpu_custom_call.1} parent=1 // pred_check
      _
    $region207: #{tpu_custom_call.1} parent=1 // pred_check_branch
      %447 = sbr.rel (0) target = $region209
    $region208: #{tpu_custom_call.1} parent=1 // pred_region
      %448 = dma.done [#allocation36], 32
    $region209: #{tpu_custom_call.1} parent=1 // pred_fallthru
      _
    // Predicated region
    $region210: #{tpu_custom_call.1} parent=1 // pred_check
      _
    $region211: #{tpu_custom_call.1} parent=1 // pred_check_branch
      %450 = sbr.rel (0) target = $region213
    $region212: #{tpu_custom_call.1} parent=1 // pred_region
      %451 = dma.done [#allocation36], 24576
    $region213: #{tpu_custom_call.1} parent=1 // pred_fallthru
      _
    // Predicated region
    $region214: #{tpu_custom_call.1} parent=1 // pred_check
      _
    $region215: #{tpu_custom_call.1} parent=1 // pred_check_branch
      %453 = sbr.rel (0) target = $region217
    $region216: #{tpu_custom_call.1} parent=1 // pred_region
      %454 = dma.done [#allocation39], 32
    $region217: #{tpu_custom_call.1} parent=1 // pred_fallthru
      _
    // Predicated region
    $region218: #{tpu_custom_call.1} parent=1 // pred_check
      _
    $region219: #{tpu_custom_call.1} parent=1 // pred_check_branch
      %456 = sbr.rel (0) target = $region221
    $region220: #{tpu_custom_call.1} parent=1 // pred_region
      %457 = dma.done [#allocation39], 12288
    $region221: #{tpu_custom_call.1} parent=1 // pred_fallthru
      _
    // Predicated region
    $region222: #{tpu_custom_call.1} parent=1 // pred_check
      _
    $region223: #{tpu_custom_call.1} parent=1 // pred_check_branch
      %459 = sbr.rel (0) target = $region225
    $region224: #{tpu_custom_call.1} parent=1 // pred_region
      %460 = dma.done [#allocation42], 16
    $region225: #{tpu_custom_call.1} parent=1 // pred_fallthru
      _
    %v461 = vld [vmem:[#allocation2] sm:$0xff]
    %v462 = vld [vmem:[#allocation2 + $0x8] sm:$0xff]
    %v463 = vld [vmem:[#allocation2 + $0x10] sm:$0xff]
    %v464 = vld [vmem:[#allocation2 + $0x18] sm:$0xff]
    %v465 = vld [vmem:[#allocation13] sm:$0xff]
    %v466 = vld [vmem:[#allocation13 + $0x8] sm:$0xff]
    %v467 = vld [vmem:[#allocation13 + $0x10] sm:$0xff]
    %v468 = vld [vmem:[#allocation13 + $0x18] sm:$0xff]
    %vm469 = vcmask 261120
    %v471 = vsel %vm469, %v465, 0
    %v474 = vsel %vm469, %v466, 0
    %v477 = vsel %vm469, %v467, 0
    %v480 = vsel %vm469, %v468, 0
    %482 = vmatprep.subr.mxu0 0.0
    %483 = vmatpush1.msra.mxu0 %v461
    %484 = vmatprep.subr.mxu0 0.0
    %485 = vmatpush1.msra.mxu0 %v462
    %486 = vmatprep.subr.mxu0 0.0
    %487 = vmatpush1.msra.mxu0 %v463
    %488 = vmatprep.subr.mxu0 0.0
    %489 = vmatpush1.msra.mxu0 %v464
    %490 = vmatprep.subr.mxu0 0.0
    %491 = vmatpush1.msra.mxu0 0.0
    %492 = vmatprep.subr.mxu0 0.0
    %493 = vmatpush1.msra.mxu0 0.0
    %494 = vmatprep.subr.mxu0 0.0
    %495 = vmatpush1.msra.mxu0 0.0
    %496 = vmatprep.subr.mxu0 0.0
    %497 = vmatpush1.msra.mxu0 0.0
    %498 = vmatprep.subr.mxu0 0.0
    %499 = vmatpush1.msra.mxu0 0.0
    %500 = vmatprep.subr.mxu0 0.0
    %501 = vmatpush1.msra.mxu0 0.0
    %502 = vmatprep.subr.mxu0 0.0
    %503 = vmatpush1.msra.mxu0 0.0
    %504 = vmatprep.subr.mxu0 0.0
    %505 = vmatpush1.msra.mxu0 0.0
    %506 = vmatprep.subr.mxu0 0.0
    %507 = vmatpush1.msra.mxu0 0.0
    %508 = vmatprep.subr.mxu0 0.0
    %509 = vmatpush1.msra.mxu0 0.0
    %510 = vmatprep.subr.mxu0 0.0
    %511 = vmatpush1.msra.mxu0 0.0
    %512 = vmatprep.subr.mxu0 0.0
    %513 = vmatpush1.msra.mxu0 0.0
    %514 = vmatprep.subr.mxu0 0.0
    %515 = vmatpush1.msra.mxu0 0.0
    %516 = vmatprep.subr.mxu0 0.0
    %517 = vmatpush1.msra.mxu0 0.0
    %518 = vmatprep.subr.mxu0 0.0
    %519 = vmatpush1.msra.mxu0 0.0
    %520 = vmatprep.subr.mxu0 0.0
    %521 = vmatpush1.msra.mxu0 0.0
    %522 = vmatprep.subr.mxu0 0.0
    %523 = vmatpush1.msra.mxu0 0.0
    %524 = vmatprep.subr.mxu0 0.0
    %525 = vmatpush1.msra.mxu0 0.0
    %526 = vmatprep.subr.mxu0 0.0
    %527 = vmatpush1.msra.mxu0 0.0
    %528 = vmatprep.subr.mxu0 0.0
    %529 = vmatpush1.msra.mxu0 0.0
    %530 = vmatprep.subr.mxu0 0.0
    %531 = vmatpush1.msra.mxu0 0.0
    %532 = vmatprep.subr.mxu0 0.0
    %533 = vmatpush1.msra.mxu0 0.0
    %534 = vmatprep.subr.mxu0 0.0
    %535 = vmatpush1.msra.mxu0 0.0
    %536 = vmatprep.subr.mxu0 0.0
    %537 = vmatpush1.msra.mxu0 0.0
    %538 = vmatprep.subr.mxu0 0.0
    %539 = vmatpush1.msra.mxu0 0.0
    %540 = vmatprep.subr.mxu0 0.0
    %541 = vmatpush1.msra.mxu0 0.0
    %542 = vmatprep.subr.mxu0 0.0
    %543 = vmatpush1.msra.mxu0 0.0
    %544 = vmatprep.subr.mxu0 0.0
    %545 = vmatpush1.msra.mxu0 0.0
    %546 = vmatprep.mubr.f32.mxu0 0.0
    %547 = vmatmul.mubr.f32.gmra.mrb[0].mxu0 %v471
    %v548 = vpop.f32.mrb[0].mxu0
    %v549 = vadd.f32 0.0, %v548
    %v550 = vpop.f32.mrb[0].mxu0
    %551 = vmatprep.mubr.f32.mxu0 0.0
    %552 = vmatmul.mubr.f32.gmra.mrb[0].mxu0 %v474
    %v553 = vpop.f32.mrb[0].mxu0
    %v554 = vadd.f32 0.0, %v553
    %v555 = vpop.f32.mrb[0].mxu0
    %556 = vmatprep.mubr.f32.mxu0 0.0
    %557 = vmatmul.mubr.f32.gmra.mrb[0].mxu0 %v477
    %v558 = vpop.f32.mrb[0].mxu0
    %v559 = vadd.f32 0.0, %v558
    %v560 = vpop.f32.mrb[0].mxu0
    %561 = vmatprep.mubr.f32.mxu0 0.0
    %562 = vmatmul.mubr.f32.gmra.mrb[0].mxu0 %v480
    %v563 = vpop.f32.mrb[0].mxu0
    %v564 = vadd.f32 0.0, %v563
    %v565 = vpop.f32.mrb[0].mxu0
    %566 = vdwg.mxu0
    %v567 = vld [vmem:[#allocation14] sm:$0xff]
    %v568 = vld [vmem:[#allocation14 + $0x8] sm:$0xff]
    %v569 = vld [vmem:[#allocation14 + $0x10] sm:$0xff]
    %v570 = vld [vmem:[#allocation14 + $0x18] sm:$0xff]
    %v571 = vld [vmem:[#allocation14 + $0x20] sm:$0xff]
    %v572 = vld [vmem:[#allocation14 + $0x28] sm:$0xff]
    %v573 = vld [vmem:[#allocation14 + $0x30] sm:$0xff]
    %v574 = vld [vmem:[#allocation14 + $0x38] sm:$0xff]
    %v575 = vld [vmem:[#allocation14 + $0x40] sm:$0xff]
    %v576 = vld [vmem:[#allocation14 + $0x48] sm:$0xff]
    %v577 = vld [vmem:[#allocation14 + $0x50] sm:$0xff]
    %v578 = vld [vmem:[#allocation14 + $0x58] sm:$0xff]
    %v579 = vld [vmem:[#allocation14 + $0x60] sm:$0xff]
    %v580 = vld [vmem:[#allocation14 + $0x68] sm:$0xff]
    %v581 = vld [vmem:[#allocation14 + $0x70] sm:$0xff]
    %v582 = vld [vmem:[#allocation14 + $0x78] sm:$0xff]
    %v583 = vld [vmem:[#allocation14 + $0x80] sm:$0xff]
    %v584 = vld [vmem:[#allocation14 + $0x88] sm:$0xff]
    %v585 = vld [vmem:[#allocation14 + $0x90] sm:$0xff]
    %v586 = vld [vmem:[#allocation14 + $0x98] sm:$0xff]
    %v587 = vld [vmem:[#allocation14 + $0xa0] sm:$0xff]
    %v588 = vld [vmem:[#allocation14 + $0xa8] sm:$0xff]
    %v589 = vld [vmem:[#allocation14 + $0xb0] sm:$0xff]
    %v590 = vld [vmem:[#allocation14 + $0xb8] sm:$0xff]
    %v591 = vld [vmem:[#allocation14 + $0xc0] sm:$0xff]
    %v592 = vld [vmem:[#allocation14 + $0xc8] sm:$0xff]
    %v593 = vld [vmem:[#allocation14 + $0xd0] sm:$0xff]
    %v594 = vld [vmem:[#allocation14 + $0xd8] sm:$0xff]
    %v595 = vld [vmem:[#allocation14 + $0xe0] sm:$0xff]
    %v596 = vld [vmem:[#allocation14 + $0xe8] sm:$0xff]
    %v597 = vld [vmem:[#allocation14 + $0xf0] sm:$0xff]
    %v598 = vld [vmem:[#allocation14 + $0xf8] sm:$0xff]
    %s599 = scalar_lea.vmem [#allocation13], 32
    %v600 = vld [vmem:[%s599] sm:$0xff]
    %v601 = vld [vmem:[%s599 + $0x8] sm:$0xff]
    %v602 = vld [vmem:[%s599 + $0x10] sm:$0xff]
    %v603 = vld [vmem:[%s599 + $0x18] sm:$0xff]
    %v605 = vsel %vm469, %v600, 0
    %v608 = vsel %vm469, %v601, 0
    %v611 = vsel %vm469, %v602, 0
    %v614 = vsel %vm469, %v603, 0
    %616 = vmatprep.subr.mxu0 0.0
    %617 = vmatpush1.msra.mxu0 %v461
    %618 = vmatprep.subr.mxu0 0.0
    %619 = vmatpush1.msra.mxu0 %v462
    %620 = vmatprep.subr.mxu0 0.0
    %621 = vmatpush1.msra.mxu0 %v463
    %622 = vmatprep.subr.mxu0 0.0
    %623 = vmatpush1.msra.mxu0 %v464
    %624 = vmatprep.subr.mxu0 0.0
    %625 = vmatpush1.msra.mxu0 0.0
    %626 = vmatprep.subr.mxu0 0.0
    %627 = vmatpush1.msra.mxu0 0.0
    %628 = vmatprep.subr.mxu0 0.0
    %629 = vmatpush1.msra.mxu0 0.0
    %630 = vmatprep.subr.mxu0 0.0
    %631 = vmatpush1.msra.mxu0 0.0
    %632 = vmatprep.subr.mxu0 0.0
    %633 = vmatpush1.msra.mxu0 0.0
    %634 = vmatprep.subr.mxu0 0.0
    %635 = vmatpush1.msra.mxu0 0.0
    %636 = vmatprep.subr.mxu0 0.0
    %637 = vmatpush1.msra.mxu0 0.0
    %638 = vmatprep.subr.mxu0 0.0
    %639 = vmatpush1.msra.mxu0 0.0
    %640 = vmatprep.subr.mxu0 0.0
    %641 = vmatpush1.msra.mxu0 0.0
    %642 = vmatprep.subr.mxu0 0.0
    %643 = vmatpush1.msra.mxu0 0.0
    %644 = vmatprep.subr.mxu0 0.0
    %645 = vmatpush1.msra.mxu0 0.0
    %646 = vmatprep.subr.mxu0 0.0
    %647 = vmatpush1.msra.mxu0 0.0
    %648 = vmatprep.subr.mxu0 0.0
    %649 = vmatpush1.msra.mxu0 0.0
    %650 = vmatprep.subr.mxu0 0.0
    %651 = vmatpush1.msra.mxu0 0.0
    %652 = vmatprep.subr.mxu0 0.0
    %653 = vmatpush1.msra.mxu0 0.0
    %654 = vmatprep.subr.mxu0 0.0
    %655 = vmatpush1.msra.mxu0 0.0
    %656 = vmatprep.subr.mxu0 0.0
    %657 = vmatpush1.msra.mxu0 0.0
    %658 = vmatprep.subr.mxu0 0.0
    %659 = vmatpush1.msra.mxu0 0.0
    %660 = vmatprep.subr.mxu0 0.0
    %661 = vmatpush1.msra.mxu0 0.0
    %662 = vmatprep.subr.mxu0 0.0
    %663 = vmatpush1.msra.mxu0 0.0
    %664 = vmatprep.subr.mxu0 0.0
    %665 = vmatpush1.msra.mxu0 0.0
    %666 = vmatprep.subr.mxu0 0.0
    %667 = vmatpush1.msra.mxu0 0.0
    %668 = vmatprep.subr.mxu0 0.0
    %669 = vmatpush1.msra.mxu0 0.0
    %670 = vmatprep.subr.mxu0 0.0
    %671 = vmatpush1.msra.mxu0 0.0
    %672 = vmatprep.subr.mxu0 0.0
    %673 = vmatpush1.msra.mxu0 0.0
    %674 = vmatprep.subr.mxu0 0.0
    %675 = vmatpush1.msra.mxu0 0.0
    %676 = vmatprep.subr.mxu0 0.0
    %677 = vmatpush1.msra.mxu0 0.0
    %678 = vmatprep.subr.mxu0 0.0
    %679 = vmatpush1.msra.mxu0 0.0
    %680 = vmatprep.mubr.f32.mxu0 0.0
    %681 = vmatmul.mubr.f32.gmra.mrb[0].mxu0 %v605
    %v682 = vpop.f32.mrb[0].mxu0
    %v683 = vadd.f32 0.0, %v682
    %v684 = vpop.f32.mrb[0].mxu0
    %685 = vmatprep.mubr.f32.mxu0 0.0
    %686 = vmatmul.mubr.f32.gmra.mrb[0].mxu0 %v608
    %v687 = vpop.f32.mrb[0].mxu0
    %v688 = vadd.f32 0.0, %v687
    %v689 = vpop.f32.mrb[0].mxu0
    %690 = vmatprep.mubr.f32.mxu0 0.0
    %691 = vmatmul.mubr.f32.gmra.mrb[0].mxu0 %v611
    %v692 = vpop.f32.mrb[0].mxu0
    %v693 = vadd.f32 0.0, %v692
    %v694 = vpop.f32.mrb[0].mxu0
    %695 = vmatprep.mubr.f32.mxu0 0.0
    %696 = vmatmul.mubr.f32.gmra.mrb[0].mxu0 %v614
    %v697 = vpop.f32.mrb[0].mxu0
    %v698 = vadd.f32 0.0, %v697
    %v699 = vpop.f32.mrb[0].mxu0
    %700 = vdwg.mxu0
    %s701 = scalar_lea.vmem [#allocation14], 256
    %v702 = vld [vmem:[%s701] sm:$0xff]
    %v703 = vld [vmem:[%s701 + $0x8] sm:$0xff]
    %v704 = vld [vmem:[%s701 + $0x10] sm:$0xff]
    %v705 = vld [vmem:[%s701 + $0x18] sm:$0xff]
    %v706 = vld [vmem:[%s701 + $0x20] sm:$0xff]
    %v707 = vld [vmem:[%s701 + $0x28] sm:$0xff]
    %v708 = vld [vmem:[%s701 + $0x30] sm:$0xff]
    %v709 = vld [vmem:[%s701 + $0x38] sm:$0xff]
    %v710 = vld [vmem:[%s701 + $0x40] sm:$0xff]
    %v711 = vld [vmem:[%s701 + $0x48] sm:$0xff]
    %v712 = vld [vmem:[%s701 + $0x50] sm:$0xff]
    %v713 = vld [vmem:[%s701 + $0x58] sm:$0xff]
    %v714 = vld [vmem:[%s701 + $0x60] sm:$0xff]
    %v715 = vld [vmem:[%s701 + $0x68] sm:$0xff]
    %v716 = vld [vmem:[%s701 + $0x70] sm:$0xff]
    %v717 = vld [vmem:[%s701 + $0x78] sm:$0xff]
    %v718 = vld [vmem:[%s701 + $0x80] sm:$0xff]
    %v719 = vld [vmem:[%s701 + $0x88] sm:$0xff]
    %v720 = vld [vmem:[%s701 + $0x90] sm:$0xff]
    %v721 = vld [vmem:[%s701 + $0x98] sm:$0xff]
    %v722 = vld [vmem:[%s701 + $0xa0] sm:$0xff]
    %v723 = vld [vmem:[%s701 + $0xa8] sm:$0xff]
    %v724 = vld [vmem:[%s701 + $0xb0] sm:$0xff]
    %v725 = vld [vmem:[%s701 + $0xb8] sm:$0xff]
    %v726 = vld [vmem:[%s701 + $0xc0] sm:$0xff]
    %v727 = vld [vmem:[%s701 + $0xc8] sm:$0xff]
    %v728 = vld [vmem:[%s701 + $0xd0] sm:$0xff]
    %v729 = vld [vmem:[%s701 + $0xd8] sm:$0xff]
    %v730 = vld [vmem:[%s701 + $0xe0] sm:$0xff]
    %v731 = vld [vmem:[%s701 + $0xe8] sm:$0xff]
    %v732 = vld [vmem:[%s701 + $0xf0] sm:$0xff]
    %v733 = vld [vmem:[%s701 + $0xf8] sm:$0xff]
    %vm734 = vcmask 523264
    %v736 = vsel %vm734, %v683, 0
    %v739 = vsel %vm734, %v688, 0
    %v742 = vsel %vm734, %v693, 0
    %v745 = vsel %vm734, %v698, 0
    %747 = vmatprep.subr.mxu0 %v703
    %748 = vmatpush1.msra.mxu0 %v702
    %749 = vmatprep.subr.mxu0 %v707
    %750 = vmatpush1.msra.mxu0 %v706
    %751 = vmatprep.subr.mxu0 %v711
    %752 = vmatpush1.msra.mxu0 %v710
    %753 = vmatprep.subr.mxu0 %v715
    %754 = vmatpush1.msra.mxu0 %v714
    %755 = vmatprep.subr.mxu0 %v719
    %756 = vmatpush1.msra.mxu0 %v718
    %757 = vmatprep.subr.mxu0 %v723
    %758 = vmatpush1.msra.mxu0 %v722
    %759 = vmatprep.subr.mxu0 %v727
    %760 = vmatpush1.msra.mxu0 %v726
    %761 = vmatprep.subr.mxu0 %v731
    %762 = vmatpush1.msra.mxu0 %v730
    %763 = vmatprep.subr.mxu0 0.0
    %764 = vmatpush1.msra.mxu0 0.0
    %765 = vmatprep.subr.mxu0 0.0
    %766 = vmatpush1.msra.mxu0 0.0
    %767 = vmatprep.subr.mxu0 0.0
    %768 = vmatpush1.msra.mxu0 0.0
    %769 = vmatprep.subr.mxu0 0.0
    %770 = vmatpush1.msra.mxu0 0.0
    %771 = vmatprep.subr.mxu0 0.0
    %772 = vmatpush1.msra.mxu0 0.0
    %773 = vmatprep.subr.mxu0 0.0
    %774 = vmatpush1.msra.mxu0 0.0
    %775 = vmatprep.subr.mxu0 0.0
    %776 = vmatpush1.msra.mxu0 0.0
    %777 = vmatprep.subr.mxu0 0.0
    %778 = vmatpush1.msra.mxu0 0.0
    %779 = vmatprep.subr.mxu0 0.0
    %780 = vmatpush1.msra.mxu0 0.0
    %781 = vmatprep.subr.mxu0 0.0
    %782 = vmatpush1.msra.mxu0 0.0
    %783 = vmatprep.subr.mxu0 0.0
    %784 = vmatpush1.msra.mxu0 0.0
    %785 = vmatprep.subr.mxu0 0.0
    %786 = vmatpush1.msra.mxu0 0.0
    %787 = vmatprep.subr.mxu0 0.0
    %788 = vmatpush1.msra.mxu0 0.0
    %789 = vmatprep.subr.mxu0 0.0
    %790 = vmatpush1.msra.mxu0 0.0
    %791 = vmatprep.subr.mxu0 0.0
    %792 = vmatpush1.msra.mxu0 0.0
    %793 = vmatprep.subr.mxu0 0.0
    %794 = vmatpush1.msra.mxu0 0.0
    %795 = vmatprep.subr.mxu0 0.0
    %796 = vmatpush1.msra.mxu0 0.0
    %797 = vmatprep.subr.mxu0 0.0
    %798 = vmatpush1.msra.mxu0 0.0
    %799 = vmatprep.subr.mxu0 0.0
    %800 = vmatpush1.msra.mxu0 0.0
    %801 = vmatprep.subr.mxu0 0.0
    %802 = vmatpush1.msra.mxu0 0.0
    %803 = vmatprep.subr.mxu0 0.0
    %804 = vmatpush1.msra.mxu0 0.0
    %805 = vmatprep.subr.mxu0 0.0
    %806 = vmatpush1.msra.mxu0 0.0
    %807 = vmatprep.subr.mxu0 0.0
    %808 = vmatpush1.msra.mxu0 0.0
    %809 = vmatprep.subr.mxu0 0.0
    %810 = vmatpush1.msra.mxu0 0.0
    %811 = vmatprep.mubr.f32.mxu0 0.0
    %812 = vmatmul.mubr.f32.gmra.mrb[0].mxu0 %v736
    %v813 = vpop.f32.mrb[0].mxu0
    %v814 = vadd.f32 0.0, %v813
    %v815 = vpop.f32.mrb[0].mxu0
    %v816 = vadd.f32 0.0, %v815
    %817 = vmatprep.mubr.f32.mxu0 0.0
    %818 = vmatmul.mubr.f32.gmra.mrb[0].mxu0 %v739
    %v819 = vpop.f32.mrb[0].mxu0
    %v820 = vadd.f32 0.0, %v819
    %v821 = vpop.f32.mrb[0].mxu0
    %v822 = vadd.f32 0.0, %v821
    %823 = vmatprep.mubr.f32.mxu0 0.0
    %824 = vmatmul.mubr.f32.gmra.mrb[0].mxu0 %v742
    %v825 = vpop.f32.mrb[0].mxu0
    %v826 = vadd.f32 0.0, %v825
    %v827 = vpop.f32.mrb[0].mxu0
    %v828 = vadd.f32 0.0, %v827
    %829 = vmatprep.mubr.f32.mxu0 0.0
    %830 = vmatmul.mubr.f32.gmra.mrb[0].mxu0 %v745
    %v831 = vpop.f32.mrb[0].mxu0
    %v832 = vadd.f32 0.0, %v831
    %v833 = vpop.f32.mrb[0].mxu0
    %v834 = vadd.f32 0.0, %v833
    %835 = vdwg.mxu0
    %836 = vmatprep.subr.mxu0 %v705
    %837 = vmatpush1.msra.mxu0 %v704
    %838 = vmatprep.subr.mxu0 %v709
    %839 = vmatpush1.msra.mxu0 %v708
    %840 = vmatprep.subr.mxu0 %v713
    %841 = vmatpush1.msra.mxu0 %v712
    %842 = vmatprep.subr.mxu0 %v717
    %843 = vmatpush1.msra.mxu0 %v716
    %844 = vmatprep.subr.mxu0 %v721
    %845 = vmatpush1.msra.mxu0 %v720
    %846 = vmatprep.subr.mxu0 %v725
    %847 = vmatpush1.msra.mxu0 %v724
    %848 = vmatprep.subr.mxu0 %v729
    %849 = vmatpush1.msra.mxu0 %v728
    %850 = vmatprep.subr.mxu0 %v733
    %851 = vmatpush1.msra.mxu0 %v732
    %852 = vmatprep.subr.mxu0 0.0
    %853 = vmatpush1.msra.mxu0 0.0
    %854 = vmatprep.subr.mxu0 0.0
    %855 = vmatpush1.msra.mxu0 0.0
    %856 = vmatprep.subr.mxu0 0.0
    %857 = vmatpush1.msra.mxu0 0.0
    %858 = vmatprep.subr.mxu0 0.0
    %859 = vmatpush1.msra.mxu0 0.0
    %860 = vmatprep.subr.mxu0 0.0
    %861 = vmatpush1.msra.mxu0 0.0
    %862 = vmatprep.subr.mxu0 0.0
    %863 = vmatpush1.msra.mxu0 0.0
    %864 = vmatprep.subr.mxu0 0.0
    %865 = vmatpush1.msra.mxu0 0.0
    %866 = vmatprep.subr.mxu0 0.0
    %867 = vmatpush1.msra.mxu0 0.0
    %868 = vmatprep.subr.mxu0 0.0
    %869 = vmatpush1.msra.mxu0 0.0
    %870 = vmatprep.subr.mxu0 0.0
    %871 = vmatpush1.msra.mxu0 0.0
    %872 = vmatprep.subr.mxu0 0.0
    %873 = vmatpush1.msra.mxu0 0.0
    %874 = vmatprep.subr.mxu0 0.0
    %875 = vmatpush1.msra.mxu0 0.0
    %876 = vmatprep.subr.mxu0 0.0
    %877 = vmatpush1.msra.mxu0 0.0
    %878 = vmatprep.subr.mxu0 0.0
    %879 = vmatpush1.msra.mxu0 0.0
    %880 = vmatprep.subr.mxu0 0.0
    %881 = vmatpush1.msra.mxu0 0.0
    %882 = vmatprep.subr.mxu0 0.0
    %883 = vmatpush1.msra.mxu0 0.0
    %884 = vmatprep.subr.mxu0 0.0
    %885 = vmatpush1.msra.mxu0 0.0
    %886 = vmatprep.subr.mxu0 0.0
    %887 = vmatpush1.msra.mxu0 0.0
    %888 = vmatprep.subr.mxu0 0.0
    %889 = vmatpush1.msra.mxu0 0.0
    %890 = vmatprep.subr.mxu0 0.0
    %891 = vmatpush1.msra.mxu0 0.0
    %892 = vmatprep.subr.mxu0 0.0
    %893 = vmatpush1.msra.mxu0 0.0
    %894 = vmatprep.subr.mxu0 0.0
    %895 = vmatpush1.msra.mxu0 0.0
    %896 = vmatprep.subr.mxu0 0.0
    %897 = vmatpush1.msra.mxu0 0.0
    %898 = vmatprep.subr.mxu0 0.0
    %899 = vmatpush1.msra.mxu0 0.0
    %900 = vmatprep.mubr.f32.mxu0 0.0
    %901 = vmatmul.mubr.f32.gmra.mrb[0].mxu0 %v736
    %v902 = vpop.f32.mrb[0].mxu0
    %v903 = vadd.f32 0.0, %v902
    %v904 = vpop.f32.mrb[0].mxu0
    %v905 = vadd.f32 0.0, %v904
    %906 = vmatprep.mubr.f32.mxu0 0.0
    %907 = vmatmul.mubr.f32.gmra.mrb[0].mxu0 %v739
    %v908 = vpop.f32.mrb[0].mxu0
    %v909 = vadd.f32 0.0, %v908
    %v910 = vpop.f32.mrb[0].mxu0
    %v911 = vadd.f32 0.0, %v910
    %912 = vmatprep.mubr.f32.mxu0 0.0
    %913 = vmatmul.mubr.f32.gmra.mrb[0].mxu0 %v742
    %v914 = vpop.f32.mrb[0].mxu0
    %v915 = vadd.f32 0.0, %v914
    %v916 = vpop.f32.mrb[0].mxu0
    %v917 = vadd.f32 0.0, %v916
    %918 = vmatprep.mubr.f32.mxu0 0.0
    %919 = vmatmul.mubr.f32.gmra.mrb[0].mxu0 %v745
    %v920 = vpop.f32.mrb[0].mxu0
    %v921 = vadd.f32 0.0, %v920
    %v922 = vpop.f32.mrb[0].mxu0
    %v923 = vadd.f32 0.0, %v922
    %924 = vdwg.mxu0
    %v926 = vsel %vm734, %v549, 0
    %v929 = vsel %vm734, %v554, 0
    %v932 = vsel %vm734, %v559, 0
    %v935 = vsel %vm734, %v564, 0
    %937 = vmatprep.subr.mxu0 %v568
    %938 = vmatpush1.msra.mxu0 %v567
    %939 = vmatprep.subr.mxu0 %v572
    %940 = vmatpush1.msra.mxu0 %v571
    %941 = vmatprep.subr.mxu0 %v576
    %942 = vmatpush1.msra.mxu0 %v575
    %943 = vmatprep.subr.mxu0 %v580
    %944 = vmatpush1.msra.mxu0 %v579
    %945 = vmatprep.subr.mxu0 %v584
    %946 = vmatpush1.msra.mxu0 %v583
    %947 = vmatprep.subr.mxu0 %v588
    %948 = vmatpush1.msra.mxu0 %v587
    %949 = vmatprep.subr.mxu0 %v592
    %950 = vmatpush1.msra.mxu0 %v591
    %951 = vmatprep.subr.mxu0 %v596
    %952 = vmatpush1.msra.mxu0 %v595
    %953 = vmatprep.subr.mxu0 0.0
    %954 = vmatpush1.msra.mxu0 0.0
    %955 = vmatprep.subr.mxu0 0.0
    %956 = vmatpush1.msra.mxu0 0.0
    %957 = vmatprep.subr.mxu0 0.0
    %958 = vmatpush1.msra.mxu0 0.0
    %959 = vmatprep.subr.mxu0 0.0
    %960 = vmatpush1.msra.mxu0 0.0
    %961 = vmatprep.subr.mxu0 0.0
    %962 = vmatpush1.msra.mxu0 0.0
    %963 = vmatprep.subr.mxu0 0.0
    %964 = vmatpush1.msra.mxu0 0.0
    %965 = vmatprep.subr.mxu0 0.0
    %966 = vmatpush1.msra.mxu0 0.0
    %967 = vmatprep.subr.mxu0 0.0
    %968 = vmatpush1.msra.mxu0 0.0
    %969 = vmatprep.subr.mxu0 0.0
    %970 = vmatpush1.msra.mxu0 0.0
    %971 = vmatprep.subr.mxu0 0.0
    %972 = vmatpush1.msra.mxu0 0.0
    %973 = vmatprep.subr.mxu0 0.0
    %974 = vmatpush1.msra.mxu0 0.0
    %975 = vmatprep.subr.mxu0 0.0
    %976 = vmatpush1.msra.mxu0 0.0
    %977 = vmatprep.subr.mxu0 0.0
    %978 = vmatpush1.msra.mxu0 0.0
    %979 = vmatprep.subr.mxu0 0.0
    %980 = vmatpush1.msra.mxu0 0.0
    %981 = vmatprep.subr.mxu0 0.0
    %982 = vmatpush1.msra.mxu0 0.0
    %983 = vmatprep.subr.mxu0 0.0
    %984 = vmatpush1.msra.mxu0 0.0
    %985 = vmatprep.subr.mxu0 0.0
    %986 = vmatpush1.msra.mxu0 0.0
    %987 = vmatprep.subr.mxu0 0.0
    %988 = vmatpush1.msra.mxu0 0.0
    %989 = vmatprep.subr.mxu0 0.0
    %990 = vmatpush1.msra.mxu0 0.0
    %991 = vmatprep.subr.mxu0 0.0
    %992 = vmatpush1.msra.mxu0 0.0
    %993 = vmatprep.subr.mxu0 0.0
    %994 = vmatpush1.msra.mxu0 0.0
    %995 = vmatprep.subr.mxu0 0.0
    %996 = vmatpush1.msra.mxu0 0.0
    %997 = vmatprep.subr.mxu0 0.0
    %998 = vmatpush1.msra.mxu0 0.0
    %999 = vmatprep.subr.mxu0 0.0
    %1000 = vmatpush1.msra.mxu0 0.0
    %1001 = vmatprep.mubr.f32.mxu0 0.0
    %1002 = vmatmul.mubr.f32.gmra.mrb[0].mxu0 %v926
    %v1003 = vpop.f32.mrb[0].mxu0
    %v1004 = vadd.f32 %v814, %v1003
    %v1005 = vpop.f32.mrb[0].mxu0
    %v1006 = vadd.f32 %v816, %v1005
    %1007 = vmatprep.mubr.f32.mxu0 0.0
    %1008 = vmatmul.mubr.f32.gmra.mrb[0].mxu0 %v929
    %v1009 = vpop.f32.mrb[0].mxu0
    %v1010 = vadd.f32 %v820, %v1009
    %v1011 = vpop.f32.mrb[0].mxu0
    %v1012 = vadd.f32 %v822, %v1011
    %1013 = vmatprep.mubr.f32.mxu0 0.0
    %1014 = vmatmul.mubr.f32.gmra.mrb[0].mxu0 %v932
    %v1015 = vpop.f32.mrb[0].mxu0
    %v1016 = vadd.f32 %v826, %v1015
    %v1017 = vpop.f32.mrb[0].mxu0
    %v1018 = vadd.f32 %v828, %v1017
    %1019 = vmatprep.mubr.f32.mxu0 0.0
    %1020 = vmatmul.mubr.f32.gmra.mrb[0].mxu0 %v935
    %v1021 = vpop.f32.mrb[0].mxu0
    %v1022 = vadd.f32 %v832, %v1021
    %v1023 = vpop.f32.mrb[0].mxu0
    %v1024 = vadd.f32 %v834, %v1023
    %1025 = vdwg.mxu0
    %1026 = vmatprep.subr.mxu0 %v570
    %1027 = vmatpush1.msra.mxu0 %v569
    %1028 = vmatprep.subr.mxu0 %v574
    %1029 = vmatpush1.msra.mxu0 %v573
    %1030 = vmatprep.subr.mxu0 %v578
    %1031 = vmatpush1.msra.mxu0 %v577
    %1032 = vmatprep.subr.mxu0 %v582
    %1033 = vmatpush1.msra.mxu0 %v581
    %1034 = vmatprep.subr.mxu0 %v586
    %1035 = vmatpush1.msra.mxu0 %v585
    %1036 = vmatprep.subr.mxu0 %v590
    %1037 = vmatpush1.msra.mxu0 %v589
    %1038 = vmatprep.subr.mxu0 %v594
    %1039 = vmatpush1.msra.mxu0 %v593
    %1040 = vmatprep.subr.mxu0 %v598
    %1041 = vmatpush1.msra.mxu0 %v597
    %1042 = vmatprep.subr.mxu0 0.0
    %1043 = vmatpush1.msra.mxu0 0.0
    %1044 = vmatprep.subr.mxu0 0.0
    %1045 = vmatpush1.msra.mxu0 0.0
    %1046 = vmatprep.subr.mxu0 0.0
    %1047 = vmatpush1.msra.mxu0 0.0
    %1048 = vmatprep.subr.mxu0 0.0
    %1049 = vmatpush1.msra.mxu0 0.0
    %1050 = vmatprep.subr.mxu0 0.0
    %1051 = vmatpush1.msra.mxu0 0.0
    %1052 = vmatprep.subr.mxu0 0.0
    %1053 = vmatpush1.msra.mxu0 0.0
    %1054 = vmatprep.subr.mxu0 0.0
    %1055 = vmatpush1.msra.mxu0 0.0
    %1056 = vmatprep.subr.mxu0 0.0
    %1057 = vmatpush1.msra.mxu0 0.0
    %1058 = vmatprep.subr.mxu0 0.0
    %1059 = vmatpush1.msra.mxu0 0.0
    %1060 = vmatprep.subr.mxu0 0.0
    %1061 = vmatpush1.msra.mxu0 0.0
    %1062 = vmatprep.subr.mxu0 0.0
    %1063 = vmatpush1.msra.mxu0 0.0
    %1064 = vmatprep.subr.mxu0 0.0
    %1065 = vmatpush1.msra.mxu0 0.0
    %1066 = vmatprep.subr.mxu0 0.0
    %1067 = vmatpush1.msra.mxu0 0.0
    %1068 = vmatprep.subr.mxu0 0.0
    %1069 = vmatpush1.msra.mxu0 0.0
    %1070 = vmatprep.subr.mxu0 0.0
    %1071 = vmatpush1.msra.mxu0 0.0
    %1072 = vmatprep.subr.mxu0 0.0
    %1073 = vmatpush1.msra.mxu0 0.0
    %1074 = vmatprep.subr.mxu0 0.0
    %1075 = vmatpush1.msra.mxu0 0.0
    %1076 = vmatprep.subr.mxu0 0.0
    %1077 = vmatpush1.msra.mxu0 0.0
    %1078 = vmatprep.subr.mxu0 0.0
    %1079 = vmatpush1.msra.mxu0 0.0
    %1080 = vmatprep.subr.mxu0 0.0
    %1081 = vmatpush1.msra.mxu0 0.0
    %1082 = vmatprep.subr.mxu0 0.0
    %1083 = vmatpush1.msra.mxu0 0.0
    %1084 = vmatprep.subr.mxu0 0.0
    %1085 = vmatpush1.msra.mxu0 0.0
    %1086 = vmatprep.subr.mxu0 0.0
    %1087 = vmatpush1.msra.mxu0 0.0
    %1088 = vmatprep.subr.mxu0 0.0
    %1089 = vmatpush1.msra.mxu0 0.0
    %1090 = vmatprep.mubr.f32.mxu0 0.0
    %1091 = vmatmul.mubr.f32.gmra.mrb[0].mxu0 %v926
    %v1092 = vpop.f32.mrb[0].mxu0
    %v1093 = vadd.f32 %v903, %v1092
    %v1094 = vpop.f32.mrb[0].mxu0
    %v1095 = vadd.f32 %v905, %v1094
    %1096 = vmatprep.mubr.f32.mxu0 0.0
    %1097 = vmatmul.mubr.f32.gmra.mrb[0].mxu0 %v929
    %v1098 = vpop.f32.mrb[0].mxu0
    %v1099 = vadd.f32 %v909, %v1098
    %v1100 = vpop.f32.mrb[0].mxu0
    %v1101 = vadd.f32 %v911, %v1100
    %1102 = vmatprep.mubr.f32.mxu0 0.0
    %1103 = vmatmul.mubr.f32.gmra.mrb[0].mxu0 %v932
    %v1104 = vpop.f32.mrb[0].mxu0
    %v1105 = vadd.f32 %v915, %v1104
    %v1106 = vpop.f32.mrb[0].mxu0
    %v1107 = vadd.f32 %v917, %v1106
    %1108 = vmatprep.mubr.f32.mxu0 0.0
    %1109 = vmatmul.mubr.f32.gmra.mrb[0].mxu0 %v935
    %v1110 = vpop.f32.mrb[0].mxu0
    %v1111 = vadd.f32 %v921, %v1110
    %v1112 = vpop.f32.mrb[0].mxu0
    %v1113 = vadd.f32 %v923, %v1112
    %1114 = vdwg.mxu0
    %s1115 = scalar_lea.vmem [#allocation13], 64
    %v1116 = vld [vmem:[%s1115] sm:$0xff]
    %v1117 = vld [vmem:[%s1115 + $0x8] sm:$0xff]
    %v1118 = vld [vmem:[%s1115 + $0x10] sm:$0xff]
    %v1119 = vld [vmem:[%s1115 + $0x18] sm:$0xff]
    %v1121 = vsel %vm469, %v1116, 0
    %v1124 = vsel %vm469, %v1117, 0
    %v1127 = vsel %vm469, %v1118, 0
    %v1130 = vsel %vm469, %v1119, 0
    %1132 = vmatprep.subr.mxu0 0.0
    %1133 = vmatpush1.msra.mxu0 %v461
    %1134 = vmatprep.subr.mxu0 0.0
    %1135 = vmatpush1.msra.mxu0 %v462
    %1136 = vmatprep.subr.mxu0 0.0
    %1137 = vmatpush1.msra.mxu0 %v463
    %1138 = vmatprep.subr.mxu0 0.0
    %1139 = vmatpush1.msra.mxu0 %v464
    %1140 = vmatprep.subr.mxu0 0.0
    %1141 = vmatpush1.msra.mxu0 0.0
    %1142 = vmatprep.subr.mxu0 0.0
    %1143 = vmatpush1.msra.mxu0 0.0
    %1144 = vmatprep.subr.mxu0 0.0
    %1145 = vmatpush1.msra.mxu0 0.0
    %1146 = vmatprep.subr.mxu0 0.0
    %1147 = vmatpush1.msra.mxu0 0.0
    %1148 = vmatprep.subr.mxu0 0.0
    %1149 = vmatpush1.msra.mxu0 0.0
    %1150 = vmatprep.subr.mxu0 0.0
    %1151 = vmatpush1.msra.mxu0 0.0
    %1152 = vmatprep.subr.mxu0 0.0
    %1153 = vmatpush1.msra.mxu0 0.0
    %1154 = vmatprep.subr.mxu0 0.0
    %1155 = vmatpush1.msra.mxu0 0.0
    %1156 = vmatprep.subr.mxu0 0.0
    %1157 = vmatpush1.msra.mxu0 0.0
    %1158 = vmatprep.subr.mxu0 0.0
    %1159 = vmatpush1.msra.mxu0 0.0
    %1160 = vmatprep.subr.mxu0 0.0
    %1161 = vmatpush1.msra.mxu0 0.0
    %1162 = vmatprep.subr.mxu0 0.0
    %1163 = vmatpush1.msra.mxu0 0.0
    %1164 = vmatprep.subr.mxu0 0.0
    %1165 = vmatpush1.msra.mxu0 0.0
    %1166 = vmatprep.subr.mxu0 0.0
    %1167 = vmatpush1.msra.mxu0 0.0
    %1168 = vmatprep.subr.mxu0 0.0
    %1169 = vmatpush1.msra.mxu0 0.0
    %1170 = vmatprep.subr.mxu0 0.0
    %1171 = vmatpush1.msra.mxu0 0.0
    %1172 = vmatprep.subr.mxu0 0.0
    %1173 = vmatpush1.msra.mxu0 0.0
    %1174 = vmatprep.subr.mxu0 0.0
    %1175 = vmatpush1.msra.mxu0 0.0
    %1176 = vmatprep.subr.mxu0 0.0
    %1177 = vmatpush1.msra.mxu0 0.0
    %1178 = vmatprep.subr.mxu0 0.0
    %1179 = vmatpush1.msra.mxu0 0.0
    %1180 = vmatprep.subr.mxu0 0.0
    %1181 = vmatpush1.msra.mxu0 0.0
    %1182 = vmatprep.subr.mxu0 0.0
    %1183 = vmatpush1.msra.mxu0 0.0
    %1184 = vmatprep.subr.mxu0 0.0
    %1185 = vmatpush1.msra.mxu0 0.0
    %1186 = vmatprep.subr.mxu0 0.0
    %1187 = vmatpush1.msra.mxu0 0.0
    %1188 = vmatprep.subr.mxu0 0.0
    %1189 = vmatpush1.msra.mxu0 0.0
    %1190 = vmatprep.subr.mxu0 0.0
    %1191 = vmatpush1.msra.mxu0 0.0
    %1192 = vmatprep.subr.mxu0 0.0
    %1193 = vmatpush1.msra.mxu0 0.0
    %1194 = vmatprep.subr.mxu0 0.0
    %1195 = vmatpush1.msra.mxu0 0.0
    %1196 = vmatprep.mubr.f32.mxu0 0.0
    %1197 = vmatmul.mubr.f32.gmra.mrb[0].mxu0 %v1121
    %v1198 = vpop.f32.mrb[0].mxu0
    %v1199 = vadd.f32 0.0, %v1198
    %v1200 = vpop.f32.mrb[0].mxu0
    %1201 = vmatprep.mubr.f32.mxu0 0.0
    %1202 = vmatmul.mubr.f32.gmra.mrb[0].mxu0 %v1124
    %v1203 = vpop.f32.mrb[0].mxu0
    %v1204 = vadd.f32 0.0, %v1203
    %v1205 = vpop.f32.mrb[0].mxu0
    %1206 = vmatprep.mubr.f32.mxu0 0.0
    %1207 = vmatmul.mubr.f32.gmra.mrb[0].mxu0 %v1127
    %v1208 = vpop.f32.mrb[0].mxu0
    %v1209 = vadd.f32 0.0, %v1208
    %v1210 = vpop.f32.mrb[0].mxu0
    %1211 = vmatprep.mubr.f32.mxu0 0.0
    %1212 = vmatmul.mubr.f32.gmra.mrb[0].mxu0 %v1130
    %v1213 = vpop.f32.mrb[0].mxu0
    %v1214 = vadd.f32 0.0, %v1213
    %v1215 = vpop.f32.mrb[0].mxu0
    %1216 = vdwg.mxu0
    %s1217 = scalar_lea.vmem [#allocation14], 512
    %v1218 = vld [vmem:[%s1217] sm:$0xff]
    %v1219 = vld [vmem:[%s1217 + $0x8] sm:$0xff]
    %v1220 = vld [vmem:[%s1217 + $0x10] sm:$0xff]
    %v1221 = vld [vmem:[%s1217 + $0x18] sm:$0xff]
    %v1222 = vld [vmem:[%s1217 + $0x20] sm:$0xff]
    %v1223 = vld [vmem:[%s1217 + $0x28] sm:$0xff]
    %v1224 = vld [vmem:[%s1217 + $0x30] sm:$0xff]
    %v1225 = vld [vmem:[%s1217 + $0x38] sm:$0xff]
    %v1226 = vld [vmem:[%s1217 + $0x40] sm:$0xff]
    %v1227 = vld [vmem:[%s1217 + $0x48] sm:$0xff]
    %v1228 = vld [vmem:[%s1217 + $0x50] sm:$0xff]
    %v1229 = vld [vmem:[%s1217 + $0x58] sm:$0xff]
    %v1230 = vld [vmem:[%s1217 + $0x60] sm:$0xff]
    %v1231 = vld [vmem:[%s1217 + $0x68] sm:$0xff]
    %v1232 = vld [vmem:[%s1217 + $0x70] sm:$0xff]
    %v1233 = vld [vmem:[%s1217 + $0x78] sm:$0xff]
    %v1234 = vld [vmem:[%s1217 + $0x80] sm:$0xff]
    %v1235 = vld [vmem:[%s1217 + $0x88] sm:$0xff]
    %v1236 = vld [vmem:[%s1217 + $0x90] sm:$0xff]
    %v1237 = vld [vmem:[%s1217 + $0x98] sm:$0xff]
    %v1238 = vld [vmem:[%s1217 + $0xa0] sm:$0xff]
    %v1239 = vld [vmem:[%s1217 + $0xa8] sm:$0xff]
    %v1240 = vld [vmem:[%s1217 + $0xb0] sm:$0xff]
    %v1241 = vld [vmem:[%s1217 + $0xb8] sm:$0xff]
    %v1242 = vld [vmem:[%s1217 + $0xc0] sm:$0xff]
    %v1243 = vld [vmem:[%s1217 + $0xc8] sm:$0xff]
    %v1244 = vld [vmem:[%s1217 + $0xd0] sm:$0xff]
    %v1245 = vld [vmem:[%s1217 + $0xd8] sm:$0xff]
    %v1246 = vld [vmem:[%s1217 + $0xe0] sm:$0xff]
    %v1247 = vld [vmem:[%s1217 + $0xe8] sm:$0xff]
    %v1248 = vld [vmem:[%s1217 + $0xf0] sm:$0xff]
    %v1249 = vld [vmem:[%s1217 + $0xf8] sm:$0xff]
    %v1251 = vsel %vm734, %v1199, 0
    %v1254 = vsel %vm734, %v1204, 0
    %v1257 = vsel %vm734, %v1209, 0
    %v1260 = vsel %vm734, %v1214, 0
    %1262 = vmatprep.subr.mxu0 %v1219
    %1263 = vmatpush1.msra.mxu0 %v1218
    %1264 = vmatprep.subr.mxu0 %v1223
    %1265 = vmatpush1.msra.mxu0 %v1222
    %1266 = vmatprep.subr.mxu0 %v1227
    %1267 = vmatpush1.msra.mxu0 %v1226
    %1268 = vmatprep.subr.mxu0 %v1231
    %1269 = vmatpush1.msra.mxu0 %v1230
    %1270 = vmatprep.subr.mxu0 %v1235
    %1271 = vmatpush1.msra.mxu0 %v1234
    %1272 = vmatprep.subr.mxu0 %v1239
    %1273 = vmatpush1.msra.mxu0 %v1238
    %1274 = vmatprep.subr.mxu0 %v1243
    %1275 = vmatpush1.msra.mxu0 %v1242
    %1276 = vmatprep.subr.mxu0 %v1247
    %1277 = vmatpush1.msra.mxu0 %v1246
    %1278 = vmatprep.subr.mxu0 0.0
    %1279 = vmatpush1.msra.mxu0 0.0
    %1280 = vmatprep.subr.mxu0 0.0
    %1281 = vmatpush1.msra.mxu0 0.0
    %1282 = vmatprep.subr.mxu0 0.0
    %1283 = vmatpush1.msra.mxu0 0.0
    %1284 = vmatprep.subr.mxu0 0.0
    %1285 = vmatpush1.msra.mxu0 0.0
    %1286 = vmatprep.subr.mxu0 0.0
    %1287 = vmatpush1.msra.mxu0 0.0
    %1288 = vmatprep.subr.mxu0 0.0
    %1289 = vmatpush1.msra.mxu0 0.0
    %1290 = vmatprep.subr.mxu0 0.0
    %1291 = vmatpush1.msra.mxu0 0.0
    %1292 = vmatprep.subr.mxu0 0.0
    %1293 = vmatpush1.msra.mxu0 0.0
    %1294 = vmatprep.subr.mxu0 0.0
    %1295 = vmatpush1.msra.mxu0 0.0
    %1296 = vmatprep.subr.mxu0 0.0
    %1297 = vmatpush1.msra.mxu0 0.0
    %1298 = vmatprep.subr.mxu0 0.0
    %1299 = vmatpush1.msra.mxu0 0.0
    %1300 = vmatprep.subr.mxu0 0.0
    %1301 = vmatpush1.msra.mxu0 0.0
    %1302 = vmatprep.subr.mxu0 0.0
    %1303 = vmatpush1.msra.mxu0 0.0
    %1304 = vmatprep.subr.mxu0 0.0
    %1305 = vmatpush1.msra.mxu0 0.0
    %1306 = vmatprep.subr.mxu0 0.0
    %1307 = vmatpush1.msra.mxu0 0.0
    %1308 = vmatprep.subr.mxu0 0.0
    %1309 = vmatpush1.msra.mxu0 0.0
    %1310 = vmatprep.subr.mxu0 0.0
    %1311 = vmatpush1.msra.mxu0 0.0
    %1312 = vmatprep.subr.mxu0 0.0
    %1313 = vmatpush1.msra.mxu0 0.0
    %1314 = vmatprep.subr.mxu0 0.0
    %1315 = vmatpush1.msra.mxu0 0.0
    %1316 = vmatprep.subr.mxu0 0.0
    %1317 = vmatpush1.msra.mxu0 0.0
    %1318 = vmatprep.subr.mxu0 0.0
    %1319 = vmatpush1.msra.mxu0 0.0
    %1320 = vmatprep.subr.mxu0 0.0
    %1321 = vmatpush1.msra.mxu0 0.0
    %1322 = vmatprep.subr.mxu0 0.0
    %1323 = vmatpush1.msra.mxu0 0.0
    %1324 = vmatprep.subr.mxu0 0.0
    %1325 = vmatpush1.msra.mxu0 0.0
    %1326 = vmatprep.mubr.f32.mxu0 0.0
    %1327 = vmatmul.mubr.f32.gmra.mrb[0].mxu0 %v1251
    %v1328 = vpop.f32.mrb[0].mxu0
    %v1329 = vadd.f32 0.0, %v1328
    %v1330 = vpop.f32.mrb[0].mxu0
    %v1331 = vadd.f32 0.0, %v1330
    %1332 = vmatprep.mubr.f32.mxu0 0.0
    %1333 = vmatmul.mubr.f32.gmra.mrb[0].mxu0 %v1254
    %v1334 = vpop.f32.mrb[0].mxu0
    %v1335 = vadd.f32 0.0, %v1334
    %v1336 = vpop.f32.mrb[0].mxu0
    %v1337 = vadd.f32 0.0, %v1336
    %1338 = vmatprep.mubr.f32.mxu0 0.0
    %1339 = vmatmul.mubr.f32.gmra.mrb[0].mxu0 %v1257
    %v1340 = vpop.f32.mrb[0].mxu0
    %v1341 = vadd.f32 0.0, %v1340
    %v1342 = vpop.f32.mrb[0].mxu0
    %v1343 = vadd.f32 0.0, %v1342
    %1344 = vmatprep.mubr.f32.mxu0 0.0
    %1345 = vmatmul.mubr.f32.gmra.mrb[0].mxu0 %v1260
    %v1346 = vpop.f32.mrb[0].mxu0
    %v1347 = vadd.f32 0.0, %v1346
    %v1348 = vpop.f32.mrb[0].mxu0
    %v1349 = vadd.f32 0.0, %v1348
    %1350 = vdwg.mxu0
    %1351 = vmatprep.subr.mxu0 %v1221
    %1352 = vmatpush1.msra.mxu0 %v1220
    %1353 = vmatprep.subr.mxu0 %v1225
    %1354 = vmatpush1.msra.mxu0 %v1224
    %1355 = vmatprep.subr.mxu0 %v1229
    %1356 = vmatpush1.msra.mxu0 %v1228
    %1357 = vmatprep.subr.mxu0 %v1233
    %1358 = vmatpush1.msra.mxu0 %v1232
    %1359 = vmatprep.subr.mxu0 %v1237
    %1360 = vmatpush1.msra.mxu0 %v1236
    %1361 = vmatprep.subr.mxu0 %v1241
    %1362 = vmatpush1.msra.mxu0 %v1240
    %1363 = vmatprep.subr.mxu0 %v1245
    %1364 = vmatpush1.msra.mxu0 %v1244
    %1365 = vmatprep.subr.mxu0 %v1249
    %1366 = vmatpush1.msra.mxu0 %v1248
    %1367 = vmatprep.subr.mxu0 0.0
    %1368 = vmatpush1.msra.mxu0 0.0
    %1369 = vmatprep.subr.mxu0 0.0
    %1370 = vmatpush1.msra.mxu0 0.0
    %1371 = vmatprep.subr.mxu0 0.0
    %1372 = vmatpush1.msra.mxu0 0.0
    %1373 = vmatprep.subr.mxu0 0.0
    %1374 = vmatpush1.msra.mxu0 0.0
    %1375 = vmatprep.subr.mxu0 0.0
    %1376 = vmatpush1.msra.mxu0 0.0
    %1377 = vmatprep.subr.mxu0 0.0
    %1378 = vmatpush1.msra.mxu0 0.0
    %1379 = vmatprep.subr.mxu0 0.0
    %1380 = vmatpush1.msra.mxu0 0.0
    %1381 = vmatprep.subr.mxu0 0.0
    %1382 = vmatpush1.msra.mxu0 0.0
    %1383 = vmatprep.subr.mxu0 0.0
    %1384 = vmatpush1.msra.mxu0 0.0
    %1385 = vmatprep.subr.mxu0 0.0
    %1386 = vmatpush1.msra.mxu0 0.0
    %1387 = vmatprep.subr.mxu0 0.0
    %1388 = vmatpush1.msra.mxu0 0.0
    %1389 = vmatprep.subr.mxu0 0.0
    %1390 = vmatpush1.msra.mxu0 0.0
    %1391 = vmatprep.subr.mxu0 0.0
    %1392 = vmatpush1.msra.mxu0 0.0
    %1393 = vmatprep.subr.mxu0 0.0
    %1394 = vmatpush1.msra.mxu0 0.0
    %1395 = vmatprep.subr.mxu0 0.0
    %1396 = vmatpush1.msra.mxu0 0.0
    %1397 = vmatprep.subr.mxu0 0.0
    %1398 = vmatpush1.msra.mxu0 0.0
    %1399 = vmatprep.subr.mxu0 0.0
    %1400 = vmatpush1.msra.mxu0 0.0
    %1401 = vmatprep.subr.mxu0 0.0
    %1402 = vmatpush1.msra.mxu0 0.0
    %1403 = vmatprep.subr.mxu0 0.0
    %1404 = vmatpush1.msra.mxu0 0.0
    %1405 = vmatprep.subr.mxu0 0.0
    %1406 = vmatpush1.msra.mxu0 0.0
    %1407 = vmatprep.subr.mxu0 0.0
    %1408 = vmatpush1.msra.mxu0 0.0
    %1409 = vmatprep.subr.mxu0 0.0
    %1410 = vmatpush1.msra.mxu0 0.0
    %1411 = vmatprep.subr.mxu0 0.0
    %1412 = vmatpush1.msra.mxu0 0.0
    %1413 = vmatprep.subr.mxu0 0.0
    %1414 = vmatpush1.msra.mxu0 0.0
    %1415 = vmatprep.mubr.f32.mxu0 0.0
    %1416 = vmatmul.mubr.f32.gmra.mrb[0].mxu0 %v1251
    %v1417 = vpop.f32.mrb[0].mxu0
    %v1418 = vadd.f32 0.0, %v1417
    %v1419 = vpop.f32.mrb[0].mxu0
    %v1420 = vadd.f32 0.0, %v1419
    %1421 = vmatprep.mubr.f32.mxu0 0.0
    %1422 = vmatmul.mubr.f32.gmra.mrb[0].mxu0 %v1254
    %v1423 = vpop.f32.mrb[0].mxu0
    %v1424 = vadd.f32 0.0, %v1423
    %v1425 = vpop.f32.mrb[0].mxu0
    %v1426 = vadd.f32 0.0, %v1425
    %1427 = vmatprep.mubr.f32.mxu0 0.0
    %1428 = vmatmul.mubr.f32.gmra.mrb[0].mxu0 %v1257
    %v1429 = vpop.f32.mrb[0].mxu0
    %v1430 = vadd.f32 0.0, %v1429
    %v1431 = vpop.f32.mrb[0].mxu0
    %v1432 = vadd.f32 0.0, %v1431
    %1433 = vmatprep.mubr.f32.mxu0 0.0
    %1434 = vmatmul.mubr.f32.gmra.mrb[0].mxu0 %v1260
    %v1435 = vpop.f32.mrb[0].mxu0
    %v1436 = vadd.f32 0.0, %v1435
    %v1437 = vpop.f32.mrb[0].mxu0
    %v1438 = vadd.f32 0.0, %v1437
    %1439 = vdwg.mxu0
    %v1440 = vadd.f32 %v1004, %v1329
    %v1441 = vadd.f32 %v1006, %v1331
    %v1442 = vadd.f32 %v1093, %v1418
    %v1443 = vadd.f32 %v1095, %v1420
    %v1444 = vadd.f32 %v1010, %v1335
    %v1445 = vadd.f32 %v1012, %v1337
    %v1446 = vadd.f32 %v1099, %v1424
    %v1447 = vadd.f32 %v1101, %v1426
    %v1448 = vadd.f32 %v1016, %v1341
    %v1449 = vadd.f32 %v1018, %v1343
    %v1450 = vadd.f32 %v1105, %v1430
    %v1451 = vadd.f32 %v1107, %v1432
    %v1452 = vadd.f32 %v1022, %v1347
    %v1453 = vadd.f32 %v1024, %v1349
    %v1454 = vadd.f32 %v1111, %v1436
    %v1455 = vadd.f32 %v1113, %v1438
    %v1456 = vld [vmem:[#allocation16] sm:$0xf]
    %v1458 = vlaneseq
    %v1459 = vshrl.u32 %v1458, 7
    %v1460 = vsub.s32 0, %v1459
    %v1461 = vrot.slane %v1456, %v1460
    %v1462 = vlaneseq
    %v1463 = vshrl.u32 %v1462, 7
    %v1464 = vsub.s32 1, %v1463
    %v1465 = vrot.slane %v1456, %v1464
    %v1466 = vlaneseq
    %v1467 = vshrl.u32 %v1466, 7
    %v1468 = vsub.s32 2, %v1467
    %v1469 = vrot.slane %v1456, %v1468
    %v1470 = vlaneseq
    %v1471 = vshrl.u32 %v1470, 7
    %v1472 = vsub.s32 3, %v1471
    %v1473 = vrot.slane %v1456, %v1472
    %v1478 = vadd.f32 %v1440, %v1461
    %v1479 = vadd.f32 %v1441, %v1465
    %v1480 = vadd.f32 %v1442, %v1469
    %v1481 = vadd.f32 %v1443, %v1473
    %v1482 = vadd.f32 %v1444, %v1461
    %v1483 = vadd.f32 %v1445, %v1465
    %v1484 = vadd.f32 %v1446, %v1469
    %v1485 = vadd.f32 %v1447, %v1473
    %v1486 = vadd.f32 %v1448, %v1461
    %v1487 = vadd.f32 %v1449, %v1465
    %v1488 = vadd.f32 %v1450, %v1469
    %v1489 = vadd.f32 %v1451, %v1473
    %v1490 = vadd.f32 %v1452, %v1461
    %v1491 = vadd.f32 %v1453, %v1465
    %v1492 = vadd.f32 %v1454, %v1469
    %v1493 = vadd.f32 %v1455, %v1473
    %v1494 = vmax.f32 %v1478, 0.0
    %v1495 = vmax.f32 %v1479, 0.0
    %v1496 = vmax.f32 %v1480, 0.0
    %v1497 = vmax.f32 %v1481, 0.0
    %v1498 = vmax.f32 %v1482, 0.0
    %v1499 = vmax.f32 %v1483, 0.0
    %v1500 = vmax.f32 %v1484, 0.0
    %v1501 = vmax.f32 %v1485, 0.0
    %v1502 = vmax.f32 %v1486, 0.0
    %v1503 = vmax.f32 %v1487, 0.0
    %v1504 = vmax.f32 %v1488, 0.0
    %v1505 = vmax.f32 %v1489, 0.0
    %v1506 = vmax.f32 %v1490, 0.0
    %v1507 = vmax.f32 %v1491, 0.0
    %v1508 = vmax.f32 %v1492, 0.0
    %v1509 = vmax.f32 %v1493, 0.0
    %v1510 = vld [vmem:[#allocation17] sm:$0xff]
    %v1511 = vld [vmem:[#allocation17 + $0x8] sm:$0xff]
    %v1512 = vld [vmem:[#allocation17 + $0x10] sm:$0xff]
    %v1513 = vld [vmem:[#allocation17 + $0x18] sm:$0xff]
    %v1515 = vsel %vm469, %v1510, 0
    %v1518 = vsel %vm469, %v1511, 0
    %v1521 = vsel %vm469, %v1512, 0
    %v1524 = vsel %vm469, %v1513, 0
    %1526 = vmatprep.subr.mxu0 %v1495
    %1527 = vmatpush1.msra.mxu0 %v1494
    %1528 = vmatprep.subr.mxu0 %v1499
    %1529 = vmatpush1.msra.mxu0 %v1498
    %1530 = vmatprep.subr.mxu0 %v1503
    %1531 = vmatpush1.msra.mxu0 %v1502
    %1532 = vmatprep.subr.mxu0 %v1507
    %1533 = vmatpush1.msra.mxu0 %v1506
    %1534 = vmatprep.subr.mxu0 0.0
    %1535 = vmatpush1.msra.mxu0 0.0
    %1536 = vmatprep.subr.mxu0 0.0
    %1537 = vmatpush1.msra.mxu0 0.0
    %1538 = vmatprep.subr.mxu0 0.0
    %1539 = vmatpush1.msra.mxu0 0.0
    %1540 = vmatprep.subr.mxu0 0.0
    %1541 = vmatpush1.msra.mxu0 0.0
    %1542 = vmatprep.subr.mxu0 0.0
    %1543 = vmatpush1.msra.mxu0 0.0
    %1544 = vmatprep.subr.mxu0 0.0
    %1545 = vmatpush1.msra.mxu0 0.0
    %1546 = vmatprep.subr.mxu0 0.0
    %1547 = vmatpush1.msra.mxu0 0.0
    %1548 = vmatprep.subr.mxu0 0.0
    %1549 = vmatpush1.msra.mxu0 0.0
    %1550 = vmatprep.subr.mxu0 0.0
    %1551 = vmatpush1.msra.mxu0 0.0
    %1552 = vmatprep.subr.mxu0 0.0
    %1553 = vmatpush1.msra.mxu0 0.0
    %1554 = vmatprep.subr.mxu0 0.0
    %1555 = vmatpush1.msra.mxu0 0.0
    %1556 = vmatprep.subr.mxu0 0.0
    %1557 = vmatpush1.msra.mxu0 0.0
    %1558 = vmatprep.subr.mxu0 0.0
    %1559 = vmatpush1.msra.mxu0 0.0
    %1560 = vmatprep.subr.mxu0 0.0
    %1561 = vmatpush1.msra.mxu0 0.0
    %1562 = vmatprep.subr.mxu0 0.0
    %1563 = vmatpush1.msra.mxu0 0.0
    %1564 = vmatprep.subr.mxu0 0.0
    %1565 = vmatpush1.msra.mxu0 0.0
    %1566 = vmatprep.subr.mxu0 0.0
    %1567 = vmatpush1.msra.mxu0 0.0
    %1568 = vmatprep.subr.mxu0 0.0
    %1569 = vmatpush1.msra.mxu0 0.0
    %1570 = vmatprep.subr.mxu0 0.0
    %1571 = vmatpush1.msra.mxu0 0.0
    %1572 = vmatprep.subr.mxu0 0.0
    %1573 = vmatpush1.msra.mxu0 0.0
    %1574 = vmatprep.subr.mxu0 0.0
    %1575 = vmatpush1.msra.mxu0 0.0
    %1576 = vmatprep.subr.mxu0 0.0
    %1577 = vmatpush1.msra.mxu0 0.0
    %1578 = vmatprep.subr.mxu0 0.0
    %1579 = vmatpush1.msra.mxu0 0.0
    %1580 = vmatprep.subr.mxu0 0.0
    %1581 = vmatpush1.msra.mxu0 0.0
    %1582 = vmatprep.subr.mxu0 0.0
    %1583 = vmatpush1.msra.mxu0 0.0
    %1584 = vmatprep.subr.mxu0 0.0
    %1585 = vmatpush1.msra.mxu0 0.0
    %1586 = vmatprep.subr.mxu0 0.0
    %1587 = vmatpush1.msra.mxu0 0.0
    %1588 = vmatprep.subr.mxu0 0.0
    %1589 = vmatpush1.msra.mxu0 0.0
    %1590 = vmatprep.mubr.f32.mxu0 0.0
    %1591 = vmatmul.mubr.f32.gmra.mrb[0].mxu0 %v1515
    %v1592 = vpop.f32.mrb[0].mxu0
    %v1593 = vadd.f32 0.0, %v1592
    %v1594 = vpop.f32.mrb[0].mxu0
    %v1595 = vadd.f32 0.0, %v1594
    %1596 = vmatprep.mubr.f32.mxu0 0.0
    %1597 = vmatmul.mubr.f32.gmra.mrb[0].mxu0 %v1518
    %v1598 = vpop.f32.mrb[0].mxu0
    %v1599 = vadd.f32 0.0, %v1598
    %v1600 = vpop.f32.mrb[0].mxu0
    %v1601 = vadd.f32 0.0, %v1600
    %1602 = vmatprep.mubr.f32.mxu0 0.0
    %1603 = vmatmul.mubr.f32.gmra.mrb[0].mxu0 %v1521
    %v1604 = vpop.f32.mrb[0].mxu0
    %v1605 = vadd.f32 0.0, %v1604
    %v1606 = vpop.f32.mrb[0].mxu0
    %v1607 = vadd.f32 0.0, %v1606
    %1608 = vmatprep.mubr.f32.mxu0 0.0
    %1609 = vmatmul.mubr.f32.gmra.mrb[0].mxu0 %v1524
    %v1610 = vpop.f32.mrb[0].mxu0
    %v1611 = vadd.f32 0.0, %v1610
    %v1612 = vpop.f32.mrb[0].mxu0
    %v1613 = vadd.f32 0.0, %v1612
    %1614 = vdwg.mxu0
    %1615 = vmatprep.subr.mxu0 %v1497
    %1616 = vmatpush1.msra.mxu0 %v1496
    %1617 = vmatprep.subr.mxu0 %v1501
    %1618 = vmatpush1.msra.mxu0 %v1500
    %1619 = vmatprep.subr.mxu0 %v1505
    %1620 = vmatpush1.msra.mxu0 %v1504
    %1621 = vmatprep.subr.mxu0 %v1509
    %1622 = vmatpush1.msra.mxu0 %v1508
    %1623 = vmatprep.subr.mxu0 0.0
    %1624 = vmatpush1.msra.mxu0 0.0
    %1625 = vmatprep.subr.mxu0 0.0
    %1626 = vmatpush1.msra.mxu0 0.0
    %1627 = vmatprep.subr.mxu0 0.0
    %1628 = vmatpush1.msra.mxu0 0.0
    %1629 = vmatprep.subr.mxu0 0.0
    %1630 = vmatpush1.msra.mxu0 0.0
    %1631 = vmatprep.subr.mxu0 0.0
    %1632 = vmatpush1.msra.mxu0 0.0
    %1633 = vmatprep.subr.mxu0 0.0
    %1634 = vmatpush1.msra.mxu0 0.0
    %1635 = vmatprep.subr.mxu0 0.0
    %1636 = vmatpush1.msra.mxu0 0.0
    %1637 = vmatprep.subr.mxu0 0.0
    %1638 = vmatpush1.msra.mxu0 0.0
    %1639 = vmatprep.subr.mxu0 0.0
    %1640 = vmatpush1.msra.mxu0 0.0
    %1641 = vmatprep.subr.mxu0 0.0
    %1642 = vmatpush1.msra.mxu0 0.0
    %1643 = vmatprep.subr.mxu0 0.0
    %1644 = vmatpush1.msra.mxu0 0.0
    %1645 = vmatprep.subr.mxu0 0.0
    %1646 = vmatpush1.msra.mxu0 0.0
    %1647 = vmatprep.subr.mxu0 0.0
    %1648 = vmatpush1.msra.mxu0 0.0
    %1649 = vmatprep.subr.mxu0 0.0
    %1650 = vmatpush1.msra.mxu0 0.0
    %1651 = vmatprep.subr.mxu0 0.0
    %1652 = vmatpush1.msra.mxu0 0.0
    %1653 = vmatprep.subr.mxu0 0.0
    %1654 = vmatpush1.msra.mxu0 0.0
    %1655 = vmatprep.subr.mxu0 0.0
    %1656 = vmatpush1.msra.mxu0 0.0
    %1657 = vmatprep.subr.mxu0 0.0
    %1658 = vmatpush1.msra.mxu0 0.0
    %1659 = vmatprep.subr.mxu0 0.0
    %1660 = vmatpush1.msra.mxu0 0.0
    %1661 = vmatprep.subr.mxu0 0.0
    %1662 = vmatpush1.msra.mxu0 0.0
    %1663 = vmatprep.subr.mxu0 0.0
    %1664 = vmatpush1.msra.mxu0 0.0
    %1665 = vmatprep.subr.mxu0 0.0
    %1666 = vmatpush1.msra.mxu0 0.0
    %1667 = vmatprep.subr.mxu0 0.0
    %1668 = vmatpush1.msra.mxu0 0.0
    %1669 = vmatprep.subr.mxu0 0.0
    %1670 = vmatpush1.msra.mxu0 0.0
    %1671 = vmatprep.subr.mxu0 0.0
    %1672 = vmatpush1.msra.mxu0 0.0
    %1673 = vmatprep.subr.mxu0 0.0
    %1674 = vmatpush1.msra.mxu0 0.0
    %1675 = vmatprep.subr.mxu0 0.0
    %1676 = vmatpush1.msra.mxu0 0.0
    %1677 = vmatprep.subr.mxu0 0.0
    %1678 = vmatpush1.msra.mxu0 0.0
    %1679 = vmatprep.mubr.f32.mxu0 0.0
    %1680 = vmatmul.mubr.f32.gmra.mrb[0].mxu0 %v1515
    %v1681 = vpop.f32.mrb[0].mxu0
    %v1682 = vadd.f32 0.0, %v1681
    %v1683 = vpop.f32.mrb[0].mxu0
    %v1684 = vadd.f32 0.0, %v1683
    %1685 = vmatprep.mubr.f32.mxu0 0.0
    %1686 = vmatmul.mubr.f32.gmra.mrb[0].mxu0 %v1518
    %v1687 = vpop.f32.mrb[0].mxu0
    %v1688 = vadd.f32 0.0, %v1687
    %v1689 = vpop.f32.mrb[0].mxu0
    %v1690 = vadd.f32 0.0, %v1689
    %1691 = vmatprep.mubr.f32.mxu0 0.0
    %1692 = vmatmul.mubr.f32.gmra.mrb[0].mxu0 %v1521
    %v1693 = vpop.f32.mrb[0].mxu0
    %v1694 = vadd.f32 0.0, %v1693
    %v1695 = vpop.f32.mrb[0].mxu0
    %v1696 = vadd.f32 0.0, %v1695
    %1697 = vmatprep.mubr.f32.mxu0 0.0
    %1698 = vmatmul.mubr.f32.gmra.mrb[0].mxu0 %v1524
    %v1699 = vpop.f32.mrb[0].mxu0
    %v1700 = vadd.f32 0.0, %v1699
    %v1701 = vpop.f32.mrb[0].mxu0
    %v1702 = vadd.f32 0.0, %v1701
    %1703 = vdwg.mxu0
    %v1704 = vmax.f32 %v1494, %v1593
    %v1705 = vmax.f32 %v1495, %v1595
    %v1706 = vmax.f32 %v1496, %v1682
    %v1707 = vmax.f32 %v1497, %v1684
    %v1708 = vmax.f32 %v1498, %v1599
    %v1709 = vmax.f32 %v1499, %v1601
    %v1710 = vmax.f32 %v1500, %v1688
    %v1711 = vmax.f32 %v1501, %v1690
    %v1712 = vmax.f32 %v1502, %v1605
    %v1713 = vmax.f32 %v1503, %v1607
    %v1714 = vmax.f32 %v1504, %v1694
    %v1715 = vmax.f32 %v1505, %v1696
    %v1716 = vmax.f32 %v1506, %v1611
    %v1717 = vmax.f32 %v1507, %v1613
    %v1718 = vmax.f32 %v1508, %v1700
    %v1719 = vmax.f32 %v1509, %v1702
    %v1720 = vld [vmem:[#allocation19] sm:$0xff]
    %v1721 = vld [vmem:[#allocation19 + $0x8] sm:$0xff]
    %v1722 = vld [vmem:[#allocation19 + $0x10] sm:$0xff]
    %v1723 = vld [vmem:[#allocation19 + $0x18] sm:$0xff]
    %v1724 = vld [vmem:[#allocation19 + $0x20] sm:$0xff]
    %v1725 = vld [vmem:[#allocation19 + $0x28] sm:$0xff]
    %v1726 = vld [vmem:[#allocation19 + $0x30] sm:$0xff]
    %v1727 = vld [vmem:[#allocation19 + $0x38] sm:$0xff]
    %v1728 = vld [vmem:[#allocation19 + $0x40] sm:$0xff]
    %v1729 = vld [vmem:[#allocation19 + $0x48] sm:$0xff]
    %v1730 = vld [vmem:[#allocation19 + $0x50] sm:$0xff]
    %v1731 = vld [vmem:[#allocation19 + $0x58] sm:$0xff]
    %v1732 = vld [vmem:[#allocation19 + $0x60] sm:$0xff]
    %v1733 = vld [vmem:[#allocation19 + $0x68] sm:$0xff]
    %v1734 = vld [vmem:[#allocation19 + $0x70] sm:$0xff]
    %v1735 = vld [vmem:[#allocation19 + $0x78] sm:$0xff]
    %v1736 = vld [vmem:[#allocation19 + $0x80] sm:$0xff]
    %v1737 = vld [vmem:[#allocation19 + $0x88] sm:$0xff]
    %v1738 = vld [vmem:[#allocation19 + $0x90] sm:$0xff]
    %v1739 = vld [vmem:[#allocation19 + $0x98] sm:$0xff]
    %v1740 = vld [vmem:[#allocation19 + $0xa0] sm:$0xff]
    %v1741 = vld [vmem:[#allocation19 + $0xa8] sm:$0xff]
    %v1742 = vld [vmem:[#allocation19 + $0xb0] sm:$0xff]
    %v1743 = vld [vmem:[#allocation19 + $0xb8] sm:$0xff]
    %v1744 = vld [vmem:[#allocation19 + $0xc0] sm:$0xff]
    %v1745 = vld [vmem:[#allocation19 + $0xc8] sm:$0xff]
    %v1746 = vld [vmem:[#allocation19 + $0xd0] sm:$0xff]
    %v1747 = vld [vmem:[#allocation19 + $0xd8] sm:$0xff]
    %v1748 = vld [vmem:[#allocation19 + $0xe0] sm:$0xff]
    %v1749 = vld [vmem:[#allocation19 + $0xe8] sm:$0xff]
    %v1750 = vld [vmem:[#allocation19 + $0xf0] sm:$0xff]
    %v1751 = vld [vmem:[#allocation19 + $0xf8] sm:$0xff]
    %v1752 = vld [vmem:[#allocation19 + $0x100] sm:$0xff]
    %v1753 = vld [vmem:[#allocation19 + $0x108] sm:$0xff]
    %v1754 = vld [vmem:[#allocation19 + $0x110] sm:$0xff]
    %v1755 = vld [vmem:[#allocation19 + $0x118] sm:$0xff]
    %v1756 = vld [vmem:[#allocation19 + $0x120] sm:$0xff]
    %v1757 = vld [vmem:[#allocation19 + $0x128] sm:$0xff]
    %v1758 = vld [vmem:[#allocation19 + $0x130] sm:$0xff]
    %v1759 = vld [vmem:[#allocation19 + $0x138] sm:$0xff]
    %v1760 = vld [vmem:[#allocation19 + $0x140] sm:$0xff]
    %v1761 = vld [vmem:[#allocation19 + $0x148] sm:$0xff]
    %v1762 = vld [vmem:[#allocation19 + $0x150] sm:$0xff]
    %v1763 = vld [vmem:[#allocation19 + $0x158] sm:$0xff]
    %v1764 = vld [vmem:[#allocation19 + $0x160] sm:$0xff]
    %v1765 = vld [vmem:[#allocation19 + $0x168] sm:$0xff]
    %v1766 = vld [vmem:[#allocation19 + $0x170] sm:$0xff]
    %v1767 = vld [vmem:[#allocation19 + $0x178] sm:$0xff]
    %v1768 = vld [vmem:[#allocation19 + $0x180] sm:$0xff]
    %v1769 = vld [vmem:[#allocation19 + $0x188] sm:$0xff]
    %v1770 = vld [vmem:[#allocation19 + $0x190] sm:$0xff]
    %v1771 = vld [vmem:[#allocation19 + $0x198] sm:$0xff]
    %v1772 = vld [vmem:[#allocation19 + $0x1a0] sm:$0xff]
    %v1773 = vld [vmem:[#allocation19 + $0x1a8] sm:$0xff]
    %v1774 = vld [vmem:[#allocation19 + $0x1b0] sm:$0xff]
    %v1775 = vld [vmem:[#allocation19 + $0x1b8] sm:$0xff]
    %v1776 = vld [vmem:[#allocation19 + $0x1c0] sm:$0xff]
    %v1777 = vld [vmem:[#allocation19 + $0x1c8] sm:$0xff]
    %v1778 = vld [vmem:[#allocation19 + $0x1d0] sm:$0xff]
    %v1779 = vld [vmem:[#allocation19 + $0x1d8] sm:$0xff]
    %v1780 = vld [vmem:[#allocation19 + $0x1e0] sm:$0xff]
    %v1781 = vld [vmem:[#allocation19 + $0x1e8] sm:$0xff]
    %v1782 = vld [vmem:[#allocation19 + $0x1f0] sm:$0xff]
    %v1783 = vld [vmem:[#allocation19 + $0x1f8] sm:$0xff]
    %v1784 = vld [vmem:[#allocation19 + $0x200] sm:$0xff]
    %v1785 = vld [vmem:[#allocation19 + $0x208] sm:$0xff]
    %v1786 = vld [vmem:[#allocation19 + $0x210] sm:$0xff]
    %v1787 = vld [vmem:[#allocation19 + $0x218] sm:$0xff]
    %v1788 = vld [vmem:[#allocation19 + $0x220] sm:$0xff]
    %v1789 = vld [vmem:[#allocation19 + $0x228] sm:$0xff]
    %v1790 = vld [vmem:[#allocation19 + $0x230] sm:$0xff]
    %v1791 = vld [vmem:[#allocation19 + $0x238] sm:$0xff]
    %v1792 = vld [vmem:[#allocation19 + $0x240] sm:$0xff]
    %v1793 = vld [vmem:[#allocation19 + $0x248] sm:$0xff]
    %v1794 = vld [vmem:[#allocation19 + $0x250] sm:$0xff]
    %v1795 = vld [vmem:[#allocation19 + $0x258] sm:$0xff]
    %v1796 = vld [vmem:[#allocation19 + $0x260] sm:$0xff]
    %v1797 = vld [vmem:[#allocation19 + $0x268] sm:$0xff]
    %v1798 = vld [vmem:[#allocation19 + $0x270] sm:$0xff]
    %v1799 = vld [vmem:[#allocation19 + $0x278] sm:$0xff]
    %v1800 = vld [vmem:[#allocation19 + $0x280] sm:$0xff]
    %v1801 = vld [vmem:[#allocation19 + $0x288] sm:$0xff]
    %v1802 = vld [vmem:[#allocation19 + $0x290] sm:$0xff]
    %v1803 = vld [vmem:[#allocation19 + $0x298] sm:$0xff]
    %v1804 = vld [vmem:[#allocation19 + $0x2a0] sm:$0xff]
    %v1805 = vld [vmem:[#allocation19 + $0x2a8] sm:$0xff]
    %v1806 = vld [vmem:[#allocation19 + $0x2b0] sm:$0xff]
    %v1807 = vld [vmem:[#allocation19 + $0x2b8] sm:$0xff]
    %v1808 = vld [vmem:[#allocation19 + $0x2c0] sm:$0xff]
    %v1809 = vld [vmem:[#allocation19 + $0x2c8] sm:$0xff]
    %v1810 = vld [vmem:[#allocation19 + $0x2d0] sm:$0xff]
    %v1811 = vld [vmem:[#allocation19 + $0x2d8] sm:$0xff]
    %v1812 = vld [vmem:[#allocation19 + $0x2e0] sm:$0xff]
    %v1813 = vld [vmem:[#allocation19 + $0x2e8] sm:$0xff]
    %v1814 = vld [vmem:[#allocation19 + $0x2f0] sm:$0xff]
    %v1815 = vld [vmem:[#allocation19 + $0x2f8] sm:$0xff]
    %v1816 = vld [vmem:[#allocation19 + $0x300] sm:$0xff]
    %v1817 = vld [vmem:[#allocation19 + $0x308] sm:$0xff]
    %v1818 = vld [vmem:[#allocation19 + $0x310] sm:$0xff]
    %v1819 = vld [vmem:[#allocation19 + $0x318] sm:$0xff]
    %v1820 = vld [vmem:[#allocation19 + $0x320] sm:$0xff]
    %v1821 = vld [vmem:[#allocation19 + $0x328] sm:$0xff]
    %v1822 = vld [vmem:[#allocation19 + $0x330] sm:$0xff]
    %v1823 = vld [vmem:[#allocation19 + $0x338] sm:$0xff]
    %v1824 = vld [vmem:[#allocation19 + $0x340] sm:$0xff]
    %v1825 = vld [vmem:[#allocation19 + $0x348] sm:$0xff]
    %v1826 = vld [vmem:[#allocation19 + $0x350] sm:$0xff]
    %v1827 = vld [vmem:[#allocation19 + $0x358] sm:$0xff]
    %v1828 = vld [vmem:[#allocation19 + $0x360] sm:$0xff]
    %v1829 = vld [vmem:[#allocation19 + $0x368] sm:$0xff]
    %v1830 = vld [vmem:[#allocation19 + $0x370] sm:$0xff]
    %v1831 = vld [vmem:[#allocation19 + $0x378] sm:$0xff]
    %v1832 = vld [vmem:[#allocation19 + $0x380] sm:$0xff]
    %v1833 = vld [vmem:[#allocation19 + $0x388] sm:$0xff]
    %v1834 = vld [vmem:[#allocation19 + $0x390] sm:$0xff]
    %v1835 = vld [vmem:[#allocation19 + $0x398] sm:$0xff]
    %v1836 = vld [vmem:[#allocation19 + $0x3a0] sm:$0xff]
    %v1837 = vld [vmem:[#allocation19 + $0x3a8] sm:$0xff]
    %v1838 = vld [vmem:[#allocation19 + $0x3b0] sm:$0xff]
    %v1839 = vld [vmem:[#allocation19 + $0x3b8] sm:$0xff]
    %v1840 = vld [vmem:[#allocation19 + $0x3c0] sm:$0xff]
    %v1841 = vld [vmem:[#allocation19 + $0x3c8] sm:$0xff]
    %v1842 = vld [vmem:[#allocation19 + $0x3d0] sm:$0xff]
    %v1843 = vld [vmem:[#allocation19 + $0x3d8] sm:$0xff]
    %v1844 = vld [vmem:[#allocation19 + $0x3e0] sm:$0xff]
    %v1845 = vld [vmem:[#allocation19 + $0x3e8] sm:$0xff]
    %v1846 = vld [vmem:[#allocation19 + $0x3f0] sm:$0xff]
    %v1847 = vld [vmem:[#allocation19 + $0x3f8] sm:$0xff]
    %1848 = vmatprep.subr.mxu0 %v1721
    %1849 = vmatpush1.msra.mxu0 %v1720
    %1850 = vmatprep.subr.mxu0 %v1723
    %1851 = vmatpush1.msra.mxu0 %v1722
    %1852 = vmatprep.subr.mxu0 %v1725
    %1853 = vmatpush1.msra.mxu0 %v1724
    %1854 = vmatprep.subr.mxu0 %v1727
    %1855 = vmatpush1.msra.mxu0 %v1726
    %1856 = vmatprep.subr.mxu0 %v1729
    %1857 = vmatpush1.msra.mxu0 %v1728
    %1858 = vmatprep.subr.mxu0 %v1731
    %1859 = vmatpush1.msra.mxu0 %v1730
    %1860 = vmatprep.subr.mxu0 %v1733
    %1861 = vmatpush1.msra.mxu0 %v1732
    %1862 = vmatprep.subr.mxu0 %v1735
    %1863 = vmatpush1.msra.mxu0 %v1734
    %1864 = vmatprep.subr.mxu0 %v1737
    %1865 = vmatpush1.msra.mxu0 %v1736
    %1866 = vmatprep.subr.mxu0 %v1739
    %1867 = vmatpush1.msra.mxu0 %v1738
    %1868 = vmatprep.subr.mxu0 %v1741
    %1869 = vmatpush1.msra.mxu0 %v1740
    %1870 = vmatprep.subr.mxu0 %v1743
    %1871 = vmatpush1.msra.mxu0 %v1742
    %1872 = vmatprep.subr.mxu0 %v1745
    %1873 = vmatpush1.msra.mxu0 %v1744
    %1874 = vmatprep.subr.mxu0 %v1747
    %1875 = vmatpush1.msra.mxu0 %v1746
    %1876 = vmatprep.subr.mxu0 %v1749
    %1877 = vmatpush1.msra.mxu0 %v1748
    %1878 = vmatprep.subr.mxu0 %v1751
    %1879 = vmatpush1.msra.mxu0 %v1750
    %1880 = vmatprep.subr.mxu0 %v1753
    %1881 = vmatpush1.msra.mxu0 %v1752
    %1882 = vmatprep.subr.mxu0 %v1755
    %1883 = vmatpush1.msra.mxu0 %v1754
    %1884 = vmatprep.subr.mxu0 %v1757
    %1885 = vmatpush1.msra.mxu0 %v1756
    %1886 = vmatprep.subr.mxu0 %v1759
    %1887 = vmatpush1.msra.mxu0 %v1758
    %1888 = vmatprep.subr.mxu0 %v1761
    %1889 = vmatpush1.msra.mxu0 %v1760
    %1890 = vmatprep.subr.mxu0 %v1763
    %1891 = vmatpush1.msra.mxu0 %v1762
    %1892 = vmatprep.subr.mxu0 %v1765
    %1893 = vmatpush1.msra.mxu0 %v1764
    %1894 = vmatprep.subr.mxu0 %v1767
    %1895 = vmatpush1.msra.mxu0 %v1766
    %1896 = vmatprep.subr.mxu0 %v1769
    %1897 = vmatpush1.msra.mxu0 %v1768
    %1898 = vmatprep.subr.mxu0 %v1771
    %1899 = vmatpush1.msra.mxu0 %v1770
    %1900 = vmatprep.subr.mxu0 %v1773
    %1901 = vmatpush1.msra.mxu0 %v1772
    %1902 = vmatprep.subr.mxu0 %v1775
    %1903 = vmatpush1.msra.mxu0 %v1774
    %1904 = vmatprep.subr.mxu0 %v1777
    %1905 = vmatpush1.msra.mxu0 %v1776
    %1906 = vmatprep.subr.mxu0 %v1779
    %1907 = vmatpush1.msra.mxu0 %v1778
    %1908 = vmatprep.subr.mxu0 %v1781
    %1909 = vmatpush1.msra.mxu0 %v1780
    %1910 = vmatprep.subr.mxu0 %v1783
    %1911 = vmatpush1.msra.mxu0 %v1782
    %1912 = vmatprep.mubr.f32.mxu0 %v1705
    %1913 = vmatmul.mubr.f32.gmra.mrb[0].mxu0 %v1704
    %v1914 = vpop.f32.mrb[0].mxu0
    %v1915 = vadd.f32 0.0, %v1914
    %v1916 = vpop.f32.mrb[0].mxu0
    %v1917 = vadd.f32 0.0, %v1916
    %1918 = vmatprep.mubr.f32.mxu0 %v1709
    %1919 = vmatmul.mubr.f32.gmra.mrb[0].mxu0 %v1708
    %v1920 = vpop.f32.mrb[0].mxu0
    %v1921 = vadd.f32 0.0, %v1920
    %v1922 = vpop.f32.mrb[0].mxu0
    %v1923 = vadd.f32 0.0, %v1922
    %1924 = vmatprep.mubr.f32.mxu0 %v1713
    %1925 = vmatmul.mubr.f32.gmra.mrb[0].mxu0 %v1712
    %v1926 = vpop.f32.mrb[0].mxu0
    %v1927 = vadd.f32 0.0, %v1926
    %v1928 = vpop.f32.mrb[0].mxu0
    %v1929 = vadd.f32 0.0, %v1928
    %1930 = vmatprep.mubr.f32.mxu0 %v1717
    %1931 = vmatmul.mubr.f32.gmra.mrb[0].mxu0 %v1716
    %v1932 = vpop.f32.mrb[0].mxu0
    %v1933 = vadd.f32 0.0, %v1932
    %v1934 = vpop.f32.mrb[0].mxu0
    %v1935 = vadd.f32 0.0, %v1934
    %1936 = vdwg.mxu0
    %1937 = vmatprep.subr.mxu0 %v1785
    %1938 = vmatpush1.msra.mxu0 %v1784
    %1939 = vmatprep.subr.mxu0 %v1787
    %1940 = vmatpush1.msra.mxu0 %v1786
    %1941 = vmatprep.subr.mxu0 %v1789
    %1942 = vmatpush1.msra.mxu0 %v1788
    %1943 = vmatprep.subr.mxu0 %v1791
    %1944 = vmatpush1.msra.mxu0 %v1790
    %1945 = vmatprep.subr.mxu0 %v1793
    %1946 = vmatpush1.msra.mxu0 %v1792
    %1947 = vmatprep.subr.mxu0 %v1795
    %1948 = vmatpush1.msra.mxu0 %v1794
    %1949 = vmatprep.subr.mxu0 %v1797
    %1950 = vmatpush1.msra.mxu0 %v1796
    %1951 = vmatprep.subr.mxu0 %v1799
    %1952 = vmatpush1.msra.mxu0 %v1798
    %1953 = vmatprep.subr.mxu0 %v1801
    %1954 = vmatpush1.msra.mxu0 %v1800
    %1955 = vmatprep.subr.mxu0 %v1803
    %1956 = vmatpush1.msra.mxu0 %v1802
    %1957 = vmatprep.subr.mxu0 %v1805
    %1958 = vmatpush1.msra.mxu0 %v1804
    %1959 = vmatprep.subr.mxu0 %v1807
    %1960 = vmatpush1.msra.mxu0 %v1806
    %1961 = vmatprep.subr.mxu0 %v1809
    %1962 = vmatpush1.msra.mxu0 %v1808
    %1963 = vmatprep.subr.mxu0 %v1811
    %1964 = vmatpush1.msra.mxu0 %v1810
    %1965 = vmatprep.subr.mxu0 %v1813
    %1966 = vmatpush1.msra.mxu0 %v1812
    %1967 = vmatprep.subr.mxu0 %v1815
    %1968 = vmatpush1.msra.mxu0 %v1814
    %1969 = vmatprep.subr.mxu0 %v1817
    %1970 = vmatpush1.msra.mxu0 %v1816
    %1971 = vmatprep.subr.mxu0 %v1819
    %1972 = vmatpush1.msra.mxu0 %v1818
    %1973 = vmatprep.subr.mxu0 %v1821
    %1974 = vmatpush1.msra.mxu0 %v1820
    %1975 = vmatprep.subr.mxu0 %v1823
    %1976 = vmatpush1.msra.mxu0 %v1822
    %1977 = vmatprep.subr.mxu0 %v1825
    %1978 = vmatpush1.msra.mxu0 %v1824
    %1979 = vmatprep.subr.mxu0 %v1827
    %1980 = vmatpush1.msra.mxu0 %v1826
    %1981 = vmatprep.subr.mxu0 %v1829
    %1982 = vmatpush1.msra.mxu0 %v1828
    %1983 = vmatprep.subr.mxu0 %v1831
    %1984 = vmatpush1.msra.mxu0 %v1830
    %1985 = vmatprep.subr.mxu0 %v1833
    %1986 = vmatpush1.msra.mxu0 %v1832
    %1987 = vmatprep.subr.mxu0 %v1835
    %1988 = vmatpush1.msra.mxu0 %v1834
    %1989 = vmatprep.subr.mxu0 %v1837
    %1990 = vmatpush1.msra.mxu0 %v1836
    %1991 = vmatprep.subr.mxu0 %v1839
    %1992 = vmatpush1.msra.mxu0 %v1838
    %1993 = vmatprep.subr.mxu0 %v1841
    %1994 = vmatpush1.msra.mxu0 %v1840
    %1995 = vmatprep.subr.mxu0 %v1843
    %1996 = vmatpush1.msra.mxu0 %v1842
    %1997 = vmatprep.subr.mxu0 %v1845
    %1998 = vmatpush1.msra.mxu0 %v1844
    %1999 = vmatprep.subr.mxu0 %v1847
    %2000 = vmatpush1.msra.mxu0 %v1846
    %2001 = vmatprep.mubr.f32.mxu0 %v1707
    %2002 = vmatmul.mubr.f32.gmra.mrb[0].mxu0 %v1706
    %v2003 = vpop.f32.mrb[0].mxu0
    %v2004 = vadd.f32 %v1915, %v2003
    %v2005 = vpop.f32.mrb[0].mxu0
    %v2006 = vadd.f32 %v1917, %v2005
    %2007 = vmatprep.mubr.f32.mxu0 %v1711
    %2008 = vmatmul.mubr.f32.gmra.mrb[0].mxu0 %v1710
    %v2009 = vpop.f32.mrb[0].mxu0
    %v2010 = vadd.f32 %v1921, %v2009
    %v2011 = vpop.f32.mrb[0].mxu0
    %v2012 = vadd.f32 %v1923, %v2011
    %2013 = vmatprep.mubr.f32.mxu0 %v1715
    %2014 = vmatmul.mubr.f32.gmra.mrb[0].mxu0 %v1714
    %v2015 = vpop.f32.mrb[0].mxu0
    %v2016 = vadd.f32 %v1927, %v2015
    %v2017 = vpop.f32.mrb[0].mxu0
    %v2018 = vadd.f32 %v1929, %v2017
    %2019 = vmatprep.mubr.f32.mxu0 %v1719
    %2020 = vmatmul.mubr.f32.gmra.mrb[0].mxu0 %v1718
    %v2021 = vpop.f32.mrb[0].mxu0
    %v2022 = vadd.f32 %v1933, %v2021
    %v2023 = vpop.f32.mrb[0].mxu0
    %v2024 = vadd.f32 %v1935, %v2023
    %2025 = vdwg.mxu0
    %s2026 = scalar_lea.vmem [#allocation19], 1024
    %v2027 = vld [vmem:[%s2026] sm:$0xff]
    %v2028 = vld [vmem:[%s2026 + $0x8] sm:$0xff]
    %v2029 = vld [vmem:[%s2026 + $0x10] sm:$0xff]
    %v2030 = vld [vmem:[%s2026 + $0x18] sm:$0xff]
    %v2031 = vld [vmem:[%s2026 + $0x20] sm:$0xff]
    %v2032 = vld [vmem:[%s2026 + $0x28] sm:$0xff]
    %v2033 = vld [vmem:[%s2026 + $0x30] sm:$0xff]
    %v2034 = vld [vmem:[%s2026 + $0x38] sm:$0xff]
    %v2035 = vld [vmem:[%s2026 + $0x40] sm:$0xff]
    %v2036 = vld [vmem:[%s2026 + $0x48] sm:$0xff]
    %v2037 = vld [vmem:[%s2026 + $0x50] sm:$0xff]
    %v2038 = vld [vmem:[%s2026 + $0x58] sm:$0xff]
    %v2039 = vld [vmem:[%s2026 + $0x60] sm:$0xff]
    %v2040 = vld [vmem:[%s2026 + $0x68] sm:$0xff]
    %v2041 = vld [vmem:[%s2026 + $0x70] sm:$0xff]
    %v2042 = vld [vmem:[%s2026 + $0x78] sm:$0xff]
    %v2043 = vld [vmem:[%s2026 + $0x80] sm:$0xff]
    %v2044 = vld [vmem:[%s2026 + $0x88] sm:$0xff]
    %v2045 = vld [vmem:[%s2026 + $0x90] sm:$0xff]
    %v2046 = vld [vmem:[%s2026 + $0x98] sm:$0xff]
    %v2047 = vld [vmem:[%s2026 + $0xa0] sm:$0xff]
    %v2048 = vld [vmem:[%s2026 + $0xa8] sm:$0xff]
    %v2049 = vld [vmem:[%s2026 + $0xb0] sm:$0xff]
    %v2050 = vld [vmem:[%s2026 + $0xb8] sm:$0xff]
    %v2051 = vld [vmem:[%s2026 + $0xc0] sm:$0xff]
    %v2052 = vld [vmem:[%s2026 + $0xc8] sm:$0xff]
    %v2053 = vld [vmem:[%s2026 + $0xd0] sm:$0xff]
    %v2054 = vld [vmem:[%s2026 + $0xd8] sm:$0xff]
    %v2055 = vld [vmem:[%s2026 + $0xe0] sm:$0xff]
    %v2056 = vld [vmem:[%s2026 + $0xe8] sm:$0xff]
    %v2057 = vld [vmem:[%s2026 + $0xf0] sm:$0xff]
    %v2058 = vld [vmem:[%s2026 + $0xf8] sm:$0xff]
    %v2059 = vld [vmem:[%s2026 + $0x100] sm:$0xff]
    %v2060 = vld [vmem:[%s2026 + $0x108] sm:$0xff]
    %v2061 = vld [vmem:[%s2026 + $0x110] sm:$0xff]
    %v2062 = vld [vmem:[%s2026 + $0x118] sm:$0xff]
    %v2063 = vld [vmem:[%s2026 + $0x120] sm:$0xff]
    %v2064 = vld [vmem:[%s2026 + $0x128] sm:$0xff]
    %v2065 = vld [vmem:[%s2026 + $0x130] sm:$0xff]
    %v2066 = vld [vmem:[%s2026 + $0x138] sm:$0xff]
    %v2067 = vld [vmem:[%s2026 + $0x140] sm:$0xff]
    %v2068 = vld [vmem:[%s2026 + $0x148] sm:$0xff]
    %v2069 = vld [vmem:[%s2026 + $0x150] sm:$0xff]
    %v2070 = vld [vmem:[%s2026 + $0x158] sm:$0xff]
    %v2071 = vld [vmem:[%s2026 + $0x160] sm:$0xff]
    %v2072 = vld [vmem:[%s2026 + $0x168] sm:$0xff]
    %v2073 = vld [vmem:[%s2026 + $0x170] sm:$0xff]
    %v2074 = vld [vmem:[%s2026 + $0x178] sm:$0xff]
    %v2075 = vld [vmem:[%s2026 + $0x180] sm:$0xff]
    %v2076 = vld [vmem:[%s2026 + $0x188] sm:$0xff]
    %v2077 = vld [vmem:[%s2026 + $0x190] sm:$0xff]
    %v2078 = vld [vmem:[%s2026 + $0x198] sm:$0xff]
    %v2079 = vld [vmem:[%s2026 + $0x1a0] sm:$0xff]
    %v2080 = vld [vmem:[%s2026 + $0x1a8] sm:$0xff]
    %v2081 = vld [vmem:[%s2026 + $0x1b0] sm:$0xff]
    %v2082 = vld [vmem:[%s2026 + $0x1b8] sm:$0xff]
    %v2083 = vld [vmem:[%s2026 + $0x1c0] sm:$0xff]
    %v2084 = vld [vmem:[%s2026 + $0x1c8] sm:$0xff]
    %v2085 = vld [vmem:[%s2026 + $0x1d0] sm:$0xff]
    %v2086 = vld [vmem:[%s2026 + $0x1d8] sm:$0xff]
    %v2087 = vld [vmem:[%s2026 + $0x1e0] sm:$0xff]
    %v2088 = vld [vmem:[%s2026 + $0x1e8] sm:$0xff]
    %v2089 = vld [vmem:[%s2026 + $0x1f0] sm:$0xff]
    %v2090 = vld [vmem:[%s2026 + $0x1f8] sm:$0xff]
    %v2091 = vld [vmem:[%s2026 + $0x200] sm:$0xff]
    %v2092 = vld [vmem:[%s2026 + $0x208] sm:$0xff]
    %v2093 = vld [vmem:[%s2026 + $0x210] sm:$0xff]
    %v2094 = vld [vmem:[%s2026 + $0x218] sm:$0xff]
    %v2095 = vld [vmem:[%s2026 + $0x220] sm:$0xff]
    %v2096 = vld [vmem:[%s2026 + $0x228] sm:$0xff]
    %v2097 = vld [vmem:[%s2026 + $0x230] sm:$0xff]
    %v2098 = vld [vmem:[%s2026 + $0x238] sm:$0xff]
    %v2099 = vld [vmem:[%s2026 + $0x240] sm:$0xff]
    %v2100 = vld [vmem:[%s2026 + $0x248] sm:$0xff]
    %v2101 = vld [vmem:[%s2026 + $0x250] sm:$0xff]
    %v2102 = vld [vmem:[%s2026 + $0x258] sm:$0xff]
    %v2103 = vld [vmem:[%s2026 + $0x260] sm:$0xff]
    %v2104 = vld [vmem:[%s2026 + $0x268] sm:$0xff]
    %v2105 = vld [vmem:[%s2026 + $0x270] sm:$0xff]
    %v2106 = vld [vmem:[%s2026 + $0x278] sm:$0xff]
    %v2107 = vld [vmem:[%s2026 + $0x280] sm:$0xff]
    %v2108 = vld [vmem:[%s2026 + $0x288] sm:$0xff]
    %v2109 = vld [vmem:[%s2026 + $0x290] sm:$0xff]
    %v2110 = vld [vmem:[%s2026 + $0x298] sm:$0xff]
    %v2111 = vld [vmem:[%s2026 + $0x2a0] sm:$0xff]
    %v2112 = vld [vmem:[%s2026 + $0x2a8] sm:$0xff]
    %v2113 = vld [vmem:[%s2026 + $0x2b0] sm:$0xff]
    %v2114 = vld [vmem:[%s2026 + $0x2b8] sm:$0xff]
    %v2115 = vld [vmem:[%s2026 + $0x2c0] sm:$0xff]
    %v2116 = vld [vmem:[%s2026 + $0x2c8] sm:$0xff]
    %v2117 = vld [vmem:[%s2026 + $0x2d0] sm:$0xff]
    %v2118 = vld [vmem:[%s2026 + $0x2d8] sm:$0xff]
    %v2119 = vld [vmem:[%s2026 + $0x2e0] sm:$0xff]
    %v2120 = vld [vmem:[%s2026 + $0x2e8] sm:$0xff]
    %v2121 = vld [vmem:[%s2026 + $0x2f0] sm:$0xff]
    %v2122 = vld [vmem:[%s2026 + $0x2f8] sm:$0xff]
    %v2123 = vld [vmem:[%s2026 + $0x300] sm:$0xff]
    %v2124 = vld [vmem:[%s2026 + $0x308] sm:$0xff]
    %v2125 = vld [vmem:[%s2026 + $0x310] sm:$0xff]
    %v2126 = vld [vmem:[%s2026 + $0x318] sm:$0xff]
    %v2127 = vld [vmem:[%s2026 + $0x320] sm:$0xff]
    %v2128 = vld [vmem:[%s2026 + $0x328] sm:$0xff]
    %v2129 = vld [vmem:[%s2026 + $0x330] sm:$0xff]
    %v2130 = vld [vmem:[%s2026 + $0x338] sm:$0xff]
    %v2131 = vld [vmem:[%s2026 + $0x340] sm:$0xff]
    %v2132 = vld [vmem:[%s2026 + $0x348] sm:$0xff]
    %v2133 = vld [vmem:[%s2026 + $0x350] sm:$0xff]
    %v2134 = vld [vmem:[%s2026 + $0x358] sm:$0xff]
    %v2135 = vld [vmem:[%s2026 + $0x360] sm:$0xff]
    %v2136 = vld [vmem:[%s2026 + $0x368] sm:$0xff]
    %v2137 = vld [vmem:[%s2026 + $0x370] sm:$0xff]
    %v2138 = vld [vmem:[%s2026 + $0x378] sm:$0xff]
    %v2139 = vld [vmem:[%s2026 + $0x380] sm:$0xff]
    %v2140 = vld [vmem:[%s2026 + $0x388] sm:$0xff]
    %v2141 = vld [vmem:[%s2026 + $0x390] sm:$0xff]
    %v2142 = vld [vmem:[%s2026 + $0x398] sm:$0xff]
    %v2143 = vld [vmem:[%s2026 + $0x3a0] sm:$0xff]
    %v2144 = vld [vmem:[%s2026 + $0x3a8] sm:$0xff]
    %v2145 = vld [vmem:[%s2026 + $0x3b0] sm:$0xff]
    %v2146 = vld [vmem:[%s2026 + $0x3b8] sm:$0xff]
    %v2147 = vld [vmem:[%s2026 + $0x3c0] sm:$0xff]
    %v2148 = vld [vmem:[%s2026 + $0x3c8] sm:$0xff]
    %v2149 = vld [vmem:[%s2026 + $0x3d0] sm:$0xff]
    %v2150 = vld [vmem:[%s2026 + $0x3d8] sm:$0xff]
    %v2151 = vld [vmem:[%s2026 + $0x3e0] sm:$0xff]
    %v2152 = vld [vmem:[%s2026 + $0x3e8] sm:$0xff]
    %v2153 = vld [vmem:[%s2026 + $0x3f0] sm:$0xff]
    %v2154 = vld [vmem:[%s2026 + $0x3f8] sm:$0xff]
    %2155 = vmatprep.subr.mxu0 %v2028
    %2156 = vmatpush1.msra.mxu0 %v2027
    %2157 = vmatprep.subr.mxu0 %v2030
    %2158 = vmatpush1.msra.mxu0 %v2029
    %2159 = vmatprep.subr.mxu0 %v2032
    %2160 = vmatpush1.msra.mxu0 %v2031
    %2161 = vmatprep.subr.mxu0 %v2034
    %2162 = vmatpush1.msra.mxu0 %v2033
    %2163 = vmatprep.subr.mxu0 %v2036
    %2164 = vmatpush1.msra.mxu0 %v2035
    %2165 = vmatprep.subr.mxu0 %v2038
    %2166 = vmatpush1.msra.mxu0 %v2037
    %2167 = vmatprep.subr.mxu0 %v2040
    %2168 = vmatpush1.msra.mxu0 %v2039
    %2169 = vmatprep.subr.mxu0 %v2042
    %2170 = vmatpush1.msra.mxu0 %v2041
    %2171 = vmatprep.subr.mxu0 %v2044
    %2172 = vmatpush1.msra.mxu0 %v2043
    %2173 = vmatprep.subr.mxu0 %v2046
    %2174 = vmatpush1.msra.mxu0 %v2045
    %2175 = vmatprep.subr.mxu0 %v2048
    %2176 = vmatpush1.msra.mxu0 %v2047
    %2177 = vmatprep.subr.mxu0 %v2050
    %2178 = vmatpush1.msra.mxu0 %v2049
    %2179 = vmatprep.subr.mxu0 %v2052
    %2180 = vmatpush1.msra.mxu0 %v2051
    %2181 = vmatprep.subr.mxu0 %v2054
    %2182 = vmatpush1.msra.mxu0 %v2053
    %2183 = vmatprep.subr.mxu0 %v2056
    %2184 = vmatpush1.msra.mxu0 %v2055
    %2185 = vmatprep.subr.mxu0 %v2058
    %2186 = vmatpush1.msra.mxu0 %v2057
    %2187 = vmatprep.subr.mxu0 %v2060
    %2188 = vmatpush1.msra.mxu0 %v2059
    %2189 = vmatprep.subr.mxu0 %v2062
    %2190 = vmatpush1.msra.mxu0 %v2061
    %2191 = vmatprep.subr.mxu0 %v2064
    %2192 = vmatpush1.msra.mxu0 %v2063
    %2193 = vmatprep.subr.mxu0 %v2066
    %2194 = vmatpush1.msra.mxu0 %v2065
    %2195 = vmatprep.subr.mxu0 %v2068
    %2196 = vmatpush1.msra.mxu0 %v2067
    %2197 = vmatprep.subr.mxu0 %v2070
    %2198 = vmatpush1.msra.mxu0 %v2069
    %2199 = vmatprep.subr.mxu0 %v2072
    %2200 = vmatpush1.msra.mxu0 %v2071
    %2201 = vmatprep.subr.mxu0 %v2074
    %2202 = vmatpush1.msra.mxu0 %v2073
    %2203 = vmatprep.subr.mxu0 %v2076
    %2204 = vmatpush1.msra.mxu0 %v2075
    %2205 = vmatprep.subr.mxu0 %v2078
    %2206 = vmatpush1.msra.mxu0 %v2077
    %2207 = vmatprep.subr.mxu0 %v2080
    %2208 = vmatpush1.msra.mxu0 %v2079
    %2209 = vmatprep.subr.mxu0 %v2082
    %2210 = vmatpush1.msra.mxu0 %v2081
    %2211 = vmatprep.subr.mxu0 %v2084
    %2212 = vmatpush1.msra.mxu0 %v2083
    %2213 = vmatprep.subr.mxu0 %v2086
    %2214 = vmatpush1.msra.mxu0 %v2085
    %2215 = vmatprep.subr.mxu0 %v2088
    %2216 = vmatpush1.msra.mxu0 %v2087
    %2217 = vmatprep.subr.mxu0 %v2090
    %2218 = vmatpush1.msra.mxu0 %v2089
    %2219 = vmatprep.mubr.f32.mxu0 %v1705
    %2220 = vmatmul.mubr.f32.gmra.mrb[0].mxu0 %v1704
    %v2221 = vpop.f32.mrb[0].mxu0
    %v2222 = vadd.f32 0.0, %v2221
    %v2223 = vpop.f32.mrb[0].mxu0
    %v2224 = vadd.f32 0.0, %v2223
    %2225 = vmatprep.mubr.f32.mxu0 %v1709
    %2226 = vmatmul.mubr.f32.gmra.mrb[0].mxu0 %v1708
    %v2227 = vpop.f32.mrb[0].mxu0
    %v2228 = vadd.f32 0.0, %v2227
    %v2229 = vpop.f32.mrb[0].mxu0
    %v2230 = vadd.f32 0.0, %v2229
    %2231 = vmatprep.mubr.f32.mxu0 %v1713
    %2232 = vmatmul.mubr.f32.gmra.mrb[0].mxu0 %v1712
    %v2233 = vpop.f32.mrb[0].mxu0
    %v2234 = vadd.f32 0.0, %v2233
    %v2235 = vpop.f32.mrb[0].mxu0
    %v2236 = vadd.f32 0.0, %v2235
    %2237 = vmatprep.mubr.f32.mxu0 %v1717
    %2238 = vmatmul.mubr.f32.gmra.mrb[0].mxu0 %v1716
    %v2239 = vpop.f32.mrb[0].mxu0
    %v2240 = vadd.f32 0.0, %v2239
    %v2241 = vpop.f32.mrb[0].mxu0
    %v2242 = vadd.f32 0.0, %v2241
    %2243 = vdwg.mxu0
    %2244 = vmatprep.subr.mxu0 %v2092
    %2245 = vmatpush1.msra.mxu0 %v2091
    %2246 = vmatprep.subr.mxu0 %v2094
    %2247 = vmatpush1.msra.mxu0 %v2093
    %2248 = vmatprep.subr.mxu0 %v2096
    %2249 = vmatpush1.msra.mxu0 %v2095
    %2250 = vmatprep.subr.mxu0 %v2098
    %2251 = vmatpush1.msra.mxu0 %v2097
    %2252 = vmatprep.subr.mxu0 %v2100
    %2253 = vmatpush1.msra.mxu0 %v2099
    %2254 = vmatprep.subr.mxu0 %v2102
    %2255 = vmatpush1.msra.mxu0 %v2101
    %2256 = vmatprep.subr.mxu0 %v2104
    %2257 = vmatpush1.msra.mxu0 %v2103
    %2258 = vmatprep.subr.mxu0 %v2106
    %2259 = vmatpush1.msra.mxu0 %v2105
    %2260 = vmatprep.subr.mxu0 %v2108
    %2261 = vmatpush1.msra.mxu0 %v2107
    %2262 = vmatprep.subr.mxu0 %v2110
    %2263 = vmatpush1.msra.mxu0 %v2109
    %2264 = vmatprep.subr.mxu0 %v2112
    %2265 = vmatpush1.msra.mxu0 %v2111
    %2266 = vmatprep.subr.mxu0 %v2114
    %2267 = vmatpush1.msra.mxu0 %v2113
    %2268 = vmatprep.subr.mxu0 %v2116
    %2269 = vmatpush1.msra.mxu0 %v2115
    %2270 = vmatprep.subr.mxu0 %v2118
    %2271 = vmatpush1.msra.mxu0 %v2117
    %2272 = vmatprep.subr.mxu0 %v2120
    %2273 = vmatpush1.msra.mxu0 %v2119
    %2274 = vmatprep.subr.mxu0 %v2122
    %2275 = vmatpush1.msra.mxu0 %v2121
    %2276 = vmatprep.subr.mxu0 %v2124
    %2277 = vmatpush1.msra.mxu0 %v2123
    %2278 = vmatprep.subr.mxu0 %v2126
    %2279 = vmatpush1.msra.mxu0 %v2125
    %2280 = vmatprep.subr.mxu0 %v2128
    %2281 = vmatpush1.msra.mxu0 %v2127
    %2282 = vmatprep.subr.mxu0 %v2130
    %2283 = vmatpush1.msra.mxu0 %v2129
    %2284 = vmatprep.subr.mxu0 %v2132
    %2285 = vmatpush1.msra.mxu0 %v2131
    %2286 = vmatprep.subr.mxu0 %v2134
    %2287 = vmatpush1.msra.mxu0 %v2133
    %2288 = vmatprep.subr.mxu0 %v2136
    %2289 = vmatpush1.msra.mxu0 %v2135
    %2290 = vmatprep.subr.mxu0 %v2138
    %2291 = vmatpush1.msra.mxu0 %v2137
    %2292 = vmatprep.subr.mxu0 %v2140
    %2293 = vmatpush1.msra.mxu0 %v2139
    %2294 = vmatprep.subr.mxu0 %v2142
    %2295 = vmatpush1.msra.mxu0 %v2141
    %2296 = vmatprep.subr.mxu0 %v2144
    %2297 = vmatpush1.msra.mxu0 %v2143
    %2298 = vmatprep.subr.mxu0 %v2146
    %2299 = vmatpush1.msra.mxu0 %v2145
    %2300 = vmatprep.subr.mxu0 %v2148
    %2301 = vmatpush1.msra.mxu0 %v2147
    %2302 = vmatprep.subr.mxu0 %v2150
    %2303 = vmatpush1.msra.mxu0 %v2149
    %2304 = vmatprep.subr.mxu0 %v2152
    %2305 = vmatpush1.msra.mxu0 %v2151
    %2306 = vmatprep.subr.mxu0 %v2154
    %2307 = vmatpush1.msra.mxu0 %v2153
    %2308 = vmatprep.mubr.f32.mxu0 %v1707
    %2309 = vmatmul.mubr.f32.gmra.mrb[0].mxu0 %v1706
    %v2310 = vpop.f32.mrb[0].mxu0
    %v2311 = vadd.f32 %v2222, %v2310
    %v2312 = vpop.f32.mrb[0].mxu0
    %v2313 = vadd.f32 %v2224, %v2312
    %2314 = vmatprep.mubr.f32.mxu0 %v1711
    %2315 = vmatmul.mubr.f32.gmra.mrb[0].mxu0 %v1710
    %v2316 = vpop.f32.mrb[0].mxu0
    %v2317 = vadd.f32 %v2228, %v2316
    %v2318 = vpop.f32.mrb[0].mxu0
    %v2319 = vadd.f32 %v2230, %v2318
    %2320 = vmatprep.mubr.f32.mxu0 %v1715
    %2321 = vmatmul.mubr.f32.gmra.mrb[0].mxu0 %v1714
    %v2322 = vpop.f32.mrb[0].mxu0
    %v2323 = vadd.f32 %v2234, %v2322
    %v2324 = vpop.f32.mrb[0].mxu0
    %v2325 = vadd.f32 %v2236, %v2324
    %2326 = vmatprep.mubr.f32.mxu0 %v1719
    %2327 = vmatmul.mubr.f32.gmra.mrb[0].mxu0 %v1718
    %v2328 = vpop.f32.mrb[0].mxu0
    %v2329 = vadd.f32 %v2240, %v2328
    %v2330 = vpop.f32.mrb[0].mxu0
    %v2331 = vadd.f32 %v2242, %v2330
    %2332 = vdwg.mxu0
    %v2333 = vmax.f32 %v2004, %v2311
    %v2334 = vmax.f32 %v2006, %v2313
    %v2335 = vmax.f32 %v2010, %v2317
    %v2336 = vmax.f32 %v2012, %v2319
    %v2337 = vmax.f32 %v2016, %v2323
    %v2338 = vmax.f32 %v2018, %v2325
    %v2339 = vmax.f32 %v2022, %v2329
    %v2340 = vmax.f32 %v2024, %v2331
    %v2341 = vld [vmem:[#allocation20] sm:$0xff]
    %v2342 = vld [vmem:[#allocation20 + $0x8] sm:$0xff]
    %v2344 = vsel %vm469, %v2341, 0
    %v2347 = vsel %vm469, %v2342, 0
    %2349 = vmatprep.subr.mxu0 %v2334
    %2350 = vmatpush1.msra.mxu0 %v2333
    %2351 = vmatprep.subr.mxu0 %v2336
    %2352 = vmatpush1.msra.mxu0 %v2335
    %2353 = vmatprep.subr.mxu0 %v2338
    %2354 = vmatpush1.msra.mxu0 %v2337
    %2355 = vmatprep.subr.mxu0 %v2340
    %2356 = vmatpush1.msra.mxu0 %v2339
    %2357 = vmatprep.subr.mxu0 0.0
    %2358 = vmatpush1.msra.mxu0 0.0
    %2359 = vmatprep.subr.mxu0 0.0
    %2360 = vmatpush1.msra.mxu0 0.0
    %2361 = vmatprep.subr.mxu0 0.0
    %2362 = vmatpush1.msra.mxu0 0.0
    %2363 = vmatprep.subr.mxu0 0.0
    %2364 = vmatpush1.msra.mxu0 0.0
    %2365 = vmatprep.subr.mxu0 0.0
    %2366 = vmatpush1.msra.mxu0 0.0
    %2367 = vmatprep.subr.mxu0 0.0
    %2368 = vmatpush1.msra.mxu0 0.0
    %2369 = vmatprep.subr.mxu0 0.0
    %2370 = vmatpush1.msra.mxu0 0.0
    %2371 = vmatprep.subr.mxu0 0.0
    %2372 = vmatpush1.msra.mxu0 0.0
    %2373 = vmatprep.subr.mxu0 0.0
    %2374 = vmatpush1.msra.mxu0 0.0
    %2375 = vmatprep.subr.mxu0 0.0
    %2376 = vmatpush1.msra.mxu0 0.0
    %2377 = vmatprep.subr.mxu0 0.0
    %2378 = vmatpush1.msra.mxu0 0.0
    %2379 = vmatprep.subr.mxu0 0.0
    %2380 = vmatpush1.msra.mxu0 0.0
    %2381 = vmatprep.subr.mxu0 0.0
    %2382 = vmatpush1.msra.mxu0 0.0
    %2383 = vmatprep.subr.mxu0 0.0
    %2384 = vmatpush1.msra.mxu0 0.0
    %2385 = vmatprep.subr.mxu0 0.0
    %2386 = vmatpush1.msra.mxu0 0.0
    %2387 = vmatprep.subr.mxu0 0.0
    %2388 = vmatpush1.msra.mxu0 0.0
    %2389 = vmatprep.subr.mxu0 0.0
    %2390 = vmatpush1.msra.mxu0 0.0
    %2391 = vmatprep.subr.mxu0 0.0
    %2392 = vmatpush1.msra.mxu0 0.0
    %2393 = vmatprep.subr.mxu0 0.0
    %2394 = vmatpush1.msra.mxu0 0.0
    %2395 = vmatprep.subr.mxu0 0.0
    %2396 = vmatpush1.msra.mxu0 0.0
    %2397 = vmatprep.subr.mxu0 0.0
    %2398 = vmatpush1.msra.mxu0 0.0
    %2399 = vmatprep.subr.mxu0 0.0
    %2400 = vmatpush1.msra.mxu0 0.0
    %2401 = vmatprep.subr.mxu0 0.0
    %2402 = vmatpush1.msra.mxu0 0.0
    %2403 = vmatprep.subr.mxu0 0.0
    %2404 = vmatpush1.msra.mxu0 0.0
    %2405 = vmatprep.subr.mxu0 0.0
    %2406 = vmatpush1.msra.mxu0 0.0
    %2407 = vmatprep.subr.mxu0 0.0
    %2408 = vmatpush1.msra.mxu0 0.0
    %2409 = vmatprep.subr.mxu0 0.0
    %2410 = vmatpush1.msra.mxu0 0.0
    %2411 = vmatprep.subr.mxu0 0.0
    %2412 = vmatpush1.msra.mxu0 0.0
    %2413 = vmatprep.mubr.f32.mxu0 0.0
    %2414 = vmatmul.mubr.f32.gmra.mrb[0].mxu0 %v2344
    %v2415 = vpop.f32.mrb[0].mxu0
    %v2416 = vadd.f32 0.0, %v2415
    %v2417 = vpop.f32.mrb[0].mxu0
    %v2418 = vadd.f32 0.0, %v2417
    %2419 = vmatprep.mubr.f32.mxu0 0.0
    %2420 = vmatmul.mubr.f32.gmra.mrb[0].mxu0 %v2347
    %v2421 = vpop.f32.mrb[0].mxu0
    %v2422 = vadd.f32 0.0, %v2421
    %v2423 = vpop.f32.mrb[0].mxu0
    %v2424 = vadd.f32 0.0, %v2423
    %2425 = vdwg.mxu0
    %v2426 = vld [vmem:[#allocation22] sm:$0xff]
    %v2427 = vld [vmem:[#allocation22 + $0x8] sm:$0xff]
    %v2428 = vld [vmem:[#allocation22 + $0x10] sm:$0xff]
    %v2429 = vld [vmem:[#allocation22 + $0x18] sm:$0xff]
    %v2430 = vld [vmem:[#allocation22 + $0x20] sm:$0xff]
    %v2431 = vld [vmem:[#allocation22 + $0x28] sm:$0xff]
    %v2432 = vld [vmem:[#allocation22 + $0x30] sm:$0xff]
    %v2433 = vld [vmem:[#allocation22 + $0x38] sm:$0xff]
    %v2434 = vld [vmem:[#allocation22 + $0x40] sm:$0xff]
    %v2435 = vld [vmem:[#allocation22 + $0x48] sm:$0xff]
    %v2436 = vld [vmem:[#allocation22 + $0x50] sm:$0xff]
    %v2437 = vld [vmem:[#allocation22 + $0x58] sm:$0xff]
    %v2438 = vld [vmem:[#allocation22 + $0x60] sm:$0xff]
    %v2439 = vld [vmem:[#allocation22 + $0x68] sm:$0xff]
    %v2440 = vld [vmem:[#allocation22 + $0x70] sm:$0xff]
    %v2441 = vld [vmem:[#allocation22 + $0x78] sm:$0xff]
    %v2442 = vld [vmem:[#allocation22 + $0x80] sm:$0xff]
    %v2443 = vld [vmem:[#allocation22 + $0x88] sm:$0xff]
    %v2444 = vld [vmem:[#allocation22 + $0x90] sm:$0xff]
    %v2445 = vld [vmem:[#allocation22 + $0x98] sm:$0xff]
    %v2446 = vld [vmem:[#allocation22 + $0xa0] sm:$0xff]
    %v2447 = vld [vmem:[#allocation22 + $0xa8] sm:$0xff]
    %v2448 = vld [vmem:[#allocation22 + $0xb0] sm:$0xff]
    %v2449 = vld [vmem:[#allocation22 + $0xb8] sm:$0xff]
    %v2450 = vld [vmem:[#allocation22 + $0xc0] sm:$0xff]
    %v2451 = vld [vmem:[#allocation22 + $0xc8] sm:$0xff]
    %v2452 = vld [vmem:[#allocation22 + $0xd0] sm:$0xff]
    %v2453 = vld [vmem:[#allocation22 + $0xd8] sm:$0xff]
    %v2454 = vld [vmem:[#allocation22 + $0xe0] sm:$0xff]
    %v2455 = vld [vmem:[#allocation22 + $0xe8] sm:$0xff]
    %v2456 = vld [vmem:[#allocation22 + $0xf0] sm:$0xff]
    %v2457 = vld [vmem:[#allocation22 + $0xf8] sm:$0xff]
    %v2458 = vld [vmem:[#allocation22 + $0x100] sm:$0xff]
    %v2459 = vld [vmem:[#allocation22 + $0x108] sm:$0xff]
    %v2460 = vld [vmem:[#allocation22 + $0x110] sm:$0xff]
    %v2461 = vld [vmem:[#allocation22 + $0x118] sm:$0xff]
    %v2462 = vld [vmem:[#allocation22 + $0x120] sm:$0xff]
    %v2463 = vld [vmem:[#allocation22 + $0x128] sm:$0xff]
    %v2464 = vld [vmem:[#allocation22 + $0x130] sm:$0xff]
    %v2465 = vld [vmem:[#allocation22 + $0x138] sm:$0xff]
    %v2466 = vld [vmem:[#allocation22 + $0x140] sm:$0xff]
    %v2467 = vld [vmem:[#allocation22 + $0x148] sm:$0xff]
    %v2468 = vld [vmem:[#allocation22 + $0x150] sm:$0xff]
    %v2469 = vld [vmem:[#allocation22 + $0x158] sm:$0xff]
    %v2470 = vld [vmem:[#allocation22 + $0x160] sm:$0xff]
    %v2471 = vld [vmem:[#allocation22 + $0x168] sm:$0xff]
    %v2472 = vld [vmem:[#allocation22 + $0x170] sm:$0xff]
    %v2473 = vld [vmem:[#allocation22 + $0x178] sm:$0xff]
    %v2474 = vld [vmem:[#allocation22 + $0x180] sm:$0xff]
    %v2475 = vld [vmem:[#allocation22 + $0x188] sm:$0xff]
    %v2476 = vld [vmem:[#allocation22 + $0x190] sm:$0xff]
    %v2477 = vld [vmem:[#allocation22 + $0x198] sm:$0xff]
    %v2478 = vld [vmem:[#allocation22 + $0x1a0] sm:$0xff]
    %v2479 = vld [vmem:[#allocation22 + $0x1a8] sm:$0xff]
    %v2480 = vld [vmem:[#allocation22 + $0x1b0] sm:$0xff]
    %v2481 = vld [vmem:[#allocation22 + $0x1b8] sm:$0xff]
    %v2482 = vld [vmem:[#allocation22 + $0x1c0] sm:$0xff]
    %v2483 = vld [vmem:[#allocation22 + $0x1c8] sm:$0xff]
    %v2484 = vld [vmem:[#allocation22 + $0x1d0] sm:$0xff]
    %v2485 = vld [vmem:[#allocation22 + $0x1d8] sm:$0xff]
    %v2486 = vld [vmem:[#allocation22 + $0x1e0] sm:$0xff]
    %v2487 = vld [vmem:[#allocation22 + $0x1e8] sm:$0xff]
    %v2488 = vld [vmem:[#allocation22 + $0x1f0] sm:$0xff]
    %v2489 = vld [vmem:[#allocation22 + $0x1f8] sm:$0xff]
    %v2490 = vld [vmem:[#allocation22 + $0x200] sm:$0xff]
    %v2491 = vld [vmem:[#allocation22 + $0x208] sm:$0xff]
    %v2492 = vld [vmem:[#allocation22 + $0x210] sm:$0xff]
    %v2493 = vld [vmem:[#allocation22 + $0x218] sm:$0xff]
    %v2494 = vld [vmem:[#allocation22 + $0x220] sm:$0xff]
    %v2495 = vld [vmem:[#allocation22 + $0x228] sm:$0xff]
    %v2496 = vld [vmem:[#allocation22 + $0x230] sm:$0xff]
    %v2497 = vld [vmem:[#allocation22 + $0x238] sm:$0xff]
    %v2498 = vld [vmem:[#allocation22 + $0x240] sm:$0xff]
    %v2499 = vld [vmem:[#allocation22 + $0x248] sm:$0xff]
    %v2500 = vld [vmem:[#allocation22 + $0x250] sm:$0xff]
    %v2501 = vld [vmem:[#allocation22 + $0x258] sm:$0xff]
    %v2502 = vld [vmem:[#allocation22 + $0x260] sm:$0xff]
    %v2503 = vld [vmem:[#allocation22 + $0x268] sm:$0xff]
    %v2504 = vld [vmem:[#allocation22 + $0x270] sm:$0xff]
    %v2505 = vld [vmem:[#allocation22 + $0x278] sm:$0xff]
    %v2506 = vld [vmem:[#allocation22 + $0x280] sm:$0xff]
    %v2507 = vld [vmem:[#allocation22 + $0x288] sm:$0xff]
    %v2508 = vld [vmem:[#allocation22 + $0x290] sm:$0xff]
    %v2509 = vld [vmem:[#allocation22 + $0x298] sm:$0xff]
    %v2510 = vld [vmem:[#allocation22 + $0x2a0] sm:$0xff]
    %v2511 = vld [vmem:[#allocation22 + $0x2a8] sm:$0xff]
    %v2512 = vld [vmem:[#allocation22 + $0x2b0] sm:$0xff]
    %v2513 = vld [vmem:[#allocation22 + $0x2b8] sm:$0xff]
    %v2514 = vld [vmem:[#allocation22 + $0x2c0] sm:$0xff]
    %v2515 = vld [vmem:[#allocation22 + $0x2c8] sm:$0xff]
    %v2516 = vld [vmem:[#allocation22 + $0x2d0] sm:$0xff]
    %v2517 = vld [vmem:[#allocation22 + $0x2d8] sm:$0xff]
    %v2518 = vld [vmem:[#allocation22 + $0x2e0] sm:$0xff]
    %v2519 = vld [vmem:[#allocation22 + $0x2e8] sm:$0xff]
    %v2520 = vld [vmem:[#allocation22 + $0x2f0] sm:$0xff]
    %v2521 = vld [vmem:[#allocation22 + $0x2f8] sm:$0xff]
    %v2522 = vld [vmem:[#allocation22 + $0x300] sm:$0xff]
    %v2523 = vld [vmem:[#allocation22 + $0x308] sm:$0xff]
    %v2524 = vld [vmem:[#allocation22 + $0x310] sm:$0xff]
    %v2525 = vld [vmem:[#allocation22 + $0x318] sm:$0xff]
    %v2526 = vld [vmem:[#allocation22 + $0x320] sm:$0xff]
    %v2527 = vld [vmem:[#allocation22 + $0x328] sm:$0xff]
    %v2528 = vld [vmem:[#allocation22 + $0x330] sm:$0xff]
    %v2529 = vld [vmem:[#allocation22 + $0x338] sm:$0xff]
    %v2530 = vld [vmem:[#allocation22 + $0x340] sm:$0xff]
    %v2531 = vld [vmem:[#allocation22 + $0x348] sm:$0xff]
    %v2532 = vld [vmem:[#allocation22 + $0x350] sm:$0xff]
    %v2533 = vld [vmem:[#allocation22 + $0x358] sm:$0xff]
    %v2534 = vld [vmem:[#allocation22 + $0x360] sm:$0xff]
    %v2535 = vld [vmem:[#allocation22 + $0x368] sm:$0xff]
    %v2536 = vld [vmem:[#allocation22 + $0x370] sm:$0xff]
    %v2537 = vld [vmem:[#allocation22 + $0x378] sm:$0xff]
    %v2538 = vld [vmem:[#allocation22 + $0x380] sm:$0xff]
    %v2539 = vld [vmem:[#allocation22 + $0x388] sm:$0xff]
    %v2540 = vld [vmem:[#allocation22 + $0x390] sm:$0xff]
    %v2541 = vld [vmem:[#allocation22 + $0x398] sm:$0xff]
    %v2542 = vld [vmem:[#allocation22 + $0x3a0] sm:$0xff]
    %v2543 = vld [vmem:[#allocation22 + $0x3a8] sm:$0xff]
    %v2544 = vld [vmem:[#allocation22 + $0x3b0] sm:$0xff]
    %v2545 = vld [vmem:[#allocation22 + $0x3b8] sm:$0xff]
    %v2546 = vld [vmem:[#allocation22 + $0x3c0] sm:$0xff]
    %v2547 = vld [vmem:[#allocation22 + $0x3c8] sm:$0xff]
    %v2548 = vld [vmem:[#allocation22 + $0x3d0] sm:$0xff]
    %v2549 = vld [vmem:[#allocation22 + $0x3d8] sm:$0xff]
    %v2550 = vld [vmem:[#allocation22 + $0x3e0] sm:$0xff]
    %v2551 = vld [vmem:[#allocation22 + $0x3e8] sm:$0xff]
    %v2552 = vld [vmem:[#allocation22 + $0x3f0] sm:$0xff]
    %v2553 = vld [vmem:[#allocation22 + $0x3f8] sm:$0xff]
    %s2554 = scalar_lea.vmem [#allocation20], 16
    %v2555 = vld [vmem:[%s2554] sm:$0xff]
    %v2556 = vld [vmem:[%s2554 + $0x8] sm:$0xff]
    %v2558 = vsel %vm469, %v2555, 0
    %v2561 = vsel %vm469, %v2556, 0
    %2563 = vmatprep.subr.mxu0 %v2334
    %2564 = vmatpush1.msra.mxu0 %v2333
    %2565 = vmatprep.subr.mxu0 %v2336
    %2566 = vmatpush1.msra.mxu0 %v2335
    %2567 = vmatprep.subr.mxu0 %v2338
    %2568 = vmatpush1.msra.mxu0 %v2337
    %2569 = vmatprep.subr.mxu0 %v2340
    %2570 = vmatpush1.msra.mxu0 %v2339
    %2571 = vmatprep.subr.mxu0 0.0
    %2572 = vmatpush1.msra.mxu0 0.0
    %2573 = vmatprep.subr.mxu0 0.0
    %2574 = vmatpush1.msra.mxu0 0.0
    %2575 = vmatprep.subr.mxu0 0.0
    %2576 = vmatpush1.msra.mxu0 0.0
    %2577 = vmatprep.subr.mxu0 0.0
    %2578 = vmatpush1.msra.mxu0 0.0
    %2579 = vmatprep.subr.mxu0 0.0
    %2580 = vmatpush1.msra.mxu0 0.0
    %2581 = vmatprep.subr.mxu0 0.0
    %2582 = vmatpush1.msra.mxu0 0.0
    %2583 = vmatprep.subr.mxu0 0.0
    %2584 = vmatpush1.msra.mxu0 0.0
    %2585 = vmatprep.subr.mxu0 0.0
    %2586 = vmatpush1.msra.mxu0 0.0
    %2587 = vmatprep.subr.mxu0 0.0
    %2588 = vmatpush1.msra.mxu0 0.0
    %2589 = vmatprep.subr.mxu0 0.0
    %2590 = vmatpush1.msra.mxu0 0.0
    %2591 = vmatprep.subr.mxu0 0.0
    %2592 = vmatpush1.msra.mxu0 0.0
    %2593 = vmatprep.subr.mxu0 0.0
    %2594 = vmatpush1.msra.mxu0 0.0
    %2595 = vmatprep.subr.mxu0 0.0
    %2596 = vmatpush1.msra.mxu0 0.0
    %2597 = vmatprep.subr.mxu0 0.0
    %2598 = vmatpush1.msra.mxu0 0.0
    %2599 = vmatprep.subr.mxu0 0.0
    %2600 = vmatpush1.msra.mxu0 0.0
    %2601 = vmatprep.subr.mxu0 0.0
    %2602 = vmatpush1.msra.mxu0 0.0
    %2603 = vmatprep.subr.mxu0 0.0
    %2604 = vmatpush1.msra.mxu0 0.0
    %2605 = vmatprep.subr.mxu0 0.0
    %2606 = vmatpush1.msra.mxu0 0.0
    %2607 = vmatprep.subr.mxu0 0.0
    %2608 = vmatpush1.msra.mxu0 0.0
    %2609 = vmatprep.subr.mxu0 0.0
    %2610 = vmatpush1.msra.mxu0 0.0
    %2611 = vmatprep.subr.mxu0 0.0
    %2612 = vmatpush1.msra.mxu0 0.0
    %2613 = vmatprep.subr.mxu0 0.0
    %2614 = vmatpush1.msra.mxu0 0.0
    %2615 = vmatprep.subr.mxu0 0.0
    %2616 = vmatpush1.msra.mxu0 0.0
    %2617 = vmatprep.subr.mxu0 0.0
    %2618 = vmatpush1.msra.mxu0 0.0
    %2619 = vmatprep.subr.mxu0 0.0
    %2620 = vmatpush1.msra.mxu0 0.0
    %2621 = vmatprep.subr.mxu0 0.0
    %2622 = vmatpush1.msra.mxu0 0.0
    %2623 = vmatprep.subr.mxu0 0.0
    %2624 = vmatpush1.msra.mxu0 0.0
    %2625 = vmatprep.subr.mxu0 0.0
    %2626 = vmatpush1.msra.mxu0 0.0
    %2627 = vmatprep.mubr.f32.mxu0 0.0
    %2628 = vmatmul.mubr.f32.gmra.mrb[0].mxu0 %v2558
    %v2629 = vpop.f32.mrb[0].mxu0
    %v2630 = vadd.f32 0.0, %v2629
    %v2631 = vpop.f32.mrb[0].mxu0
    %v2632 = vadd.f32 0.0, %v2631
    %2633 = vmatprep.mubr.f32.mxu0 0.0
    %2634 = vmatmul.mubr.f32.gmra.mrb[0].mxu0 %v2561
    %v2635 = vpop.f32.mrb[0].mxu0
    %v2636 = vadd.f32 0.0, %v2635
    %v2637 = vpop.f32.mrb[0].mxu0
    %v2638 = vadd.f32 0.0, %v2637
    %2639 = vdwg.mxu0
    %s2640 = scalar_lea.vmem [#allocation22], 1024
    %v2641 = vld [vmem:[%s2640] sm:$0xff]
    %v2642 = vld [vmem:[%s2640 + $0x8] sm:$0xff]
    %v2643 = vld [vmem:[%s2640 + $0x10] sm:$0xff]
    %v2644 = vld [vmem:[%s2640 + $0x18] sm:$0xff]
    %v2645 = vld [vmem:[%s2640 + $0x20] sm:$0xff]
    %v2646 = vld [vmem:[%s2640 + $0x28] sm:$0xff]
    %v2647 = vld [vmem:[%s2640 + $0x30] sm:$0xff]
    %v2648 = vld [vmem:[%s2640 + $0x38] sm:$0xff]
    %v2649 = vld [vmem:[%s2640 + $0x40] sm:$0xff]
    %v2650 = vld [vmem:[%s2640 + $0x48] sm:$0xff]
    %v2651 = vld [vmem:[%s2640 + $0x50] sm:$0xff]
    %v2652 = vld [vmem:[%s2640 + $0x58] sm:$0xff]
    %v2653 = vld [vmem:[%s2640 + $0x60] sm:$0xff]
    %v2654 = vld [vmem:[%s2640 + $0x68] sm:$0xff]
    %v2655 = vld [vmem:[%s2640 + $0x70] sm:$0xff]
    %v2656 = vld [vmem:[%s2640 + $0x78] sm:$0xff]
    %v2657 = vld [vmem:[%s2640 + $0x80] sm:$0xff]
    %v2658 = vld [vmem:[%s2640 + $0x88] sm:$0xff]
    %v2659 = vld [vmem:[%s2640 + $0x90] sm:$0xff]
    %v2660 = vld [vmem:[%s2640 + $0x98] sm:$0xff]
    %v2661 = vld [vmem:[%s2640 + $0xa0] sm:$0xff]
    %v2662 = vld [vmem:[%s2640 + $0xa8] sm:$0xff]
    %v2663 = vld [vmem:[%s2640 + $0xb0] sm:$0xff]
    %v2664 = vld [vmem:[%s2640 + $0xb8] sm:$0xff]
    %v2665 = vld [vmem:[%s2640 + $0xc0] sm:$0xff]
    %v2666 = vld [vmem:[%s2640 + $0xc8] sm:$0xff]
    %v2667 = vld [vmem:[%s2640 + $0xd0] sm:$0xff]
    %v2668 = vld [vmem:[%s2640 + $0xd8] sm:$0xff]
    %v2669 = vld [vmem:[%s2640 + $0xe0] sm:$0xff]
    %v2670 = vld [vmem:[%s2640 + $0xe8] sm:$0xff]
    %v2671 = vld [vmem:[%s2640 + $0xf0] sm:$0xff]
    %v2672 = vld [vmem:[%s2640 + $0xf8] sm:$0xff]
    %v2673 = vld [vmem:[%s2640 + $0x100] sm:$0xff]
    %v2674 = vld [vmem:[%s2640 + $0x108] sm:$0xff]
    %v2675 = vld [vmem:[%s2640 + $0x110] sm:$0xff]
    %v2676 = vld [vmem:[%s2640 + $0x118] sm:$0xff]
    %v2677 = vld [vmem:[%s2640 + $0x120] sm:$0xff]
    %v2678 = vld [vmem:[%s2640 + $0x128] sm:$0xff]
    %v2679 = vld [vmem:[%s2640 + $0x130] sm:$0xff]
    %v2680 = vld [vmem:[%s2640 + $0x138] sm:$0xff]
    %v2681 = vld [vmem:[%s2640 + $0x140] sm:$0xff]
    %v2682 = vld [vmem:[%s2640 + $0x148] sm:$0xff]
    %v2683 = vld [vmem:[%s2640 + $0x150] sm:$0xff]
    %v2684 = vld [vmem:[%s2640 + $0x158] sm:$0xff]
    %v2685 = vld [vmem:[%s2640 + $0x160] sm:$0xff]
    %v2686 = vld [vmem:[%s2640 + $0x168] sm:$0xff]
    %v2687 = vld [vmem:[%s2640 + $0x170] sm:$0xff]
    %v2688 = vld [vmem:[%s2640 + $0x178] sm:$0xff]
    %v2689 = vld [vmem:[%s2640 + $0x180] sm:$0xff]
    %v2690 = vld [vmem:[%s2640 + $0x188] sm:$0xff]
    %v2691 = vld [vmem:[%s2640 + $0x190] sm:$0xff]
    %v2692 = vld [vmem:[%s2640 + $0x198] sm:$0xff]
    %v2693 = vld [vmem:[%s2640 + $0x1a0] sm:$0xff]
    %v2694 = vld [vmem:[%s2640 + $0x1a8] sm:$0xff]
    %v2695 = vld [vmem:[%s2640 + $0x1b0] sm:$0xff]
    %v2696 = vld [vmem:[%s2640 + $0x1b8] sm:$0xff]
    %v2697 = vld [vmem:[%s2640 + $0x1c0] sm:$0xff]
    %v2698 = vld [vmem:[%s2640 + $0x1c8] sm:$0xff]
    %v2699 = vld [vmem:[%s2640 + $0x1d0] sm:$0xff]
    %v2700 = vld [vmem:[%s2640 + $0x1d8] sm:$0xff]
    %v2701 = vld [vmem:[%s2640 + $0x1e0] sm:$0xff]
    %v2702 = vld [vmem:[%s2640 + $0x1e8] sm:$0xff]
    %v2703 = vld [vmem:[%s2640 + $0x1f0] sm:$0xff]
    %v2704 = vld [vmem:[%s2640 + $0x1f8] sm:$0xff]
    %v2705 = vld [vmem:[%s2640 + $0x200] sm:$0xff]
    %v2706 = vld [vmem:[%s2640 + $0x208] sm:$0xff]
    %v2707 = vld [vmem:[%s2640 + $0x210] sm:$0xff]
    %v2708 = vld [vmem:[%s2640 + $0x218] sm:$0xff]
    %v2709 = vld [vmem:[%s2640 + $0x220] sm:$0xff]
    %v2710 = vld [vmem:[%s2640 + $0x228] sm:$0xff]
    %v2711 = vld [vmem:[%s2640 + $0x230] sm:$0xff]
    %v2712 = vld [vmem:[%s2640 + $0x238] sm:$0xff]
    %v2713 = vld [vmem:[%s2640 + $0x240] sm:$0xff]
    %v2714 = vld [vmem:[%s2640 + $0x248] sm:$0xff]
    %v2715 = vld [vmem:[%s2640 + $0x250] sm:$0xff]
    %v2716 = vld [vmem:[%s2640 + $0x258] sm:$0xff]
    %v2717 = vld [vmem:[%s2640 + $0x260] sm:$0xff]
    %v2718 = vld [vmem:[%s2640 + $0x268] sm:$0xff]
    %v2719 = vld [vmem:[%s2640 + $0x270] sm:$0xff]
    %v2720 = vld [vmem:[%s2640 + $0x278] sm:$0xff]
    %v2721 = vld [vmem:[%s2640 + $0x280] sm:$0xff]
    %v2722 = vld [vmem:[%s2640 + $0x288] sm:$0xff]
    %v2723 = vld [vmem:[%s2640 + $0x290] sm:$0xff]
    %v2724 = vld [vmem:[%s2640 + $0x298] sm:$0xff]
    %v2725 = vld [vmem:[%s2640 + $0x2a0] sm:$0xff]
    %v2726 = vld [vmem:[%s2640 + $0x2a8] sm:$0xff]
    %v2727 = vld [vmem:[%s2640 + $0x2b0] sm:$0xff]
    %v2728 = vld [vmem:[%s2640 + $0x2b8] sm:$0xff]
    %v2729 = vld [vmem:[%s2640 + $0x2c0] sm:$0xff]
    %v2730 = vld [vmem:[%s2640 + $0x2c8] sm:$0xff]
    %v2731 = vld [vmem:[%s2640 + $0x2d0] sm:$0xff]
    %v2732 = vld [vmem:[%s2640 + $0x2d8] sm:$0xff]
    %v2733 = vld [vmem:[%s2640 + $0x2e0] sm:$0xff]
    %v2734 = vld [vmem:[%s2640 + $0x2e8] sm:$0xff]
    %v2735 = vld [vmem:[%s2640 + $0x2f0] sm:$0xff]
    %v2736 = vld [vmem:[%s2640 + $0x2f8] sm:$0xff]
    %v2737 = vld [vmem:[%s2640 + $0x300] sm:$0xff]
    %v2738 = vld [vmem:[%s2640 + $0x308] sm:$0xff]
    %v2739 = vld [vmem:[%s2640 + $0x310] sm:$0xff]
    %v2740 = vld [vmem:[%s2640 + $0x318] sm:$0xff]
    %v2741 = vld [vmem:[%s2640 + $0x320] sm:$0xff]
    %v2742 = vld [vmem:[%s2640 + $0x328] sm:$0xff]
    %v2743 = vld [vmem:[%s2640 + $0x330] sm:$0xff]
    %v2744 = vld [vmem:[%s2640 + $0x338] sm:$0xff]
    %v2745 = vld [vmem:[%s2640 + $0x340] sm:$0xff]
    %v2746 = vld [vmem:[%s2640 + $0x348] sm:$0xff]
    %v2747 = vld [vmem:[%s2640 + $0x350] sm:$0xff]
    %v2748 = vld [vmem:[%s2640 + $0x358] sm:$0xff]
    %v2749 = vld [vmem:[%s2640 + $0x360] sm:$0xff]
    %v2750 = vld [vmem:[%s2640 + $0x368] sm:$0xff]
    %v2751 = vld [vmem:[%s2640 + $0x370] sm:$0xff]
    %v2752 = vld [vmem:[%s2640 + $0x378] sm:$0xff]
    %v2753 = vld [vmem:[%s2640 + $0x380] sm:$0xff]
    %v2754 = vld [vmem:[%s2640 + $0x388] sm:$0xff]
    %v2755 = vld [vmem:[%s2640 + $0x390] sm:$0xff]
    %v2756 = vld [vmem:[%s2640 + $0x398] sm:$0xff]
    %v2757 = vld [vmem:[%s2640 + $0x3a0] sm:$0xff]
    %v2758 = vld [vmem:[%s2640 + $0x3a8] sm:$0xff]
    %v2759 = vld [vmem:[%s2640 + $0x3b0] sm:$0xff]
    %v2760 = vld [vmem:[%s2640 + $0x3b8] sm:$0xff]
    %v2761 = vld [vmem:[%s2640 + $0x3c0] sm:$0xff]
    %v2762 = vld [vmem:[%s2640 + $0x3c8] sm:$0xff]
    %v2763 = vld [vmem:[%s2640 + $0x3d0] sm:$0xff]
    %v2764 = vld [vmem:[%s2640 + $0x3d8] sm:$0xff]
    %v2765 = vld [vmem:[%s2640 + $0x3e0] sm:$0xff]
    %v2766 = vld [vmem:[%s2640 + $0x3e8] sm:$0xff]
    %v2767 = vld [vmem:[%s2640 + $0x3f0] sm:$0xff]
    %v2768 = vld [vmem:[%s2640 + $0x3f8] sm:$0xff]
    %2769 = vmatprep.subr.mxu0 %v2642
    %2770 = vmatpush1.msra.mxu0 %v2641
    %2771 = vmatprep.subr.mxu0 %v2646
    %2772 = vmatpush1.msra.mxu0 %v2645
    %2773 = vmatprep.subr.mxu0 %v2650
    %2774 = vmatpush1.msra.mxu0 %v2649
    %2775 = vmatprep.subr.mxu0 %v2654
    %2776 = vmatpush1.msra.mxu0 %v2653
    %2777 = vmatprep.subr.mxu0 %v2658
    %2778 = vmatpush1.msra.mxu0 %v2657
    %2779 = vmatprep.subr.mxu0 %v2662
    %2780 = vmatpush1.msra.mxu0 %v2661
    %2781 = vmatprep.subr.mxu0 %v2666
    %2782 = vmatpush1.msra.mxu0 %v2665
    %2783 = vmatprep.subr.mxu0 %v2670
    %2784 = vmatpush1.msra.mxu0 %v2669
    %2785 = vmatprep.subr.mxu0 %v2674
    %2786 = vmatpush1.msra.mxu0 %v2673
    %2787 = vmatprep.subr.mxu0 %v2678
    %2788 = vmatpush1.msra.mxu0 %v2677
    %2789 = vmatprep.subr.mxu0 %v2682
    %2790 = vmatpush1.msra.mxu0 %v2681
    %2791 = vmatprep.subr.mxu0 %v2686
    %2792 = vmatpush1.msra.mxu0 %v2685
    %2793 = vmatprep.subr.mxu0 %v2690
    %2794 = vmatpush1.msra.mxu0 %v2689
    %2795 = vmatprep.subr.mxu0 %v2694
    %2796 = vmatpush1.msra.mxu0 %v2693
    %2797 = vmatprep.subr.mxu0 %v2698
    %2798 = vmatpush1.msra.mxu0 %v2697
    %2799 = vmatprep.subr.mxu0 %v2702
    %2800 = vmatpush1.msra.mxu0 %v2701
    %2801 = vmatprep.subr.mxu0 %v2706
    %2802 = vmatpush1.msra.mxu0 %v2705
    %2803 = vmatprep.subr.mxu0 %v2710
    %2804 = vmatpush1.msra.mxu0 %v2709
    %2805 = vmatprep.subr.mxu0 %v2714
    %2806 = vmatpush1.msra.mxu0 %v2713
    %2807 = vmatprep.subr.mxu0 %v2718
    %2808 = vmatpush1.msra.mxu0 %v2717
    %2809 = vmatprep.subr.mxu0 %v2722
    %2810 = vmatpush1.msra.mxu0 %v2721
    %2811 = vmatprep.subr.mxu0 %v2726
    %2812 = vmatpush1.msra.mxu0 %v2725
    %2813 = vmatprep.subr.mxu0 %v2730
    %2814 = vmatpush1.msra.mxu0 %v2729
    %2815 = vmatprep.subr.mxu0 %v2734
    %2816 = vmatpush1.msra.mxu0 %v2733
    %2817 = vmatprep.subr.mxu0 %v2738
    %2818 = vmatpush1.msra.mxu0 %v2737
    %2819 = vmatprep.subr.mxu0 %v2742
    %2820 = vmatpush1.msra.mxu0 %v2741
    %2821 = vmatprep.subr.mxu0 %v2746
    %2822 = vmatpush1.msra.mxu0 %v2745
    %2823 = vmatprep.subr.mxu0 %v2750
    %2824 = vmatpush1.msra.mxu0 %v2749
    %2825 = vmatprep.subr.mxu0 %v2754
    %2826 = vmatpush1.msra.mxu0 %v2753
    %2827 = vmatprep.subr.mxu0 %v2758
    %2828 = vmatpush1.msra.mxu0 %v2757
    %2829 = vmatprep.subr.mxu0 %v2762
    %2830 = vmatpush1.msra.mxu0 %v2761
    %2831 = vmatprep.subr.mxu0 %v2766
    %2832 = vmatpush1.msra.mxu0 %v2765
    %2833 = vmatprep.mubr.f32.mxu0 %v2632
    %2834 = vmatmul.mubr.f32.gmra.mrb[0].mxu0 %v2630
    %v2835 = vpop.f32.mrb[0].mxu0
    %v2836 = vadd.f32 0.0, %v2835
    %v2837 = vpop.f32.mrb[0].mxu0
    %v2838 = vadd.f32 0.0, %v2837
    %2839 = vmatprep.mubr.f32.mxu0 %v2638
    %2840 = vmatmul.mubr.f32.gmra.mrb[0].mxu0 %v2636
    %v2841 = vpop.f32.mrb[0].mxu0
    %v2842 = vadd.f32 0.0, %v2841
    %v2843 = vpop.f32.mrb[0].mxu0
    %v2844 = vadd.f32 0.0, %v2843
    %2845 = vdwg.mxu0
    %2846 = vmatprep.subr.mxu0 %v2644
    %2847 = vmatpush1.msra.mxu0 %v2643
    %2848 = vmatprep.subr.mxu0 %v2648
    %2849 = vmatpush1.msra.mxu0 %v2647
    %2850 = vmatprep.subr.mxu0 %v2652
    %2851 = vmatpush1.msra.mxu0 %v2651
    %2852 = vmatprep.subr.mxu0 %v2656
    %2853 = vmatpush1.msra.mxu0 %v2655
    %2854 = vmatprep.subr.mxu0 %v2660
    %2855 = vmatpush1.msra.mxu0 %v2659
    %2856 = vmatprep.subr.mxu0 %v2664
    %2857 = vmatpush1.msra.mxu0 %v2663
    %2858 = vmatprep.subr.mxu0 %v2668
    %2859 = vmatpush1.msra.mxu0 %v2667
    %2860 = vmatprep.subr.mxu0 %v2672
    %2861 = vmatpush1.msra.mxu0 %v2671
    %2862 = vmatprep.subr.mxu0 %v2676
    %2863 = vmatpush1.msra.mxu0 %v2675
    %2864 = vmatprep.subr.mxu0 %v2680
    %2865 = vmatpush1.msra.mxu0 %v2679
    %2866 = vmatprep.subr.mxu0 %v2684
    %2867 = vmatpush1.msra.mxu0 %v2683
    %2868 = vmatprep.subr.mxu0 %v2688
    %2869 = vmatpush1.msra.mxu0 %v2687
    %2870 = vmatprep.subr.mxu0 %v2692
    %2871 = vmatpush1.msra.mxu0 %v2691
    %2872 = vmatprep.subr.mxu0 %v2696
    %2873 = vmatpush1.msra.mxu0 %v2695
    %2874 = vmatprep.subr.mxu0 %v2700
    %2875 = vmatpush1.msra.mxu0 %v2699
    %2876 = vmatprep.subr.mxu0 %v2704
    %2877 = vmatpush1.msra.mxu0 %v2703
    %2878 = vmatprep.subr.mxu0 %v2708
    %2879 = vmatpush1.msra.mxu0 %v2707
    %2880 = vmatprep.subr.mxu0 %v2712
    %2881 = vmatpush1.msra.mxu0 %v2711
    %2882 = vmatprep.subr.mxu0 %v2716
    %2883 = vmatpush1.msra.mxu0 %v2715
    %2884 = vmatprep.subr.mxu0 %v2720
    %2885 = vmatpush1.msra.mxu0 %v2719
    %2886 = vmatprep.subr.mxu0 %v2724
    %2887 = vmatpush1.msra.mxu0 %v2723
    %2888 = vmatprep.subr.mxu0 %v2728
    %2889 = vmatpush1.msra.mxu0 %v2727
    %2890 = vmatprep.subr.mxu0 %v2732
    %2891 = vmatpush1.msra.mxu0 %v2731
    %2892 = vmatprep.subr.mxu0 %v2736
    %2893 = vmatpush1.msra.mxu0 %v2735
    %2894 = vmatprep.subr.mxu0 %v2740
    %2895 = vmatpush1.msra.mxu0 %v2739
    %2896 = vmatprep.subr.mxu0 %v2744
    %2897 = vmatpush1.msra.mxu0 %v2743
    %2898 = vmatprep.subr.mxu0 %v2748
    %2899 = vmatpush1.msra.mxu0 %v2747
    %2900 = vmatprep.subr.mxu0 %v2752
    %2901 = vmatpush1.msra.mxu0 %v2751
    %2902 = vmatprep.subr.mxu0 %v2756
    %2903 = vmatpush1.msra.mxu0 %v2755
    %2904 = vmatprep.subr.mxu0 %v2760
    %2905 = vmatpush1.msra.mxu0 %v2759
    %2906 = vmatprep.subr.mxu0 %v2764
    %2907 = vmatpush1.msra.mxu0 %v2763
    %2908 = vmatprep.subr.mxu0 %v2768
    %2909 = vmatpush1.msra.mxu0 %v2767
    %2910 = vmatprep.mubr.f32.mxu0 %v2632
    %2911 = vmatmul.mubr.f32.gmra.mrb[0].mxu0 %v2630
    %v2912 = vpop.f32.mrb[0].mxu0
    %v2913 = vadd.f32 0.0, %v2912
    %v2914 = vpop.f32.mrb[0].mxu0
    %v2915 = vadd.f32 0.0, %v2914
    %2916 = vmatprep.mubr.f32.mxu0 %v2638
    %2917 = vmatmul.mubr.f32.gmra.mrb[0].mxu0 %v2636
    %v2918 = vpop.f32.mrb[0].mxu0
    %v2919 = vadd.f32 0.0, %v2918
    %v2920 = vpop.f32.mrb[0].mxu0
    %v2921 = vadd.f32 0.0, %v2920
    %2922 = vdwg.mxu0
    %2923 = vmatprep.subr.mxu0 %v2427
    %2924 = vmatpush1.msra.mxu0 %v2426
    %2925 = vmatprep.subr.mxu0 %v2431
    %2926 = vmatpush1.msra.mxu0 %v2430
    %2927 = vmatprep.subr.mxu0 %v2435
    %2928 = vmatpush1.msra.mxu0 %v2434
    %2929 = vmatprep.subr.mxu0 %v2439
    %2930 = vmatpush1.msra.mxu0 %v2438
    %2931 = vmatprep.subr.mxu0 %v2443
    %2932 = vmatpush1.msra.mxu0 %v2442
    %2933 = vmatprep.subr.mxu0 %v2447
    %2934 = vmatpush1.msra.mxu0 %v2446
    %2935 = vmatprep.subr.mxu0 %v2451
    %2936 = vmatpush1.msra.mxu0 %v2450
    %2937 = vmatprep.subr.mxu0 %v2455
    %2938 = vmatpush1.msra.mxu0 %v2454
    %2939 = vmatprep.subr.mxu0 %v2459
    %2940 = vmatpush1.msra.mxu0 %v2458
    %2941 = vmatprep.subr.mxu0 %v2463
    %2942 = vmatpush1.msra.mxu0 %v2462
    %2943 = vmatprep.subr.mxu0 %v2467
    %2944 = vmatpush1.msra.mxu0 %v2466
    %2945 = vmatprep.subr.mxu0 %v2471
    %2946 = vmatpush1.msra.mxu0 %v2470
    %2947 = vmatprep.subr.mxu0 %v2475
    %2948 = vmatpush1.msra.mxu0 %v2474
    %2949 = vmatprep.subr.mxu0 %v2479
    %2950 = vmatpush1.msra.mxu0 %v2478
    %2951 = vmatprep.subr.mxu0 %v2483
    %2952 = vmatpush1.msra.mxu0 %v2482
    %2953 = vmatprep.subr.mxu0 %v2487
    %2954 = vmatpush1.msra.mxu0 %v2486
    %2955 = vmatprep.subr.mxu0 %v2491
    %2956 = vmatpush1.msra.mxu0 %v2490
    %2957 = vmatprep.subr.mxu0 %v2495
    %2958 = vmatpush1.msra.mxu0 %v2494
    %2959 = vmatprep.subr.mxu0 %v2499
    %2960 = vmatpush1.msra.mxu0 %v2498
    %2961 = vmatprep.subr.mxu0 %v2503
    %2962 = vmatpush1.msra.mxu0 %v2502
    %2963 = vmatprep.subr.mxu0 %v2507
    %2964 = vmatpush1.msra.mxu0 %v2506
    %2965 = vmatprep.subr.mxu0 %v2511
    %2966 = vmatpush1.msra.mxu0 %v2510
    %2967 = vmatprep.subr.mxu0 %v2515
    %2968 = vmatpush1.msra.mxu0 %v2514
    %2969 = vmatprep.subr.mxu0 %v2519
    %2970 = vmatpush1.msra.mxu0 %v2518
    %2971 = vmatprep.subr.mxu0 %v2523
    %2972 = vmatpush1.msra.mxu0 %v2522
    %2973 = vmatprep.subr.mxu0 %v2527
    %2974 = vmatpush1.msra.mxu0 %v2526
    %2975 = vmatprep.subr.mxu0 %v2531
    %2976 = vmatpush1.msra.mxu0 %v2530
    %2977 = vmatprep.subr.mxu0 %v2535
    %2978 = vmatpush1.msra.mxu0 %v2534
    %2979 = vmatprep.subr.mxu0 %v2539
    %2980 = vmatpush1.msra.mxu0 %v2538
    %2981 = vmatprep.subr.mxu0 %v2543
    %2982 = vmatpush1.msra.mxu0 %v2542
    %2983 = vmatprep.subr.mxu0 %v2547
    %2984 = vmatpush1.msra.mxu0 %v2546
    %2985 = vmatprep.subr.mxu0 %v2551
    %2986 = vmatpush1.msra.mxu0 %v2550
    %2987 = vmatprep.mubr.f32.mxu0 %v2418
    %2988 = vmatmul.mubr.f32.gmra.mrb[0].mxu0 %v2416
    %v2989 = vpop.f32.mrb[0].mxu0
    %v2990 = vadd.f32 %v2836, %v2989
    %v2991 = vpop.f32.mrb[0].mxu0
    %v2992 = vadd.f32 %v2838, %v2991
    %2993 = vmatprep.mubr.f32.mxu0 %v2424
    %2994 = vmatmul.mubr.f32.gmra.mrb[0].mxu0 %v2422
    %v2995 = vpop.f32.mrb[0].mxu0
    %v2996 = vadd.f32 %v2842, %v2995
    %v2997 = vpop.f32.mrb[0].mxu0
    %v2998 = vadd.f32 %v2844, %v2997
    %2999 = vdwg.mxu0
    %3000 = vmatprep.subr.mxu0 %v2429
    %3001 = vmatpush1.msra.mxu0 %v2428
    %3002 = vmatprep.subr.mxu0 %v2433
    %3003 = vmatpush1.msra.mxu0 %v2432
    %3004 = vmatprep.subr.mxu0 %v2437
    %3005 = vmatpush1.msra.mxu0 %v2436
    %3006 = vmatprep.subr.mxu0 %v2441
    %3007 = vmatpush1.msra.mxu0 %v2440
    %3008 = vmatprep.subr.mxu0 %v2445
    %3009 = vmatpush1.msra.mxu0 %v2444
    %3010 = vmatprep.subr.mxu0 %v2449
    %3011 = vmatpush1.msra.mxu0 %v2448
    %3012 = vmatprep.subr.mxu0 %v2453
    %3013 = vmatpush1.msra.mxu0 %v2452
    %3014 = vmatprep.subr.mxu0 %v2457
    %3015 = vmatpush1.msra.mxu0 %v2456
    %3016 = vmatprep.subr.mxu0 %v2461
    %3017 = vmatpush1.msra.mxu0 %v2460
    %3018 = vmatprep.subr.mxu0 %v2465
    %3019 = vmatpush1.msra.mxu0 %v2464
    %3020 = vmatprep.subr.mxu0 %v2469
    %3021 = vmatpush1.msra.mxu0 %v2468
    %3022 = vmatprep.subr.mxu0 %v2473
    %3023 = vmatpush1.msra.mxu0 %v2472
    %3024 = vmatprep.subr.mxu0 %v2477
    %3025 = vmatpush1.msra.mxu0 %v2476
    %3026 = vmatprep.subr.mxu0 %v2481
    %3027 = vmatpush1.msra.mxu0 %v2480
    %3028 = vmatprep.subr.mxu0 %v2485
    %3029 = vmatpush1.msra.mxu0 %v2484
    %3030 = vmatprep.subr.mxu0 %v2489
    %3031 = vmatpush1.msra.mxu0 %v2488
    %3032 = vmatprep.subr.mxu0 %v2493
    %3033 = vmatpush1.msra.mxu0 %v2492
    %3034 = vmatprep.subr.mxu0 %v2497
    %3035 = vmatpush1.msra.mxu0 %v2496
    %3036 = vmatprep.subr.mxu0 %v2501
    %3037 = vmatpush1.msra.mxu0 %v2500
    %3038 = vmatprep.subr.mxu0 %v2505
    %3039 = vmatpush1.msra.mxu0 %v2504
    %3040 = vmatprep.subr.mxu0 %v2509
    %3041 = vmatpush1.msra.mxu0 %v2508
    %3042 = vmatprep.subr.mxu0 %v2513
    %3043 = vmatpush1.msra.mxu0 %v2512
    %3044 = vmatprep.subr.mxu0 %v2517
    %3045 = vmatpush1.msra.mxu0 %v2516
    %3046 = vmatprep.subr.mxu0 %v2521
    %3047 = vmatpush1.msra.mxu0 %v2520
    %3048 = vmatprep.subr.mxu0 %v2525
    %3049 = vmatpush1.msra.mxu0 %v2524
    %3050 = vmatprep.subr.mxu0 %v2529
    %3051 = vmatpush1.msra.mxu0 %v2528
    %3052 = vmatprep.subr.mxu0 %v2533
    %3053 = vmatpush1.msra.mxu0 %v2532
    %3054 = vmatprep.subr.mxu0 %v2537
    %3055 = vmatpush1.msra.mxu0 %v2536
    %3056 = vmatprep.subr.mxu0 %v2541
    %3057 = vmatpush1.msra.mxu0 %v2540
    %3058 = vmatprep.subr.mxu0 %v2545
    %3059 = vmatpush1.msra.mxu0 %v2544
    %3060 = vmatprep.subr.mxu0 %v2549
    %3061 = vmatpush1.msra.mxu0 %v2548
    %3062 = vmatprep.subr.mxu0 %v2553
    %3063 = vmatpush1.msra.mxu0 %v2552
    %3064 = vmatprep.mubr.f32.mxu0 %v2418
    %3065 = vmatmul.mubr.f32.gmra.mrb[0].mxu0 %v2416
    %v3066 = vpop.f32.mrb[0].mxu0
    %v3067 = vadd.f32 %v2913, %v3066
    %v3068 = vpop.f32.mrb[0].mxu0
    %v3069 = vadd.f32 %v2915, %v3068
    %3070 = vmatprep.mubr.f32.mxu0 %v2424
    %3071 = vmatmul.mubr.f32.gmra.mrb[0].mxu0 %v2422
    %v3072 = vpop.f32.mrb[0].mxu0
    %v3073 = vadd.f32 %v2919, %v3072
    %v3074 = vpop.f32.mrb[0].mxu0
    %v3075 = vadd.f32 %v2921, %v3074
    %3076 = vdwg.mxu0
    %s3077 = scalar_lea.vmem [#allocation20], 32
    %v3078 = vld [vmem:[%s3077] sm:$0xff]
    %v3079 = vld [vmem:[%s3077 + $0x8] sm:$0xff]
    %v3081 = vsel %vm469, %v3078, 0
    %v3084 = vsel %vm469, %v3079, 0
    %3086 = vmatprep.subr.mxu0 %v2334
    %3087 = vmatpush1.msra.mxu0 %v2333
    %3088 = vmatprep.subr.mxu0 %v2336
    %3089 = vmatpush1.msra.mxu0 %v2335
    %3090 = vmatprep.subr.mxu0 %v2338
    %3091 = vmatpush1.msra.mxu0 %v2337
    %3092 = vmatprep.subr.mxu0 %v2340
    %3093 = vmatpush1.msra.mxu0 %v2339
    %3094 = vmatprep.subr.mxu0 0.0
    %3095 = vmatpush1.msra.mxu0 0.0
    %3096 = vmatprep.subr.mxu0 0.0
    %3097 = vmatpush1.msra.mxu0 0.0
    %3098 = vmatprep.subr.mxu0 0.0
    %3099 = vmatpush1.msra.mxu0 0.0
    %3100 = vmatprep.subr.mxu0 0.0
    %3101 = vmatpush1.msra.mxu0 0.0
    %3102 = vmatprep.subr.mxu0 0.0
    %3103 = vmatpush1.msra.mxu0 0.0
    %3104 = vmatprep.subr.mxu0 0.0
    %3105 = vmatpush1.msra.mxu0 0.0
    %3106 = vmatprep.subr.mxu0 0.0
    %3107 = vmatpush1.msra.mxu0 0.0
    %3108 = vmatprep.subr.mxu0 0.0
    %3109 = vmatpush1.msra.mxu0 0.0
    %3110 = vmatprep.subr.mxu0 0.0
    %3111 = vmatpush1.msra.mxu0 0.0
    %3112 = vmatprep.subr.mxu0 0.0
    %3113 = vmatpush1.msra.mxu0 0.0
    %3114 = vmatprep.subr.mxu0 0.0
    %3115 = vmatpush1.msra.mxu0 0.0
    %3116 = vmatprep.subr.mxu0 0.0
    %3117 = vmatpush1.msra.mxu0 0.0
    %3118 = vmatprep.subr.mxu0 0.0
    %3119 = vmatpush1.msra.mxu0 0.0
    %3120 = vmatprep.subr.mxu0 0.0
    %3121 = vmatpush1.msra.mxu0 0.0
    %3122 = vmatprep.subr.mxu0 0.0
    %3123 = vmatpush1.msra.mxu0 0.0
    %3124 = vmatprep.subr.mxu0 0.0
    %3125 = vmatpush1.msra.mxu0 0.0
    %3126 = vmatprep.subr.mxu0 0.0
    %3127 = vmatpush1.msra.mxu0 0.0
    %3128 = vmatprep.subr.mxu0 0.0
    %3129 = vmatpush1.msra.mxu0 0.0
    %3130 = vmatprep.subr.mxu0 0.0
    %3131 = vmatpush1.msra.mxu0 0.0
    %3132 = vmatprep.subr.mxu0 0.0
    %3133 = vmatpush1.msra.mxu0 0.0
    %3134 = vmatprep.subr.mxu0 0.0
    %3135 = vmatpush1.msra.mxu0 0.0
    %3136 = vmatprep.subr.mxu0 0.0
    %3137 = vmatpush1.msra.mxu0 0.0
    %3138 = vmatprep.subr.mxu0 0.0
    %3139 = vmatpush1.msra.mxu0 0.0
    %3140 = vmatprep.subr.mxu0 0.0
    %3141 = vmatpush1.msra.mxu0 0.0
    %3142 = vmatprep.subr.mxu0 0.0
    %3143 = vmatpush1.msra.mxu0 0.0
    %3144 = vmatprep.subr.mxu0 0.0
    %3145 = vmatpush1.msra.mxu0 0.0
    %3146 = vmatprep.subr.mxu0 0.0
    %3147 = vmatpush1.msra.mxu0 0.0
    %3148 = vmatprep.subr.mxu0 0.0
    %3149 = vmatpush1.msra.mxu0 0.0
    %3150 = vmatprep.mubr.f32.mxu0 0.0
    %3151 = vmatmul.mubr.f32.gmra.mrb[0].mxu0 %v3081
    %v3152 = vpop.f32.mrb[0].mxu0
    %v3153 = vadd.f32 0.0, %v3152
    %v3154 = vpop.f32.mrb[0].mxu0
    %v3155 = vadd.f32 0.0, %v3154
    %3156 = vmatprep.mubr.f32.mxu0 0.0
    %3157 = vmatmul.mubr.f32.gmra.mrb[0].mxu0 %v3084
    %v3158 = vpop.f32.mrb[0].mxu0
    %v3159 = vadd.f32 0.0, %v3158
    %v3160 = vpop.f32.mrb[0].mxu0
    %v3161 = vadd.f32 0.0, %v3160
    %3162 = vdwg.mxu0
    %s3163 = scalar_lea.vmem [#allocation22], 2048
    %v3164 = vld [vmem:[%s3163] sm:$0xff]
    %v3165 = vld [vmem:[%s3163 + $0x8] sm:$0xff]
    %v3166 = vld [vmem:[%s3163 + $0x10] sm:$0xff]
    %v3167 = vld [vmem:[%s3163 + $0x18] sm:$0xff]
    %v3168 = vld [vmem:[%s3163 + $0x20] sm:$0xff]
    %v3169 = vld [vmem:[%s3163 + $0x28] sm:$0xff]
    %v3170 = vld [vmem:[%s3163 + $0x30] sm:$0xff]
    %v3171 = vld [vmem:[%s3163 + $0x38] sm:$0xff]
    %v3172 = vld [vmem:[%s3163 + $0x40] sm:$0xff]
    %v3173 = vld [vmem:[%s3163 + $0x48] sm:$0xff]
    %v3174 = vld [vmem:[%s3163 + $0x50] sm:$0xff]
    %v3175 = vld [vmem:[%s3163 + $0x58] sm:$0xff]
    %v3176 = vld [vmem:[%s3163 + $0x60] sm:$0xff]
    %v3177 = vld [vmem:[%s3163 + $0x68] sm:$0xff]
    %v3178 = vld [vmem:[%s3163 + $0x70] sm:$0xff]
    %v3179 = vld [vmem:[%s3163 + $0x78] sm:$0xff]
    %v3180 = vld [vmem:[%s3163 + $0x80] sm:$0xff]
    %v3181 = vld [vmem:[%s3163 + $0x88] sm:$0xff]
    %v3182 = vld [vmem:[%s3163 + $0x90] sm:$0xff]
    %v3183 = vld [vmem:[%s3163 + $0x98] sm:$0xff]
    %v3184 = vld [vmem:[%s3163 + $0xa0] sm:$0xff]
    %v3185 = vld [vmem:[%s3163 + $0xa8] sm:$0xff]
    %v3186 = vld [vmem:[%s3163 + $0xb0] sm:$0xff]
    %v3187 = vld [vmem:[%s3163 + $0xb8] sm:$0xff]
    %v3188 = vld [vmem:[%s3163 + $0xc0] sm:$0xff]
    %v3189 = vld [vmem:[%s3163 + $0xc8] sm:$0xff]
    %v3190 = vld [vmem:[%s3163 + $0xd0] sm:$0xff]
    %v3191 = vld [vmem:[%s3163 + $0xd8] sm:$0xff]
    %v3192 = vld [vmem:[%s3163 + $0xe0] sm:$0xff]
    %v3193 = vld [vmem:[%s3163 + $0xe8] sm:$0xff]
    %v3194 = vld [vmem:[%s3163 + $0xf0] sm:$0xff]
    %v3195 = vld [vmem:[%s3163 + $0xf8] sm:$0xff]
    %v3196 = vld [vmem:[%s3163 + $0x100] sm:$0xff]
    %v3197 = vld [vmem:[%s3163 + $0x108] sm:$0xff]
    %v3198 = vld [vmem:[%s3163 + $0x110] sm:$0xff]
    %v3199 = vld [vmem:[%s3163 + $0x118] sm:$0xff]
    %v3200 = vld [vmem:[%s3163 + $0x120] sm:$0xff]
    %v3201 = vld [vmem:[%s3163 + $0x128] sm:$0xff]
    %v3202 = vld [vmem:[%s3163 + $0x130] sm:$0xff]
    %v3203 = vld [vmem:[%s3163 + $0x138] sm:$0xff]
    %v3204 = vld [vmem:[%s3163 + $0x140] sm:$0xff]
    %v3205 = vld [vmem:[%s3163 + $0x148] sm:$0xff]
    %v3206 = vld [vmem:[%s3163 + $0x150] sm:$0xff]
    %v3207 = vld [vmem:[%s3163 + $0x158] sm:$0xff]
    %v3208 = vld [vmem:[%s3163 + $0x160] sm:$0xff]
    %v3209 = vld [vmem:[%s3163 + $0x168] sm:$0xff]
    %v3210 = vld [vmem:[%s3163 + $0x170] sm:$0xff]
    %v3211 = vld [vmem:[%s3163 + $0x178] sm:$0xff]
    %v3212 = vld [vmem:[%s3163 + $0x180] sm:$0xff]
    %v3213 = vld [vmem:[%s3163 + $0x188] sm:$0xff]
    %v3214 = vld [vmem:[%s3163 + $0x190] sm:$0xff]
    %v3215 = vld [vmem:[%s3163 + $0x198] sm:$0xff]
    %v3216 = vld [vmem:[%s3163 + $0x1a0] sm:$0xff]
    %v3217 = vld [vmem:[%s3163 + $0x1a8] sm:$0xff]
    %v3218 = vld [vmem:[%s3163 + $0x1b0] sm:$0xff]
    %v3219 = vld [vmem:[%s3163 + $0x1b8] sm:$0xff]
    %v3220 = vld [vmem:[%s3163 + $0x1c0] sm:$0xff]
    %v3221 = vld [vmem:[%s3163 + $0x1c8] sm:$0xff]
    %v3222 = vld [vmem:[%s3163 + $0x1d0] sm:$0xff]
    %v3223 = vld [vmem:[%s3163 + $0x1d8] sm:$0xff]
    %v3224 = vld [vmem:[%s3163 + $0x1e0] sm:$0xff]
    %v3225 = vld [vmem:[%s3163 + $0x1e8] sm:$0xff]
    %v3226 = vld [vmem:[%s3163 + $0x1f0] sm:$0xff]
    %v3227 = vld [vmem:[%s3163 + $0x1f8] sm:$0xff]
    %v3228 = vld [vmem:[%s3163 + $0x200] sm:$0xff]
    %v3229 = vld [vmem:[%s3163 + $0x208] sm:$0xff]
    %v3230 = vld [vmem:[%s3163 + $0x210] sm:$0xff]
    %v3231 = vld [vmem:[%s3163 + $0x218] sm:$0xff]
    %v3232 = vld [vmem:[%s3163 + $0x220] sm:$0xff]
    %v3233 = vld [vmem:[%s3163 + $0x228] sm:$0xff]
    %v3234 = vld [vmem:[%s3163 + $0x230] sm:$0xff]
    %v3235 = vld [vmem:[%s3163 + $0x238] sm:$0xff]
    %v3236 = vld [vmem:[%s3163 + $0x240] sm:$0xff]
    %v3237 = vld [vmem:[%s3163 + $0x248] sm:$0xff]
    %v3238 = vld [vmem:[%s3163 + $0x250] sm:$0xff]
    %v3239 = vld [vmem:[%s3163 + $0x258] sm:$0xff]
    %v3240 = vld [vmem:[%s3163 + $0x260] sm:$0xff]
    %v3241 = vld [vmem:[%s3163 + $0x268] sm:$0xff]
    %v3242 = vld [vmem:[%s3163 + $0x270] sm:$0xff]
    %v3243 = vld [vmem:[%s3163 + $0x278] sm:$0xff]
    %v3244 = vld [vmem:[%s3163 + $0x280] sm:$0xff]
    %v3245 = vld [vmem:[%s3163 + $0x288] sm:$0xff]
    %v3246 = vld [vmem:[%s3163 + $0x290] sm:$0xff]
    %v3247 = vld [vmem:[%s3163 + $0x298] sm:$0xff]
    %v3248 = vld [vmem:[%s3163 + $0x2a0] sm:$0xff]
    %v3249 = vld [vmem:[%s3163 + $0x2a8] sm:$0xff]
    %v3250 = vld [vmem:[%s3163 + $0x2b0] sm:$0xff]
    %v3251 = vld [vmem:[%s3163 + $0x2b8] sm:$0xff]
    %v3252 = vld [vmem:[%s3163 + $0x2c0] sm:$0xff]
    %v3253 = vld [vmem:[%s3163 + $0x2c8] sm:$0xff]
    %v3254 = vld [vmem:[%s3163 + $0x2d0] sm:$0xff]
    %v3255 = vld [vmem:[%s3163 + $0x2d8] sm:$0xff]
    %v3256 = vld [vmem:[%s3163 + $0x2e0] sm:$0xff]
    %v3257 = vld [vmem:[%s3163 + $0x2e8] sm:$0xff]
    %v3258 = vld [vmem:[%s3163 + $0x2f0] sm:$0xff]
    %v3259 = vld [vmem:[%s3163 + $0x2f8] sm:$0xff]
    %v3260 = vld [vmem:[%s3163 + $0x300] sm:$0xff]
    %v3261 = vld [vmem:[%s3163 + $0x308] sm:$0xff]
    %v3262 = vld [vmem:[%s3163 + $0x310] sm:$0xff]
    %v3263 = vld [vmem:[%s3163 + $0x318] sm:$0xff]
    %v3264 = vld [vmem:[%s3163 + $0x320] sm:$0xff]
    %v3265 = vld [vmem:[%s3163 + $0x328] sm:$0xff]
    %v3266 = vld [vmem:[%s3163 + $0x330] sm:$0xff]
    %v3267 = vld [vmem:[%s3163 + $0x338] sm:$0xff]
    %v3268 = vld [vmem:[%s3163 + $0x340] sm:$0xff]
    %v3269 = vld [vmem:[%s3163 + $0x348] sm:$0xff]
    %v3270 = vld [vmem:[%s3163 + $0x350] sm:$0xff]
    %v3271 = vld [vmem:[%s3163 + $0x358] sm:$0xff]
    %v3272 = vld [vmem:[%s3163 + $0x360] sm:$0xff]
    %v3273 = vld [vmem:[%s3163 + $0x368] sm:$0xff]
    %v3274 = vld [vmem:[%s3163 + $0x370] sm:$0xff]
    %v3275 = vld [vmem:[%s3163 + $0x378] sm:$0xff]
    %v3276 = vld [vmem:[%s3163 + $0x380] sm:$0xff]
    %v3277 = vld [vmem:[%s3163 + $0x388] sm:$0xff]
    %v3278 = vld [vmem:[%s3163 + $0x390] sm:$0xff]
    %v3279 = vld [vmem:[%s3163 + $0x398] sm:$0xff]
    %v3280 = vld [vmem:[%s3163 + $0x3a0] sm:$0xff]
    %v3281 = vld [vmem:[%s3163 + $0x3a8] sm:$0xff]
    %v3282 = vld [vmem:[%s3163 + $0x3b0] sm:$0xff]
    %v3283 = vld [vmem:[%s3163 + $0x3b8] sm:$0xff]
    %v3284 = vld [vmem:[%s3163 + $0x3c0] sm:$0xff]
    %v3285 = vld [vmem:[%s3163 + $0x3c8] sm:$0xff]
    %v3286 = vld [vmem:[%s3163 + $0x3d0] sm:$0xff]
    %v3287 = vld [vmem:[%s3163 + $0x3d8] sm:$0xff]
    %v3288 = vld [vmem:[%s3163 + $0x3e0] sm:$0xff]
    %v3289 = vld [vmem:[%s3163 + $0x3e8] sm:$0xff]
    %v3290 = vld [vmem:[%s3163 + $0x3f0] sm:$0xff]
    %v3291 = vld [vmem:[%s3163 + $0x3f8] sm:$0xff]
    %3292 = vmatprep.subr.mxu0 %v3165
    %3293 = vmatpush1.msra.mxu0 %v3164
    %3294 = vmatprep.subr.mxu0 %v3169
    %3295 = vmatpush1.msra.mxu0 %v3168
    %3296 = vmatprep.subr.mxu0 %v3173
    %3297 = vmatpush1.msra.mxu0 %v3172
    %3298 = vmatprep.subr.mxu0 %v3177
    %3299 = vmatpush1.msra.mxu0 %v3176
    %3300 = vmatprep.subr.mxu0 %v3181
    %3301 = vmatpush1.msra.mxu0 %v3180
    %3302 = vmatprep.subr.mxu0 %v3185
    %3303 = vmatpush1.msra.mxu0 %v3184
    %3304 = vmatprep.subr.mxu0 %v3189
    %3305 = vmatpush1.msra.mxu0 %v3188
    %3306 = vmatprep.subr.mxu0 %v3193
    %3307 = vmatpush1.msra.mxu0 %v3192
    %3308 = vmatprep.subr.mxu0 %v3197
    %3309 = vmatpush1.msra.mxu0 %v3196
    %3310 = vmatprep.subr.mxu0 %v3201
    %3311 = vmatpush1.msra.mxu0 %v3200
    %3312 = vmatprep.subr.mxu0 %v3205
    %3313 = vmatpush1.msra.mxu0 %v3204
    %3314 = vmatprep.subr.mxu0 %v3209
    %3315 = vmatpush1.msra.mxu0 %v3208
    %3316 = vmatprep.subr.mxu0 %v3213
    %3317 = vmatpush1.msra.mxu0 %v3212
    %3318 = vmatprep.subr.mxu0 %v3217
    %3319 = vmatpush1.msra.mxu0 %v3216
    %3320 = vmatprep.subr.mxu0 %v3221
    %3321 = vmatpush1.msra.mxu0 %v3220
    %3322 = vmatprep.subr.mxu0 %v3225
    %3323 = vmatpush1.msra.mxu0 %v3224
    %3324 = vmatprep.subr.mxu0 %v3229
    %3325 = vmatpush1.msra.mxu0 %v3228
    %3326 = vmatprep.subr.mxu0 %v3233
    %3327 = vmatpush1.msra.mxu0 %v3232
    %3328 = vmatprep.subr.mxu0 %v3237
    %3329 = vmatpush1.msra.mxu0 %v3236
    %3330 = vmatprep.subr.mxu0 %v3241
    %3331 = vmatpush1.msra.mxu0 %v3240
    %3332 = vmatprep.subr.mxu0 %v3245
    %3333 = vmatpush1.msra.mxu0 %v3244
    %3334 = vmatprep.subr.mxu0 %v3249
    %3335 = vmatpush1.msra.mxu0 %v3248
    %3336 = vmatprep.subr.mxu0 %v3253
    %3337 = vmatpush1.msra.mxu0 %v3252
    %3338 = vmatprep.subr.mxu0 %v3257
    %3339 = vmatpush1.msra.mxu0 %v3256
    %3340 = vmatprep.subr.mxu0 %v3261
    %3341 = vmatpush1.msra.mxu0 %v3260
    %3342 = vmatprep.subr.mxu0 %v3265
    %3343 = vmatpush1.msra.mxu0 %v3264
    %3344 = vmatprep.subr.mxu0 %v3269
    %3345 = vmatpush1.msra.mxu0 %v3268
    %3346 = vmatprep.subr.mxu0 %v3273
    %3347 = vmatpush1.msra.mxu0 %v3272
    %3348 = vmatprep.subr.mxu0 %v3277
    %3349 = vmatpush1.msra.mxu0 %v3276
    %3350 = vmatprep.subr.mxu0 %v3281
    %3351 = vmatpush1.msra.mxu0 %v3280
    %3352 = vmatprep.subr.mxu0 %v3285
    %3353 = vmatpush1.msra.mxu0 %v3284
    %3354 = vmatprep.subr.mxu0 %v3289
    %3355 = vmatpush1.msra.mxu0 %v3288
    %3356 = vmatprep.mubr.f32.mxu0 %v3155
    %3357 = vmatmul.mubr.f32.gmra.mrb[0].mxu0 %v3153
    %v3358 = vpop.f32.mrb[0].mxu0
    %v3359 = vadd.f32 0.0, %v3358
    %v3360 = vpop.f32.mrb[0].mxu0
    %v3361 = vadd.f32 0.0, %v3360
    %3362 = vmatprep.mubr.f32.mxu0 %v3161
    %3363 = vmatmul.mubr.f32.gmra.mrb[0].mxu0 %v3159
    %v3364 = vpop.f32.mrb[0].mxu0
    %v3365 = vadd.f32 0.0, %v3364
    %v3366 = vpop.f32.mrb[0].mxu0
    %v3367 = vadd.f32 0.0, %v3366
    %3368 = vdwg.mxu0
    %3369 = vmatprep.subr.mxu0 %v3167
    %3370 = vmatpush1.msra.mxu0 %v3166
    %3371 = vmatprep.subr.mxu0 %v3171
    %3372 = vmatpush1.msra.mxu0 %v3170
    %3373 = vmatprep.subr.mxu0 %v3175
    %3374 = vmatpush1.msra.mxu0 %v3174
    %3375 = vmatprep.subr.mxu0 %v3179
    %3376 = vmatpush1.msra.mxu0 %v3178
    %3377 = vmatprep.subr.mxu0 %v3183
    %3378 = vmatpush1.msra.mxu0 %v3182
    %3379 = vmatprep.subr.mxu0 %v3187
    %3380 = vmatpush1.msra.mxu0 %v3186
    %3381 = vmatprep.subr.mxu0 %v3191
    %3382 = vmatpush1.msra.mxu0 %v3190
    %3383 = vmatprep.subr.mxu0 %v3195
    %3384 = vmatpush1.msra.mxu0 %v3194
    %3385 = vmatprep.subr.mxu0 %v3199
    %3386 = vmatpush1.msra.mxu0 %v3198
    %3387 = vmatprep.subr.mxu0 %v3203
    %3388 = vmatpush1.msra.mxu0 %v3202
    %3389 = vmatprep.subr.mxu0 %v3207
    %3390 = vmatpush1.msra.mxu0 %v3206
    %3391 = vmatprep.subr.mxu0 %v3211
    %3392 = vmatpush1.msra.mxu0 %v3210
    %3393 = vmatprep.subr.mxu0 %v3215
    %3394 = vmatpush1.msra.mxu0 %v3214
    %3395 = vmatprep.subr.mxu0 %v3219
    %3396 = vmatpush1.msra.mxu0 %v3218
    %3397 = vmatprep.subr.mxu0 %v3223
    %3398 = vmatpush1.msra.mxu0 %v3222
    %3399 = vmatprep.subr.mxu0 %v3227
    %3400 = vmatpush1.msra.mxu0 %v3226
    %3401 = vmatprep.subr.mxu0 %v3231
    %3402 = vmatpush1.msra.mxu0 %v3230
    %3403 = vmatprep.subr.mxu0 %v3235
    %3404 = vmatpush1.msra.mxu0 %v3234
    %3405 = vmatprep.subr.mxu0 %v3239
    %3406 = vmatpush1.msra.mxu0 %v3238
    %3407 = vmatprep.subr.mxu0 %v3243
    %3408 = vmatpush1.msra.mxu0 %v3242
    %3409 = vmatprep.subr.mxu0 %v3247
    %3410 = vmatpush1.msra.mxu0 %v3246
    %3411 = vmatprep.subr.mxu0 %v3251
    %3412 = vmatpush1.msra.mxu0 %v3250
    %3413 = vmatprep.subr.mxu0 %v3255
    %3414 = vmatpush1.msra.mxu0 %v3254
    %3415 = vmatprep.subr.mxu0 %v3259
    %3416 = vmatpush1.msra.mxu0 %v3258
    %3417 = vmatprep.subr.mxu0 %v3263
    %3418 = vmatpush1.msra.mxu0 %v3262
    %3419 = vmatprep.subr.mxu0 %v3267
    %3420 = vmatpush1.msra.mxu0 %v3266
    %3421 = vmatprep.subr.mxu0 %v3271
    %3422 = vmatpush1.msra.mxu0 %v3270
    %3423 = vmatprep.subr.mxu0 %v3275
    %3424 = vmatpush1.msra.mxu0 %v3274
    %3425 = vmatprep.subr.mxu0 %v3279
    %3426 = vmatpush1.msra.mxu0 %v3278
    %3427 = vmatprep.subr.mxu0 %v3283
    %3428 = vmatpush1.msra.mxu0 %v3282
    %3429 = vmatprep.subr.mxu0 %v3287
    %3430 = vmatpush1.msra.mxu0 %v3286
    %3431 = vmatprep.subr.mxu0 %v3291
    %3432 = vmatpush1.msra.mxu0 %v3290
    %3433 = vmatprep.mubr.f32.mxu0 %v3155
    %3434 = vmatmul.mubr.f32.gmra.mrb[0].mxu0 %v3153
    %v3435 = vpop.f32.mrb[0].mxu0
    %v3436 = vadd.f32 0.0, %v3435
    %v3437 = vpop.f32.mrb[0].mxu0
    %v3438 = vadd.f32 0.0, %v3437
    %3439 = vmatprep.mubr.f32.mxu0 %v3161
    %3440 = vmatmul.mubr.f32.gmra.mrb[0].mxu0 %v3159
    %v3441 = vpop.f32.mrb[0].mxu0
    %v3442 = vadd.f32 0.0, %v3441
    %v3443 = vpop.f32.mrb[0].mxu0
    %v3444 = vadd.f32 0.0, %v3443
    %3445 = vdwg.mxu0
    %v3446 = vadd.f32 %v2990, %v3359
    %v3447 = vadd.f32 %v2992, %v3361
    %v3448 = vadd.f32 %v3067, %v3436
    %v3449 = vadd.f32 %v3069, %v3438
    %v3450 = vadd.f32 %v2996, %v3365
    %v3451 = vadd.f32 %v2998, %v3367
    %v3452 = vadd.f32 %v3073, %v3442
    %v3453 = vadd.f32 %v3075, %v3444
    %v3454 = vld [vmem:[#allocation23] sm:$0xf]
    %v3456 = vlaneseq
    %v3457 = vshrl.u32 %v3456, 7
    %v3458 = vsub.s32 0, %v3457
    %v3459 = vrot.slane %v3454, %v3458
    %v3460 = vlaneseq
    %v3461 = vshrl.u32 %v3460, 7
    %v3462 = vsub.s32 1, %v3461
    %v3463 = vrot.slane %v3454, %v3462
    %v3464 = vlaneseq
    %v3465 = vshrl.u32 %v3464, 7
    %v3466 = vsub.s32 2, %v3465
    %v3467 = vrot.slane %v3454, %v3466
    %v3468 = vlaneseq
    %v3469 = vshrl.u32 %v3468, 7
    %v3470 = vsub.s32 3, %v3469
    %v3471 = vrot.slane %v3454, %v3470
    %v3476 = vadd.f32 %v3446, %v3459
    %v3477 = vadd.f32 %v3447, %v3463
    %v3478 = vadd.f32 %v3448, %v3467
    %v3479 = vadd.f32 %v3449, %v3471
    %v3480 = vadd.f32 %v3450, %v3459
    %v3481 = vadd.f32 %v3451, %v3463
    %v3482 = vadd.f32 %v3452, %v3467
    %v3483 = vadd.f32 %v3453, %v3471
    %v3484 = vmax.f32 %v3476, 0.0
    %v3485 = vmax.f32 %v3477, 0.0
    %v3486 = vmax.f32 %v3478, 0.0
    %v3487 = vmax.f32 %v3479, 0.0
    %v3488 = vmax.f32 %v3480, 0.0
    %v3489 = vmax.f32 %v3481, 0.0
    %v3490 = vmax.f32 %v3482, 0.0
    %v3491 = vmax.f32 %v3483, 0.0
    %v3492 = vld [vmem:[#allocation25] sm:$0xff]
    %v3493 = vld [vmem:[#allocation25 + $0x8] sm:$0xff]
    %vm3494 = vcmask 130048
    %v3496 = vsel %vm3494, %v3492, 0
    %v3499 = vsel %vm3494, %v3493, 0
    %3501 = vmatprep.subr.mxu0 %v3485
    %3502 = vmatpush1.msra.mxu0 %v3484
    %3503 = vmatprep.subr.mxu0 %v3489
    %3504 = vmatpush1.msra.mxu0 %v3488
    %3505 = vmatprep.subr.mxu0 0.0
    %3506 = vmatpush1.msra.mxu0 0.0
    %3507 = vmatprep.subr.mxu0 0.0
    %3508 = vmatpush1.msra.mxu0 0.0
    %3509 = vmatprep.subr.mxu0 0.0
    %3510 = vmatpush1.msra.mxu0 0.0
    %3511 = vmatprep.subr.mxu0 0.0
    %3512 = vmatpush1.msra.mxu0 0.0
    %3513 = vmatprep.subr.mxu0 0.0
    %3514 = vmatpush1.msra.mxu0 0.0
    %3515 = vmatprep.subr.mxu0 0.0
    %3516 = vmatpush1.msra.mxu0 0.0
    %3517 = vmatprep.subr.mxu0 0.0
    %3518 = vmatpush1.msra.mxu0 0.0
    %3519 = vmatprep.subr.mxu0 0.0
    %3520 = vmatpush1.msra.mxu0 0.0
    %3521 = vmatprep.subr.mxu0 0.0
    %3522 = vmatpush1.msra.mxu0 0.0
    %3523 = vmatprep.subr.mxu0 0.0
    %3524 = vmatpush1.msra.mxu0 0.0
    %3525 = vmatprep.subr.mxu0 0.0
    %3526 = vmatpush1.msra.mxu0 0.0
    %3527 = vmatprep.subr.mxu0 0.0
    %3528 = vmatpush1.msra.mxu0 0.0
    %3529 = vmatprep.subr.mxu0 0.0
    %3530 = vmatpush1.msra.mxu0 0.0
    %3531 = vmatprep.subr.mxu0 0.0
    %3532 = vmatpush1.msra.mxu0 0.0
    %3533 = vmatprep.subr.mxu0 0.0
    %3534 = vmatpush1.msra.mxu0 0.0
    %3535 = vmatprep.subr.mxu0 0.0
    %3536 = vmatpush1.msra.mxu0 0.0
    %3537 = vmatprep.subr.mxu0 0.0
    %3538 = vmatpush1.msra.mxu0 0.0
    %3539 = vmatprep.subr.mxu0 0.0
    %3540 = vmatpush1.msra.mxu0 0.0
    %3541 = vmatprep.subr.mxu0 0.0
    %3542 = vmatpush1.msra.mxu0 0.0
    %3543 = vmatprep.subr.mxu0 0.0
    %3544 = vmatpush1.msra.mxu0 0.0
    %3545 = vmatprep.subr.mxu0 0.0
    %3546 = vmatpush1.msra.mxu0 0.0
    %3547 = vmatprep.subr.mxu0 0.0
    %3548 = vmatpush1.msra.mxu0 0.0
    %3549 = vmatprep.subr.mxu0 0.0
    %3550 = vmatpush1.msra.mxu0 0.0
    %3551 = vmatprep.subr.mxu0 0.0
    %3552 = vmatpush1.msra.mxu0 0.0
    %3553 = vmatprep.subr.mxu0 0.0
    %3554 = vmatpush1.msra.mxu0 0.0
    %3555 = vmatprep.subr.mxu0 0.0
    %3556 = vmatpush1.msra.mxu0 0.0
    %3557 = vmatprep.subr.mxu0 0.0
    %3558 = vmatpush1.msra.mxu0 0.0
    %3559 = vmatprep.subr.mxu0 0.0
    %3560 = vmatpush1.msra.mxu0 0.0
    %3561 = vmatprep.subr.mxu0 0.0
    %3562 = vmatpush1.msra.mxu0 0.0
    %3563 = vmatprep.subr.mxu0 0.0
    %3564 = vmatpush1.msra.mxu0 0.0
    %3565 = vmatprep.mubr.f32.mxu0 0.0
    %3566 = vmatmul.mubr.f32.gmra.mrb[0].mxu0 %v3496
    %v3567 = vpop.f32.mrb[0].mxu0
    %v3568 = vadd.f32 0.0, %v3567
    %v3569 = vpop.f32.mrb[0].mxu0
    %v3570 = vadd.f32 0.0, %v3569
    %3571 = vmatprep.mubr.f32.mxu0 0.0
    %3572 = vmatmul.mubr.f32.gmra.mrb[0].mxu0 %v3499
    %v3573 = vpop.f32.mrb[0].mxu0
    %v3574 = vadd.f32 0.0, %v3573
    %v3575 = vpop.f32.mrb[0].mxu0
    %v3576 = vadd.f32 0.0, %v3575
    %3577 = vdwg.mxu0
    %3578 = vmatprep.subr.mxu0 %v3487
    %3579 = vmatpush1.msra.mxu0 %v3486
    %3580 = vmatprep.subr.mxu0 %v3491
    %3581 = vmatpush1.msra.mxu0 %v3490
    %3582 = vmatprep.subr.mxu0 0.0
    %3583 = vmatpush1.msra.mxu0 0.0
    %3584 = vmatprep.subr.mxu0 0.0
    %3585 = vmatpush1.msra.mxu0 0.0
    %3586 = vmatprep.subr.mxu0 0.0
    %3587 = vmatpush1.msra.mxu0 0.0
    %3588 = vmatprep.subr.mxu0 0.0
    %3589 = vmatpush1.msra.mxu0 0.0
    %3590 = vmatprep.subr.mxu0 0.0
    %3591 = vmatpush1.msra.mxu0 0.0
    %3592 = vmatprep.subr.mxu0 0.0
    %3593 = vmatpush1.msra.mxu0 0.0
    %3594 = vmatprep.subr.mxu0 0.0
    %3595 = vmatpush1.msra.mxu0 0.0
    %3596 = vmatprep.subr.mxu0 0.0
    %3597 = vmatpush1.msra.mxu0 0.0
    %3598 = vmatprep.subr.mxu0 0.0
    %3599 = vmatpush1.msra.mxu0 0.0
    %3600 = vmatprep.subr.mxu0 0.0
    %3601 = vmatpush1.msra.mxu0 0.0
    %3602 = vmatprep.subr.mxu0 0.0
    %3603 = vmatpush1.msra.mxu0 0.0
    %3604 = vmatprep.subr.mxu0 0.0
    %3605 = vmatpush1.msra.mxu0 0.0
    %3606 = vmatprep.subr.mxu0 0.0
    %3607 = vmatpush1.msra.mxu0 0.0
    %3608 = vmatprep.subr.mxu0 0.0
    %3609 = vmatpush1.msra.mxu0 0.0
    %3610 = vmatprep.subr.mxu0 0.0
    %3611 = vmatpush1.msra.mxu0 0.0
    %3612 = vmatprep.subr.mxu0 0.0
    %3613 = vmatpush1.msra.mxu0 0.0
    %3614 = vmatprep.subr.mxu0 0.0
    %3615 = vmatpush1.msra.mxu0 0.0
    %3616 = vmatprep.subr.mxu0 0.0
    %3617 = vmatpush1.msra.mxu0 0.0
    %3618 = vmatprep.subr.mxu0 0.0
    %3619 = vmatpush1.msra.mxu0 0.0
    %3620 = vmatprep.subr.mxu0 0.0
    %3621 = vmatpush1.msra.mxu0 0.0
    %3622 = vmatprep.subr.mxu0 0.0
    %3623 = vmatpush1.msra.mxu0 0.0
    %3624 = vmatprep.subr.mxu0 0.0
    %3625 = vmatpush1.msra.mxu0 0.0
    %3626 = vmatprep.subr.mxu0 0.0
    %3627 = vmatpush1.msra.mxu0 0.0
    %3628 = vmatprep.subr.mxu0 0.0
    %3629 = vmatpush1.msra.mxu0 0.0
    %3630 = vmatprep.subr.mxu0 0.0
    %3631 = vmatpush1.msra.mxu0 0.0
    %3632 = vmatprep.subr.mxu0 0.0
    %3633 = vmatpush1.msra.mxu0 0.0
    %3634 = vmatprep.subr.mxu0 0.0
    %3635 = vmatpush1.msra.mxu0 0.0
    %3636 = vmatprep.subr.mxu0 0.0
    %3637 = vmatpush1.msra.mxu0 0.0
    %3638 = vmatprep.subr.mxu0 0.0
    %3639 = vmatpush1.msra.mxu0 0.0
    %3640 = vmatprep.subr.mxu0 0.0
    %3641 = vmatpush1.msra.mxu0 0.0
    %3642 = vmatprep.mubr.f32.mxu0 0.0
    %3643 = vmatmul.mubr.f32.gmra.mrb[0].mxu0 %v3496
    %v3644 = vpop.f32.mrb[0].mxu0
    %v3645 = vadd.f32 0.0, %v3644
    %v3646 = vpop.f32.mrb[0].mxu0
    %v3647 = vadd.f32 0.0, %v3646
    %3648 = vmatprep.mubr.f32.mxu0 0.0
    %3649 = vmatmul.mubr.f32.gmra.mrb[0].mxu0 %v3499
    %v3650 = vpop.f32.mrb[0].mxu0
    %v3651 = vadd.f32 0.0, %v3650
    %v3652 = vpop.f32.mrb[0].mxu0
    %v3653 = vadd.f32 0.0, %v3652
    %3654 = vdwg.mxu0
    %v3655 = vmax.f32 %v3484, %v3568
    %v3656 = vmax.f32 %v3485, %v3570
    %v3657 = vmax.f32 %v3486, %v3645
    %v3658 = vmax.f32 %v3487, %v3647
    %v3659 = vmax.f32 %v3488, %v3574
    %v3660 = vmax.f32 %v3489, %v3576
    %v3661 = vmax.f32 %v3490, %v3651
    %v3662 = vmax.f32 %v3491, %v3653
    %v3663 = vld [vmem:[#allocation26] sm:$0xff]
    %v3664 = vld [vmem:[#allocation26 + $0x8] sm:$0xff]
    %v3665 = vld [vmem:[#allocation26 + $0x10] sm:$0xff]
    %v3666 = vld [vmem:[#allocation26 + $0x18] sm:$0xff]
    %v3667 = vld [vmem:[#allocation26 + $0x20] sm:$0xff]
    %v3668 = vld [vmem:[#allocation26 + $0x28] sm:$0xff]
    %v3669 = vld [vmem:[#allocation26 + $0x30] sm:$0xff]
    %v3670 = vld [vmem:[#allocation26 + $0x38] sm:$0xff]
    %v3671 = vld [vmem:[#allocation26 + $0x40] sm:$0xff]
    %v3672 = vld [vmem:[#allocation26 + $0x48] sm:$0xff]
    %v3673 = vld [vmem:[#allocation26 + $0x50] sm:$0xff]
    %v3674 = vld [vmem:[#allocation26 + $0x58] sm:$0xff]
    %v3675 = vld [vmem:[#allocation26 + $0x60] sm:$0xff]
    %v3676 = vld [vmem:[#allocation26 + $0x68] sm:$0xff]
    %v3677 = vld [vmem:[#allocation26 + $0x70] sm:$0xff]
    %v3678 = vld [vmem:[#allocation26 + $0x78] sm:$0xff]
    %v3679 = vld [vmem:[#allocation26 + $0x80] sm:$0xff]
    %v3680 = vld [vmem:[#allocation26 + $0x88] sm:$0xff]
    %v3681 = vld [vmem:[#allocation26 + $0x90] sm:$0xff]
    %v3682 = vld [vmem:[#allocation26 + $0x98] sm:$0xff]
    %v3683 = vld [vmem:[#allocation26 + $0xa0] sm:$0xff]
    %v3684 = vld [vmem:[#allocation26 + $0xa8] sm:$0xff]
    %v3685 = vld [vmem:[#allocation26 + $0xb0] sm:$0xff]
    %v3686 = vld [vmem:[#allocation26 + $0xb8] sm:$0xff]
    %v3687 = vld [vmem:[#allocation26 + $0xc0] sm:$0xff]
    %v3688 = vld [vmem:[#allocation26 + $0xc8] sm:$0xff]
    %v3689 = vld [vmem:[#allocation26 + $0xd0] sm:$0xff]
    %v3690 = vld [vmem:[#allocation26 + $0xd8] sm:$0xff]
    %v3691 = vld [vmem:[#allocation26 + $0xe0] sm:$0xff]
    %v3692 = vld [vmem:[#allocation26 + $0xe8] sm:$0xff]
    %v3693 = vld [vmem:[#allocation26 + $0xf0] sm:$0xff]
    %v3694 = vld [vmem:[#allocation26 + $0xf8] sm:$0xff]
    %v3695 = vld [vmem:[#allocation26 + $0x100] sm:$0xff]
    %v3696 = vld [vmem:[#allocation26 + $0x108] sm:$0xff]
    %v3697 = vld [vmem:[#allocation26 + $0x110] sm:$0xff]
    %v3698 = vld [vmem:[#allocation26 + $0x118] sm:$0xff]
    %v3699 = vld [vmem:[#allocation26 + $0x120] sm:$0xff]
    %v3700 = vld [vmem:[#allocation26 + $0x128] sm:$0xff]
    %v3701 = vld [vmem:[#allocation26 + $0x130] sm:$0xff]
    %v3702 = vld [vmem:[#allocation26 + $0x138] sm:$0xff]
    %v3703 = vld [vmem:[#allocation26 + $0x140] sm:$0xff]
    %v3704 = vld [vmem:[#allocation26 + $0x148] sm:$0xff]
    %v3705 = vld [vmem:[#allocation26 + $0x150] sm:$0xff]
    %v3706 = vld [vmem:[#allocation26 + $0x158] sm:$0xff]
    %v3707 = vld [vmem:[#allocation26 + $0x160] sm:$0xff]
    %v3708 = vld [vmem:[#allocation26 + $0x168] sm:$0xff]
    %v3709 = vld [vmem:[#allocation26 + $0x170] sm:$0xff]
    %v3710 = vld [vmem:[#allocation26 + $0x178] sm:$0xff]
    %v3711 = vld [vmem:[#allocation26 + $0x180] sm:$0xff]
    %v3712 = vld [vmem:[#allocation26 + $0x188] sm:$0xff]
    %v3713 = vld [vmem:[#allocation26 + $0x190] sm:$0xff]
    %v3714 = vld [vmem:[#allocation26 + $0x198] sm:$0xff]
    %v3715 = vld [vmem:[#allocation26 + $0x1a0] sm:$0xff]
    %v3716 = vld [vmem:[#allocation26 + $0x1a8] sm:$0xff]
    %v3717 = vld [vmem:[#allocation26 + $0x1b0] sm:$0xff]
    %v3718 = vld [vmem:[#allocation26 + $0x1b8] sm:$0xff]
    %v3719 = vld [vmem:[#allocation26 + $0x1c0] sm:$0xff]
    %v3720 = vld [vmem:[#allocation26 + $0x1c8] sm:$0xff]
    %v3721 = vld [vmem:[#allocation26 + $0x1d0] sm:$0xff]
    %v3722 = vld [vmem:[#allocation26 + $0x1d8] sm:$0xff]
    %v3723 = vld [vmem:[#allocation26 + $0x1e0] sm:$0xff]
    %v3724 = vld [vmem:[#allocation26 + $0x1e8] sm:$0xff]
    %v3725 = vld [vmem:[#allocation26 + $0x1f0] sm:$0xff]
    %v3726 = vld [vmem:[#allocation26 + $0x1f8] sm:$0xff]
    %v3727 = vld [vmem:[#allocation26 + $0x200] sm:$0xff]
    %v3728 = vld [vmem:[#allocation26 + $0x208] sm:$0xff]
    %v3729 = vld [vmem:[#allocation26 + $0x210] sm:$0xff]
    %v3730 = vld [vmem:[#allocation26 + $0x218] sm:$0xff]
    %v3731 = vld [vmem:[#allocation26 + $0x220] sm:$0xff]
    %v3732 = vld [vmem:[#allocation26 + $0x228] sm:$0xff]
    %v3733 = vld [vmem:[#allocation26 + $0x230] sm:$0xff]
    %v3734 = vld [vmem:[#allocation26 + $0x238] sm:$0xff]
    %v3735 = vld [vmem:[#allocation26 + $0x240] sm:$0xff]
    %v3736 = vld [vmem:[#allocation26 + $0x248] sm:$0xff]
    %v3737 = vld [vmem:[#allocation26 + $0x250] sm:$0xff]
    %v3738 = vld [vmem:[#allocation26 + $0x258] sm:$0xff]
    %v3739 = vld [vmem:[#allocation26 + $0x260] sm:$0xff]
    %v3740 = vld [vmem:[#allocation26 + $0x268] sm:$0xff]
    %v3741 = vld [vmem:[#allocation26 + $0x270] sm:$0xff]
    %v3742 = vld [vmem:[#allocation26 + $0x278] sm:$0xff]
    %v3743 = vld [vmem:[#allocation26 + $0x280] sm:$0xff]
    %v3744 = vld [vmem:[#allocation26 + $0x288] sm:$0xff]
    %v3745 = vld [vmem:[#allocation26 + $0x290] sm:$0xff]
    %v3746 = vld [vmem:[#allocation26 + $0x298] sm:$0xff]
    %v3747 = vld [vmem:[#allocation26 + $0x2a0] sm:$0xff]
    %v3748 = vld [vmem:[#allocation26 + $0x2a8] sm:$0xff]
    %v3749 = vld [vmem:[#allocation26 + $0x2b0] sm:$0xff]
    %v3750 = vld [vmem:[#allocation26 + $0x2b8] sm:$0xff]
    %v3751 = vld [vmem:[#allocation26 + $0x2c0] sm:$0xff]
    %v3752 = vld [vmem:[#allocation26 + $0x2c8] sm:$0xff]
    %v3753 = vld [vmem:[#allocation26 + $0x2d0] sm:$0xff]
    %v3754 = vld [vmem:[#allocation26 + $0x2d8] sm:$0xff]
    %v3755 = vld [vmem:[#allocation26 + $0x2e0] sm:$0xff]
    %v3756 = vld [vmem:[#allocation26 + $0x2e8] sm:$0xff]
    %v3757 = vld [vmem:[#allocation26 + $0x2f0] sm:$0xff]
    %v3758 = vld [vmem:[#allocation26 + $0x2f8] sm:$0xff]
    %v3759 = vld [vmem:[#allocation26 + $0x300] sm:$0xff]
    %v3760 = vld [vmem:[#allocation26 + $0x308] sm:$0xff]
    %v3761 = vld [vmem:[#allocation26 + $0x310] sm:$0xff]
    %v3762 = vld [vmem:[#allocation26 + $0x318] sm:$0xff]
    %v3763 = vld [vmem:[#allocation26 + $0x320] sm:$0xff]
    %v3764 = vld [vmem:[#allocation26 + $0x328] sm:$0xff]
    %v3765 = vld [vmem:[#allocation26 + $0x330] sm:$0xff]
    %v3766 = vld [vmem:[#allocation26 + $0x338] sm:$0xff]
    %v3767 = vld [vmem:[#allocation26 + $0x340] sm:$0xff]
    %v3768 = vld [vmem:[#allocation26 + $0x348] sm:$0xff]
    %v3769 = vld [vmem:[#allocation26 + $0x350] sm:$0xff]
    %v3770 = vld [vmem:[#allocation26 + $0x358] sm:$0xff]
    %v3771 = vld [vmem:[#allocation26 + $0x360] sm:$0xff]
    %v3772 = vld [vmem:[#allocation26 + $0x368] sm:$0xff]
    %v3773 = vld [vmem:[#allocation26 + $0x370] sm:$0xff]
    %v3774 = vld [vmem:[#allocation26 + $0x378] sm:$0xff]
    %v3775 = vld [vmem:[#allocation26 + $0x380] sm:$0xff]
    %v3776 = vld [vmem:[#allocation26 + $0x388] sm:$0xff]
    %v3777 = vld [vmem:[#allocation26 + $0x390] sm:$0xff]
    %v3778 = vld [vmem:[#allocation26 + $0x398] sm:$0xff]
    %v3779 = vld [vmem:[#allocation26 + $0x3a0] sm:$0xff]
    %v3780 = vld [vmem:[#allocation26 + $0x3a8] sm:$0xff]
    %v3781 = vld [vmem:[#allocation26 + $0x3b0] sm:$0xff]
    %v3782 = vld [vmem:[#allocation26 + $0x3b8] sm:$0xff]
    %v3783 = vld [vmem:[#allocation26 + $0x3c0] sm:$0xff]
    %v3784 = vld [vmem:[#allocation26 + $0x3c8] sm:$0xff]
    %v3785 = vld [vmem:[#allocation26 + $0x3d0] sm:$0xff]
    %v3786 = vld [vmem:[#allocation26 + $0x3d8] sm:$0xff]
    %v3787 = vld [vmem:[#allocation26 + $0x3e0] sm:$0xff]
    %v3788 = vld [vmem:[#allocation26 + $0x3e8] sm:$0xff]
    %v3789 = vld [vmem:[#allocation26 + $0x3f0] sm:$0xff]
    %v3790 = vld [vmem:[#allocation26 + $0x3f8] sm:$0xff]
    %3791 = vmatprep.subr.mxu0 %v3664
    %3792 = vmatpush1.msra.mxu0 %v3663
    %3793 = vmatprep.subr.mxu0 %v3666
    %3794 = vmatpush1.msra.mxu0 %v3665
    %3795 = vmatprep.subr.mxu0 %v3668
    %3796 = vmatpush1.msra.mxu0 %v3667
    %3797 = vmatprep.subr.mxu0 %v3670
    %3798 = vmatpush1.msra.mxu0 %v3669
    %3799 = vmatprep.subr.mxu0 %v3672
    %3800 = vmatpush1.msra.mxu0 %v3671
    %3801 = vmatprep.subr.mxu0 %v3674
    %3802 = vmatpush1.msra.mxu0 %v3673
    %3803 = vmatprep.subr.mxu0 %v3676
    %3804 = vmatpush1.msra.mxu0 %v3675
    %3805 = vmatprep.subr.mxu0 %v3678
    %3806 = vmatpush1.msra.mxu0 %v3677
    %3807 = vmatprep.subr.mxu0 %v3680
    %3808 = vmatpush1.msra.mxu0 %v3679
    %3809 = vmatprep.subr.mxu0 %v3682
    %3810 = vmatpush1.msra.mxu0 %v3681
    %3811 = vmatprep.subr.mxu0 %v3684
    %3812 = vmatpush1.msra.mxu0 %v3683
    %3813 = vmatprep.subr.mxu0 %v3686
    %3814 = vmatpush1.msra.mxu0 %v3685
    %3815 = vmatprep.subr.mxu0 %v3688
    %3816 = vmatpush1.msra.mxu0 %v3687
    %3817 = vmatprep.subr.mxu0 %v3690
    %3818 = vmatpush1.msra.mxu0 %v3689
    %3819 = vmatprep.subr.mxu0 %v3692
    %3820 = vmatpush1.msra.mxu0 %v3691
    %3821 = vmatprep.subr.mxu0 %v3694
    %3822 = vmatpush1.msra.mxu0 %v3693
    %3823 = vmatprep.subr.mxu0 %v3696
    %3824 = vmatpush1.msra.mxu0 %v3695
    %3825 = vmatprep.subr.mxu0 %v3698
    %3826 = vmatpush1.msra.mxu0 %v3697
    %3827 = vmatprep.subr.mxu0 %v3700
    %3828 = vmatpush1.msra.mxu0 %v3699
    %3829 = vmatprep.subr.mxu0 %v3702
    %3830 = vmatpush1.msra.mxu0 %v3701
    %3831 = vmatprep.subr.mxu0 %v3704
    %3832 = vmatpush1.msra.mxu0 %v3703
    %3833 = vmatprep.subr.mxu0 %v3706
    %3834 = vmatpush1.msra.mxu0 %v3705
    %3835 = vmatprep.subr.mxu0 %v3708
    %3836 = vmatpush1.msra.mxu0 %v3707
    %3837 = vmatprep.subr.mxu0 %v3710
    %3838 = vmatpush1.msra.mxu0 %v3709
    %3839 = vmatprep.subr.mxu0 %v3712
    %3840 = vmatpush1.msra.mxu0 %v3711
    %3841 = vmatprep.subr.mxu0 %v3714
    %3842 = vmatpush1.msra.mxu0 %v3713
    %3843 = vmatprep.subr.mxu0 %v3716
    %3844 = vmatpush1.msra.mxu0 %v3715
    %3845 = vmatprep.subr.mxu0 %v3718
    %3846 = vmatpush1.msra.mxu0 %v3717
    %3847 = vmatprep.subr.mxu0 %v3720
    %3848 = vmatpush1.msra.mxu0 %v3719
    %3849 = vmatprep.subr.mxu0 %v3722
    %3850 = vmatpush1.msra.mxu0 %v3721
    %3851 = vmatprep.subr.mxu0 %v3724
    %3852 = vmatpush1.msra.mxu0 %v3723
    %3853 = vmatprep.subr.mxu0 %v3726
    %3854 = vmatpush1.msra.mxu0 %v3725
    %3855 = vmatprep.mubr.f32.mxu0 %v3656
    %3856 = vmatmul.mubr.f32.gmra.mrb[0].mxu0 %v3655
    %v3857 = vpop.f32.mrb[0].mxu0
    %v3858 = vadd.f32 0.0, %v3857
    %v3859 = vpop.f32.mrb[0].mxu0
    %v3860 = vadd.f32 0.0, %v3859
    %3861 = vmatprep.mubr.f32.mxu0 %v3660
    %3862 = vmatmul.mubr.f32.gmra.mrb[0].mxu0 %v3659
    %v3863 = vpop.f32.mrb[0].mxu0
    %v3864 = vadd.f32 0.0, %v3863
    %v3865 = vpop.f32.mrb[0].mxu0
    %v3866 = vadd.f32 0.0, %v3865
    %3867 = vdwg.mxu0
    %3868 = vmatprep.subr.mxu0 %v3728
    %3869 = vmatpush1.msra.mxu0 %v3727
    %3870 = vmatprep.subr.mxu0 %v3730
    %3871 = vmatpush1.msra.mxu0 %v3729
    %3872 = vmatprep.subr.mxu0 %v3732
    %3873 = vmatpush1.msra.mxu0 %v3731
    %3874 = vmatprep.subr.mxu0 %v3734
    %3875 = vmatpush1.msra.mxu0 %v3733
    %3876 = vmatprep.subr.mxu0 %v3736
    %3877 = vmatpush1.msra.mxu0 %v3735
    %3878 = vmatprep.subr.mxu0 %v3738
    %3879 = vmatpush1.msra.mxu0 %v3737
    %3880 = vmatprep.subr.mxu0 %v3740
    %3881 = vmatpush1.msra.mxu0 %v3739
    %3882 = vmatprep.subr.mxu0 %v3742
    %3883 = vmatpush1.msra.mxu0 %v3741
    %3884 = vmatprep.subr.mxu0 %v3744
    %3885 = vmatpush1.msra.mxu0 %v3743
    %3886 = vmatprep.subr.mxu0 %v3746
    %3887 = vmatpush1.msra.mxu0 %v3745
    %3888 = vmatprep.subr.mxu0 %v3748
    %3889 = vmatpush1.msra.mxu0 %v3747
    %3890 = vmatprep.subr.mxu0 %v3750
    %3891 = vmatpush1.msra.mxu0 %v3749
    %3892 = vmatprep.subr.mxu0 %v3752
    %3893 = vmatpush1.msra.mxu0 %v3751
    %3894 = vmatprep.subr.mxu0 %v3754
    %3895 = vmatpush1.msra.mxu0 %v3753
    %3896 = vmatprep.subr.mxu0 %v3756
    %3897 = vmatpush1.msra.mxu0 %v3755
    %3898 = vmatprep.subr.mxu0 %v3758
    %3899 = vmatpush1.msra.mxu0 %v3757
    %3900 = vmatprep.subr.mxu0 %v3760
    %3901 = vmatpush1.msra.mxu0 %v3759
    %3902 = vmatprep.subr.mxu0 %v3762
    %3903 = vmatpush1.msra.mxu0 %v3761
    %3904 = vmatprep.subr.mxu0 %v3764
    %3905 = vmatpush1.msra.mxu0 %v3763
    %3906 = vmatprep.subr.mxu0 %v3766
    %3907 = vmatpush1.msra.mxu0 %v3765
    %3908 = vmatprep.subr.mxu0 %v3768
    %3909 = vmatpush1.msra.mxu0 %v3767
    %3910 = vmatprep.subr.mxu0 %v3770
    %3911 = vmatpush1.msra.mxu0 %v3769
    %3912 = vmatprep.subr.mxu0 %v3772
    %3913 = vmatpush1.msra.mxu0 %v3771
    %3914 = vmatprep.subr.mxu0 %v3774
    %3915 = vmatpush1.msra.mxu0 %v3773
    %3916 = vmatprep.subr.mxu0 %v3776
    %3917 = vmatpush1.msra.mxu0 %v3775
    %3918 = vmatprep.subr.mxu0 %v3778
    %3919 = vmatpush1.msra.mxu0 %v3777
    %3920 = vmatprep.subr.mxu0 %v3780
    %3921 = vmatpush1.msra.mxu0 %v3779
    %3922 = vmatprep.subr.mxu0 %v3782
    %3923 = vmatpush1.msra.mxu0 %v3781
    %3924 = vmatprep.subr.mxu0 %v3784
    %3925 = vmatpush1.msra.mxu0 %v3783
    %3926 = vmatprep.subr.mxu0 %v3786
    %3927 = vmatpush1.msra.mxu0 %v3785
    %3928 = vmatprep.subr.mxu0 %v3788
    %3929 = vmatpush1.msra.mxu0 %v3787
    %3930 = vmatprep.subr.mxu0 %v3790
    %3931 = vmatpush1.msra.mxu0 %v3789
    %3932 = vmatprep.mubr.f32.mxu0 %v3658
    %3933 = vmatmul.mubr.f32.gmra.mrb[0].mxu0 %v3657
    %v3934 = vpop.f32.mrb[0].mxu0
    %v3935 = vadd.f32 %v3858, %v3934
    %v3936 = vpop.f32.mrb[0].mxu0
    %v3937 = vadd.f32 %v3860, %v3936
    %3938 = vmatprep.mubr.f32.mxu0 %v3662
    %3939 = vmatmul.mubr.f32.gmra.mrb[0].mxu0 %v3661
    %v3940 = vpop.f32.mrb[0].mxu0
    %v3941 = vadd.f32 %v3864, %v3940
    %v3942 = vpop.f32.mrb[0].mxu0
    %v3943 = vadd.f32 %v3866, %v3942
    %3944 = vdwg.mxu0
    %s3945 = scalar_lea.vmem [#allocation26], 1024
    %v3946 = vld [vmem:[%s3945] sm:$0xff]
    %v3947 = vld [vmem:[%s3945 + $0x8] sm:$0xff]
    %v3948 = vld [vmem:[%s3945 + $0x10] sm:$0xff]
    %v3949 = vld [vmem:[%s3945 + $0x18] sm:$0xff]
    %v3950 = vld [vmem:[%s3945 + $0x20] sm:$0xff]
    %v3951 = vld [vmem:[%s3945 + $0x28] sm:$0xff]
    %v3952 = vld [vmem:[%s3945 + $0x30] sm:$0xff]
    %v3953 = vld [vmem:[%s3945 + $0x38] sm:$0xff]
    %v3954 = vld [vmem:[%s3945 + $0x40] sm:$0xff]
    %v3955 = vld [vmem:[%s3945 + $0x48] sm:$0xff]
    %v3956 = vld [vmem:[%s3945 + $0x50] sm:$0xff]
    %v3957 = vld [vmem:[%s3945 + $0x58] sm:$0xff]
    %v3958 = vld [vmem:[%s3945 + $0x60] sm:$0xff]
    %v3959 = vld [vmem:[%s3945 + $0x68] sm:$0xff]
    %v3960 = vld [vmem:[%s3945 + $0x70] sm:$0xff]
    %v3961 = vld [vmem:[%s3945 + $0x78] sm:$0xff]
    %v3962 = vld [vmem:[%s3945 + $0x80] sm:$0xff]
    %v3963 = vld [vmem:[%s3945 + $0x88] sm:$0xff]
    %v3964 = vld [vmem:[%s3945 + $0x90] sm:$0xff]
    %v3965 = vld [vmem:[%s3945 + $0x98] sm:$0xff]
    %v3966 = vld [vmem:[%s3945 + $0xa0] sm:$0xff]
    %v3967 = vld [vmem:[%s3945 + $0xa8] sm:$0xff]
    %v3968 = vld [vmem:[%s3945 + $0xb0] sm:$0xff]
    %v3969 = vld [vmem:[%s3945 + $0xb8] sm:$0xff]
    %v3970 = vld [vmem:[%s3945 + $0xc0] sm:$0xff]
    %v3971 = vld [vmem:[%s3945 + $0xc8] sm:$0xff]
    %v3972 = vld [vmem:[%s3945 + $0xd0] sm:$0xff]
    %v3973 = vld [vmem:[%s3945 + $0xd8] sm:$0xff]
    %v3974 = vld [vmem:[%s3945 + $0xe0] sm:$0xff]
    %v3975 = vld [vmem:[%s3945 + $0xe8] sm:$0xff]
    %v3976 = vld [vmem:[%s3945 + $0xf0] sm:$0xff]
    %v3977 = vld [vmem:[%s3945 + $0xf8] sm:$0xff]
    %v3978 = vld [vmem:[%s3945 + $0x100] sm:$0xff]
    %v3979 = vld [vmem:[%s3945 + $0x108] sm:$0xff]
    %v3980 = vld [vmem:[%s3945 + $0x110] sm:$0xff]
    %v3981 = vld [vmem:[%s3945 + $0x118] sm:$0xff]
    %v3982 = vld [vmem:[%s3945 + $0x120] sm:$0xff]
    %v3983 = vld [vmem:[%s3945 + $0x128] sm:$0xff]
    %v3984 = vld [vmem:[%s3945 + $0x130] sm:$0xff]
    %v3985 = vld [vmem:[%s3945 + $0x138] sm:$0xff]
    %v3986 = vld [vmem:[%s3945 + $0x140] sm:$0xff]
    %v3987 = vld [vmem:[%s3945 + $0x148] sm:$0xff]
    %v3988 = vld [vmem:[%s3945 + $0x150] sm:$0xff]
    %v3989 = vld [vmem:[%s3945 + $0x158] sm:$0xff]
    %v3990 = vld [vmem:[%s3945 + $0x160] sm:$0xff]
    %v3991 = vld [vmem:[%s3945 + $0x168] sm:$0xff]
    %v3992 = vld [vmem:[%s3945 + $0x170] sm:$0xff]
    %v3993 = vld [vmem:[%s3945 + $0x178] sm:$0xff]
    %v3994 = vld [vmem:[%s3945 + $0x180] sm:$0xff]
    %v3995 = vld [vmem:[%s3945 + $0x188] sm:$0xff]
    %v3996 = vld [vmem:[%s3945 + $0x190] sm:$0xff]
    %v3997 = vld [vmem:[%s3945 + $0x198] sm:$0xff]
    %v3998 = vld [vmem:[%s3945 + $0x1a0] sm:$0xff]
    %v3999 = vld [vmem:[%s3945 + $0x1a8] sm:$0xff]
    %v4000 = vld [vmem:[%s3945 + $0x1b0] sm:$0xff]
    %v4001 = vld [vmem:[%s3945 + $0x1b8] sm:$0xff]
    %v4002 = vld [vmem:[%s3945 + $0x1c0] sm:$0xff]
    %v4003 = vld [vmem:[%s3945 + $0x1c8] sm:$0xff]
    %v4004 = vld [vmem:[%s3945 + $0x1d0] sm:$0xff]
    %v4005 = vld [vmem:[%s3945 + $0x1d8] sm:$0xff]
    %v4006 = vld [vmem:[%s3945 + $0x1e0] sm:$0xff]
    %v4007 = vld [vmem:[%s3945 + $0x1e8] sm:$0xff]
    %v4008 = vld [vmem:[%s3945 + $0x1f0] sm:$0xff]
    %v4009 = vld [vmem:[%s3945 + $0x1f8] sm:$0xff]
    %v4010 = vld [vmem:[%s3945 + $0x200] sm:$0xff]
    %v4011 = vld [vmem:[%s3945 + $0x208] sm:$0xff]
    %v4012 = vld [vmem:[%s3945 + $0x210] sm:$0xff]
    %v4013 = vld [vmem:[%s3945 + $0x218] sm:$0xff]
    %v4014 = vld [vmem:[%s3945 + $0x220] sm:$0xff]
    %v4015 = vld [vmem:[%s3945 + $0x228] sm:$0xff]
    %v4016 = vld [vmem:[%s3945 + $0x230] sm:$0xff]
    %v4017 = vld [vmem:[%s3945 + $0x238] sm:$0xff]
    %v4018 = vld [vmem:[%s3945 + $0x240] sm:$0xff]
    %v4019 = vld [vmem:[%s3945 + $0x248] sm:$0xff]
    %v4020 = vld [vmem:[%s3945 + $0x250] sm:$0xff]
    %v4021 = vld [vmem:[%s3945 + $0x258] sm:$0xff]
    %v4022 = vld [vmem:[%s3945 + $0x260] sm:$0xff]
    %v4023 = vld [vmem:[%s3945 + $0x268] sm:$0xff]
    %v4024 = vld [vmem:[%s3945 + $0x270] sm:$0xff]
    %v4025 = vld [vmem:[%s3945 + $0x278] sm:$0xff]
    %v4026 = vld [vmem:[%s3945 + $0x280] sm:$0xff]
    %v4027 = vld [vmem:[%s3945 + $0x288] sm:$0xff]
    %v4028 = vld [vmem:[%s3945 + $0x290] sm:$0xff]
    %v4029 = vld [vmem:[%s3945 + $0x298] sm:$0xff]
    %v4030 = vld [vmem:[%s3945 + $0x2a0] sm:$0xff]
    %v4031 = vld [vmem:[%s3945 + $0x2a8] sm:$0xff]
    %v4032 = vld [vmem:[%s3945 + $0x2b0] sm:$0xff]
    %v4033 = vld [vmem:[%s3945 + $0x2b8] sm:$0xff]
    %v4034 = vld [vmem:[%s3945 + $0x2c0] sm:$0xff]
    %v4035 = vld [vmem:[%s3945 + $0x2c8] sm:$0xff]
    %v4036 = vld [vmem:[%s3945 + $0x2d0] sm:$0xff]
    %v4037 = vld [vmem:[%s3945 + $0x2d8] sm:$0xff]
    %v4038 = vld [vmem:[%s3945 + $0x2e0] sm:$0xff]
    %v4039 = vld [vmem:[%s3945 + $0x2e8] sm:$0xff]
    %v4040 = vld [vmem:[%s3945 + $0x2f0] sm:$0xff]
    %v4041 = vld [vmem:[%s3945 + $0x2f8] sm:$0xff]
    %v4042 = vld [vmem:[%s3945 + $0x300] sm:$0xff]
    %v4043 = vld [vmem:[%s3945 + $0x308] sm:$0xff]
    %v4044 = vld [vmem:[%s3945 + $0x310] sm:$0xff]
    %v4045 = vld [vmem:[%s3945 + $0x318] sm:$0xff]
    %v4046 = vld [vmem:[%s3945 + $0x320] sm:$0xff]
    %v4047 = vld [vmem:[%s3945 + $0x328] sm:$0xff]
    %v4048 = vld [vmem:[%s3945 + $0x330] sm:$0xff]
    %v4049 = vld [vmem:[%s3945 + $0x338] sm:$0xff]
    %v4050 = vld [vmem:[%s3945 + $0x340] sm:$0xff]
    %v4051 = vld [vmem:[%s3945 + $0x348] sm:$0xff]
    %v4052 = vld [vmem:[%s3945 + $0x350] sm:$0xff]
    %v4053 = vld [vmem:[%s3945 + $0x358] sm:$0xff]
    %v4054 = vld [vmem:[%s3945 + $0x360] sm:$0xff]
    %v4055 = vld [vmem:[%s3945 + $0x368] sm:$0xff]
    %v4056 = vld [vmem:[%s3945 + $0x370] sm:$0xff]
    %v4057 = vld [vmem:[%s3945 + $0x378] sm:$0xff]
    %v4058 = vld [vmem:[%s3945 + $0x380] sm:$0xff]
    %v4059 = vld [vmem:[%s3945 + $0x388] sm:$0xff]
    %v4060 = vld [vmem:[%s3945 + $0x390] sm:$0xff]
    %v4061 = vld [vmem:[%s3945 + $0x398] sm:$0xff]
    %v4062 = vld [vmem:[%s3945 + $0x3a0] sm:$0xff]
    %v4063 = vld [vmem:[%s3945 + $0x3a8] sm:$0xff]
    %v4064 = vld [vmem:[%s3945 + $0x3b0] sm:$0xff]
    %v4065 = vld [vmem:[%s3945 + $0x3b8] sm:$0xff]
    %v4066 = vld [vmem:[%s3945 + $0x3c0] sm:$0xff]
    %v4067 = vld [vmem:[%s3945 + $0x3c8] sm:$0xff]
    %v4068 = vld [vmem:[%s3945 + $0x3d0] sm:$0xff]
    %v4069 = vld [vmem:[%s3945 + $0x3d8] sm:$0xff]
    %v4070 = vld [vmem:[%s3945 + $0x3e0] sm:$0xff]
    %v4071 = vld [vmem:[%s3945 + $0x3e8] sm:$0xff]
    %v4072 = vld [vmem:[%s3945 + $0x3f0] sm:$0xff]
    %v4073 = vld [vmem:[%s3945 + $0x3f8] sm:$0xff]
    %4074 = vmatprep.subr.mxu0 %v3947
    %4075 = vmatpush1.msra.mxu0 %v3946
    %4076 = vmatprep.subr.mxu0 %v3949
    %4077 = vmatpush1.msra.mxu0 %v3948
    %4078 = vmatprep.subr.mxu0 %v3951
    %4079 = vmatpush1.msra.mxu0 %v3950
    %4080 = vmatprep.subr.mxu0 %v3953
    %4081 = vmatpush1.msra.mxu0 %v3952
    %4082 = vmatprep.subr.mxu0 %v3955
    %4083 = vmatpush1.msra.mxu0 %v3954
    %4084 = vmatprep.subr.mxu0 %v3957
    %4085 = vmatpush1.msra.mxu0 %v3956
    %4086 = vmatprep.subr.mxu0 %v3959
    %4087 = vmatpush1.msra.mxu0 %v3958
    %4088 = vmatprep.subr.mxu0 %v3961
    %4089 = vmatpush1.msra.mxu0 %v3960
    %4090 = vmatprep.subr.mxu0 %v3963
    %4091 = vmatpush1.msra.mxu0 %v3962
    %4092 = vmatprep.subr.mxu0 %v3965
    %4093 = vmatpush1.msra.mxu0 %v3964
    %4094 = vmatprep.subr.mxu0 %v3967
    %4095 = vmatpush1.msra.mxu0 %v3966
    %4096 = vmatprep.subr.mxu0 %v3969
    %4097 = vmatpush1.msra.mxu0 %v3968
    %4098 = vmatprep.subr.mxu0 %v3971
    %4099 = vmatpush1.msra.mxu0 %v3970
    %4100 = vmatprep.subr.mxu0 %v3973
    %4101 = vmatpush1.msra.mxu0 %v3972
    %4102 = vmatprep.subr.mxu0 %v3975
    %4103 = vmatpush1.msra.mxu0 %v3974
    %4104 = vmatprep.subr.mxu0 %v3977
    %4105 = vmatpush1.msra.mxu0 %v3976
    %4106 = vmatprep.subr.mxu0 %v3979
    %4107 = vmatpush1.msra.mxu0 %v3978
    %4108 = vmatprep.subr.mxu0 %v3981
    %4109 = vmatpush1.msra.mxu0 %v3980
    %4110 = vmatprep.subr.mxu0 %v3983
    %4111 = vmatpush1.msra.mxu0 %v3982
    %4112 = vmatprep.subr.mxu0 %v3985
    %4113 = vmatpush1.msra.mxu0 %v3984
    %4114 = vmatprep.subr.mxu0 %v3987
    %4115 = vmatpush1.msra.mxu0 %v3986
    %4116 = vmatprep.subr.mxu0 %v3989
    %4117 = vmatpush1.msra.mxu0 %v3988
    %4118 = vmatprep.subr.mxu0 %v3991
    %4119 = vmatpush1.msra.mxu0 %v3990
    %4120 = vmatprep.subr.mxu0 %v3993
    %4121 = vmatpush1.msra.mxu0 %v3992
    %4122 = vmatprep.subr.mxu0 %v3995
    %4123 = vmatpush1.msra.mxu0 %v3994
    %4124 = vmatprep.subr.mxu0 %v3997
    %4125 = vmatpush1.msra.mxu0 %v3996
    %4126 = vmatprep.subr.mxu0 %v3999
    %4127 = vmatpush1.msra.mxu0 %v3998
    %4128 = vmatprep.subr.mxu0 %v4001
    %4129 = vmatpush1.msra.mxu0 %v4000
    %4130 = vmatprep.subr.mxu0 %v4003
    %4131 = vmatpush1.msra.mxu0 %v4002
    %4132 = vmatprep.subr.mxu0 %v4005
    %4133 = vmatpush1.msra.mxu0 %v4004
    %4134 = vmatprep.subr.mxu0 %v4007
    %4135 = vmatpush1.msra.mxu0 %v4006
    %4136 = vmatprep.subr.mxu0 %v4009
    %4137 = vmatpush1.msra.mxu0 %v4008
    %4138 = vmatprep.mubr.f32.mxu0 %v3656
    %4139 = vmatmul.mubr.f32.gmra.mrb[0].mxu0 %v3655
    %v4140 = vpop.f32.mrb[0].mxu0
    %v4141 = vadd.f32 0.0, %v4140
    %v4142 = vpop.f32.mrb[0].mxu0
    %v4143 = vadd.f32 0.0, %v4142
    %4144 = vmatprep.mubr.f32.mxu0 %v3660
    %4145 = vmatmul.mubr.f32.gmra.mrb[0].mxu0 %v3659
    %v4146 = vpop.f32.mrb[0].mxu0
    %v4147 = vadd.f32 0.0, %v4146
    %v4148 = vpop.f32.mrb[0].mxu0
    %v4149 = vadd.f32 0.0, %v4148
    %4150 = vdwg.mxu0
    %4151 = vmatprep.subr.mxu0 %v4011
    %4152 = vmatpush1.msra.mxu0 %v4010
    %4153 = vmatprep.subr.mxu0 %v4013
    %4154 = vmatpush1.msra.mxu0 %v4012
    %4155 = vmatprep.subr.mxu0 %v4015
    %4156 = vmatpush1.msra.mxu0 %v4014
    %4157 = vmatprep.subr.mxu0 %v4017
    %4158 = vmatpush1.msra.mxu0 %v4016
    %4159 = vmatprep.subr.mxu0 %v4019
    %4160 = vmatpush1.msra.mxu0 %v4018
    %4161 = vmatprep.subr.mxu0 %v4021
    %4162 = vmatpush1.msra.mxu0 %v4020
    %4163 = vmatprep.subr.mxu0 %v4023
    %4164 = vmatpush1.msra.mxu0 %v4022
    %4165 = vmatprep.subr.mxu0 %v4025
    %4166 = vmatpush1.msra.mxu0 %v4024
    %4167 = vmatprep.subr.mxu0 %v4027
    %4168 = vmatpush1.msra.mxu0 %v4026
    %4169 = vmatprep.subr.mxu0 %v4029
    %4170 = vmatpush1.msra.mxu0 %v4028
    %4171 = vmatprep.subr.mxu0 %v4031
    %4172 = vmatpush1.msra.mxu0 %v4030
    %4173 = vmatprep.subr.mxu0 %v4033
    %4174 = vmatpush1.msra.mxu0 %v4032
    %4175 = vmatprep.subr.mxu0 %v4035
    %4176 = vmatpush1.msra.mxu0 %v4034
    %4177 = vmatprep.subr.mxu0 %v4037
    %4178 = vmatpush1.msra.mxu0 %v4036
    %4179 = vmatprep.subr.mxu0 %v4039
    %4180 = vmatpush1.msra.mxu0 %v4038
    %4181 = vmatprep.subr.mxu0 %v4041
    %4182 = vmatpush1.msra.mxu0 %v4040
    %4183 = vmatprep.subr.mxu0 %v4043
    %4184 = vmatpush1.msra.mxu0 %v4042
    %4185 = vmatprep.subr.mxu0 %v4045
    %4186 = vmatpush1.msra.mxu0 %v4044
    %4187 = vmatprep.subr.mxu0 %v4047
    %4188 = vmatpush1.msra.mxu0 %v4046
    %4189 = vmatprep.subr.mxu0 %v4049
    %4190 = vmatpush1.msra.mxu0 %v4048
    %4191 = vmatprep.subr.mxu0 %v4051
    %4192 = vmatpush1.msra.mxu0 %v4050
    %4193 = vmatprep.subr.mxu0 %v4053
    %4194 = vmatpush1.msra.mxu0 %v4052
    %4195 = vmatprep.subr.mxu0 %v4055
    %4196 = vmatpush1.msra.mxu0 %v4054
    %4197 = vmatprep.subr.mxu0 %v4057
    %4198 = vmatpush1.msra.mxu0 %v4056
    %4199 = vmatprep.subr.mxu0 %v4059
    %4200 = vmatpush1.msra.mxu0 %v4058
    %4201 = vmatprep.subr.mxu0 %v4061
    %4202 = vmatpush1.msra.mxu0 %v4060
    %4203 = vmatprep.subr.mxu0 %v4063
    %4204 = vmatpush1.msra.mxu0 %v4062
    %4205 = vmatprep.subr.mxu0 %v4065
    %4206 = vmatpush1.msra.mxu0 %v4064
    %4207 = vmatprep.subr.mxu0 %v4067
    %4208 = vmatpush1.msra.mxu0 %v4066
    %4209 = vmatprep.subr.mxu0 %v4069
    %4210 = vmatpush1.msra.mxu0 %v4068
    %4211 = vmatprep.subr.mxu0 %v4071
    %4212 = vmatpush1.msra.mxu0 %v4070
    %4213 = vmatprep.subr.mxu0 %v4073
    %4214 = vmatpush1.msra.mxu0 %v4072
    %4215 = vmatprep.mubr.f32.mxu0 %v3658
    %4216 = vmatmul.mubr.f32.gmra.mrb[0].mxu0 %v3657
    %v4217 = vpop.f32.mrb[0].mxu0
    %v4218 = vadd.f32 %v4141, %v4217
    %v4219 = vpop.f32.mrb[0].mxu0
    %v4220 = vadd.f32 %v4143, %v4219
    %4221 = vmatprep.mubr.f32.mxu0 %v3662
    %4222 = vmatmul.mubr.f32.gmra.mrb[0].mxu0 %v3661
    %v4223 = vpop.f32.mrb[0].mxu0
    %v4224 = vadd.f32 %v4147, %v4223
    %v4225 = vpop.f32.mrb[0].mxu0
    %v4226 = vadd.f32 %v4149, %v4225
    %4227 = vdwg.mxu0
    %v4228 = vmax.f32 %v3935, %v4218
    %v4229 = vmax.f32 %v3937, %v4220
    %v4230 = vmax.f32 %v3941, %v4224
    %v4231 = vmax.f32 %v3943, %v4226
    %v4232 = vld [vmem:[#allocation28] sm:$0xff]
    %v4234 = vsel %vm3494, %v4232, 0
    %4236 = vmatprep.subr.mxu0 %v4229
    %4237 = vmatpush1.msra.mxu0 %v4228
    %4238 = vmatprep.subr.mxu0 %v4231
    %4239 = vmatpush1.msra.mxu0 %v4230
    %4240 = vmatprep.subr.mxu0 0.0
    %4241 = vmatpush1.msra.mxu0 0.0
    %4242 = vmatprep.subr.mxu0 0.0
    %4243 = vmatpush1.msra.mxu0 0.0
    %4244 = vmatprep.subr.mxu0 0.0
    %4245 = vmatpush1.msra.mxu0 0.0
    %4246 = vmatprep.subr.mxu0 0.0
    %4247 = vmatpush1.msra.mxu0 0.0
    %4248 = vmatprep.subr.mxu0 0.0
    %4249 = vmatpush1.msra.mxu0 0.0
    %4250 = vmatprep.subr.mxu0 0.0
    %4251 = vmatpush1.msra.mxu0 0.0
    %4252 = vmatprep.subr.mxu0 0.0
    %4253 = vmatpush1.msra.mxu0 0.0
    %4254 = vmatprep.subr.mxu0 0.0
    %4255 = vmatpush1.msra.mxu0 0.0
    %4256 = vmatprep.subr.mxu0 0.0
    %4257 = vmatpush1.msra.mxu0 0.0
    %4258 = vmatprep.subr.mxu0 0.0
    %4259 = vmatpush1.msra.mxu0 0.0
    %4260 = vmatprep.subr.mxu0 0.0
    %4261 = vmatpush1.msra.mxu0 0.0
    %4262 = vmatprep.subr.mxu0 0.0
    %4263 = vmatpush1.msra.mxu0 0.0
    %4264 = vmatprep.subr.mxu0 0.0
    %4265 = vmatpush1.msra.mxu0 0.0
    %4266 = vmatprep.subr.mxu0 0.0
    %4267 = vmatpush1.msra.mxu0 0.0
    %4268 = vmatprep.subr.mxu0 0.0
    %4269 = vmatpush1.msra.mxu0 0.0
    %4270 = vmatprep.subr.mxu0 0.0
    %4271 = vmatpush1.msra.mxu0 0.0
    %4272 = vmatprep.subr.mxu0 0.0
    %4273 = vmatpush1.msra.mxu0 0.0
    %4274 = vmatprep.subr.mxu0 0.0
    %4275 = vmatpush1.msra.mxu0 0.0
    %4276 = vmatprep.subr.mxu0 0.0
    %4277 = vmatpush1.msra.mxu0 0.0
    %4278 = vmatprep.subr.mxu0 0.0
    %4279 = vmatpush1.msra.mxu0 0.0
    %4280 = vmatprep.subr.mxu0 0.0
    %4281 = vmatpush1.msra.mxu0 0.0
    %4282 = vmatprep.subr.mxu0 0.0
    %4283 = vmatpush1.msra.mxu0 0.0
    %4284 = vmatprep.subr.mxu0 0.0
    %4285 = vmatpush1.msra.mxu0 0.0
    %4286 = vmatprep.subr.mxu0 0.0
    %4287 = vmatpush1.msra.mxu0 0.0
    %4288 = vmatprep.subr.mxu0 0.0
    %4289 = vmatpush1.msra.mxu0 0.0
    %4290 = vmatprep.subr.mxu0 0.0
    %4291 = vmatpush1.msra.mxu0 0.0
    %4292 = vmatprep.subr.mxu0 0.0
    %4293 = vmatpush1.msra.mxu0 0.0
    %4294 = vmatprep.subr.mxu0 0.0
    %4295 = vmatpush1.msra.mxu0 0.0
    %4296 = vmatprep.subr.mxu0 0.0
    %4297 = vmatpush1.msra.mxu0 0.0
    %4298 = vmatprep.subr.mxu0 0.0
    %4299 = vmatpush1.msra.mxu0 0.0
    %4300 = vmatprep.mubr.f32.mxu0 0.0
    %4301 = vmatmul.mubr.f32.gmra.mrb[0].mxu0 %v4234
    %v4302 = vpop.f32.mrb[0].mxu0
    %v4303 = vadd.f32 0.0, %v4302
    %v4304 = vpop.f32.mrb[0].mxu0
    %v4305 = vadd.f32 0.0, %v4304
    %4306 = vdwg.mxu0
    %v4307 = vld [vmem:[#allocation29] sm:$0xff]
    %v4308 = vld [vmem:[#allocation29 + $0x8] sm:$0xff]
    %v4309 = vld [vmem:[#allocation29 + $0x10] sm:$0xff]
    %v4310 = vld [vmem:[#allocation29 + $0x18] sm:$0xff]
    %v4311 = vld [vmem:[#allocation29 + $0x20] sm:$0xff]
    %v4312 = vld [vmem:[#allocation29 + $0x28] sm:$0xff]
    %v4313 = vld [vmem:[#allocation29 + $0x30] sm:$0xff]
    %v4314 = vld [vmem:[#allocation29 + $0x38] sm:$0xff]
    %v4315 = vld [vmem:[#allocation29 + $0x40] sm:$0xff]
    %v4316 = vld [vmem:[#allocation29 + $0x48] sm:$0xff]
    %v4317 = vld [vmem:[#allocation29 + $0x50] sm:$0xff]
    %v4318 = vld [vmem:[#allocation29 + $0x58] sm:$0xff]
    %v4319 = vld [vmem:[#allocation29 + $0x60] sm:$0xff]
    %v4320 = vld [vmem:[#allocation29 + $0x68] sm:$0xff]
    %v4321 = vld [vmem:[#allocation29 + $0x70] sm:$0xff]
    %v4322 = vld [vmem:[#allocation29 + $0x78] sm:$0xff]
    %v4323 = vld [vmem:[#allocation29 + $0x80] sm:$0xff]
    %v4324 = vld [vmem:[#allocation29 + $0x88] sm:$0xff]
    %v4325 = vld [vmem:[#allocation29 + $0x90] sm:$0xff]
    %v4326 = vld [vmem:[#allocation29 + $0x98] sm:$0xff]
    %v4327 = vld [vmem:[#allocation29 + $0xa0] sm:$0xff]
    %v4328 = vld [vmem:[#allocation29 + $0xa8] sm:$0xff]
    %v4329 = vld [vmem:[#allocation29 + $0xb0] sm:$0xff]
    %v4330 = vld [vmem:[#allocation29 + $0xb8] sm:$0xff]
    %v4331 = vld [vmem:[#allocation29 + $0xc0] sm:$0xff]
    %v4332 = vld [vmem:[#allocation29 + $0xc8] sm:$0xff]
    %v4333 = vld [vmem:[#allocation29 + $0xd0] sm:$0xff]
    %v4334 = vld [vmem:[#allocation29 + $0xd8] sm:$0xff]
    %v4335 = vld [vmem:[#allocation29 + $0xe0] sm:$0xff]
    %v4336 = vld [vmem:[#allocation29 + $0xe8] sm:$0xff]
    %v4337 = vld [vmem:[#allocation29 + $0xf0] sm:$0xff]
    %v4338 = vld [vmem:[#allocation29 + $0xf8] sm:$0xff]
    %v4339 = vld [vmem:[#allocation29 + $0x100] sm:$0xff]
    %v4340 = vld [vmem:[#allocation29 + $0x108] sm:$0xff]
    %v4341 = vld [vmem:[#allocation29 + $0x110] sm:$0xff]
    %v4342 = vld [vmem:[#allocation29 + $0x118] sm:$0xff]
    %v4343 = vld [vmem:[#allocation29 + $0x120] sm:$0xff]
    %v4344 = vld [vmem:[#allocation29 + $0x128] sm:$0xff]
    %v4345 = vld [vmem:[#allocation29 + $0x130] sm:$0xff]
    %v4346 = vld [vmem:[#allocation29 + $0x138] sm:$0xff]
    %v4347 = vld [vmem:[#allocation29 + $0x140] sm:$0xff]
    %v4348 = vld [vmem:[#allocation29 + $0x148] sm:$0xff]
    %v4349 = vld [vmem:[#allocation29 + $0x150] sm:$0xff]
    %v4350 = vld [vmem:[#allocation29 + $0x158] sm:$0xff]
    %v4351 = vld [vmem:[#allocation29 + $0x160] sm:$0xff]
    %v4352 = vld [vmem:[#allocation29 + $0x168] sm:$0xff]
    %v4353 = vld [vmem:[#allocation29 + $0x170] sm:$0xff]
    %v4354 = vld [vmem:[#allocation29 + $0x178] sm:$0xff]
    %v4355 = vld [vmem:[#allocation29 + $0x180] sm:$0xff]
    %v4356 = vld [vmem:[#allocation29 + $0x188] sm:$0xff]
    %v4357 = vld [vmem:[#allocation29 + $0x190] sm:$0xff]
    %v4358 = vld [vmem:[#allocation29 + $0x198] sm:$0xff]
    %v4359 = vld [vmem:[#allocation29 + $0x1a0] sm:$0xff]
    %v4360 = vld [vmem:[#allocation29 + $0x1a8] sm:$0xff]
    %v4361 = vld [vmem:[#allocation29 + $0x1b0] sm:$0xff]
    %v4362 = vld [vmem:[#allocation29 + $0x1b8] sm:$0xff]
    %v4363 = vld [vmem:[#allocation29 + $0x1c0] sm:$0xff]
    %v4364 = vld [vmem:[#allocation29 + $0x1c8] sm:$0xff]
    %v4365 = vld [vmem:[#allocation29 + $0x1d0] sm:$0xff]
    %v4366 = vld [vmem:[#allocation29 + $0x1d8] sm:$0xff]
    %v4367 = vld [vmem:[#allocation29 + $0x1e0] sm:$0xff]
    %v4368 = vld [vmem:[#allocation29 + $0x1e8] sm:$0xff]
    %v4369 = vld [vmem:[#allocation29 + $0x1f0] sm:$0xff]
    %v4370 = vld [vmem:[#allocation29 + $0x1f8] sm:$0xff]
    %v4371 = vld [vmem:[#allocation29 + $0x200] sm:$0xff]
    %v4372 = vld [vmem:[#allocation29 + $0x208] sm:$0xff]
    %v4373 = vld [vmem:[#allocation29 + $0x210] sm:$0xff]
    %v4374 = vld [vmem:[#allocation29 + $0x218] sm:$0xff]
    %v4375 = vld [vmem:[#allocation29 + $0x220] sm:$0xff]
    %v4376 = vld [vmem:[#allocation29 + $0x228] sm:$0xff]
    %v4377 = vld [vmem:[#allocation29 + $0x230] sm:$0xff]
    %v4378 = vld [vmem:[#allocation29 + $0x238] sm:$0xff]
    %v4379 = vld [vmem:[#allocation29 + $0x240] sm:$0xff]
    %v4380 = vld [vmem:[#allocation29 + $0x248] sm:$0xff]
    %v4381 = vld [vmem:[#allocation29 + $0x250] sm:$0xff]
    %v4382 = vld [vmem:[#allocation29 + $0x258] sm:$0xff]
    %v4383 = vld [vmem:[#allocation29 + $0x260] sm:$0xff]
    %v4384 = vld [vmem:[#allocation29 + $0x268] sm:$0xff]
    %v4385 = vld [vmem:[#allocation29 + $0x270] sm:$0xff]
    %v4386 = vld [vmem:[#allocation29 + $0x278] sm:$0xff]
    %v4387 = vld [vmem:[#allocation29 + $0x280] sm:$0xff]
    %v4388 = vld [vmem:[#allocation29 + $0x288] sm:$0xff]
    %v4389 = vld [vmem:[#allocation29 + $0x290] sm:$0xff]
    %v4390 = vld [vmem:[#allocation29 + $0x298] sm:$0xff]
    %v4391 = vld [vmem:[#allocation29 + $0x2a0] sm:$0xff]
    %v4392 = vld [vmem:[#allocation29 + $0x2a8] sm:$0xff]
    %v4393 = vld [vmem:[#allocation29 + $0x2b0] sm:$0xff]
    %v4394 = vld [vmem:[#allocation29 + $0x2b8] sm:$0xff]
    %v4395 = vld [vmem:[#allocation29 + $0x2c0] sm:$0xff]
    %v4396 = vld [vmem:[#allocation29 + $0x2c8] sm:$0xff]
    %v4397 = vld [vmem:[#allocation29 + $0x2d0] sm:$0xff]
    %v4398 = vld [vmem:[#allocation29 + $0x2d8] sm:$0xff]
    %v4399 = vld [vmem:[#allocation29 + $0x2e0] sm:$0xff]
    %v4400 = vld [vmem:[#allocation29 + $0x2e8] sm:$0xff]
    %v4401 = vld [vmem:[#allocation29 + $0x2f0] sm:$0xff]
    %v4402 = vld [vmem:[#allocation29 + $0x2f8] sm:$0xff]
    %v4403 = vld [vmem:[#allocation29 + $0x300] sm:$0xff]
    %v4404 = vld [vmem:[#allocation29 + $0x308] sm:$0xff]
    %v4405 = vld [vmem:[#allocation29 + $0x310] sm:$0xff]
    %v4406 = vld [vmem:[#allocation29 + $0x318] sm:$0xff]
    %v4407 = vld [vmem:[#allocation29 + $0x320] sm:$0xff]
    %v4408 = vld [vmem:[#allocation29 + $0x328] sm:$0xff]
    %v4409 = vld [vmem:[#allocation29 + $0x330] sm:$0xff]
    %v4410 = vld [vmem:[#allocation29 + $0x338] sm:$0xff]
    %v4411 = vld [vmem:[#allocation29 + $0x340] sm:$0xff]
    %v4412 = vld [vmem:[#allocation29 + $0x348] sm:$0xff]
    %v4413 = vld [vmem:[#allocation29 + $0x350] sm:$0xff]
    %v4414 = vld [vmem:[#allocation29 + $0x358] sm:$0xff]
    %v4415 = vld [vmem:[#allocation29 + $0x360] sm:$0xff]
    %v4416 = vld [vmem:[#allocation29 + $0x368] sm:$0xff]
    %v4417 = vld [vmem:[#allocation29 + $0x370] sm:$0xff]
    %v4418 = vld [vmem:[#allocation29 + $0x378] sm:$0xff]
    %v4419 = vld [vmem:[#allocation29 + $0x380] sm:$0xff]
    %v4420 = vld [vmem:[#allocation29 + $0x388] sm:$0xff]
    %v4421 = vld [vmem:[#allocation29 + $0x390] sm:$0xff]
    %v4422 = vld [vmem:[#allocation29 + $0x398] sm:$0xff]
    %v4423 = vld [vmem:[#allocation29 + $0x3a0] sm:$0xff]
    %v4424 = vld [vmem:[#allocation29 + $0x3a8] sm:$0xff]
    %v4425 = vld [vmem:[#allocation29 + $0x3b0] sm:$0xff]
    %v4426 = vld [vmem:[#allocation29 + $0x3b8] sm:$0xff]
    %v4427 = vld [vmem:[#allocation29 + $0x3c0] sm:$0xff]
    %v4428 = vld [vmem:[#allocation29 + $0x3c8] sm:$0xff]
    %v4429 = vld [vmem:[#allocation29 + $0x3d0] sm:$0xff]
    %v4430 = vld [vmem:[#allocation29 + $0x3d8] sm:$0xff]
    %v4431 = vld [vmem:[#allocation29 + $0x3e0] sm:$0xff]
    %v4432 = vld [vmem:[#allocation29 + $0x3e8] sm:$0xff]
    %v4433 = vld [vmem:[#allocation29 + $0x3f0] sm:$0xff]
    %v4434 = vld [vmem:[#allocation29 + $0x3f8] sm:$0xff]
    %s4435 = scalar_lea.vmem [#allocation28], 8
    %v4436 = vld [vmem:[%s4435] sm:$0xff]
    %v4438 = vsel %vm3494, %v4436, 0
    %4440 = vmatprep.subr.mxu0 %v4229
    %4441 = vmatpush1.msra.mxu0 %v4228
    %4442 = vmatprep.subr.mxu0 %v4231
    %4443 = vmatpush1.msra.mxu0 %v4230
    %4444 = vmatprep.subr.mxu0 0.0
    %4445 = vmatpush1.msra.mxu0 0.0
    %4446 = vmatprep.subr.mxu0 0.0
    %4447 = vmatpush1.msra.mxu0 0.0
    %4448 = vmatprep.subr.mxu0 0.0
    %4449 = vmatpush1.msra.mxu0 0.0
    %4450 = vmatprep.subr.mxu0 0.0
    %4451 = vmatpush1.msra.mxu0 0.0
    %4452 = vmatprep.subr.mxu0 0.0
    %4453 = vmatpush1.msra.mxu0 0.0
    %4454 = vmatprep.subr.mxu0 0.0
    %4455 = vmatpush1.msra.mxu0 0.0
    %4456 = vmatprep.subr.mxu0 0.0
    %4457 = vmatpush1.msra.mxu0 0.0
    %4458 = vmatprep.subr.mxu0 0.0
    %4459 = vmatpush1.msra.mxu0 0.0
    %4460 = vmatprep.subr.mxu0 0.0
    %4461 = vmatpush1.msra.mxu0 0.0
    %4462 = vmatprep.subr.mxu0 0.0
    %4463 = vmatpush1.msra.mxu0 0.0
    %4464 = vmatprep.subr.mxu0 0.0
    %4465 = vmatpush1.msra.mxu0 0.0
    %4466 = vmatprep.subr.mxu0 0.0
    %4467 = vmatpush1.msra.mxu0 0.0
    %4468 = vmatprep.subr.mxu0 0.0
    %4469 = vmatpush1.msra.mxu0 0.0
    %4470 = vmatprep.subr.mxu0 0.0
    %4471 = vmatpush1.msra.mxu0 0.0
    %4472 = vmatprep.subr.mxu0 0.0
    %4473 = vmatpush1.msra.mxu0 0.0
    %4474 = vmatprep.subr.mxu0 0.0
    %4475 = vmatpush1.msra.mxu0 0.0
    %4476 = vmatprep.subr.mxu0 0.0
    %4477 = vmatpush1.msra.mxu0 0.0
    %4478 = vmatprep.subr.mxu0 0.0
    %4479 = vmatpush1.msra.mxu0 0.0
    %4480 = vmatprep.subr.mxu0 0.0
    %4481 = vmatpush1.msra.mxu0 0.0
    %4482 = vmatprep.subr.mxu0 0.0
    %4483 = vmatpush1.msra.mxu0 0.0
    %4484 = vmatprep.subr.mxu0 0.0
    %4485 = vmatpush1.msra.mxu0 0.0
    %4486 = vmatprep.subr.mxu0 0.0
    %4487 = vmatpush1.msra.mxu0 0.0
    %4488 = vmatprep.subr.mxu0 0.0
    %4489 = vmatpush1.msra.mxu0 0.0
    %4490 = vmatprep.subr.mxu0 0.0
    %4491 = vmatpush1.msra.mxu0 0.0
    %4492 = vmatprep.subr.mxu0 0.0
    %4493 = vmatpush1.msra.mxu0 0.0
    %4494 = vmatprep.subr.mxu0 0.0
    %4495 = vmatpush1.msra.mxu0 0.0
    %4496 = vmatprep.subr.mxu0 0.0
    %4497 = vmatpush1.msra.mxu0 0.0
    %4498 = vmatprep.subr.mxu0 0.0
    %4499 = vmatpush1.msra.mxu0 0.0
    %4500 = vmatprep.subr.mxu0 0.0
    %4501 = vmatpush1.msra.mxu0 0.0
    %4502 = vmatprep.subr.mxu0 0.0
    %4503 = vmatpush1.msra.mxu0 0.0
    %4504 = vmatprep.mubr.f32.mxu0 0.0
    %4505 = vmatmul.mubr.f32.gmra.mrb[0].mxu0 %v4438
    %v4506 = vpop.f32.mrb[0].mxu0
    %v4507 = vadd.f32 0.0, %v4506
    %v4508 = vpop.f32.mrb[0].mxu0
    %v4509 = vadd.f32 0.0, %v4508
    %4510 = vdwg.mxu0
    %s4511 = scalar_lea.vmem [#allocation29], 1024
    %v4512 = vld [vmem:[%s4511] sm:$0xff]
    %v4513 = vld [vmem:[%s4511 + $0x8] sm:$0xff]
    %v4514 = vld [vmem:[%s4511 + $0x10] sm:$0xff]
    %v4515 = vld [vmem:[%s4511 + $0x18] sm:$0xff]
    %v4516 = vld [vmem:[%s4511 + $0x20] sm:$0xff]
    %v4517 = vld [vmem:[%s4511 + $0x28] sm:$0xff]
    %v4518 = vld [vmem:[%s4511 + $0x30] sm:$0xff]
    %v4519 = vld [vmem:[%s4511 + $0x38] sm:$0xff]
    %v4520 = vld [vmem:[%s4511 + $0x40] sm:$0xff]
    %v4521 = vld [vmem:[%s4511 + $0x48] sm:$0xff]
    %v4522 = vld [vmem:[%s4511 + $0x50] sm:$0xff]
    %v4523 = vld [vmem:[%s4511 + $0x58] sm:$0xff]
    %v4524 = vld [vmem:[%s4511 + $0x60] sm:$0xff]
    %v4525 = vld [vmem:[%s4511 + $0x68] sm:$0xff]
    %v4526 = vld [vmem:[%s4511 + $0x70] sm:$0xff]
    %v4527 = vld [vmem:[%s4511 + $0x78] sm:$0xff]
    %v4528 = vld [vmem:[%s4511 + $0x80] sm:$0xff]
    %v4529 = vld [vmem:[%s4511 + $0x88] sm:$0xff]
    %v4530 = vld [vmem:[%s4511 + $0x90] sm:$0xff]
    %v4531 = vld [vmem:[%s4511 + $0x98] sm:$0xff]
    %v4532 = vld [vmem:[%s4511 + $0xa0] sm:$0xff]
    %v4533 = vld [vmem:[%s4511 + $0xa8] sm:$0xff]
    %v4534 = vld [vmem:[%s4511 + $0xb0] sm:$0xff]
    %v4535 = vld [vmem:[%s4511 + $0xb8] sm:$0xff]
    %v4536 = vld [vmem:[%s4511 + $0xc0] sm:$0xff]
    %v4537 = vld [vmem:[%s4511 + $0xc8] sm:$0xff]
    %v4538 = vld [vmem:[%s4511 + $0xd0] sm:$0xff]
    %v4539 = vld [vmem:[%s4511 + $0xd8] sm:$0xff]
    %v4540 = vld [vmem:[%s4511 + $0xe0] sm:$0xff]
    %v4541 = vld [vmem:[%s4511 + $0xe8] sm:$0xff]
    %v4542 = vld [vmem:[%s4511 + $0xf0] sm:$0xff]
    %v4543 = vld [vmem:[%s4511 + $0xf8] sm:$0xff]
    %v4544 = vld [vmem:[%s4511 + $0x100] sm:$0xff]
    %v4545 = vld [vmem:[%s4511 + $0x108] sm:$0xff]
    %v4546 = vld [vmem:[%s4511 + $0x110] sm:$0xff]
    %v4547 = vld [vmem:[%s4511 + $0x118] sm:$0xff]
    %v4548 = vld [vmem:[%s4511 + $0x120] sm:$0xff]
    %v4549 = vld [vmem:[%s4511 + $0x128] sm:$0xff]
    %v4550 = vld [vmem:[%s4511 + $0x130] sm:$0xff]
    %v4551 = vld [vmem:[%s4511 + $0x138] sm:$0xff]
    %v4552 = vld [vmem:[%s4511 + $0x140] sm:$0xff]
    %v4553 = vld [vmem:[%s4511 + $0x148] sm:$0xff]
    %v4554 = vld [vmem:[%s4511 + $0x150] sm:$0xff]
    %v4555 = vld [vmem:[%s4511 + $0x158] sm:$0xff]
    %v4556 = vld [vmem:[%s4511 + $0x160] sm:$0xff]
    %v4557 = vld [vmem:[%s4511 + $0x168] sm:$0xff]
    %v4558 = vld [vmem:[%s4511 + $0x170] sm:$0xff]
    %v4559 = vld [vmem:[%s4511 + $0x178] sm:$0xff]
    %v4560 = vld [vmem:[%s4511 + $0x180] sm:$0xff]
    %v4561 = vld [vmem:[%s4511 + $0x188] sm:$0xff]
    %v4562 = vld [vmem:[%s4511 + $0x190] sm:$0xff]
    %v4563 = vld [vmem:[%s4511 + $0x198] sm:$0xff]
    %v4564 = vld [vmem:[%s4511 + $0x1a0] sm:$0xff]
    %v4565 = vld [vmem:[%s4511 + $0x1a8] sm:$0xff]
    %v4566 = vld [vmem:[%s4511 + $0x1b0] sm:$0xff]
    %v4567 = vld [vmem:[%s4511 + $0x1b8] sm:$0xff]
    %v4568 = vld [vmem:[%s4511 + $0x1c0] sm:$0xff]
    %v4569 = vld [vmem:[%s4511 + $0x1c8] sm:$0xff]
    %v4570 = vld [vmem:[%s4511 + $0x1d0] sm:$0xff]
    %v4571 = vld [vmem:[%s4511 + $0x1d8] sm:$0xff]
    %v4572 = vld [vmem:[%s4511 + $0x1e0] sm:$0xff]
    %v4573 = vld [vmem:[%s4511 + $0x1e8] sm:$0xff]
    %v4574 = vld [vmem:[%s4511 + $0x1f0] sm:$0xff]
    %v4575 = vld [vmem:[%s4511 + $0x1f8] sm:$0xff]
    %v4576 = vld [vmem:[%s4511 + $0x200] sm:$0xff]
    %v4577 = vld [vmem:[%s4511 + $0x208] sm:$0xff]
    %v4578 = vld [vmem:[%s4511 + $0x210] sm:$0xff]
    %v4579 = vld [vmem:[%s4511 + $0x218] sm:$0xff]
    %v4580 = vld [vmem:[%s4511 + $0x220] sm:$0xff]
    %v4581 = vld [vmem:[%s4511 + $0x228] sm:$0xff]
    %v4582 = vld [vmem:[%s4511 + $0x230] sm:$0xff]
    %v4583 = vld [vmem:[%s4511 + $0x238] sm:$0xff]
    %v4584 = vld [vmem:[%s4511 + $0x240] sm:$0xff]
    %v4585 = vld [vmem:[%s4511 + $0x248] sm:$0xff]
    %v4586 = vld [vmem:[%s4511 + $0x250] sm:$0xff]
    %v4587 = vld [vmem:[%s4511 + $0x258] sm:$0xff]
    %v4588 = vld [vmem:[%s4511 + $0x260] sm:$0xff]
    %v4589 = vld [vmem:[%s4511 + $0x268] sm:$0xff]
    %v4590 = vld [vmem:[%s4511 + $0x270] sm:$0xff]
    %v4591 = vld [vmem:[%s4511 + $0x278] sm:$0xff]
    %v4592 = vld [vmem:[%s4511 + $0x280] sm:$0xff]
    %v4593 = vld [vmem:[%s4511 + $0x288] sm:$0xff]
    %v4594 = vld [vmem:[%s4511 + $0x290] sm:$0xff]
    %v4595 = vld [vmem:[%s4511 + $0x298] sm:$0xff]
    %v4596 = vld [vmem:[%s4511 + $0x2a0] sm:$0xff]
    %v4597 = vld [vmem:[%s4511 + $0x2a8] sm:$0xff]
    %v4598 = vld [vmem:[%s4511 + $0x2b0] sm:$0xff]
    %v4599 = vld [vmem:[%s4511 + $0x2b8] sm:$0xff]
    %v4600 = vld [vmem:[%s4511 + $0x2c0] sm:$0xff]
    %v4601 = vld [vmem:[%s4511 + $0x2c8] sm:$0xff]
    %v4602 = vld [vmem:[%s4511 + $0x2d0] sm:$0xff]
    %v4603 = vld [vmem:[%s4511 + $0x2d8] sm:$0xff]
    %v4604 = vld [vmem:[%s4511 + $0x2e0] sm:$0xff]
    %v4605 = vld [vmem:[%s4511 + $0x2e8] sm:$0xff]
    %v4606 = vld [vmem:[%s4511 + $0x2f0] sm:$0xff]
    %v4607 = vld [vmem:[%s4511 + $0x2f8] sm:$0xff]
    %v4608 = vld [vmem:[%s4511 + $0x300] sm:$0xff]
    %v4609 = vld [vmem:[%s4511 + $0x308] sm:$0xff]
    %v4610 = vld [vmem:[%s4511 + $0x310] sm:$0xff]
    %v4611 = vld [vmem:[%s4511 + $0x318] sm:$0xff]
    %v4612 = vld [vmem:[%s4511 + $0x320] sm:$0xff]
    %v4613 = vld [vmem:[%s4511 + $0x328] sm:$0xff]
    %v4614 = vld [vmem:[%s4511 + $0x330] sm:$0xff]
    %v4615 = vld [vmem:[%s4511 + $0x338] sm:$0xff]
    %v4616 = vld [vmem:[%s4511 + $0x340] sm:$0xff]
    %v4617 = vld [vmem:[%s4511 + $0x348] sm:$0xff]
    %v4618 = vld [vmem:[%s4511 + $0x350] sm:$0xff]
    %v4619 = vld [vmem:[%s4511 + $0x358] sm:$0xff]
    %v4620 = vld [vmem:[%s4511 + $0x360] sm:$0xff]
    %v4621 = vld [vmem:[%s4511 + $0x368] sm:$0xff]
    %v4622 = vld [vmem:[%s4511 + $0x370] sm:$0xff]
    %v4623 = vld [vmem:[%s4511 + $0x378] sm:$0xff]
    %v4624 = vld [vmem:[%s4511 + $0x380] sm:$0xff]
    %v4625 = vld [vmem:[%s4511 + $0x388] sm:$0xff]
    %v4626 = vld [vmem:[%s4511 + $0x390] sm:$0xff]
    %v4627 = vld [vmem:[%s4511 + $0x398] sm:$0xff]
    %v4628 = vld [vmem:[%s4511 + $0x3a0] sm:$0xff]
    %v4629 = vld [vmem:[%s4511 + $0x3a8] sm:$0xff]
    %v4630 = vld [vmem:[%s4511 + $0x3b0] sm:$0xff]
    %v4631 = vld [vmem:[%s4511 + $0x3b8] sm:$0xff]
    %v4632 = vld [vmem:[%s4511 + $0x3c0] sm:$0xff]
    %v4633 = vld [vmem:[%s4511 + $0x3c8] sm:$0xff]
    %v4634 = vld [vmem:[%s4511 + $0x3d0] sm:$0xff]
    %v4635 = vld [vmem:[%s4511 + $0x3d8] sm:$0xff]
    %v4636 = vld [vmem:[%s4511 + $0x3e0] sm:$0xff]
    %v4637 = vld [vmem:[%s4511 + $0x3e8] sm:$0xff]
    %v4638 = vld [vmem:[%s4511 + $0x3f0] sm:$0xff]
    %v4639 = vld [vmem:[%s4511 + $0x3f8] sm:$0xff]
    %4640 = vmatprep.subr.mxu0 %v4513
    %4641 = vmatpush1.msra.mxu0 %v4512
    %4642 = vmatprep.subr.mxu0 %v4517
    %4643 = vmatpush1.msra.mxu0 %v4516
    %4644 = vmatprep.subr.mxu0 %v4521
    %4645 = vmatpush1.msra.mxu0 %v4520
    %4646 = vmatprep.subr.mxu0 %v4525
    %4647 = vmatpush1.msra.mxu0 %v4524
    %4648 = vmatprep.subr.mxu0 %v4529
    %4649 = vmatpush1.msra.mxu0 %v4528
    %4650 = vmatprep.subr.mxu0 %v4533
    %4651 = vmatpush1.msra.mxu0 %v4532
    %4652 = vmatprep.subr.mxu0 %v4537
    %4653 = vmatpush1.msra.mxu0 %v4536
    %4654 = vmatprep.subr.mxu0 %v4541
    %4655 = vmatpush1.msra.mxu0 %v4540
    %4656 = vmatprep.subr.mxu0 %v4545
    %4657 = vmatpush1.msra.mxu0 %v4544
    %4658 = vmatprep.subr.mxu0 %v4549
    %4659 = vmatpush1.msra.mxu0 %v4548
    %4660 = vmatprep.subr.mxu0 %v4553
    %4661 = vmatpush1.msra.mxu0 %v4552
    %4662 = vmatprep.subr.mxu0 %v4557
    %4663 = vmatpush1.msra.mxu0 %v4556
    %4664 = vmatprep.subr.mxu0 %v4561
    %4665 = vmatpush1.msra.mxu0 %v4560
    %4666 = vmatprep.subr.mxu0 %v4565
    %4667 = vmatpush1.msra.mxu0 %v4564
    %4668 = vmatprep.subr.mxu0 %v4569
    %4669 = vmatpush1.msra.mxu0 %v4568
    %4670 = vmatprep.subr.mxu0 %v4573
    %4671 = vmatpush1.msra.mxu0 %v4572
    %4672 = vmatprep.subr.mxu0 %v4577
    %4673 = vmatpush1.msra.mxu0 %v4576
    %4674 = vmatprep.subr.mxu0 %v4581
    %4675 = vmatpush1.msra.mxu0 %v4580
    %4676 = vmatprep.subr.mxu0 %v4585
    %4677 = vmatpush1.msra.mxu0 %v4584
    %4678 = vmatprep.subr.mxu0 %v4589
    %4679 = vmatpush1.msra.mxu0 %v4588
    %4680 = vmatprep.subr.mxu0 %v4593
    %4681 = vmatpush1.msra.mxu0 %v4592
    %4682 = vmatprep.subr.mxu0 %v4597
    %4683 = vmatpush1.msra.mxu0 %v4596
    %4684 = vmatprep.subr.mxu0 %v4601
    %4685 = vmatpush1.msra.mxu0 %v4600
    %4686 = vmatprep.subr.mxu0 %v4605
    %4687 = vmatpush1.msra.mxu0 %v4604
    %4688 = vmatprep.subr.mxu0 %v4609
    %4689 = vmatpush1.msra.mxu0 %v4608
    %4690 = vmatprep.subr.mxu0 %v4613
    %4691 = vmatpush1.msra.mxu0 %v4612
    %4692 = vmatprep.subr.mxu0 %v4617
    %4693 = vmatpush1.msra.mxu0 %v4616
    %4694 = vmatprep.subr.mxu0 %v4621
    %4695 = vmatpush1.msra.mxu0 %v4620
    %4696 = vmatprep.subr.mxu0 %v4625
    %4697 = vmatpush1.msra.mxu0 %v4624
    %4698 = vmatprep.subr.mxu0 %v4629
    %4699 = vmatpush1.msra.mxu0 %v4628
    %4700 = vmatprep.subr.mxu0 %v4633
    %4701 = vmatpush1.msra.mxu0 %v4632
    %4702 = vmatprep.subr.mxu0 %v4637
    %4703 = vmatpush1.msra.mxu0 %v4636
    %4704 = vmatprep.mubr.f32.mxu0 %v4509
    %4705 = vmatmul.mubr.f32.gmra.mrb[0].mxu0 %v4507
    %v4706 = vpop.f32.mrb[0].mxu0
    %v4707 = vadd.f32 0.0, %v4706
    %v4708 = vpop.f32.mrb[0].mxu0
    %v4709 = vadd.f32 0.0, %v4708
    %4710 = vdwg.mxu0
    %4711 = vmatprep.subr.mxu0 %v4515
    %4712 = vmatpush1.msra.mxu0 %v4514
    %4713 = vmatprep.subr.mxu0 %v4519
    %4714 = vmatpush1.msra.mxu0 %v4518
    %4715 = vmatprep.subr.mxu0 %v4523
    %4716 = vmatpush1.msra.mxu0 %v4522
    %4717 = vmatprep.subr.mxu0 %v4527
    %4718 = vmatpush1.msra.mxu0 %v4526
    %4719 = vmatprep.subr.mxu0 %v4531
    %4720 = vmatpush1.msra.mxu0 %v4530
    %4721 = vmatprep.subr.mxu0 %v4535
    %4722 = vmatpush1.msra.mxu0 %v4534
    %4723 = vmatprep.subr.mxu0 %v4539
    %4724 = vmatpush1.msra.mxu0 %v4538
    %4725 = vmatprep.subr.mxu0 %v4543
    %4726 = vmatpush1.msra.mxu0 %v4542
    %4727 = vmatprep.subr.mxu0 %v4547
    %4728 = vmatpush1.msra.mxu0 %v4546
    %4729 = vmatprep.subr.mxu0 %v4551
    %4730 = vmatpush1.msra.mxu0 %v4550
    %4731 = vmatprep.subr.mxu0 %v4555
    %4732 = vmatpush1.msra.mxu0 %v4554
    %4733 = vmatprep.subr.mxu0 %v4559
    %4734 = vmatpush1.msra.mxu0 %v4558
    %4735 = vmatprep.subr.mxu0 %v4563
    %4736 = vmatpush1.msra.mxu0 %v4562
    %4737 = vmatprep.subr.mxu0 %v4567
    %4738 = vmatpush1.msra.mxu0 %v4566
    %4739 = vmatprep.subr.mxu0 %v4571
    %4740 = vmatpush1.msra.mxu0 %v4570
    %4741 = vmatprep.subr.mxu0 %v4575
    %4742 = vmatpush1.msra.mxu0 %v4574
    %4743 = vmatprep.subr.mxu0 %v4579
    %4744 = vmatpush1.msra.mxu0 %v4578
    %4745 = vmatprep.subr.mxu0 %v4583
    %4746 = vmatpush1.msra.mxu0 %v4582
    %4747 = vmatprep.subr.mxu0 %v4587
    %4748 = vmatpush1.msra.mxu0 %v4586
    %4749 = vmatprep.subr.mxu0 %v4591
    %4750 = vmatpush1.msra.mxu0 %v4590
    %4751 = vmatprep.subr.mxu0 %v4595
    %4752 = vmatpush1.msra.mxu0 %v4594
    %4753 = vmatprep.subr.mxu0 %v4599
    %4754 = vmatpush1.msra.mxu0 %v4598
    %4755 = vmatprep.subr.mxu0 %v4603
    %4756 = vmatpush1.msra.mxu0 %v4602
    %4757 = vmatprep.subr.mxu0 %v4607
    %4758 = vmatpush1.msra.mxu0 %v4606
    %4759 = vmatprep.subr.mxu0 %v4611
    %4760 = vmatpush1.msra.mxu0 %v4610
    %4761 = vmatprep.subr.mxu0 %v4615
    %4762 = vmatpush1.msra.mxu0 %v4614
    %4763 = vmatprep.subr.mxu0 %v4619
    %4764 = vmatpush1.msra.mxu0 %v4618
    %4765 = vmatprep.subr.mxu0 %v4623
    %4766 = vmatpush1.msra.mxu0 %v4622
    %4767 = vmatprep.subr.mxu0 %v4627
    %4768 = vmatpush1.msra.mxu0 %v4626
    %4769 = vmatprep.subr.mxu0 %v4631
    %4770 = vmatpush1.msra.mxu0 %v4630
    %4771 = vmatprep.subr.mxu0 %v4635
    %4772 = vmatpush1.msra.mxu0 %v4634
    %4773 = vmatprep.subr.mxu0 %v4639
    %4774 = vmatpush1.msra.mxu0 %v4638
    %4775 = vmatprep.mubr.f32.mxu0 %v4509
    %4776 = vmatmul.mubr.f32.gmra.mrb[0].mxu0 %v4507
    %v4777 = vpop.f32.mrb[0].mxu0
    %v4778 = vadd.f32 0.0, %v4777
    %v4779 = vpop.f32.mrb[0].mxu0
    %v4780 = vadd.f32 0.0, %v4779
    %4781 = vdwg.mxu0
    %4782 = vmatprep.subr.mxu0 %v4308
    %4783 = vmatpush1.msra.mxu0 %v4307
    %4784 = vmatprep.subr.mxu0 %v4312
    %4785 = vmatpush1.msra.mxu0 %v4311
    %4786 = vmatprep.subr.mxu0 %v4316
    %4787 = vmatpush1.msra.mxu0 %v4315
    %4788 = vmatprep.subr.mxu0 %v4320
    %4789 = vmatpush1.msra.mxu0 %v4319
    %4790 = vmatprep.subr.mxu0 %v4324
    %4791 = vmatpush1.msra.mxu0 %v4323
    %4792 = vmatprep.subr.mxu0 %v4328
    %4793 = vmatpush1.msra.mxu0 %v4327
    %4794 = vmatprep.subr.mxu0 %v4332
    %4795 = vmatpush1.msra.mxu0 %v4331
    %4796 = vmatprep.subr.mxu0 %v4336
    %4797 = vmatpush1.msra.mxu0 %v4335
    %4798 = vmatprep.subr.mxu0 %v4340
    %4799 = vmatpush1.msra.mxu0 %v4339
    %4800 = vmatprep.subr.mxu0 %v4344
    %4801 = vmatpush1.msra.mxu0 %v4343
    %4802 = vmatprep.subr.mxu0 %v4348
    %4803 = vmatpush1.msra.mxu0 %v4347
    %4804 = vmatprep.subr.mxu0 %v4352
    %4805 = vmatpush1.msra.mxu0 %v4351
    %4806 = vmatprep.subr.mxu0 %v4356
    %4807 = vmatpush1.msra.mxu0 %v4355
    %4808 = vmatprep.subr.mxu0 %v4360
    %4809 = vmatpush1.msra.mxu0 %v4359
    %4810 = vmatprep.subr.mxu0 %v4364
    %4811 = vmatpush1.msra.mxu0 %v4363
    %4812 = vmatprep.subr.mxu0 %v4368
    %4813 = vmatpush1.msra.mxu0 %v4367
    %4814 = vmatprep.subr.mxu0 %v4372
    %4815 = vmatpush1.msra.mxu0 %v4371
    %4816 = vmatprep.subr.mxu0 %v4376
    %4817 = vmatpush1.msra.mxu0 %v4375
    %4818 = vmatprep.subr.mxu0 %v4380
    %4819 = vmatpush1.msra.mxu0 %v4379
    %4820 = vmatprep.subr.mxu0 %v4384
    %4821 = vmatpush1.msra.mxu0 %v4383
    %4822 = vmatprep.subr.mxu0 %v4388
    %4823 = vmatpush1.msra.mxu0 %v4387
    %4824 = vmatprep.subr.mxu0 %v4392
    %4825 = vmatpush1.msra.mxu0 %v4391
    %4826 = vmatprep.subr.mxu0 %v4396
    %4827 = vmatpush1.msra.mxu0 %v4395
    %4828 = vmatprep.subr.mxu0 %v4400
    %4829 = vmatpush1.msra.mxu0 %v4399
    %4830 = vmatprep.subr.mxu0 %v4404
    %4831 = vmatpush1.msra.mxu0 %v4403
    %4832 = vmatprep.subr.mxu0 %v4408
    %4833 = vmatpush1.msra.mxu0 %v4407
    %4834 = vmatprep.subr.mxu0 %v4412
    %4835 = vmatpush1.msra.mxu0 %v4411
    %4836 = vmatprep.subr.mxu0 %v4416
    %4837 = vmatpush1.msra.mxu0 %v4415
    %4838 = vmatprep.subr.mxu0 %v4420
    %4839 = vmatpush1.msra.mxu0 %v4419
    %4840 = vmatprep.subr.mxu0 %v4424
    %4841 = vmatpush1.msra.mxu0 %v4423
    %4842 = vmatprep.subr.mxu0 %v4428
    %4843 = vmatpush1.msra.mxu0 %v4427
    %4844 = vmatprep.subr.mxu0 %v4432
    %4845 = vmatpush1.msra.mxu0 %v4431
    %4846 = vmatprep.mubr.f32.mxu0 %v4305
    %4847 = vmatmul.mubr.f32.gmra.mrb[0].mxu0 %v4303
    %v4848 = vpop.f32.mrb[0].mxu0
    %v4849 = vadd.f32 %v4707, %v4848
    %v4850 = vpop.f32.mrb[0].mxu0
    %v4851 = vadd.f32 %v4709, %v4850
    %4852 = vdwg.mxu0
    %4853 = vmatprep.subr.mxu0 %v4310
    %4854 = vmatpush1.msra.mxu0 %v4309
    %4855 = vmatprep.subr.mxu0 %v4314
    %4856 = vmatpush1.msra.mxu0 %v4313
    %4857 = vmatprep.subr.mxu0 %v4318
    %4858 = vmatpush1.msra.mxu0 %v4317
    %4859 = vmatprep.subr.mxu0 %v4322
    %4860 = vmatpush1.msra.mxu0 %v4321
    %4861 = vmatprep.subr.mxu0 %v4326
    %4862 = vmatpush1.msra.mxu0 %v4325
    %4863 = vmatprep.subr.mxu0 %v4330
    %4864 = vmatpush1.msra.mxu0 %v4329
    %4865 = vmatprep.subr.mxu0 %v4334
    %4866 = vmatpush1.msra.mxu0 %v4333
    %4867 = vmatprep.subr.mxu0 %v4338
    %4868 = vmatpush1.msra.mxu0 %v4337
    %4869 = vmatprep.subr.mxu0 %v4342
    %4870 = vmatpush1.msra.mxu0 %v4341
    %4871 = vmatprep.subr.mxu0 %v4346
    %4872 = vmatpush1.msra.mxu0 %v4345
    %4873 = vmatprep.subr.mxu0 %v4350
    %4874 = vmatpush1.msra.mxu0 %v4349
    %4875 = vmatprep.subr.mxu0 %v4354
    %4876 = vmatpush1.msra.mxu0 %v4353
    %4877 = vmatprep.subr.mxu0 %v4358
    %4878 = vmatpush1.msra.mxu0 %v4357
    %4879 = vmatprep.subr.mxu0 %v4362
    %4880 = vmatpush1.msra.mxu0 %v4361
    %4881 = vmatprep.subr.mxu0 %v4366
    %4882 = vmatpush1.msra.mxu0 %v4365
    %4883 = vmatprep.subr.mxu0 %v4370
    %4884 = vmatpush1.msra.mxu0 %v4369
    %4885 = vmatprep.subr.mxu0 %v4374
    %4886 = vmatpush1.msra.mxu0 %v4373
    %4887 = vmatprep.subr.mxu0 %v4378
    %4888 = vmatpush1.msra.mxu0 %v4377
    %4889 = vmatprep.subr.mxu0 %v4382
    %4890 = vmatpush1.msra.mxu0 %v4381
    %4891 = vmatprep.subr.mxu0 %v4386
    %4892 = vmatpush1.msra.mxu0 %v4385
    %4893 = vmatprep.subr.mxu0 %v4390
    %4894 = vmatpush1.msra.mxu0 %v4389
    %4895 = vmatprep.subr.mxu0 %v4394
    %4896 = vmatpush1.msra.mxu0 %v4393
    %4897 = vmatprep.subr.mxu0 %v4398
    %4898 = vmatpush1.msra.mxu0 %v4397
    %4899 = vmatprep.subr.mxu0 %v4402
    %4900 = vmatpush1.msra.mxu0 %v4401
    %4901 = vmatprep.subr.mxu0 %v4406
    %4902 = vmatpush1.msra.mxu0 %v4405
    %4903 = vmatprep.subr.mxu0 %v4410
    %4904 = vmatpush1.msra.mxu0 %v4409
    %4905 = vmatprep.subr.mxu0 %v4414
    %4906 = vmatpush1.msra.mxu0 %v4413
    %4907 = vmatprep.subr.mxu0 %v4418
    %4908 = vmatpush1.msra.mxu0 %v4417
    %4909 = vmatprep.subr.mxu0 %v4422
    %4910 = vmatpush1.msra.mxu0 %v4421
    %4911 = vmatprep.subr.mxu0 %v4426
    %4912 = vmatpush1.msra.mxu0 %v4425
    %4913 = vmatprep.subr.mxu0 %v4430
    %4914 = vmatpush1.msra.mxu0 %v4429
    %4915 = vmatprep.subr.mxu0 %v4434
    %4916 = vmatpush1.msra.mxu0 %v4433
    %4917 = vmatprep.mubr.f32.mxu0 %v4305
    %4918 = vmatmul.mubr.f32.gmra.mrb[0].mxu0 %v4303
    %v4919 = vpop.f32.mrb[0].mxu0
    %v4920 = vadd.f32 %v4778, %v4919
    %v4921 = vpop.f32.mrb[0].mxu0
    %v4922 = vadd.f32 %v4780, %v4921
    %4923 = vdwg.mxu0
    %s4924 = scalar_lea.vmem [#allocation28], 16
    %v4925 = vld [vmem:[%s4924] sm:$0xff]
    %v4927 = vsel %vm3494, %v4925, 0
    %4929 = vmatprep.subr.mxu0 %v4229
    %4930 = vmatpush1.msra.mxu0 %v4228
    %4931 = vmatprep.subr.mxu0 %v4231
    %4932 = vmatpush1.msra.mxu0 %v4230
    %4933 = vmatprep.subr.mxu0 0.0
    %4934 = vmatpush1.msra.mxu0 0.0
    %4935 = vmatprep.subr.mxu0 0.0
    %4936 = vmatpush1.msra.mxu0 0.0
    %4937 = vmatprep.subr.mxu0 0.0
    %4938 = vmatpush1.msra.mxu0 0.0
    %4939 = vmatprep.subr.mxu0 0.0
    %4940 = vmatpush1.msra.mxu0 0.0
    %4941 = vmatprep.subr.mxu0 0.0
    %4942 = vmatpush1.msra.mxu0 0.0
    %4943 = vmatprep.subr.mxu0 0.0
    %4944 = vmatpush1.msra.mxu0 0.0
    %4945 = vmatprep.subr.mxu0 0.0
    %4946 = vmatpush1.msra.mxu0 0.0
    %4947 = vmatprep.subr.mxu0 0.0
    %4948 = vmatpush1.msra.mxu0 0.0
    %4949 = vmatprep.subr.mxu0 0.0
    %4950 = vmatpush1.msra.mxu0 0.0
    %4951 = vmatprep.subr.mxu0 0.0
    %4952 = vmatpush1.msra.mxu0 0.0
    %4953 = vmatprep.subr.mxu0 0.0
    %4954 = vmatpush1.msra.mxu0 0.0
    %4955 = vmatprep.subr.mxu0 0.0
    %4956 = vmatpush1.msra.mxu0 0.0
    %4957 = vmatprep.subr.mxu0 0.0
    %4958 = vmatpush1.msra.mxu0 0.0
    %4959 = vmatprep.subr.mxu0 0.0
    %4960 = vmatpush1.msra.mxu0 0.0
    %4961 = vmatprep.subr.mxu0 0.0
    %4962 = vmatpush1.msra.mxu0 0.0
    %4963 = vmatprep.subr.mxu0 0.0
    %4964 = vmatpush1.msra.mxu0 0.0
    %4965 = vmatprep.subr.mxu0 0.0
    %4966 = vmatpush1.msra.mxu0 0.0
    %4967 = vmatprep.subr.mxu0 0.0
    %4968 = vmatpush1.msra.mxu0 0.0
    %4969 = vmatprep.subr.mxu0 0.0
    %4970 = vmatpush1.msra.mxu0 0.0
    %4971 = vmatprep.subr.mxu0 0.0
    %4972 = vmatpush1.msra.mxu0 0.0
    %4973 = vmatprep.subr.mxu0 0.0
    %4974 = vmatpush1.msra.mxu0 0.0
    %4975 = vmatprep.subr.mxu0 0.0
    %4976 = vmatpush1.msra.mxu0 0.0
    %4977 = vmatprep.subr.mxu0 0.0
    %4978 = vmatpush1.msra.mxu0 0.0
    %4979 = vmatprep.subr.mxu0 0.0
    %4980 = vmatpush1.msra.mxu0 0.0
    %4981 = vmatprep.subr.mxu0 0.0
    %4982 = vmatpush1.msra.mxu0 0.0
    %4983 = vmatprep.subr.mxu0 0.0
    %4984 = vmatpush1.msra.mxu0 0.0
    %4985 = vmatprep.subr.mxu0 0.0
    %4986 = vmatpush1.msra.mxu0 0.0
    %4987 = vmatprep.subr.mxu0 0.0
    %4988 = vmatpush1.msra.mxu0 0.0
    %4989 = vmatprep.subr.mxu0 0.0
    %4990 = vmatpush1.msra.mxu0 0.0
    %4991 = vmatprep.subr.mxu0 0.0
    %4992 = vmatpush1.msra.mxu0 0.0
    %4993 = vmatprep.mubr.f32.mxu0 0.0
    %4994 = vmatmul.mubr.f32.gmra.mrb[0].mxu0 %v4927
    %v4995 = vpop.f32.mrb[0].mxu0
    %v4996 = vadd.f32 0.0, %v4995
    %v4997 = vpop.f32.mrb[0].mxu0
    %v4998 = vadd.f32 0.0, %v4997
    %4999 = vdwg.mxu0
    %s5000 = scalar_lea.vmem [#allocation29], 2048
    %v5001 = vld [vmem:[%s5000] sm:$0xff]
    %v5002 = vld [vmem:[%s5000 + $0x8] sm:$0xff]
    %v5003 = vld [vmem:[%s5000 + $0x10] sm:$0xff]
    %v5004 = vld [vmem:[%s5000 + $0x18] sm:$0xff]
    %v5005 = vld [vmem:[%s5000 + $0x20] sm:$0xff]
    %v5006 = vld [vmem:[%s5000 + $0x28] sm:$0xff]
    %v5007 = vld [vmem:[%s5000 + $0x30] sm:$0xff]
    %v5008 = vld [vmem:[%s5000 + $0x38] sm:$0xff]
    %v5009 = vld [vmem:[%s5000 + $0x40] sm:$0xff]
    %v5010 = vld [vmem:[%s5000 + $0x48] sm:$0xff]
    %v5011 = vld [vmem:[%s5000 + $0x50] sm:$0xff]
    %v5012 = vld [vmem:[%s5000 + $0x58] sm:$0xff]
    %v5013 = vld [vmem:[%s5000 + $0x60] sm:$0xff]
    %v5014 = vld [vmem:[%s5000 + $0x68] sm:$0xff]
    %v5015 = vld [vmem:[%s5000 + $0x70] sm:$0xff]
    %v5016 = vld [vmem:[%s5000 + $0x78] sm:$0xff]
    %v5017 = vld [vmem:[%s5000 + $0x80] sm:$0xff]
    %v5018 = vld [vmem:[%s5000 + $0x88] sm:$0xff]
    %v5019 = vld [vmem:[%s5000 + $0x90] sm:$0xff]
    %v5020 = vld [vmem:[%s5000 + $0x98] sm:$0xff]
    %v5021 = vld [vmem:[%s5000 + $0xa0] sm:$0xff]
    %v5022 = vld [vmem:[%s5000 + $0xa8] sm:$0xff]
    %v5023 = vld [vmem:[%s5000 + $0xb0] sm:$0xff]
    %v5024 = vld [vmem:[%s5000 + $0xb8] sm:$0xff]
    %v5025 = vld [vmem:[%s5000 + $0xc0] sm:$0xff]
    %v5026 = vld [vmem:[%s5000 + $0xc8] sm:$0xff]
    %v5027 = vld [vmem:[%s5000 + $0xd0] sm:$0xff]
    %v5028 = vld [vmem:[%s5000 + $0xd8] sm:$0xff]
    %v5029 = vld [vmem:[%s5000 + $0xe0] sm:$0xff]
    %v5030 = vld [vmem:[%s5000 + $0xe8] sm:$0xff]
    %v5031 = vld [vmem:[%s5000 + $0xf0] sm:$0xff]
    %v5032 = vld [vmem:[%s5000 + $0xf8] sm:$0xff]
    %v5033 = vld [vmem:[%s5000 + $0x100] sm:$0xff]
    %v5034 = vld [vmem:[%s5000 + $0x108] sm:$0xff]
    %v5035 = vld [vmem:[%s5000 + $0x110] sm:$0xff]
    %v5036 = vld [vmem:[%s5000 + $0x118] sm:$0xff]
    %v5037 = vld [vmem:[%s5000 + $0x120] sm:$0xff]
    %v5038 = vld [vmem:[%s5000 + $0x128] sm:$0xff]
    %v5039 = vld [vmem:[%s5000 + $0x130] sm:$0xff]
    %v5040 = vld [vmem:[%s5000 + $0x138] sm:$0xff]
    %v5041 = vld [vmem:[%s5000 + $0x140] sm:$0xff]
    %v5042 = vld [vmem:[%s5000 + $0x148] sm:$0xff]
    %v5043 = vld [vmem:[%s5000 + $0x150] sm:$0xff]
    %v5044 = vld [vmem:[%s5000 + $0x158] sm:$0xff]
    %v5045 = vld [vmem:[%s5000 + $0x160] sm:$0xff]
    %v5046 = vld [vmem:[%s5000 + $0x168] sm:$0xff]
    %v5047 = vld [vmem:[%s5000 + $0x170] sm:$0xff]
    %v5048 = vld [vmem:[%s5000 + $0x178] sm:$0xff]
    %v5049 = vld [vmem:[%s5000 + $0x180] sm:$0xff]
    %v5050 = vld [vmem:[%s5000 + $0x188] sm:$0xff]
    %v5051 = vld [vmem:[%s5000 + $0x190] sm:$0xff]
    %v5052 = vld [vmem:[%s5000 + $0x198] sm:$0xff]
    %v5053 = vld [vmem:[%s5000 + $0x1a0] sm:$0xff]
    %v5054 = vld [vmem:[%s5000 + $0x1a8] sm:$0xff]
    %v5055 = vld [vmem:[%s5000 + $0x1b0] sm:$0xff]
    %v5056 = vld [vmem:[%s5000 + $0x1b8] sm:$0xff]
    %v5057 = vld [vmem:[%s5000 + $0x1c0] sm:$0xff]
    %v5058 = vld [vmem:[%s5000 + $0x1c8] sm:$0xff]
    %v5059 = vld [vmem:[%s5000 + $0x1d0] sm:$0xff]
    %v5060 = vld [vmem:[%s5000 + $0x1d8] sm:$0xff]
    %v5061 = vld [vmem:[%s5000 + $0x1e0] sm:$0xff]
    %v5062 = vld [vmem:[%s5000 + $0x1e8] sm:$0xff]
    %v5063 = vld [vmem:[%s5000 + $0x1f0] sm:$0xff]
    %v5064 = vld [vmem:[%s5000 + $0x1f8] sm:$0xff]
    %v5065 = vld [vmem:[%s5000 + $0x200] sm:$0xff]
    %v5066 = vld [vmem:[%s5000 + $0x208] sm:$0xff]
    %v5067 = vld [vmem:[%s5000 + $0x210] sm:$0xff]
    %v5068 = vld [vmem:[%s5000 + $0x218] sm:$0xff]
    %v5069 = vld [vmem:[%s5000 + $0x220] sm:$0xff]
    %v5070 = vld [vmem:[%s5000 + $0x228] sm:$0xff]
    %v5071 = vld [vmem:[%s5000 + $0x230] sm:$0xff]
    %v5072 = vld [vmem:[%s5000 + $0x238] sm:$0xff]
    %v5073 = vld [vmem:[%s5000 + $0x240] sm:$0xff]
    %v5074 = vld [vmem:[%s5000 + $0x248] sm:$0xff]
    %v5075 = vld [vmem:[%s5000 + $0x250] sm:$0xff]
    %v5076 = vld [vmem:[%s5000 + $0x258] sm:$0xff]
    %v5077 = vld [vmem:[%s5000 + $0x260] sm:$0xff]
    %v5078 = vld [vmem:[%s5000 + $0x268] sm:$0xff]
    %v5079 = vld [vmem:[%s5000 + $0x270] sm:$0xff]
    %v5080 = vld [vmem:[%s5000 + $0x278] sm:$0xff]
    %v5081 = vld [vmem:[%s5000 + $0x280] sm:$0xff]
    %v5082 = vld [vmem:[%s5000 + $0x288] sm:$0xff]
    %v5083 = vld [vmem:[%s5000 + $0x290] sm:$0xff]
    %v5084 = vld [vmem:[%s5000 + $0x298] sm:$0xff]
    %v5085 = vld [vmem:[%s5000 + $0x2a0] sm:$0xff]
    %v5086 = vld [vmem:[%s5000 + $0x2a8] sm:$0xff]
    %v5087 = vld [vmem:[%s5000 + $0x2b0] sm:$0xff]
    %v5088 = vld [vmem:[%s5000 + $0x2b8] sm:$0xff]
    %v5089 = vld [vmem:[%s5000 + $0x2c0] sm:$0xff]
    %v5090 = vld [vmem:[%s5000 + $0x2c8] sm:$0xff]
    %v5091 = vld [vmem:[%s5000 + $0x2d0] sm:$0xff]
    %v5092 = vld [vmem:[%s5000 + $0x2d8] sm:$0xff]
    %v5093 = vld [vmem:[%s5000 + $0x2e0] sm:$0xff]
    %v5094 = vld [vmem:[%s5000 + $0x2e8] sm:$0xff]
    %v5095 = vld [vmem:[%s5000 + $0x2f0] sm:$0xff]
    %v5096 = vld [vmem:[%s5000 + $0x2f8] sm:$0xff]
    %v5097 = vld [vmem:[%s5000 + $0x300] sm:$0xff]
    %v5098 = vld [vmem:[%s5000 + $0x308] sm:$0xff]
    %v5099 = vld [vmem:[%s5000 + $0x310] sm:$0xff]
    %v5100 = vld [vmem:[%s5000 + $0x318] sm:$0xff]
    %v5101 = vld [vmem:[%s5000 + $0x320] sm:$0xff]
    %v5102 = vld [vmem:[%s5000 + $0x328] sm:$0xff]
    %v5103 = vld [vmem:[%s5000 + $0x330] sm:$0xff]
    %v5104 = vld [vmem:[%s5000 + $0x338] sm:$0xff]
    %v5105 = vld [vmem:[%s5000 + $0x340] sm:$0xff]
    %v5106 = vld [vmem:[%s5000 + $0x348] sm:$0xff]
    %v5107 = vld [vmem:[%s5000 + $0x350] sm:$0xff]
    %v5108 = vld [vmem:[%s5000 + $0x358] sm:$0xff]
    %v5109 = vld [vmem:[%s5000 + $0x360] sm:$0xff]
    %v5110 = vld [vmem:[%s5000 + $0x368] sm:$0xff]
    %v5111 = vld [vmem:[%s5000 + $0x370] sm:$0xff]
    %v5112 = vld [vmem:[%s5000 + $0x378] sm:$0xff]
    %v5113 = vld [vmem:[%s5000 + $0x380] sm:$0xff]
    %v5114 = vld [vmem:[%s5000 + $0x388] sm:$0xff]
    %v5115 = vld [vmem:[%s5000 + $0x390] sm:$0xff]
    %v5116 = vld [vmem:[%s5000 + $0x398] sm:$0xff]
    %v5117 = vld [vmem:[%s5000 + $0x3a0] sm:$0xff]
    %v5118 = vld [vmem:[%s5000 + $0x3a8] sm:$0xff]
    %v5119 = vld [vmem:[%s5000 + $0x3b0] sm:$0xff]
    %v5120 = vld [vmem:[%s5000 + $0x3b8] sm:$0xff]
    %v5121 = vld [vmem:[%s5000 + $0x3c0] sm:$0xff]
    %v5122 = vld [vmem:[%s5000 + $0x3c8] sm:$0xff]
    %v5123 = vld [vmem:[%s5000 + $0x3d0] sm:$0xff]
    %v5124 = vld [vmem:[%s5000 + $0x3d8] sm:$0xff]
    %v5125 = vld [vmem:[%s5000 + $0x3e0] sm:$0xff]
    %v5126 = vld [vmem:[%s5000 + $0x3e8] sm:$0xff]
    %v5127 = vld [vmem:[%s5000 + $0x3f0] sm:$0xff]
    %v5128 = vld [vmem:[%s5000 + $0x3f8] sm:$0xff]
    %5129 = vmatprep.subr.mxu0 %v5002
    %5130 = vmatpush1.msra.mxu0 %v5001
    %5131 = vmatprep.subr.mxu0 %v5006
    %5132 = vmatpush1.msra.mxu0 %v5005
    %5133 = vmatprep.subr.mxu0 %v5010
    %5134 = vmatpush1.msra.mxu0 %v5009
    %5135 = vmatprep.subr.mxu0 %v5014
    %5136 = vmatpush1.msra.mxu0 %v5013
    %5137 = vmatprep.subr.mxu0 %v5018
    %5138 = vmatpush1.msra.mxu0 %v5017
    %5139 = vmatprep.subr.mxu0 %v5022
    %5140 = vmatpush1.msra.mxu0 %v5021
    %5141 = vmatprep.subr.mxu0 %v5026
    %5142 = vmatpush1.msra.mxu0 %v5025
    %5143 = vmatprep.subr.mxu0 %v5030
    %5144 = vmatpush1.msra.mxu0 %v5029
    %5145 = vmatprep.subr.mxu0 %v5034
    %5146 = vmatpush1.msra.mxu0 %v5033
    %5147 = vmatprep.subr.mxu0 %v5038
    %5148 = vmatpush1.msra.mxu0 %v5037
    %5149 = vmatprep.subr.mxu0 %v5042
    %5150 = vmatpush1.msra.mxu0 %v5041
    %5151 = vmatprep.subr.mxu0 %v5046
    %5152 = vmatpush1.msra.mxu0 %v5045
    %5153 = vmatprep.subr.mxu0 %v5050
    %5154 = vmatpush1.msra.mxu0 %v5049
    %5155 = vmatprep.subr.mxu0 %v5054
    %5156 = vmatpush1.msra.mxu0 %v5053
    %5157 = vmatprep.subr.mxu0 %v5058
    %5158 = vmatpush1.msra.mxu0 %v5057
    %5159 = vmatprep.subr.mxu0 %v5062
    %5160 = vmatpush1.msra.mxu0 %v5061
    %5161 = vmatprep.subr.mxu0 %v5066
    %5162 = vmatpush1.msra.mxu0 %v5065
    %5163 = vmatprep.subr.mxu0 %v5070
    %5164 = vmatpush1.msra.mxu0 %v5069
    %5165 = vmatprep.subr.mxu0 %v5074
    %5166 = vmatpush1.msra.mxu0 %v5073
    %5167 = vmatprep.subr.mxu0 %v5078
    %5168 = vmatpush1.msra.mxu0 %v5077
    %5169 = vmatprep.subr.mxu0 %v5082
    %5170 = vmatpush1.msra.mxu0 %v5081
    %5171 = vmatprep.subr.mxu0 %v5086
    %5172 = vmatpush1.msra.mxu0 %v5085
    %5173 = vmatprep.subr.mxu0 %v5090
    %5174 = vmatpush1.msra.mxu0 %v5089
    %5175 = vmatprep.subr.mxu0 %v5094
    %5176 = vmatpush1.msra.mxu0 %v5093
    %5177 = vmatprep.subr.mxu0 %v5098
    %5178 = vmatpush1.msra.mxu0 %v5097
    %5179 = vmatprep.subr.mxu0 %v5102
    %5180 = vmatpush1.msra.mxu0 %v5101
    %5181 = vmatprep.subr.mxu0 %v5106
    %5182 = vmatpush1.msra.mxu0 %v5105
    %5183 = vmatprep.subr.mxu0 %v5110
    %5184 = vmatpush1.msra.mxu0 %v5109
    %5185 = vmatprep.subr.mxu0 %v5114
    %5186 = vmatpush1.msra.mxu0 %v5113
    %5187 = vmatprep.subr.mxu0 %v5118
    %5188 = vmatpush1.msra.mxu0 %v5117
    %5189 = vmatprep.subr.mxu0 %v5122
    %5190 = vmatpush1.msra.mxu0 %v5121
    %5191 = vmatprep.subr.mxu0 %v5126
    %5192 = vmatpush1.msra.mxu0 %v5125
    %5193 = vmatprep.mubr.f32.mxu0 %v4998
    %5194 = vmatmul.mubr.f32.gmra.mrb[0].mxu0 %v4996
    %v5195 = vpop.f32.mrb[0].mxu0
    %v5196 = vadd.f32 0.0, %v5195
    %v5197 = vpop.f32.mrb[0].mxu0
    %v5198 = vadd.f32 0.0, %v5197
    %5199 = vdwg.mxu0
    %5200 = vmatprep.subr.mxu0 %v5004
    %5201 = vmatpush1.msra.mxu0 %v5003
    %5202 = vmatprep.subr.mxu0 %v5008
    %5203 = vmatpush1.msra.mxu0 %v5007
    %5204 = vmatprep.subr.mxu0 %v5012
    %5205 = vmatpush1.msra.mxu0 %v5011
    %5206 = vmatprep.subr.mxu0 %v5016
    %5207 = vmatpush1.msra.mxu0 %v5015
    %5208 = vmatprep.subr.mxu0 %v5020
    %5209 = vmatpush1.msra.mxu0 %v5019
    %5210 = vmatprep.subr.mxu0 %v5024
    %5211 = vmatpush1.msra.mxu0 %v5023
    %5212 = vmatprep.subr.mxu0 %v5028
    %5213 = vmatpush1.msra.mxu0 %v5027
    %5214 = vmatprep.subr.mxu0 %v5032
    %5215 = vmatpush1.msra.mxu0 %v5031
    %5216 = vmatprep.subr.mxu0 %v5036
    %5217 = vmatpush1.msra.mxu0 %v5035
    %5218 = vmatprep.subr.mxu0 %v5040
    %5219 = vmatpush1.msra.mxu0 %v5039
    %5220 = vmatprep.subr.mxu0 %v5044
    %5221 = vmatpush1.msra.mxu0 %v5043
    %5222 = vmatprep.subr.mxu0 %v5048
    %5223 = vmatpush1.msra.mxu0 %v5047
    %5224 = vmatprep.subr.mxu0 %v5052
    %5225 = vmatpush1.msra.mxu0 %v5051
    %5226 = vmatprep.subr.mxu0 %v5056
    %5227 = vmatpush1.msra.mxu0 %v5055
    %5228 = vmatprep.subr.mxu0 %v5060
    %5229 = vmatpush1.msra.mxu0 %v5059
    %5230 = vmatprep.subr.mxu0 %v5064
    %5231 = vmatpush1.msra.mxu0 %v5063
    %5232 = vmatprep.subr.mxu0 %v5068
    %5233 = vmatpush1.msra.mxu0 %v5067
    %5234 = vmatprep.subr.mxu0 %v5072
    %5235 = vmatpush1.msra.mxu0 %v5071
    %5236 = vmatprep.subr.mxu0 %v5076
    %5237 = vmatpush1.msra.mxu0 %v5075
    %5238 = vmatprep.subr.mxu0 %v5080
    %5239 = vmatpush1.msra.mxu0 %v5079
    %5240 = vmatprep.subr.mxu0 %v5084
    %5241 = vmatpush1.msra.mxu0 %v5083
    %5242 = vmatprep.subr.mxu0 %v5088
    %5243 = vmatpush1.msra.mxu0 %v5087
    %5244 = vmatprep.subr.mxu0 %v5092
    %5245 = vmatpush1.msra.mxu0 %v5091
    %5246 = vmatprep.subr.mxu0 %v5096
    %5247 = vmatpush1.msra.mxu0 %v5095
    %5248 = vmatprep.subr.mxu0 %v5100
    %5249 = vmatpush1.msra.mxu0 %v5099
    %5250 = vmatprep.subr.mxu0 %v5104
    %5251 = vmatpush1.msra.mxu0 %v5103
    %5252 = vmatprep.subr.mxu0 %v5108
    %5253 = vmatpush1.msra.mxu0 %v5107
    %5254 = vmatprep.subr.mxu0 %v5112
    %5255 = vmatpush1.msra.mxu0 %v5111
    %5256 = vmatprep.subr.mxu0 %v5116
    %5257 = vmatpush1.msra.mxu0 %v5115
    %5258 = vmatprep.subr.mxu0 %v5120
    %5259 = vmatpush1.msra.mxu0 %v5119
    %5260 = vmatprep.subr.mxu0 %v5124
    %5261 = vmatpush1.msra.mxu0 %v5123
    %5262 = vmatprep.subr.mxu0 %v5128
    %5263 = vmatpush1.msra.mxu0 %v5127
    %5264 = vmatprep.mubr.f32.mxu0 %v4998
    %5265 = vmatmul.mubr.f32.gmra.mrb[0].mxu0 %v4996
    %v5266 = vpop.f32.mrb[0].mxu0
    %v5267 = vadd.f32 0.0, %v5266
    %v5268 = vpop.f32.mrb[0].mxu0
    %v5269 = vadd.f32 0.0, %v5268
    %5270 = vdwg.mxu0
    %v5271 = vadd.f32 %v4849, %v5196
    %v5272 = vadd.f32 %v4851, %v5198
    %v5273 = vadd.f32 %v4920, %v5267
    %v5274 = vadd.f32 %v4922, %v5269
    %v5275 = vld [vmem:[#allocation31] sm:$0xf]
    %v5277 = vlaneseq
    %v5278 = vshrl.u32 %v5277, 7
    %v5279 = vsub.s32 0, %v5278
    %v5280 = vrot.slane %v5275, %v5279
    %v5281 = vlaneseq
    %v5282 = vshrl.u32 %v5281, 7
    %v5283 = vsub.s32 1, %v5282
    %v5284 = vrot.slane %v5275, %v5283
    %v5285 = vlaneseq
    %v5286 = vshrl.u32 %v5285, 7
    %v5287 = vsub.s32 2, %v5286
    %v5288 = vrot.slane %v5275, %v5287
    %v5289 = vlaneseq
    %v5290 = vshrl.u32 %v5289, 7
    %v5291 = vsub.s32 3, %v5290
    %v5292 = vrot.slane %v5275, %v5291
    %v5297 = vadd.f32 %v5271, %v5280
    %v5298 = vadd.f32 %v5272, %v5284
    %v5299 = vadd.f32 %v5273, %v5288
    %v5300 = vadd.f32 %v5274, %v5292
    %v5301 = vmax.f32 %v5297, 0.0
    %v5302 = vmax.f32 %v5298, 0.0
    %v5303 = vmax.f32 %v5299, 0.0
    %v5304 = vmax.f32 %v5300, 0.0
    %v5305 = vld [vmem:[%s3] sm:$0x3]
    %v5306 = vld [vmem:[#allocation5] sm:$0x1]
    %5308 = vset.pattern.permute.xlu0 0
    %5309 = vperm.xlu0 %5308, %v5305
    %v5310 = vpop.permute.xlu0 %5309
    %v5313 = vlaneseq
    %v5314 = vshrl.u32 %v5313, 7
    %v5315 = vsub.s32 0, %v5314
    %v5316 = vrot.slane %v5306, %v5315
    %v5318 = vmul.f32 %v5310, %v5316
    %v5319 = vld [vmem:[#allocation7] sm:$0x1]
    %v5321 = vlaneseq
    %v5322 = vshrl.u32 %v5321, 7
    %v5323 = vsub.s32 0, %v5322
    %v5324 = vrot.slane %v5319, %v5323
    %v5326 = vadd.f32 %v5318, %v5324
    %v5327 = vmax.f32 %v5326, 0.0
    %v5328 = vld [vmem:[#allocation8] sm:$0xff]
    %v5329 = vld [vmem:[#allocation8 + $0x8] sm:$0xff]
    %v5330 = vld [vmem:[#allocation8 + $0x10] sm:$0xff]
    %v5331 = vld [vmem:[#allocation8 + $0x18] sm:$0xff]
    %v5332 = vld [vmem:[#allocation10] sm:$0x1]
    %v5334 = vlaneseq
    %v5335 = vshrl.u32 %v5334, 7
    %v5336 = vsub.s32 0, %v5335
    %v5337 = vrot.slane %v5332, %v5336
    %v5340 = vsel %vm469, %v5327, 0
    %5342 = vmatprep.subr.mxu0 0.0
    %5343 = vmatpush1.msra.mxu0 %v5328
    %5344 = vmatprep.subr.mxu0 0.0
    %5345 = vmatpush1.msra.mxu0 %v5329
    %5346 = vmatprep.subr.mxu0 0.0
    %5347 = vmatpush1.msra.mxu0 %v5330
    %5348 = vmatprep.subr.mxu0 0.0
    %5349 = vmatpush1.msra.mxu0 %v5331
    %5350 = vmatprep.subr.mxu0 0.0
    %5351 = vmatpush1.msra.mxu0 0.0
    %5352 = vmatprep.subr.mxu0 0.0
    %5353 = vmatpush1.msra.mxu0 0.0
    %5354 = vmatprep.subr.mxu0 0.0
    %5355 = vmatpush1.msra.mxu0 0.0
    %5356 = vmatprep.subr.mxu0 0.0
    %5357 = vmatpush1.msra.mxu0 0.0
    %5358 = vmatprep.subr.mxu0 0.0
    %5359 = vmatpush1.msra.mxu0 0.0
    %5360 = vmatprep.subr.mxu0 0.0
    %5361 = vmatpush1.msra.mxu0 0.0
    %5362 = vmatprep.subr.mxu0 0.0
    %5363 = vmatpush1.msra.mxu0 0.0
    %5364 = vmatprep.subr.mxu0 0.0
    %5365 = vmatpush1.msra.mxu0 0.0
    %5366 = vmatprep.subr.mxu0 0.0
    %5367 = vmatpush1.msra.mxu0 0.0
    %5368 = vmatprep.subr.mxu0 0.0
    %5369 = vmatpush1.msra.mxu0 0.0
    %5370 = vmatprep.subr.mxu0 0.0
    %5371 = vmatpush1.msra.mxu0 0.0
    %5372 = vmatprep.subr.mxu0 0.0
    %5373 = vmatpush1.msra.mxu0 0.0
    %5374 = vmatprep.subr.mxu0 0.0
    %5375 = vmatpush1.msra.mxu0 0.0
    %5376 = vmatprep.subr.mxu0 0.0
    %5377 = vmatpush1.msra.mxu0 0.0
    %5378 = vmatprep.subr.mxu0 0.0
    %5379 = vmatpush1.msra.mxu0 0.0
    %5380 = vmatprep.subr.mxu0 0.0
    %5381 = vmatpush1.msra.mxu0 0.0
    %5382 = vmatprep.subr.mxu0 0.0
    %5383 = vmatpush1.msra.mxu0 0.0
    %5384 = vmatprep.subr.mxu0 0.0
    %5385 = vmatpush1.msra.mxu0 0.0
    %5386 = vmatprep.subr.mxu0 0.0
    %5387 = vmatpush1.msra.mxu0 0.0
    %5388 = vmatprep.subr.mxu0 0.0
    %5389 = vmatpush1.msra.mxu0 0.0
    %5390 = vmatprep.subr.mxu0 0.0
    %5391 = vmatpush1.msra.mxu0 0.0
    %5392 = vmatprep.subr.mxu0 0.0
    %5393 = vmatpush1.msra.mxu0 0.0
    %5394 = vmatprep.subr.mxu0 0.0
    %5395 = vmatpush1.msra.mxu0 0.0
    %5396 = vmatprep.subr.mxu0 0.0
    %5397 = vmatpush1.msra.mxu0 0.0
    %5398 = vmatprep.subr.mxu0 0.0
    %5399 = vmatpush1.msra.mxu0 0.0
    %5400 = vmatprep.subr.mxu0 0.0
    %5401 = vmatpush1.msra.mxu0 0.0
    %5402 = vmatprep.subr.mxu0 0.0
    %5403 = vmatpush1.msra.mxu0 0.0
    %5404 = vmatprep.subr.mxu0 0.0
    %5405 = vmatpush1.msra.mxu0 0.0
    %5406 = vmatprep.mubr.f32.mxu0 0.0
    %5407 = vmatmul.mubr.f32.gmra.mrb[0].mxu0 %v5340
    %v5408 = vpop.f32.mrb[0].mxu0
    %v5409 = vadd.f32 %v5337, %v5408
    %v5410 = vpop.f32.mrb[0].mxu0
    %5411 = vdwg.mxu0
    %v5412 = vmax.f32 %v5409, 0.0
    %v5413 = vld [vmem:[%s15] sm:$0xff]
    %v5414 = vld [vmem:[#allocation11] sm:$0xff]
    %v5415 = vld [vmem:[#allocation11 + $0x8] sm:$0xff]
    %v5416 = vld [vmem:[#allocation11 + $0x10] sm:$0xff]
    %v5417 = vld [vmem:[#allocation11 + $0x18] sm:$0xff]
    %v5418 = vld [vmem:[#allocation11 + $0x20] sm:$0xff]
    %v5419 = vld [vmem:[#allocation11 + $0x28] sm:$0xff]
    %v5420 = vld [vmem:[#allocation11 + $0x30] sm:$0xff]
    %v5421 = vld [vmem:[#allocation11 + $0x38] sm:$0xff]
    %v5422 = vld [vmem:[#allocation11 + $0x40] sm:$0xff]
    %v5423 = vld [vmem:[#allocation11 + $0x48] sm:$0xff]
    %v5424 = vld [vmem:[#allocation11 + $0x50] sm:$0xff]
    %v5425 = vld [vmem:[#allocation11 + $0x58] sm:$0xff]
    %v5426 = vld [vmem:[#allocation11 + $0x60] sm:$0xff]
    %v5427 = vld [vmem:[#allocation11 + $0x68] sm:$0xff]
    %v5428 = vld [vmem:[#allocation11 + $0x70] sm:$0xff]
    %v5429 = vld [vmem:[#allocation11 + $0x78] sm:$0xff]
    %v5430 = vld [vmem:[#allocation11 + $0x80] sm:$0xff]
    %v5431 = vld [vmem:[#allocation11 + $0x88] sm:$0xff]
    %v5432 = vld [vmem:[#allocation11 + $0x90] sm:$0xff]
    %v5433 = vld [vmem:[#allocation11 + $0x98] sm:$0xff]
    %v5434 = vld [vmem:[#allocation11 + $0xa0] sm:$0xff]
    %v5435 = vld [vmem:[#allocation11 + $0xa8] sm:$0xff]
    %v5436 = vld [vmem:[#allocation11 + $0xb0] sm:$0xff]
    %v5437 = vld [vmem:[#allocation11 + $0xb8] sm:$0xff]
    %v5438 = vld [vmem:[#allocation11 + $0xc0] sm:$0xff]
    %v5439 = vld [vmem:[#allocation11 + $0xc8] sm:$0xff]
    %v5440 = vld [vmem:[#allocation11 + $0xd0] sm:$0xff]
    %v5441 = vld [vmem:[#allocation11 + $0xd8] sm:$0xff]
    %v5442 = vld [vmem:[#allocation11 + $0xe0] sm:$0xff]
    %v5443 = vld [vmem:[#allocation11 + $0xe8] sm:$0xff]
    %v5444 = vld [vmem:[#allocation11 + $0xf0] sm:$0xff]
    %v5445 = vld [vmem:[#allocation11 + $0xf8] sm:$0xff]
    %v5447 = vsel %vm734, %v5412, 0
    %5449 = vmatprep.subr.mxu0 %v5415
    %5450 = vmatpush1.msra.mxu0 %v5414
    %5451 = vmatprep.subr.mxu0 %v5419
    %5452 = vmatpush1.msra.mxu0 %v5418
    %5453 = vmatprep.subr.mxu0 %v5423
    %5454 = vmatpush1.msra.mxu0 %v5422
    %5455 = vmatprep.subr.mxu0 %v5427
    %5456 = vmatpush1.msra.mxu0 %v5426
    %5457 = vmatprep.subr.mxu0 %v5431
    %5458 = vmatpush1.msra.mxu0 %v5430
    %5459 = vmatprep.subr.mxu0 %v5435
    %5460 = vmatpush1.msra.mxu0 %v5434
    %5461 = vmatprep.subr.mxu0 %v5439
    %5462 = vmatpush1.msra.mxu0 %v5438
    %5463 = vmatprep.subr.mxu0 %v5443
    %5464 = vmatpush1.msra.mxu0 %v5442
    %5465 = vmatprep.subr.mxu0 0.0
    %5466 = vmatpush1.msra.mxu0 0.0
    %5467 = vmatprep.subr.mxu0 0.0
    %5468 = vmatpush1.msra.mxu0 0.0
    %5469 = vmatprep.subr.mxu0 0.0
    %5470 = vmatpush1.msra.mxu0 0.0
    %5471 = vmatprep.subr.mxu0 0.0
    %5472 = vmatpush1.msra.mxu0 0.0
    %5473 = vmatprep.subr.mxu0 0.0
    %5474 = vmatpush1.msra.mxu0 0.0
    %5475 = vmatprep.subr.mxu0 0.0
    %5476 = vmatpush1.msra.mxu0 0.0
    %5477 = vmatprep.subr.mxu0 0.0
    %5478 = vmatpush1.msra.mxu0 0.0
    %5479 = vmatprep.subr.mxu0 0.0
    %5480 = vmatpush1.msra.mxu0 0.0
    %5481 = vmatprep.subr.mxu0 0.0
    %5482 = vmatpush1.msra.mxu0 0.0
    %5483 = vmatprep.subr.mxu0 0.0
    %5484 = vmatpush1.msra.mxu0 0.0
    %5485 = vmatprep.subr.mxu0 0.0
    %5486 = vmatpush1.msra.mxu0 0.0
    %5487 = vmatprep.subr.mxu0 0.0
    %5488 = vmatpush1.msra.mxu0 0.0
    %5489 = vmatprep.subr.mxu0 0.0
    %5490 = vmatpush1.msra.mxu0 0.0
    %5491 = vmatprep.subr.mxu0 0.0
    %5492 = vmatpush1.msra.mxu0 0.0
    %5493 = vmatprep.subr.mxu0 0.0
    %5494 = vmatpush1.msra.mxu0 0.0
    %5495 = vmatprep.subr.mxu0 0.0
    %5496 = vmatpush1.msra.mxu0 0.0
    %5497 = vmatprep.subr.mxu0 0.0
    %5498 = vmatpush1.msra.mxu0 0.0
    %5499 = vmatprep.subr.mxu0 0.0
    %5500 = vmatpush1.msra.mxu0 0.0
    %5501 = vmatprep.subr.mxu0 0.0
    %5502 = vmatpush1.msra.mxu0 0.0
    %5503 = vmatprep.subr.mxu0 0.0
    %5504 = vmatpush1.msra.mxu0 0.0
    %5505 = vmatprep.subr.mxu0 0.0
    %5506 = vmatpush1.msra.mxu0 0.0
    %5507 = vmatprep.subr.mxu0 0.0
    %5508 = vmatpush1.msra.mxu0 0.0
    %5509 = vmatprep.subr.mxu0 0.0
    %5510 = vmatpush1.msra.mxu0 0.0
    %5511 = vmatprep.subr.mxu0 0.0
    %5512 = vmatpush1.msra.mxu0 0.0
    %5513 = vmatprep.mubr.f32.mxu0 0.0
    %5514 = vmatmul.mubr.f32.gmra.mrb[0].mxu0 %v5447
    %v5515 = vpop.f32.mrb[0].mxu0
    %v5516 = vadd.f32 0.0, %v5515
    %v5517 = vpop.f32.mrb[0].mxu0
    %v5518 = vadd.f32 0.0, %v5517
    %5519 = vdwg.mxu0
    %5520 = vmatprep.subr.mxu0 %v5417
    %5521 = vmatpush1.msra.mxu0 %v5416
    %5522 = vmatprep.subr.mxu0 %v5421
    %5523 = vmatpush1.msra.mxu0 %v5420
    %5524 = vmatprep.subr.mxu0 %v5425
    %5525 = vmatpush1.msra.mxu0 %v5424
    %5526 = vmatprep.subr.mxu0 %v5429
    %5527 = vmatpush1.msra.mxu0 %v5428
    %5528 = vmatprep.subr.mxu0 %v5433
    %5529 = vmatpush1.msra.mxu0 %v5432
    %5530 = vmatprep.subr.mxu0 %v5437
    %5531 = vmatpush1.msra.mxu0 %v5436
    %5532 = vmatprep.subr.mxu0 %v5441
    %5533 = vmatpush1.msra.mxu0 %v5440
    %5534 = vmatprep.subr.mxu0 %v5445
    %5535 = vmatpush1.msra.mxu0 %v5444
    %5536 = vmatprep.subr.mxu0 0.0
    %5537 = vmatpush1.msra.mxu0 0.0
    %5538 = vmatprep.subr.mxu0 0.0
    %5539 = vmatpush1.msra.mxu0 0.0
    %5540 = vmatprep.subr.mxu0 0.0
    %5541 = vmatpush1.msra.mxu0 0.0
    %5542 = vmatprep.subr.mxu0 0.0
    %5543 = vmatpush1.msra.mxu0 0.0
    %5544 = vmatprep.subr.mxu0 0.0
    %5545 = vmatpush1.msra.mxu0 0.0
    %5546 = vmatprep.subr.mxu0 0.0
    %5547 = vmatpush1.msra.mxu0 0.0
    %5548 = vmatprep.subr.mxu0 0.0
    %5549 = vmatpush1.msra.mxu0 0.0
    %5550 = vmatprep.subr.mxu0 0.0
    %5551 = vmatpush1.msra.mxu0 0.0
    %5552 = vmatprep.subr.mxu0 0.0
    %5553 = vmatpush1.msra.mxu0 0.0
    %5554 = vmatprep.subr.mxu0 0.0
    %5555 = vmatpush1.msra.mxu0 0.0
    %5556 = vmatprep.subr.mxu0 0.0
    %5557 = vmatpush1.msra.mxu0 0.0
    %5558 = vmatprep.subr.mxu0 0.0
    %5559 = vmatpush1.msra.mxu0 0.0
    %5560 = vmatprep.subr.mxu0 0.0
    %5561 = vmatpush1.msra.mxu0 0.0
    %5562 = vmatprep.subr.mxu0 0.0
    %5563 = vmatpush1.msra.mxu0 0.0
    %5564 = vmatprep.subr.mxu0 0.0
    %5565 = vmatpush1.msra.mxu0 0.0
    %5566 = vmatprep.subr.mxu0 0.0
    %5567 = vmatpush1.msra.mxu0 0.0
    %5568 = vmatprep.subr.mxu0 0.0
    %5569 = vmatpush1.msra.mxu0 0.0
    %5570 = vmatprep.subr.mxu0 0.0
    %5571 = vmatpush1.msra.mxu0 0.0
    %5572 = vmatprep.subr.mxu0 0.0
    %5573 = vmatpush1.msra.mxu0 0.0
    %5574 = vmatprep.subr.mxu0 0.0
    %5575 = vmatpush1.msra.mxu0 0.0
    %5576 = vmatprep.subr.mxu0 0.0
    %5577 = vmatpush1.msra.mxu0 0.0
    %5578 = vmatprep.subr.mxu0 0.0
    %5579 = vmatpush1.msra.mxu0 0.0
    %5580 = vmatprep.subr.mxu0 0.0
    %5581 = vmatpush1.msra.mxu0 0.0
    %5582 = vmatprep.subr.mxu0 0.0
    %5583 = vmatpush1.msra.mxu0 0.0
    %5584 = vmatprep.mubr.f32.mxu0 0.0
    %5585 = vmatmul.mubr.f32.gmra.mrb[0].mxu0 %v5447
    %v5586 = vpop.f32.mrb[0].mxu0
    %v5587 = vadd.f32 0.0, %v5586
    %v5588 = vpop.f32.mrb[0].mxu0
    %v5589 = vadd.f32 0.0, %v5588
    %5590 = vdwg.mxu0
    %vm5591 = vcmask 15360
    %v5593 = vsel %vm5591, %v5413, 0
    %vm5595 = vcmask 1041408
    %v5597 = vsel %vm5595, %v5516, 0
    %v5600 = vsel %vm5595, %v5518, 0
    %v5603 = vsel %vm5595, %v5587, 0
    %v5606 = vsel %vm5595, %v5589, 0
    %5608 = vmatprep.subr.mxu0 %v5600
    %5609 = vmatpush1.msra.mxu0 %v5597
    %5610 = vmatprep.subr.mxu0 0.0
    %5611 = vmatpush1.msra.mxu0 0.0
    %5612 = vmatprep.subr.mxu0 0.0
    %5613 = vmatpush1.msra.mxu0 0.0
    %5614 = vmatprep.subr.mxu0 0.0
    %5615 = vmatpush1.msra.mxu0 0.0
    %5616 = vmatprep.subr.mxu0 0.0
    %5617 = vmatpush1.msra.mxu0 0.0
    %5618 = vmatprep.subr.mxu0 0.0
    %5619 = vmatpush1.msra.mxu0 0.0
    %5620 = vmatprep.subr.mxu0 0.0
    %5621 = vmatpush1.msra.mxu0 0.0
    %5622 = vmatprep.subr.mxu0 0.0
    %5623 = vmatpush1.msra.mxu0 0.0
    %5624 = vmatprep.subr.mxu0 0.0
    %5625 = vmatpush1.msra.mxu0 0.0
    %5626 = vmatprep.subr.mxu0 0.0
    %5627 = vmatpush1.msra.mxu0 0.0
    %5628 = vmatprep.subr.mxu0 0.0
    %5629 = vmatpush1.msra.mxu0 0.0
    %5630 = vmatprep.subr.mxu0 0.0
    %5631 = vmatpush1.msra.mxu0 0.0
    %5632 = vmatprep.subr.mxu0 0.0
    %5633 = vmatpush1.msra.mxu0 0.0
    %5634 = vmatprep.subr.mxu0 0.0
    %5635 = vmatpush1.msra.mxu0 0.0
    %5636 = vmatprep.subr.mxu0 0.0
    %5637 = vmatpush1.msra.mxu0 0.0
    %5638 = vmatprep.subr.mxu0 0.0
    %5639 = vmatpush1.msra.mxu0 0.0
    %5640 = vmatprep.subr.mxu0 0.0
    %5641 = vmatpush1.msra.mxu0 0.0
    %5642 = vmatprep.subr.mxu0 0.0
    %5643 = vmatpush1.msra.mxu0 0.0
    %5644 = vmatprep.subr.mxu0 0.0
    %5645 = vmatpush1.msra.mxu0 0.0
    %5646 = vmatprep.subr.mxu0 0.0
    %5647 = vmatpush1.msra.mxu0 0.0
    %5648 = vmatprep.subr.mxu0 0.0
    %5649 = vmatpush1.msra.mxu0 0.0
    %5650 = vmatprep.subr.mxu0 0.0
    %5651 = vmatpush1.msra.mxu0 0.0
    %5652 = vmatprep.subr.mxu0 0.0
    %5653 = vmatpush1.msra.mxu0 0.0
    %5654 = vmatprep.subr.mxu0 0.0
    %5655 = vmatpush1.msra.mxu0 0.0
    %5656 = vmatprep.subr.mxu0 0.0
    %5657 = vmatpush1.msra.mxu0 0.0
    %5658 = vmatprep.subr.mxu0 0.0
    %5659 = vmatpush1.msra.mxu0 0.0
    %5660 = vmatprep.subr.mxu0 0.0
    %5661 = vmatpush1.msra.mxu0 0.0
    %5662 = vmatprep.subr.mxu0 0.0
    %5663 = vmatpush1.msra.mxu0 0.0
    %5664 = vmatprep.subr.mxu0 0.0
    %5665 = vmatpush1.msra.mxu0 0.0
    %5666 = vmatprep.subr.mxu0 0.0
    %5667 = vmatpush1.msra.mxu0 0.0
    %5668 = vmatprep.subr.mxu0 0.0
    %5669 = vmatpush1.msra.mxu0 0.0
    %5670 = vmatprep.subr.mxu0 0.0
    %5671 = vmatpush1.msra.mxu0 0.0
    %5672 = vmatprep.mubr.f32.mxu0 0.0
    %5673 = vmatmul.mubr.f32.gmra.mrb[0].mxu0 %v5593
    %v5674 = vpop.f32.mrb[0].mxu0
    %v5675 = vadd.f32 0.0, %v5674
    %v5676 = vpop.f32.mrb[0].mxu0
    %v5677 = vadd.f32 0.0, %v5676
    %5678 = vdwg.mxu0
    %5679 = vmatprep.subr.mxu0 %v5606
    %5680 = vmatpush1.msra.mxu0 %v5603
    %5681 = vmatprep.subr.mxu0 0.0
    %5682 = vmatpush1.msra.mxu0 0.0
    %5683 = vmatprep.subr.mxu0 0.0
    %5684 = vmatpush1.msra.mxu0 0.0
    %5685 = vmatprep.subr.mxu0 0.0
    %5686 = vmatpush1.msra.mxu0 0.0
    %5687 = vmatprep.subr.mxu0 0.0
    %5688 = vmatpush1.msra.mxu0 0.0
    %5689 = vmatprep.subr.mxu0 0.0
    %5690 = vmatpush1.msra.mxu0 0.0
    %5691 = vmatprep.subr.mxu0 0.0
    %5692 = vmatpush1.msra.mxu0 0.0
    %5693 = vmatprep.subr.mxu0 0.0
    %5694 = vmatpush1.msra.mxu0 0.0
    %5695 = vmatprep.subr.mxu0 0.0
    %5696 = vmatpush1.msra.mxu0 0.0
    %5697 = vmatprep.subr.mxu0 0.0
    %5698 = vmatpush1.msra.mxu0 0.0
    %5699 = vmatprep.subr.mxu0 0.0
    %5700 = vmatpush1.msra.mxu0 0.0
    %5701 = vmatprep.subr.mxu0 0.0
    %5702 = vmatpush1.msra.mxu0 0.0
    %5703 = vmatprep.subr.mxu0 0.0
    %5704 = vmatpush1.msra.mxu0 0.0
    %5705 = vmatprep.subr.mxu0 0.0
    %5706 = vmatpush1.msra.mxu0 0.0
    %5707 = vmatprep.subr.mxu0 0.0
    %5708 = vmatpush1.msra.mxu0 0.0
    %5709 = vmatprep.subr.mxu0 0.0
    %5710 = vmatpush1.msra.mxu0 0.0
    %5711 = vmatprep.subr.mxu0 0.0
    %5712 = vmatpush1.msra.mxu0 0.0
    %5713 = vmatprep.subr.mxu0 0.0
    %5714 = vmatpush1.msra.mxu0 0.0
    %5715 = vmatprep.subr.mxu0 0.0
    %5716 = vmatpush1.msra.mxu0 0.0
    %5717 = vmatprep.subr.mxu0 0.0
    %5718 = vmatpush1.msra.mxu0 0.0
    %5719 = vmatprep.subr.mxu0 0.0
    %5720 = vmatpush1.msra.mxu0 0.0
    %5721 = vmatprep.subr.mxu0 0.0
    %5722 = vmatpush1.msra.mxu0 0.0
    %5723 = vmatprep.subr.mxu0 0.0
    %5724 = vmatpush1.msra.mxu0 0.0
    %5725 = vmatprep.subr.mxu0 0.0
    %5726 = vmatpush1.msra.mxu0 0.0
    %5727 = vmatprep.subr.mxu0 0.0
    %5728 = vmatpush1.msra.mxu0 0.0
    %5729 = vmatprep.subr.mxu0 0.0
    %5730 = vmatpush1.msra.mxu0 0.0
    %5731 = vmatprep.subr.mxu0 0.0
    %5732 = vmatpush1.msra.mxu0 0.0
    %5733 = vmatprep.subr.mxu0 0.0
    %5734 = vmatpush1.msra.mxu0 0.0
    %5735 = vmatprep.subr.mxu0 0.0
    %5736 = vmatpush1.msra.mxu0 0.0
    %5737 = vmatprep.subr.mxu0 0.0
    %5738 = vmatpush1.msra.mxu0 0.0
    %5739 = vmatprep.subr.mxu0 0.0
    %5740 = vmatpush1.msra.mxu0 0.0
    %5741 = vmatprep.subr.mxu0 0.0
    %5742 = vmatpush1.msra.mxu0 0.0
    %5743 = vmatprep.mubr.f32.mxu0 0.0
    %5744 = vmatmul.mubr.f32.gmra.mrb[0].mxu0 %v5593
    %v5745 = vpop.f32.mrb[0].mxu0
    %v5746 = vadd.f32 0.0, %v5745
    %v5747 = vpop.f32.mrb[0].mxu0
    %v5748 = vadd.f32 0.0, %v5747
    %5749 = vdwg.mxu0
    %v5750 = vadd.f32 %v5301, %v5675
    %v5751 = vadd.f32 %v5302, %v5677
    %v5752 = vadd.f32 %v5303, %v5746
    %v5753 = vadd.f32 %v5304, %v5748
    %v5754 = vld [vmem:[#allocation32] sm:$0xff]
    %vm5755 = vcmask 64512
    %v5757 = vsel %vm5755, %v5754, 0
    %5759 = vmatprep.subr.mxu0 %v5751
    %5760 = vmatpush1.msra.mxu0 %v5750
    %5761 = vmatprep.subr.mxu0 0.0
    %5762 = vmatpush1.msra.mxu0 0.0
    %5763 = vmatprep.subr.mxu0 0.0
    %5764 = vmatpush1.msra.mxu0 0.0
    %5765 = vmatprep.subr.mxu0 0.0
    %5766 = vmatpush1.msra.mxu0 0.0
    %5767 = vmatprep.subr.mxu0 0.0
    %5768 = vmatpush1.msra.mxu0 0.0
    %5769 = vmatprep.subr.mxu0 0.0
    %5770 = vmatpush1.msra.mxu0 0.0
    %5771 = vmatprep.subr.mxu0 0.0
    %5772 = vmatpush1.msra.mxu0 0.0
    %5773 = vmatprep.subr.mxu0 0.0
    %5774 = vmatpush1.msra.mxu0 0.0
    %5775 = vmatprep.subr.mxu0 0.0
    %5776 = vmatpush1.msra.mxu0 0.0
    %5777 = vmatprep.subr.mxu0 0.0
    %5778 = vmatpush1.msra.mxu0 0.0
    %5779 = vmatprep.subr.mxu0 0.0
    %5780 = vmatpush1.msra.mxu0 0.0
    %5781 = vmatprep.subr.mxu0 0.0
    %5782 = vmatpush1.msra.mxu0 0.0
    %5783 = vmatprep.subr.mxu0 0.0
    %5784 = vmatpush1.msra.mxu0 0.0
    %5785 = vmatprep.subr.mxu0 0.0
    %5786 = vmatpush1.msra.mxu0 0.0
    %5787 = vmatprep.subr.mxu0 0.0
    %5788 = vmatpush1.msra.mxu0 0.0
    %5789 = vmatprep.subr.mxu0 0.0
    %5790 = vmatpush1.msra.mxu0 0.0
    %5791 = vmatprep.subr.mxu0 0.0
    %5792 = vmatpush1.msra.mxu0 0.0
    %5793 = vmatprep.subr.mxu0 0.0
    %5794 = vmatpush1.msra.mxu0 0.0
    %5795 = vmatprep.subr.mxu0 0.0
    %5796 = vmatpush1.msra.mxu0 0.0
    %5797 = vmatprep.subr.mxu0 0.0
    %5798 = vmatpush1.msra.mxu0 0.0
    %5799 = vmatprep.subr.mxu0 0.0
    %5800 = vmatpush1.msra.mxu0 0.0
    %5801 = vmatprep.subr.mxu0 0.0
    %5802 = vmatpush1.msra.mxu0 0.0
    %5803 = vmatprep.subr.mxu0 0.0
    %5804 = vmatpush1.msra.mxu0 0.0
    %5805 = vmatprep.subr.mxu0 0.0
    %5806 = vmatpush1.msra.mxu0 0.0
    %5807 = vmatprep.subr.mxu0 0.0
    %5808 = vmatpush1.msra.mxu0 0.0
    %5809 = vmatprep.subr.mxu0 0.0
    %5810 = vmatpush1.msra.mxu0 0.0
    %5811 = vmatprep.subr.mxu0 0.0
    %5812 = vmatpush1.msra.mxu0 0.0
    %5813 = vmatprep.subr.mxu0 0.0
    %5814 = vmatpush1.msra.mxu0 0.0
    %5815 = vmatprep.subr.mxu0 0.0
    %5816 = vmatpush1.msra.mxu0 0.0
    %5817 = vmatprep.subr.mxu0 0.0
    %5818 = vmatpush1.msra.mxu0 0.0
    %5819 = vmatprep.subr.mxu0 0.0
    %5820 = vmatpush1.msra.mxu0 0.0
    %5821 = vmatprep.subr.mxu0 0.0
    %5822 = vmatpush1.msra.mxu0 0.0
    %5823 = vmatprep.mubr.f32.mxu0 0.0
    %5824 = vmatmul.mubr.f32.gmra.mrb[0].mxu0 %v5757
    %v5825 = vpop.f32.mrb[0].mxu0
    %v5826 = vadd.f32 0.0, %v5825
    %v5827 = vpop.f32.mrb[0].mxu0
    %v5828 = vadd.f32 0.0, %v5827
    %5829 = vdwg.mxu0
    %5830 = vmatprep.subr.mxu0 %v5753
    %5831 = vmatpush1.msra.mxu0 %v5752
    %5832 = vmatprep.subr.mxu0 0.0
    %5833 = vmatpush1.msra.mxu0 0.0
    %5834 = vmatprep.subr.mxu0 0.0
    %5835 = vmatpush1.msra.mxu0 0.0
    %5836 = vmatprep.subr.mxu0 0.0
    %5837 = vmatpush1.msra.mxu0 0.0
    %5838 = vmatprep.subr.mxu0 0.0
    %5839 = vmatpush1.msra.mxu0 0.0
    %5840 = vmatprep.subr.mxu0 0.0
    %5841 = vmatpush1.msra.mxu0 0.0
    %5842 = vmatprep.subr.mxu0 0.0
    %5843 = vmatpush1.msra.mxu0 0.0
    %5844 = vmatprep.subr.mxu0 0.0
    %5845 = vmatpush1.msra.mxu0 0.0
    %5846 = vmatprep.subr.mxu0 0.0
    %5847 = vmatpush1.msra.mxu0 0.0
    %5848 = vmatprep.subr.mxu0 0.0
    %5849 = vmatpush1.msra.mxu0 0.0
    %5850 = vmatprep.subr.mxu0 0.0
    %5851 = vmatpush1.msra.mxu0 0.0
    %5852 = vmatprep.subr.mxu0 0.0
    %5853 = vmatpush1.msra.mxu0 0.0
    %5854 = vmatprep.subr.mxu0 0.0
    %5855 = vmatpush1.msra.mxu0 0.0
    %5856 = vmatprep.subr.mxu0 0.0
    %5857 = vmatpush1.msra.mxu0 0.0
    %5858 = vmatprep.subr.mxu0 0.0
    %5859 = vmatpush1.msra.mxu0 0.0
    %5860 = vmatprep.subr.mxu0 0.0
    %5861 = vmatpush1.msra.mxu0 0.0
    %5862 = vmatprep.subr.mxu0 0.0
    %5863 = vmatpush1.msra.mxu0 0.0
    %5864 = vmatprep.subr.mxu0 0.0
    %5865 = vmatpush1.msra.mxu0 0.0
    %5866 = vmatprep.subr.mxu0 0.0
    %5867 = vmatpush1.msra.mxu0 0.0
    %5868 = vmatprep.subr.mxu0 0.0
    %5869 = vmatpush1.msra.mxu0 0.0
    %5870 = vmatprep.subr.mxu0 0.0
    %5871 = vmatpush1.msra.mxu0 0.0
    %5872 = vmatprep.subr.mxu0 0.0
    %5873 = vmatpush1.msra.mxu0 0.0
    %5874 = vmatprep.subr.mxu0 0.0
    %5875 = vmatpush1.msra.mxu0 0.0
    %5876 = vmatprep.subr.mxu0 0.0
    %5877 = vmatpush1.msra.mxu0 0.0
    %5878 = vmatprep.subr.mxu0 0.0
    %5879 = vmatpush1.msra.mxu0 0.0
    %5880 = vmatprep.subr.mxu0 0.0
    %5881 = vmatpush1.msra.mxu0 0.0
    %5882 = vmatprep.subr.mxu0 0.0
    %5883 = vmatpush1.msra.mxu0 0.0
    %5884 = vmatprep.subr.mxu0 0.0
    %5885 = vmatpush1.msra.mxu0 0.0
    %5886 = vmatprep.subr.mxu0 0.0
    %5887 = vmatpush1.msra.mxu0 0.0
    %5888 = vmatprep.subr.mxu0 0.0
    %5889 = vmatpush1.msra.mxu0 0.0
    %5890 = vmatprep.subr.mxu0 0.0
    %5891 = vmatpush1.msra.mxu0 0.0
    %5892 = vmatprep.subr.mxu0 0.0
    %5893 = vmatpush1.msra.mxu0 0.0
    %5894 = vmatprep.mubr.f32.mxu0 0.0
    %5895 = vmatmul.mubr.f32.gmra.mrb[0].mxu0 %v5757
    %v5896 = vpop.f32.mrb[0].mxu0
    %v5897 = vadd.f32 0.0, %v5896
    %v5898 = vpop.f32.mrb[0].mxu0
    %v5899 = vadd.f32 0.0, %v5898
    %5900 = vdwg.mxu0
    %v5901 = vld [vmem:[#allocation34] sm:$0xff]
    %v5902 = vld [vmem:[#allocation34 + $0x8] sm:$0xff]
    %v5903 = vld [vmem:[#allocation34 + $0x10] sm:$0xff]
    %v5904 = vld [vmem:[#allocation34 + $0x18] sm:$0xff]
    %v5905 = vld [vmem:[#allocation34 + $0x20] sm:$0xff]
    %v5906 = vld [vmem:[#allocation34 + $0x28] sm:$0xff]
    %v5907 = vld [vmem:[#allocation34 + $0x30] sm:$0xff]
    %v5908 = vld [vmem:[#allocation34 + $0x38] sm:$0xff]
    %v5909 = vld [vmem:[#allocation34 + $0x40] sm:$0xff]
    %v5910 = vld [vmem:[#allocation34 + $0x48] sm:$0xff]
    %v5911 = vld [vmem:[#allocation34 + $0x50] sm:$0xff]
    %v5912 = vld [vmem:[#allocation34 + $0x58] sm:$0xff]
    %v5913 = vld [vmem:[#allocation34 + $0x60] sm:$0xff]
    %v5914 = vld [vmem:[#allocation34 + $0x68] sm:$0xff]
    %v5915 = vld [vmem:[#allocation34 + $0x70] sm:$0xff]
    %v5916 = vld [vmem:[#allocation34 + $0x78] sm:$0xff]
    %v5917 = vld [vmem:[#allocation34 + $0x80] sm:$0xff]
    %v5918 = vld [vmem:[#allocation34 + $0x88] sm:$0xff]
    %v5919 = vld [vmem:[#allocation34 + $0x90] sm:$0xff]
    %v5920 = vld [vmem:[#allocation34 + $0x98] sm:$0xff]
    %v5921 = vld [vmem:[#allocation34 + $0xa0] sm:$0xff]
    %v5922 = vld [vmem:[#allocation34 + $0xa8] sm:$0xff]
    %v5923 = vld [vmem:[#allocation34 + $0xb0] sm:$0xff]
    %v5924 = vld [vmem:[#allocation34 + $0xb8] sm:$0xff]
    %v5925 = vld [vmem:[#allocation34 + $0xc0] sm:$0xff]
    %v5926 = vld [vmem:[#allocation34 + $0xc8] sm:$0xff]
    %v5927 = vld [vmem:[#allocation34 + $0xd0] sm:$0xff]
    %v5928 = vld [vmem:[#allocation34 + $0xd8] sm:$0xff]
    %v5929 = vld [vmem:[#allocation34 + $0xe0] sm:$0xff]
    %v5930 = vld [vmem:[#allocation34 + $0xe8] sm:$0xff]
    %v5931 = vld [vmem:[#allocation34 + $0xf0] sm:$0xff]
    %v5932 = vld [vmem:[#allocation34 + $0xf8] sm:$0xff]
    %v5933 = vld [vmem:[#allocation34 + $0x100] sm:$0xff]
    %v5934 = vld [vmem:[#allocation34 + $0x108] sm:$0xff]
    %v5935 = vld [vmem:[#allocation34 + $0x110] sm:$0xff]
    %v5936 = vld [vmem:[#allocation34 + $0x118] sm:$0xff]
    %v5937 = vld [vmem:[#allocation34 + $0x120] sm:$0xff]
    %v5938 = vld [vmem:[#allocation34 + $0x128] sm:$0xff]
    %v5939 = vld [vmem:[#allocation34 + $0x130] sm:$0xff]
    %v5940 = vld [vmem:[#allocation34 + $0x138] sm:$0xff]
    %v5941 = vld [vmem:[#allocation34 + $0x140] sm:$0xff]
    %v5942 = vld [vmem:[#allocation34 + $0x148] sm:$0xff]
    %v5943 = vld [vmem:[#allocation34 + $0x150] sm:$0xff]
    %v5944 = vld [vmem:[#allocation34 + $0x158] sm:$0xff]
    %v5945 = vld [vmem:[#allocation34 + $0x160] sm:$0xff]
    %v5946 = vld [vmem:[#allocation34 + $0x168] sm:$0xff]
    %v5947 = vld [vmem:[#allocation34 + $0x170] sm:$0xff]
    %v5948 = vld [vmem:[#allocation34 + $0x178] sm:$0xff]
    %v5949 = vld [vmem:[#allocation34 + $0x180] sm:$0xff]
    %v5950 = vld [vmem:[#allocation34 + $0x188] sm:$0xff]
    %v5951 = vld [vmem:[#allocation34 + $0x190] sm:$0xff]
    %v5952 = vld [vmem:[#allocation34 + $0x198] sm:$0xff]
    %v5953 = vld [vmem:[#allocation34 + $0x1a0] sm:$0xff]
    %v5954 = vld [vmem:[#allocation34 + $0x1a8] sm:$0xff]
    %v5955 = vld [vmem:[#allocation34 + $0x1b0] sm:$0xff]
    %v5956 = vld [vmem:[#allocation34 + $0x1b8] sm:$0xff]
    %v5957 = vld [vmem:[#allocation34 + $0x1c0] sm:$0xff]
    %v5958 = vld [vmem:[#allocation34 + $0x1c8] sm:$0xff]
    %v5959 = vld [vmem:[#allocation34 + $0x1d0] sm:$0xff]
    %v5960 = vld [vmem:[#allocation34 + $0x1d8] sm:$0xff]
    %v5961 = vld [vmem:[#allocation34 + $0x1e0] sm:$0xff]
    %v5962 = vld [vmem:[#allocation34 + $0x1e8] sm:$0xff]
    %v5963 = vld [vmem:[#allocation34 + $0x1f0] sm:$0xff]
    %v5964 = vld [vmem:[#allocation34 + $0x1f8] sm:$0xff]
    %v5965 = vld [vmem:[#allocation34 + $0x200] sm:$0xff]
    %v5966 = vld [vmem:[#allocation34 + $0x208] sm:$0xff]
    %v5967 = vld [vmem:[#allocation34 + $0x210] sm:$0xff]
    %v5968 = vld [vmem:[#allocation34 + $0x218] sm:$0xff]
    %v5969 = vld [vmem:[#allocation34 + $0x220] sm:$0xff]
    %v5970 = vld [vmem:[#allocation34 + $0x228] sm:$0xff]
    %v5971 = vld [vmem:[#allocation34 + $0x230] sm:$0xff]
    %v5972 = vld [vmem:[#allocation34 + $0x238] sm:$0xff]
    %v5973 = vld [vmem:[#allocation34 + $0x240] sm:$0xff]
    %v5974 = vld [vmem:[#allocation34 + $0x248] sm:$0xff]
    %v5975 = vld [vmem:[#allocation34 + $0x250] sm:$0xff]
    %v5976 = vld [vmem:[#allocation34 + $0x258] sm:$0xff]
    %v5977 = vld [vmem:[#allocation34 + $0x260] sm:$0xff]
    %v5978 = vld [vmem:[#allocation34 + $0x268] sm:$0xff]
    %v5979 = vld [vmem:[#allocation34 + $0x270] sm:$0xff]
    %v5980 = vld [vmem:[#allocation34 + $0x278] sm:$0xff]
    %v5981 = vld [vmem:[#allocation34 + $0x280] sm:$0xff]
    %v5982 = vld [vmem:[#allocation34 + $0x288] sm:$0xff]
    %v5983 = vld [vmem:[#allocation34 + $0x290] sm:$0xff]
    %v5984 = vld [vmem:[#allocation34 + $0x298] sm:$0xff]
    %v5985 = vld [vmem:[#allocation34 + $0x2a0] sm:$0xff]
    %v5986 = vld [vmem:[#allocation34 + $0x2a8] sm:$0xff]
    %v5987 = vld [vmem:[#allocation34 + $0x2b0] sm:$0xff]
    %v5988 = vld [vmem:[#allocation34 + $0x2b8] sm:$0xff]
    %v5989 = vld [vmem:[#allocation34 + $0x2c0] sm:$0xff]
    %v5990 = vld [vmem:[#allocation34 + $0x2c8] sm:$0xff]
    %v5991 = vld [vmem:[#allocation34 + $0x2d0] sm:$0xff]
    %v5992 = vld [vmem:[#allocation34 + $0x2d8] sm:$0xff]
    %v5993 = vld [vmem:[#allocation34 + $0x2e0] sm:$0xff]
    %v5994 = vld [vmem:[#allocation34 + $0x2e8] sm:$0xff]
    %v5995 = vld [vmem:[#allocation34 + $0x2f0] sm:$0xff]
    %v5996 = vld [vmem:[#allocation34 + $0x2f8] sm:$0xff]
    %v5997 = vld [vmem:[#allocation34 + $0x300] sm:$0xff]
    %v5998 = vld [vmem:[#allocation34 + $0x308] sm:$0xff]
    %v5999 = vld [vmem:[#allocation34 + $0x310] sm:$0xff]
    %v6000 = vld [vmem:[#allocation34 + $0x318] sm:$0xff]
    %v6001 = vld [vmem:[#allocation34 + $0x320] sm:$0xff]
    %v6002 = vld [vmem:[#allocation34 + $0x328] sm:$0xff]
    %v6003 = vld [vmem:[#allocation34 + $0x330] sm:$0xff]
    %v6004 = vld [vmem:[#allocation34 + $0x338] sm:$0xff]
    %v6005 = vld [vmem:[#allocation34 + $0x340] sm:$0xff]
    %v6006 = vld [vmem:[#allocation34 + $0x348] sm:$0xff]
    %v6007 = vld [vmem:[#allocation34 + $0x350] sm:$0xff]
    %v6008 = vld [vmem:[#allocation34 + $0x358] sm:$0xff]
    %v6009 = vld [vmem:[#allocation34 + $0x360] sm:$0xff]
    %v6010 = vld [vmem:[#allocation34 + $0x368] sm:$0xff]
    %v6011 = vld [vmem:[#allocation34 + $0x370] sm:$0xff]
    %v6012 = vld [vmem:[#allocation34 + $0x378] sm:$0xff]
    %v6013 = vld [vmem:[#allocation34 + $0x380] sm:$0xff]
    %v6014 = vld [vmem:[#allocation34 + $0x388] sm:$0xff]
    %v6015 = vld [vmem:[#allocation34 + $0x390] sm:$0xff]
    %v6016 = vld [vmem:[#allocation34 + $0x398] sm:$0xff]
    %v6017 = vld [vmem:[#allocation34 + $0x3a0] sm:$0xff]
    %v6018 = vld [vmem:[#allocation34 + $0x3a8] sm:$0xff]
    %v6019 = vld [vmem:[#allocation34 + $0x3b0] sm:$0xff]
    %v6020 = vld [vmem:[#allocation34 + $0x3b8] sm:$0xff]
    %v6021 = vld [vmem:[#allocation34 + $0x3c0] sm:$0xff]
    %v6022 = vld [vmem:[#allocation34 + $0x3c8] sm:$0xff]
    %v6023 = vld [vmem:[#allocation34 + $0x3d0] sm:$0xff]
    %v6024 = vld [vmem:[#allocation34 + $0x3d8] sm:$0xff]
    %v6025 = vld [vmem:[#allocation34 + $0x3e0] sm:$0xff]
    %v6026 = vld [vmem:[#allocation34 + $0x3e8] sm:$0xff]
    %v6027 = vld [vmem:[#allocation34 + $0x3f0] sm:$0xff]
    %v6028 = vld [vmem:[#allocation34 + $0x3f8] sm:$0xff]
    %s6029 = scalar_lea.vmem [#allocation32], 8
    %v6030 = vld [vmem:[%s6029] sm:$0xff]
    %v6032 = vsel %vm5755, %v6030, 0
    %6034 = vmatprep.subr.mxu0 %v5751
    %6035 = vmatpush1.msra.mxu0 %v5750
    %6036 = vmatprep.subr.mxu0 0.0
    %6037 = vmatpush1.msra.mxu0 0.0
    %6038 = vmatprep.subr.mxu0 0.0
    %6039 = vmatpush1.msra.mxu0 0.0
    %6040 = vmatprep.subr.mxu0 0.0
    %6041 = vmatpush1.msra.mxu0 0.0
    %6042 = vmatprep.subr.mxu0 0.0
    %6043 = vmatpush1.msra.mxu0 0.0
    %6044 = vmatprep.subr.mxu0 0.0
    %6045 = vmatpush1.msra.mxu0 0.0
    %6046 = vmatprep.subr.mxu0 0.0
    %6047 = vmatpush1.msra.mxu0 0.0
    %6048 = vmatprep.subr.mxu0 0.0
    %6049 = vmatpush1.msra.mxu0 0.0
    %6050 = vmatprep.subr.mxu0 0.0
    %6051 = vmatpush1.msra.mxu0 0.0
    %6052 = vmatprep.subr.mxu0 0.0
    %6053 = vmatpush1.msra.mxu0 0.0
    %6054 = vmatprep.subr.mxu0 0.0
    %6055 = vmatpush1.msra.mxu0 0.0
    %6056 = vmatprep.subr.mxu0 0.0
    %6057 = vmatpush1.msra.mxu0 0.0
    %6058 = vmatprep.subr.mxu0 0.0
    %6059 = vmatpush1.msra.mxu0 0.0
    %6060 = vmatprep.subr.mxu0 0.0
    %6061 = vmatpush1.msra.mxu0 0.0
    %6062 = vmatprep.subr.mxu0 0.0
    %6063 = vmatpush1.msra.mxu0 0.0
    %6064 = vmatprep.subr.mxu0 0.0
    %6065 = vmatpush1.msra.mxu0 0.0
    %6066 = vmatprep.subr.mxu0 0.0
    %6067 = vmatpush1.msra.mxu0 0.0
    %6068 = vmatprep.subr.mxu0 0.0
    %6069 = vmatpush1.msra.mxu0 0.0
    %6070 = vmatprep.subr.mxu0 0.0
    %6071 = vmatpush1.msra.mxu0 0.0
    %6072 = vmatprep.subr.mxu0 0.0
    %6073 = vmatpush1.msra.mxu0 0.0
    %6074 = vmatprep.subr.mxu0 0.0
    %6075 = vmatpush1.msra.mxu0 0.0
    %6076 = vmatprep.subr.mxu0 0.0
    %6077 = vmatpush1.msra.mxu0 0.0
    %6078 = vmatprep.subr.mxu0 0.0
    %6079 = vmatpush1.msra.mxu0 0.0
    %6080 = vmatprep.subr.mxu0 0.0
    %6081 = vmatpush1.msra.mxu0 0.0
    %6082 = vmatprep.subr.mxu0 0.0
    %6083 = vmatpush1.msra.mxu0 0.0
    %6084 = vmatprep.subr.mxu0 0.0
    %6085 = vmatpush1.msra.mxu0 0.0
    %6086 = vmatprep.subr.mxu0 0.0
    %6087 = vmatpush1.msra.mxu0 0.0
    %6088 = vmatprep.subr.mxu0 0.0
    %6089 = vmatpush1.msra.mxu0 0.0
    %6090 = vmatprep.subr.mxu0 0.0
    %6091 = vmatpush1.msra.mxu0 0.0
    %6092 = vmatprep.subr.mxu0 0.0
    %6093 = vmatpush1.msra.mxu0 0.0
    %6094 = vmatprep.subr.mxu0 0.0
    %6095 = vmatpush1.msra.mxu0 0.0
    %6096 = vmatprep.subr.mxu0 0.0
    %6097 = vmatpush1.msra.mxu0 0.0
    %6098 = vmatprep.mubr.f32.mxu0 0.0
    %6099 = vmatmul.mubr.f32.gmra.mrb[0].mxu0 %v6032
    %v6100 = vpop.f32.mrb[0].mxu0
    %v6101 = vadd.f32 0.0, %v6100
    %v6102 = vpop.f32.mrb[0].mxu0
    %v6103 = vadd.f32 0.0, %v6102
    %6104 = vdwg.mxu0
    %6105 = vmatprep.subr.mxu0 %v5753
    %6106 = vmatpush1.msra.mxu0 %v5752
    %6107 = vmatprep.subr.mxu0 0.0
    %6108 = vmatpush1.msra.mxu0 0.0
    %6109 = vmatprep.subr.mxu0 0.0
    %6110 = vmatpush1.msra.mxu0 0.0
    %6111 = vmatprep.subr.mxu0 0.0
    %6112 = vmatpush1.msra.mxu0 0.0
    %6113 = vmatprep.subr.mxu0 0.0
    %6114 = vmatpush1.msra.mxu0 0.0
    %6115 = vmatprep.subr.mxu0 0.0
    %6116 = vmatpush1.msra.mxu0 0.0
    %6117 = vmatprep.subr.mxu0 0.0
    %6118 = vmatpush1.msra.mxu0 0.0
    %6119 = vmatprep.subr.mxu0 0.0
    %6120 = vmatpush1.msra.mxu0 0.0
    %6121 = vmatprep.subr.mxu0 0.0
    %6122 = vmatpush1.msra.mxu0 0.0
    %6123 = vmatprep.subr.mxu0 0.0
    %6124 = vmatpush1.msra.mxu0 0.0
    %6125 = vmatprep.subr.mxu0 0.0
    %6126 = vmatpush1.msra.mxu0 0.0
    %6127 = vmatprep.subr.mxu0 0.0
    %6128 = vmatpush1.msra.mxu0 0.0
    %6129 = vmatprep.subr.mxu0 0.0
    %6130 = vmatpush1.msra.mxu0 0.0
    %6131 = vmatprep.subr.mxu0 0.0
    %6132 = vmatpush1.msra.mxu0 0.0
    %6133 = vmatprep.subr.mxu0 0.0
    %6134 = vmatpush1.msra.mxu0 0.0
    %6135 = vmatprep.subr.mxu0 0.0
    %6136 = vmatpush1.msra.mxu0 0.0
    %6137 = vmatprep.subr.mxu0 0.0
    %6138 = vmatpush1.msra.mxu0 0.0
    %6139 = vmatprep.subr.mxu0 0.0
    %6140 = vmatpush1.msra.mxu0 0.0
    %6141 = vmatprep.subr.mxu0 0.0
    %6142 = vmatpush1.msra.mxu0 0.0
    %6143 = vmatprep.subr.mxu0 0.0
    %6144 = vmatpush1.msra.mxu0 0.0
    %6145 = vmatprep.subr.mxu0 0.0
    %6146 = vmatpush1.msra.mxu0 0.0
    %6147 = vmatprep.subr.mxu0 0.0
    %6148 = vmatpush1.msra.mxu0 0.0
    %6149 = vmatprep.subr.mxu0 0.0
    %6150 = vmatpush1.msra.mxu0 0.0
    %6151 = vmatprep.subr.mxu0 0.0
    %6152 = vmatpush1.msra.mxu0 0.0
    %6153 = vmatprep.subr.mxu0 0.0
    %6154 = vmatpush1.msra.mxu0 0.0
    %6155 = vmatprep.subr.mxu0 0.0
    %6156 = vmatpush1.msra.mxu0 0.0
    %6157 = vmatprep.subr.mxu0 0.0
    %6158 = vmatpush1.msra.mxu0 0.0
    %6159 = vmatprep.subr.mxu0 0.0
    %6160 = vmatpush1.msra.mxu0 0.0
    %6161 = vmatprep.subr.mxu0 0.0
    %6162 = vmatpush1.msra.mxu0 0.0
    %6163 = vmatprep.subr.mxu0 0.0
    %6164 = vmatpush1.msra.mxu0 0.0
    %6165 = vmatprep.subr.mxu0 0.0
    %6166 = vmatpush1.msra.mxu0 0.0
    %6167 = vmatprep.subr.mxu0 0.0
    %6168 = vmatpush1.msra.mxu0 0.0
    %6169 = vmatprep.mubr.f32.mxu0 0.0
    %6170 = vmatmul.mubr.f32.gmra.mrb[0].mxu0 %v6032
    %v6171 = vpop.f32.mrb[0].mxu0
    %v6172 = vadd.f32 0.0, %v6171
    %v6173 = vpop.f32.mrb[0].mxu0
    %v6174 = vadd.f32 0.0, %v6173
    %6175 = vdwg.mxu0
    %s6176 = scalar_lea.vmem [#allocation34], 1024
    %v6177 = vld [vmem:[%s6176] sm:$0xff]
    %v6178 = vld [vmem:[%s6176 + $0x8] sm:$0xff]
    %v6179 = vld [vmem:[%s6176 + $0x10] sm:$0xff]
    %v6180 = vld [vmem:[%s6176 + $0x18] sm:$0xff]
    %v6181 = vld [vmem:[%s6176 + $0x20] sm:$0xff]
    %v6182 = vld [vmem:[%s6176 + $0x28] sm:$0xff]
    %v6183 = vld [vmem:[%s6176 + $0x30] sm:$0xff]
    %v6184 = vld [vmem:[%s6176 + $0x38] sm:$0xff]
    %v6185 = vld [vmem:[%s6176 + $0x40] sm:$0xff]
    %v6186 = vld [vmem:[%s6176 + $0x48] sm:$0xff]
    %v6187 = vld [vmem:[%s6176 + $0x50] sm:$0xff]
    %v6188 = vld [vmem:[%s6176 + $0x58] sm:$0xff]
    %v6189 = vld [vmem:[%s6176 + $0x60] sm:$0xff]
    %v6190 = vld [vmem:[%s6176 + $0x68] sm:$0xff]
    %v6191 = vld [vmem:[%s6176 + $0x70] sm:$0xff]
    %v6192 = vld [vmem:[%s6176 + $0x78] sm:$0xff]
    %v6193 = vld [vmem:[%s6176 + $0x80] sm:$0xff]
    %v6194 = vld [vmem:[%s6176 + $0x88] sm:$0xff]
    %v6195 = vld [vmem:[%s6176 + $0x90] sm:$0xff]
    %v6196 = vld [vmem:[%s6176 + $0x98] sm:$0xff]
    %v6197 = vld [vmem:[%s6176 + $0xa0] sm:$0xff]
    %v6198 = vld [vmem:[%s6176 + $0xa8] sm:$0xff]
    %v6199 = vld [vmem:[%s6176 + $0xb0] sm:$0xff]
    %v6200 = vld [vmem:[%s6176 + $0xb8] sm:$0xff]
    %v6201 = vld [vmem:[%s6176 + $0xc0] sm:$0xff]
    %v6202 = vld [vmem:[%s6176 + $0xc8] sm:$0xff]
    %v6203 = vld [vmem:[%s6176 + $0xd0] sm:$0xff]
    %v6204 = vld [vmem:[%s6176 + $0xd8] sm:$0xff]
    %v6205 = vld [vmem:[%s6176 + $0xe0] sm:$0xff]
    %v6206 = vld [vmem:[%s6176 + $0xe8] sm:$0xff]
    %v6207 = vld [vmem:[%s6176 + $0xf0] sm:$0xff]
    %v6208 = vld [vmem:[%s6176 + $0xf8] sm:$0xff]
    %v6209 = vld [vmem:[%s6176 + $0x100] sm:$0xff]
    %v6210 = vld [vmem:[%s6176 + $0x108] sm:$0xff]
    %v6211 = vld [vmem:[%s6176 + $0x110] sm:$0xff]
    %v6212 = vld [vmem:[%s6176 + $0x118] sm:$0xff]
    %v6213 = vld [vmem:[%s6176 + $0x120] sm:$0xff]
    %v6214 = vld [vmem:[%s6176 + $0x128] sm:$0xff]
    %v6215 = vld [vmem:[%s6176 + $0x130] sm:$0xff]
    %v6216 = vld [vmem:[%s6176 + $0x138] sm:$0xff]
    %v6217 = vld [vmem:[%s6176 + $0x140] sm:$0xff]
    %v6218 = vld [vmem:[%s6176 + $0x148] sm:$0xff]
    %v6219 = vld [vmem:[%s6176 + $0x150] sm:$0xff]
    %v6220 = vld [vmem:[%s6176 + $0x158] sm:$0xff]
    %v6221 = vld [vmem:[%s6176 + $0x160] sm:$0xff]
    %v6222 = vld [vmem:[%s6176 + $0x168] sm:$0xff]
    %v6223 = vld [vmem:[%s6176 + $0x170] sm:$0xff]
    %v6224 = vld [vmem:[%s6176 + $0x178] sm:$0xff]
    %v6225 = vld [vmem:[%s6176 + $0x180] sm:$0xff]
    %v6226 = vld [vmem:[%s6176 + $0x188] sm:$0xff]
    %v6227 = vld [vmem:[%s6176 + $0x190] sm:$0xff]
    %v6228 = vld [vmem:[%s6176 + $0x198] sm:$0xff]
    %v6229 = vld [vmem:[%s6176 + $0x1a0] sm:$0xff]
    %v6230 = vld [vmem:[%s6176 + $0x1a8] sm:$0xff]
    %v6231 = vld [vmem:[%s6176 + $0x1b0] sm:$0xff]
    %v6232 = vld [vmem:[%s6176 + $0x1b8] sm:$0xff]
    %v6233 = vld [vmem:[%s6176 + $0x1c0] sm:$0xff]
    %v6234 = vld [vmem:[%s6176 + $0x1c8] sm:$0xff]
    %v6235 = vld [vmem:[%s6176 + $0x1d0] sm:$0xff]
    %v6236 = vld [vmem:[%s6176 + $0x1d8] sm:$0xff]
    %v6237 = vld [vmem:[%s6176 + $0x1e0] sm:$0xff]
    %v6238 = vld [vmem:[%s6176 + $0x1e8] sm:$0xff]
    %v6239 = vld [vmem:[%s6176 + $0x1f0] sm:$0xff]
    %v6240 = vld [vmem:[%s6176 + $0x1f8] sm:$0xff]
    %v6241 = vld [vmem:[%s6176 + $0x200] sm:$0xff]
    %v6242 = vld [vmem:[%s6176 + $0x208] sm:$0xff]
    %v6243 = vld [vmem:[%s6176 + $0x210] sm:$0xff]
    %v6244 = vld [vmem:[%s6176 + $0x218] sm:$0xff]
    %v6245 = vld [vmem:[%s6176 + $0x220] sm:$0xff]
    %v6246 = vld [vmem:[%s6176 + $0x228] sm:$0xff]
    %v6247 = vld [vmem:[%s6176 + $0x230] sm:$0xff]
    %v6248 = vld [vmem:[%s6176 + $0x238] sm:$0xff]
    %v6249 = vld [vmem:[%s6176 + $0x240] sm:$0xff]
    %v6250 = vld [vmem:[%s6176 + $0x248] sm:$0xff]
    %v6251 = vld [vmem:[%s6176 + $0x250] sm:$0xff]
    %v6252 = vld [vmem:[%s6176 + $0x258] sm:$0xff]
    %v6253 = vld [vmem:[%s6176 + $0x260] sm:$0xff]
    %v6254 = vld [vmem:[%s6176 + $0x268] sm:$0xff]
    %v6255 = vld [vmem:[%s6176 + $0x270] sm:$0xff]
    %v6256 = vld [vmem:[%s6176 + $0x278] sm:$0xff]
    %v6257 = vld [vmem:[%s6176 + $0x280] sm:$0xff]
    %v6258 = vld [vmem:[%s6176 + $0x288] sm:$0xff]
    %v6259 = vld [vmem:[%s6176 + $0x290] sm:$0xff]
    %v6260 = vld [vmem:[%s6176 + $0x298] sm:$0xff]
    %v6261 = vld [vmem:[%s6176 + $0x2a0] sm:$0xff]
    %v6262 = vld [vmem:[%s6176 + $0x2a8] sm:$0xff]
    %v6263 = vld [vmem:[%s6176 + $0x2b0] sm:$0xff]
    %v6264 = vld [vmem:[%s6176 + $0x2b8] sm:$0xff]
    %v6265 = vld [vmem:[%s6176 + $0x2c0] sm:$0xff]
    %v6266 = vld [vmem:[%s6176 + $0x2c8] sm:$0xff]
    %v6267 = vld [vmem:[%s6176 + $0x2d0] sm:$0xff]
    %v6268 = vld [vmem:[%s6176 + $0x2d8] sm:$0xff]
    %v6269 = vld [vmem:[%s6176 + $0x2e0] sm:$0xff]
    %v6270 = vld [vmem:[%s6176 + $0x2e8] sm:$0xff]
    %v6271 = vld [vmem:[%s6176 + $0x2f0] sm:$0xff]
    %v6272 = vld [vmem:[%s6176 + $0x2f8] sm:$0xff]
    %v6273 = vld [vmem:[%s6176 + $0x300] sm:$0xff]
    %v6274 = vld [vmem:[%s6176 + $0x308] sm:$0xff]
    %v6275 = vld [vmem:[%s6176 + $0x310] sm:$0xff]
    %v6276 = vld [vmem:[%s6176 + $0x318] sm:$0xff]
    %v6277 = vld [vmem:[%s6176 + $0x320] sm:$0xff]
    %v6278 = vld [vmem:[%s6176 + $0x328] sm:$0xff]
    %v6279 = vld [vmem:[%s6176 + $0x330] sm:$0xff]
    %v6280 = vld [vmem:[%s6176 + $0x338] sm:$0xff]
    %v6281 = vld [vmem:[%s6176 + $0x340] sm:$0xff]
    %v6282 = vld [vmem:[%s6176 + $0x348] sm:$0xff]
    %v6283 = vld [vmem:[%s6176 + $0x350] sm:$0xff]
    %v6284 = vld [vmem:[%s6176 + $0x358] sm:$0xff]
    %v6285 = vld [vmem:[%s6176 + $0x360] sm:$0xff]
    %v6286 = vld [vmem:[%s6176 + $0x368] sm:$0xff]
    %v6287 = vld [vmem:[%s6176 + $0x370] sm:$0xff]
    %v6288 = vld [vmem:[%s6176 + $0x378] sm:$0xff]
    %v6289 = vld [vmem:[%s6176 + $0x380] sm:$0xff]
    %v6290 = vld [vmem:[%s6176 + $0x388] sm:$0xff]
    %v6291 = vld [vmem:[%s6176 + $0x390] sm:$0xff]
    %v6292 = vld [vmem:[%s6176 + $0x398] sm:$0xff]
    %v6293 = vld [vmem:[%s6176 + $0x3a0] sm:$0xff]
    %v6294 = vld [vmem:[%s6176 + $0x3a8] sm:$0xff]
    %v6295 = vld [vmem:[%s6176 + $0x3b0] sm:$0xff]
    %v6296 = vld [vmem:[%s6176 + $0x3b8] sm:$0xff]
    %v6297 = vld [vmem:[%s6176 + $0x3c0] sm:$0xff]
    %v6298 = vld [vmem:[%s6176 + $0x3c8] sm:$0xff]
    %v6299 = vld [vmem:[%s6176 + $0x3d0] sm:$0xff]
    %v6300 = vld [vmem:[%s6176 + $0x3d8] sm:$0xff]
    %v6301 = vld [vmem:[%s6176 + $0x3e0] sm:$0xff]
    %v6302 = vld [vmem:[%s6176 + $0x3e8] sm:$0xff]
    %v6303 = vld [vmem:[%s6176 + $0x3f0] sm:$0xff]
    %v6304 = vld [vmem:[%s6176 + $0x3f8] sm:$0xff]
    %6305 = vmatprep.subr.mxu0 %v6178
    %6306 = vmatpush1.msra.mxu0 %v6177
    %6307 = vmatprep.subr.mxu0 %v6180
    %6308 = vmatpush1.msra.mxu0 %v6179
    %6309 = vmatprep.subr.mxu0 %v6182
    %6310 = vmatpush1.msra.mxu0 %v6181
    %6311 = vmatprep.subr.mxu0 %v6184
    %6312 = vmatpush1.msra.mxu0 %v6183
    %6313 = vmatprep.subr.mxu0 %v6186
    %6314 = vmatpush1.msra.mxu0 %v6185
    %6315 = vmatprep.subr.mxu0 %v6188
    %6316 = vmatpush1.msra.mxu0 %v6187
    %6317 = vmatprep.subr.mxu0 %v6190
    %6318 = vmatpush1.msra.mxu0 %v6189
    %6319 = vmatprep.subr.mxu0 %v6192
    %6320 = vmatpush1.msra.mxu0 %v6191
    %6321 = vmatprep.subr.mxu0 %v6194
    %6322 = vmatpush1.msra.mxu0 %v6193
    %6323 = vmatprep.subr.mxu0 %v6196
    %6324 = vmatpush1.msra.mxu0 %v6195
    %6325 = vmatprep.subr.mxu0 %v6198
    %6326 = vmatpush1.msra.mxu0 %v6197
    %6327 = vmatprep.subr.mxu0 %v6200
    %6328 = vmatpush1.msra.mxu0 %v6199
    %6329 = vmatprep.subr.mxu0 %v6202
    %6330 = vmatpush1.msra.mxu0 %v6201
    %6331 = vmatprep.subr.mxu0 %v6204
    %6332 = vmatpush1.msra.mxu0 %v6203
    %6333 = vmatprep.subr.mxu0 %v6206
    %6334 = vmatpush1.msra.mxu0 %v6205
    %6335 = vmatprep.subr.mxu0 %v6208
    %6336 = vmatpush1.msra.mxu0 %v6207
    %6337 = vmatprep.subr.mxu0 %v6210
    %6338 = vmatpush1.msra.mxu0 %v6209
    %6339 = vmatprep.subr.mxu0 %v6212
    %6340 = vmatpush1.msra.mxu0 %v6211
    %6341 = vmatprep.subr.mxu0 %v6214
    %6342 = vmatpush1.msra.mxu0 %v6213
    %6343 = vmatprep.subr.mxu0 %v6216
    %6344 = vmatpush1.msra.mxu0 %v6215
    %6345 = vmatprep.subr.mxu0 %v6218
    %6346 = vmatpush1.msra.mxu0 %v6217
    %6347 = vmatprep.subr.mxu0 %v6220
    %6348 = vmatpush1.msra.mxu0 %v6219
    %6349 = vmatprep.subr.mxu0 %v6222
    %6350 = vmatpush1.msra.mxu0 %v6221
    %6351 = vmatprep.subr.mxu0 %v6224
    %6352 = vmatpush1.msra.mxu0 %v6223
    %6353 = vmatprep.subr.mxu0 %v6226
    %6354 = vmatpush1.msra.mxu0 %v6225
    %6355 = vmatprep.subr.mxu0 %v6228
    %6356 = vmatpush1.msra.mxu0 %v6227
    %6357 = vmatprep.subr.mxu0 %v6230
    %6358 = vmatpush1.msra.mxu0 %v6229
    %6359 = vmatprep.subr.mxu0 %v6232
    %6360 = vmatpush1.msra.mxu0 %v6231
    %6361 = vmatprep.subr.mxu0 %v6234
    %6362 = vmatpush1.msra.mxu0 %v6233
    %6363 = vmatprep.subr.mxu0 %v6236
    %6364 = vmatpush1.msra.mxu0 %v6235
    %6365 = vmatprep.subr.mxu0 %v6238
    %6366 = vmatpush1.msra.mxu0 %v6237
    %6367 = vmatprep.subr.mxu0 %v6240
    %6368 = vmatpush1.msra.mxu0 %v6239
    %6369 = vmatprep.mubr.f32.mxu0 %v6103
    %6370 = vmatmul.mubr.f32.gmra.mrb[0].mxu0 %v6101
    %v6371 = vpop.f32.mrb[0].mxu0
    %v6372 = vadd.f32 0.0, %v6371
    %v6373 = vpop.f32.mrb[0].mxu0
    %v6374 = vadd.f32 0.0, %v6373
    %6375 = vdwg.mxu0
    %6376 = vmatprep.subr.mxu0 %v6242
    %6377 = vmatpush1.msra.mxu0 %v6241
    %6378 = vmatprep.subr.mxu0 %v6244
    %6379 = vmatpush1.msra.mxu0 %v6243
    %6380 = vmatprep.subr.mxu0 %v6246
    %6381 = vmatpush1.msra.mxu0 %v6245
    %6382 = vmatprep.subr.mxu0 %v6248
    %6383 = vmatpush1.msra.mxu0 %v6247
    %6384 = vmatprep.subr.mxu0 %v6250
    %6385 = vmatpush1.msra.mxu0 %v6249
    %6386 = vmatprep.subr.mxu0 %v6252
    %6387 = vmatpush1.msra.mxu0 %v6251
    %6388 = vmatprep.subr.mxu0 %v6254
    %6389 = vmatpush1.msra.mxu0 %v6253
    %6390 = vmatprep.subr.mxu0 %v6256
    %6391 = vmatpush1.msra.mxu0 %v6255
    %6392 = vmatprep.subr.mxu0 %v6258
    %6393 = vmatpush1.msra.mxu0 %v6257
    %6394 = vmatprep.subr.mxu0 %v6260
    %6395 = vmatpush1.msra.mxu0 %v6259
    %6396 = vmatprep.subr.mxu0 %v6262
    %6397 = vmatpush1.msra.mxu0 %v6261
    %6398 = vmatprep.subr.mxu0 %v6264
    %6399 = vmatpush1.msra.mxu0 %v6263
    %6400 = vmatprep.subr.mxu0 %v6266
    %6401 = vmatpush1.msra.mxu0 %v6265
    %6402 = vmatprep.subr.mxu0 %v6268
    %6403 = vmatpush1.msra.mxu0 %v6267
    %6404 = vmatprep.subr.mxu0 %v6270
    %6405 = vmatpush1.msra.mxu0 %v6269
    %6406 = vmatprep.subr.mxu0 %v6272
    %6407 = vmatpush1.msra.mxu0 %v6271
    %6408 = vmatprep.subr.mxu0 %v6274
    %6409 = vmatpush1.msra.mxu0 %v6273
    %6410 = vmatprep.subr.mxu0 %v6276
    %6411 = vmatpush1.msra.mxu0 %v6275
    %6412 = vmatprep.subr.mxu0 %v6278
    %6413 = vmatpush1.msra.mxu0 %v6277
    %6414 = vmatprep.subr.mxu0 %v6280
    %6415 = vmatpush1.msra.mxu0 %v6279
    %6416 = vmatprep.subr.mxu0 %v6282
    %6417 = vmatpush1.msra.mxu0 %v6281
    %6418 = vmatprep.subr.mxu0 %v6284
    %6419 = vmatpush1.msra.mxu0 %v6283
    %6420 = vmatprep.subr.mxu0 %v6286
    %6421 = vmatpush1.msra.mxu0 %v6285
    %6422 = vmatprep.subr.mxu0 %v6288
    %6423 = vmatpush1.msra.mxu0 %v6287
    %6424 = vmatprep.subr.mxu0 %v6290
    %6425 = vmatpush1.msra.mxu0 %v6289
    %6426 = vmatprep.subr.mxu0 %v6292
    %6427 = vmatpush1.msra.mxu0 %v6291
    %6428 = vmatprep.subr.mxu0 %v6294
    %6429 = vmatpush1.msra.mxu0 %v6293
    %6430 = vmatprep.subr.mxu0 %v6296
    %6431 = vmatpush1.msra.mxu0 %v6295
    %6432 = vmatprep.subr.mxu0 %v6298
    %6433 = vmatpush1.msra.mxu0 %v6297
    %6434 = vmatprep.subr.mxu0 %v6300
    %6435 = vmatpush1.msra.mxu0 %v6299
    %6436 = vmatprep.subr.mxu0 %v6302
    %6437 = vmatpush1.msra.mxu0 %v6301
    %6438 = vmatprep.subr.mxu0 %v6304
    %6439 = vmatpush1.msra.mxu0 %v6303
    %6440 = vmatprep.mubr.f32.mxu0 %v6174
    %6441 = vmatmul.mubr.f32.gmra.mrb[0].mxu0 %v6172
    %v6442 = vpop.f32.mrb[0].mxu0
    %v6443 = vadd.f32 %v6372, %v6442
    %v6444 = vpop.f32.mrb[0].mxu0
    %v6445 = vadd.f32 %v6374, %v6444
    %6446 = vdwg.mxu0
    %6447 = vmatprep.subr.mxu0 %v5902
    %6448 = vmatpush1.msra.mxu0 %v5901
    %6449 = vmatprep.subr.mxu0 %v5904
    %6450 = vmatpush1.msra.mxu0 %v5903
    %6451 = vmatprep.subr.mxu0 %v5906
    %6452 = vmatpush1.msra.mxu0 %v5905
    %6453 = vmatprep.subr.mxu0 %v5908
    %6454 = vmatpush1.msra.mxu0 %v5907
    %6455 = vmatprep.subr.mxu0 %v5910
    %6456 = vmatpush1.msra.mxu0 %v5909
    %6457 = vmatprep.subr.mxu0 %v5912
    %6458 = vmatpush1.msra.mxu0 %v5911
    %6459 = vmatprep.subr.mxu0 %v5914
    %6460 = vmatpush1.msra.mxu0 %v5913
    %6461 = vmatprep.subr.mxu0 %v5916
    %6462 = vmatpush1.msra.mxu0 %v5915
    %6463 = vmatprep.subr.mxu0 %v5918
    %6464 = vmatpush1.msra.mxu0 %v5917
    %6465 = vmatprep.subr.mxu0 %v5920
    %6466 = vmatpush1.msra.mxu0 %v5919
    %6467 = vmatprep.subr.mxu0 %v5922
    %6468 = vmatpush1.msra.mxu0 %v5921
    %6469 = vmatprep.subr.mxu0 %v5924
    %6470 = vmatpush1.msra.mxu0 %v5923
    %6471 = vmatprep.subr.mxu0 %v5926
    %6472 = vmatpush1.msra.mxu0 %v5925
    %6473 = vmatprep.subr.mxu0 %v5928
    %6474 = vmatpush1.msra.mxu0 %v5927
    %6475 = vmatprep.subr.mxu0 %v5930
    %6476 = vmatpush1.msra.mxu0 %v5929
    %6477 = vmatprep.subr.mxu0 %v5932
    %6478 = vmatpush1.msra.mxu0 %v5931
    %6479 = vmatprep.subr.mxu0 %v5934
    %6480 = vmatpush1.msra.mxu0 %v5933
    %6481 = vmatprep.subr.mxu0 %v5936
    %6482 = vmatpush1.msra.mxu0 %v5935
    %6483 = vmatprep.subr.mxu0 %v5938
    %6484 = vmatpush1.msra.mxu0 %v5937
    %6485 = vmatprep.subr.mxu0 %v5940
    %6486 = vmatpush1.msra.mxu0 %v5939
    %6487 = vmatprep.subr.mxu0 %v5942
    %6488 = vmatpush1.msra.mxu0 %v5941
    %6489 = vmatprep.subr.mxu0 %v5944
    %6490 = vmatpush1.msra.mxu0 %v5943
    %6491 = vmatprep.subr.mxu0 %v5946
    %6492 = vmatpush1.msra.mxu0 %v5945
    %6493 = vmatprep.subr.mxu0 %v5948
    %6494 = vmatpush1.msra.mxu0 %v5947
    %6495 = vmatprep.subr.mxu0 %v5950
    %6496 = vmatpush1.msra.mxu0 %v5949
    %6497 = vmatprep.subr.mxu0 %v5952
    %6498 = vmatpush1.msra.mxu0 %v5951
    %6499 = vmatprep.subr.mxu0 %v5954
    %6500 = vmatpush1.msra.mxu0 %v5953
    %6501 = vmatprep.subr.mxu0 %v5956
    %6502 = vmatpush1.msra.mxu0 %v5955
    %6503 = vmatprep.subr.mxu0 %v5958
    %6504 = vmatpush1.msra.mxu0 %v5957
    %6505 = vmatprep.subr.mxu0 %v5960
    %6506 = vmatpush1.msra.mxu0 %v5959
    %6507 = vmatprep.subr.mxu0 %v5962
    %6508 = vmatpush1.msra.mxu0 %v5961
    %6509 = vmatprep.subr.mxu0 %v5964
    %6510 = vmatpush1.msra.mxu0 %v5963
    %6511 = vmatprep.mubr.f32.mxu0 %v5828
    %6512 = vmatmul.mubr.f32.gmra.mrb[0].mxu0 %v5826
    %v6513 = vpop.f32.mrb[0].mxu0
    %v6514 = vadd.f32 %v6443, %v6513
    %v6515 = vpop.f32.mrb[0].mxu0
    %v6516 = vadd.f32 %v6445, %v6515
    %6517 = vdwg.mxu0
    %6518 = vmatprep.subr.mxu0 %v5966
    %6519 = vmatpush1.msra.mxu0 %v5965
    %6520 = vmatprep.subr.mxu0 %v5968
    %6521 = vmatpush1.msra.mxu0 %v5967
    %6522 = vmatprep.subr.mxu0 %v5970
    %6523 = vmatpush1.msra.mxu0 %v5969
    %6524 = vmatprep.subr.mxu0 %v5972
    %6525 = vmatpush1.msra.mxu0 %v5971
    %6526 = vmatprep.subr.mxu0 %v5974
    %6527 = vmatpush1.msra.mxu0 %v5973
    %6528 = vmatprep.subr.mxu0 %v5976
    %6529 = vmatpush1.msra.mxu0 %v5975
    %6530 = vmatprep.subr.mxu0 %v5978
    %6531 = vmatpush1.msra.mxu0 %v5977
    %6532 = vmatprep.subr.mxu0 %v5980
    %6533 = vmatpush1.msra.mxu0 %v5979
    %6534 = vmatprep.subr.mxu0 %v5982
    %6535 = vmatpush1.msra.mxu0 %v5981
    %6536 = vmatprep.subr.mxu0 %v5984
    %6537 = vmatpush1.msra.mxu0 %v5983
    %6538 = vmatprep.subr.mxu0 %v5986
    %6539 = vmatpush1.msra.mxu0 %v5985
    %6540 = vmatprep.subr.mxu0 %v5988
    %6541 = vmatpush1.msra.mxu0 %v5987
    %6542 = vmatprep.subr.mxu0 %v5990
    %6543 = vmatpush1.msra.mxu0 %v5989
    %6544 = vmatprep.subr.mxu0 %v5992
    %6545 = vmatpush1.msra.mxu0 %v5991
    %6546 = vmatprep.subr.mxu0 %v5994
    %6547 = vmatpush1.msra.mxu0 %v5993
    %6548 = vmatprep.subr.mxu0 %v5996
    %6549 = vmatpush1.msra.mxu0 %v5995
    %6550 = vmatprep.subr.mxu0 %v5998
    %6551 = vmatpush1.msra.mxu0 %v5997
    %6552 = vmatprep.subr.mxu0 %v6000
    %6553 = vmatpush1.msra.mxu0 %v5999
    %6554 = vmatprep.subr.mxu0 %v6002
    %6555 = vmatpush1.msra.mxu0 %v6001
    %6556 = vmatprep.subr.mxu0 %v6004
    %6557 = vmatpush1.msra.mxu0 %v6003
    %6558 = vmatprep.subr.mxu0 %v6006
    %6559 = vmatpush1.msra.mxu0 %v6005
    %6560 = vmatprep.subr.mxu0 %v6008
    %6561 = vmatpush1.msra.mxu0 %v6007
    %6562 = vmatprep.subr.mxu0 %v6010
    %6563 = vmatpush1.msra.mxu0 %v6009
    %6564 = vmatprep.subr.mxu0 %v6012
    %6565 = vmatpush1.msra.mxu0 %v6011
    %6566 = vmatprep.subr.mxu0 %v6014
    %6567 = vmatpush1.msra.mxu0 %v6013
    %6568 = vmatprep.subr.mxu0 %v6016
    %6569 = vmatpush1.msra.mxu0 %v6015
    %6570 = vmatprep.subr.mxu0 %v6018
    %6571 = vmatpush1.msra.mxu0 %v6017
    %6572 = vmatprep.subr.mxu0 %v6020
    %6573 = vmatpush1.msra.mxu0 %v6019
    %6574 = vmatprep.subr.mxu0 %v6022
    %6575 = vmatpush1.msra.mxu0 %v6021
    %6576 = vmatprep.subr.mxu0 %v6024
    %6577 = vmatpush1.msra.mxu0 %v6023
    %6578 = vmatprep.subr.mxu0 %v6026
    %6579 = vmatpush1.msra.mxu0 %v6025
    %6580 = vmatprep.subr.mxu0 %v6028
    %6581 = vmatpush1.msra.mxu0 %v6027
    %6582 = vmatprep.mubr.f32.mxu0 %v5899
    %6583 = vmatmul.mubr.f32.gmra.mrb[0].mxu0 %v5897
    %v6584 = vpop.f32.mrb[0].mxu0
    %v6585 = vadd.f32 %v6514, %v6584
    %v6586 = vpop.f32.mrb[0].mxu0
    %v6587 = vadd.f32 %v6516, %v6586
    %6588 = vdwg.mxu0
    %s6589 = scalar_lea.vmem [#allocation32], 16
    %v6590 = vld [vmem:[%s6589] sm:$0xff]
    %v6592 = vsel %vm5755, %v6590, 0
    %6594 = vmatprep.subr.mxu0 %v5751
    %6595 = vmatpush1.msra.mxu0 %v5750
    %6596 = vmatprep.subr.mxu0 0.0
    %6597 = vmatpush1.msra.mxu0 0.0
    %6598 = vmatprep.subr.mxu0 0.0
    %6599 = vmatpush1.msra.mxu0 0.0
    %6600 = vmatprep.subr.mxu0 0.0
    %6601 = vmatpush1.msra.mxu0 0.0
    %6602 = vmatprep.subr.mxu0 0.0
    %6603 = vmatpush1.msra.mxu0 0.0
    %6604 = vmatprep.subr.mxu0 0.0
    %6605 = vmatpush1.msra.mxu0 0.0
    %6606 = vmatprep.subr.mxu0 0.0
    %6607 = vmatpush1.msra.mxu0 0.0
    %6608 = vmatprep.subr.mxu0 0.0
    %6609 = vmatpush1.msra.mxu0 0.0
    %6610 = vmatprep.subr.mxu0 0.0
    %6611 = vmatpush1.msra.mxu0 0.0
    %6612 = vmatprep.subr.mxu0 0.0
    %6613 = vmatpush1.msra.mxu0 0.0
    %6614 = vmatprep.subr.mxu0 0.0
    %6615 = vmatpush1.msra.mxu0 0.0
    %6616 = vmatprep.subr.mxu0 0.0
    %6617 = vmatpush1.msra.mxu0 0.0
    %6618 = vmatprep.subr.mxu0 0.0
    %6619 = vmatpush1.msra.mxu0 0.0
    %6620 = vmatprep.subr.mxu0 0.0
    %6621 = vmatpush1.msra.mxu0 0.0
    %6622 = vmatprep.subr.mxu0 0.0
    %6623 = vmatpush1.msra.mxu0 0.0
    %6624 = vmatprep.subr.mxu0 0.0
    %6625 = vmatpush1.msra.mxu0 0.0
    %6626 = vmatprep.subr.mxu0 0.0
    %6627 = vmatpush1.msra.mxu0 0.0
    %6628 = vmatprep.subr.mxu0 0.0
    %6629 = vmatpush1.msra.mxu0 0.0
    %6630 = vmatprep.subr.mxu0 0.0
    %6631 = vmatpush1.msra.mxu0 0.0
    %6632 = vmatprep.subr.mxu0 0.0
    %6633 = vmatpush1.msra.mxu0 0.0
    %6634 = vmatprep.subr.mxu0 0.0
    %6635 = vmatpush1.msra.mxu0 0.0
    %6636 = vmatprep.subr.mxu0 0.0
    %6637 = vmatpush1.msra.mxu0 0.0
    %6638 = vmatprep.subr.mxu0 0.0
    %6639 = vmatpush1.msra.mxu0 0.0
    %6640 = vmatprep.subr.mxu0 0.0
    %6641 = vmatpush1.msra.mxu0 0.0
    %6642 = vmatprep.subr.mxu0 0.0
    %6643 = vmatpush1.msra.mxu0 0.0
    %6644 = vmatprep.subr.mxu0 0.0
    %6645 = vmatpush1.msra.mxu0 0.0
    %6646 = vmatprep.subr.mxu0 0.0
    %6647 = vmatpush1.msra.mxu0 0.0
    %6648 = vmatprep.subr.mxu0 0.0
    %6649 = vmatpush1.msra.mxu0 0.0
    %6650 = vmatprep.subr.mxu0 0.0
    %6651 = vmatpush1.msra.mxu0 0.0
    %6652 = vmatprep.subr.mxu0 0.0
    %6653 = vmatpush1.msra.mxu0 0.0
    %6654 = vmatprep.subr.mxu0 0.0
    %6655 = vmatpush1.msra.mxu0 0.0
    %6656 = vmatprep.subr.mxu0 0.0
    %6657 = vmatpush1.msra.mxu0 0.0
    %6658 = vmatprep.mubr.f32.mxu0 0.0
    %6659 = vmatmul.mubr.f32.gmra.mrb[0].mxu0 %v6592
    %v6660 = vpop.f32.mrb[0].mxu0
    %v6661 = vadd.f32 0.0, %v6660
    %v6662 = vpop.f32.mrb[0].mxu0
    %v6663 = vadd.f32 0.0, %v6662
    %6664 = vdwg.mxu0
    %6665 = vmatprep.subr.mxu0 %v5753
    %6666 = vmatpush1.msra.mxu0 %v5752
    %6667 = vmatprep.subr.mxu0 0.0
    %6668 = vmatpush1.msra.mxu0 0.0
    %6669 = vmatprep.subr.mxu0 0.0
    %6670 = vmatpush1.msra.mxu0 0.0
    %6671 = vmatprep.subr.mxu0 0.0
    %6672 = vmatpush1.msra.mxu0 0.0
    %6673 = vmatprep.subr.mxu0 0.0
    %6674 = vmatpush1.msra.mxu0 0.0
    %6675 = vmatprep.subr.mxu0 0.0
    %6676 = vmatpush1.msra.mxu0 0.0
    %6677 = vmatprep.subr.mxu0 0.0
    %6678 = vmatpush1.msra.mxu0 0.0
    %6679 = vmatprep.subr.mxu0 0.0
    %6680 = vmatpush1.msra.mxu0 0.0
    %6681 = vmatprep.subr.mxu0 0.0
    %6682 = vmatpush1.msra.mxu0 0.0
    %6683 = vmatprep.subr.mxu0 0.0
    %6684 = vmatpush1.msra.mxu0 0.0
    %6685 = vmatprep.subr.mxu0 0.0
    %6686 = vmatpush1.msra.mxu0 0.0
    %6687 = vmatprep.subr.mxu0 0.0
    %6688 = vmatpush1.msra.mxu0 0.0
    %6689 = vmatprep.subr.mxu0 0.0
    %6690 = vmatpush1.msra.mxu0 0.0
    %6691 = vmatprep.subr.mxu0 0.0
    %6692 = vmatpush1.msra.mxu0 0.0
    %6693 = vmatprep.subr.mxu0 0.0
    %6694 = vmatpush1.msra.mxu0 0.0
    %6695 = vmatprep.subr.mxu0 0.0
    %6696 = vmatpush1.msra.mxu0 0.0
    %6697 = vmatprep.subr.mxu0 0.0
    %6698 = vmatpush1.msra.mxu0 0.0
    %6699 = vmatprep.subr.mxu0 0.0
    %6700 = vmatpush1.msra.mxu0 0.0
    %6701 = vmatprep.subr.mxu0 0.0
    %6702 = vmatpush1.msra.mxu0 0.0
    %6703 = vmatprep.subr.mxu0 0.0
    %6704 = vmatpush1.msra.mxu0 0.0
    %6705 = vmatprep.subr.mxu0 0.0
    %6706 = vmatpush1.msra.mxu0 0.0
    %6707 = vmatprep.subr.mxu0 0.0
    %6708 = vmatpush1.msra.mxu0 0.0
    %6709 = vmatprep.subr.mxu0 0.0
    %6710 = vmatpush1.msra.mxu0 0.0
    %6711 = vmatprep.subr.mxu0 0.0
    %6712 = vmatpush1.msra.mxu0 0.0
    %6713 = vmatprep.subr.mxu0 0.0
    %6714 = vmatpush1.msra.mxu0 0.0
    %6715 = vmatprep.subr.mxu0 0.0
    %6716 = vmatpush1.msra.mxu0 0.0
    %6717 = vmatprep.subr.mxu0 0.0
    %6718 = vmatpush1.msra.mxu0 0.0
    %6719 = vmatprep.subr.mxu0 0.0
    %6720 = vmatpush1.msra.mxu0 0.0
    %6721 = vmatprep.subr.mxu0 0.0
    %6722 = vmatpush1.msra.mxu0 0.0
    %6723 = vmatprep.subr.mxu0 0.0
    %6724 = vmatpush1.msra.mxu0 0.0
    %6725 = vmatprep.subr.mxu0 0.0
    %6726 = vmatpush1.msra.mxu0 0.0
    %6727 = vmatprep.subr.mxu0 0.0
    %6728 = vmatpush1.msra.mxu0 0.0
    %6729 = vmatprep.mubr.f32.mxu0 0.0
    %6730 = vmatmul.mubr.f32.gmra.mrb[0].mxu0 %v6592
    %v6731 = vpop.f32.mrb[0].mxu0
    %v6732 = vadd.f32 0.0, %v6731
    %v6733 = vpop.f32.mrb[0].mxu0
    %v6734 = vadd.f32 0.0, %v6733
    %6735 = vdwg.mxu0
    %s6736 = scalar_lea.vmem [#allocation34], 2048
    %v6737 = vld [vmem:[%s6736] sm:$0xff]
    %v6738 = vld [vmem:[%s6736 + $0x8] sm:$0xff]
    %v6739 = vld [vmem:[%s6736 + $0x10] sm:$0xff]
    %v6740 = vld [vmem:[%s6736 + $0x18] sm:$0xff]
    %v6741 = vld [vmem:[%s6736 + $0x20] sm:$0xff]
    %v6742 = vld [vmem:[%s6736 + $0x28] sm:$0xff]
    %v6743 = vld [vmem:[%s6736 + $0x30] sm:$0xff]
    %v6744 = vld [vmem:[%s6736 + $0x38] sm:$0xff]
    %v6745 = vld [vmem:[%s6736 + $0x40] sm:$0xff]
    %v6746 = vld [vmem:[%s6736 + $0x48] sm:$0xff]
    %v6747 = vld [vmem:[%s6736 + $0x50] sm:$0xff]
    %v6748 = vld [vmem:[%s6736 + $0x58] sm:$0xff]
    %v6749 = vld [vmem:[%s6736 + $0x60] sm:$0xff]
    %v6750 = vld [vmem:[%s6736 + $0x68] sm:$0xff]
    %v6751 = vld [vmem:[%s6736 + $0x70] sm:$0xff]
    %v6752 = vld [vmem:[%s6736 + $0x78] sm:$0xff]
    %v6753 = vld [vmem:[%s6736 + $0x80] sm:$0xff]
    %v6754 = vld [vmem:[%s6736 + $0x88] sm:$0xff]
    %v6755 = vld [vmem:[%s6736 + $0x90] sm:$0xff]
    %v6756 = vld [vmem:[%s6736 + $0x98] sm:$0xff]
    %v6757 = vld [vmem:[%s6736 + $0xa0] sm:$0xff]
    %v6758 = vld [vmem:[%s6736 + $0xa8] sm:$0xff]
    %v6759 = vld [vmem:[%s6736 + $0xb0] sm:$0xff]
    %v6760 = vld [vmem:[%s6736 + $0xb8] sm:$0xff]
    %v6761 = vld [vmem:[%s6736 + $0xc0] sm:$0xff]
    %v6762 = vld [vmem:[%s6736 + $0xc8] sm:$0xff]
    %v6763 = vld [vmem:[%s6736 + $0xd0] sm:$0xff]
    %v6764 = vld [vmem:[%s6736 + $0xd8] sm:$0xff]
    %v6765 = vld [vmem:[%s6736 + $0xe0] sm:$0xff]
    %v6766 = vld [vmem:[%s6736 + $0xe8] sm:$0xff]
    %v6767 = vld [vmem:[%s6736 + $0xf0] sm:$0xff]
    %v6768 = vld [vmem:[%s6736 + $0xf8] sm:$0xff]
    %v6769 = vld [vmem:[%s6736 + $0x100] sm:$0xff]
    %v6770 = vld [vmem:[%s6736 + $0x108] sm:$0xff]
    %v6771 = vld [vmem:[%s6736 + $0x110] sm:$0xff]
    %v6772 = vld [vmem:[%s6736 + $0x118] sm:$0xff]
    %v6773 = vld [vmem:[%s6736 + $0x120] sm:$0xff]
    %v6774 = vld [vmem:[%s6736 + $0x128] sm:$0xff]
    %v6775 = vld [vmem:[%s6736 + $0x130] sm:$0xff]
    %v6776 = vld [vmem:[%s6736 + $0x138] sm:$0xff]
    %v6777 = vld [vmem:[%s6736 + $0x140] sm:$0xff]
    %v6778 = vld [vmem:[%s6736 + $0x148] sm:$0xff]
    %v6779 = vld [vmem:[%s6736 + $0x150] sm:$0xff]
    %v6780 = vld [vmem:[%s6736 + $0x158] sm:$0xff]
    %v6781 = vld [vmem:[%s6736 + $0x160] sm:$0xff]
    %v6782 = vld [vmem:[%s6736 + $0x168] sm:$0xff]
    %v6783 = vld [vmem:[%s6736 + $0x170] sm:$0xff]
    %v6784 = vld [vmem:[%s6736 + $0x178] sm:$0xff]
    %v6785 = vld [vmem:[%s6736 + $0x180] sm:$0xff]
    %v6786 = vld [vmem:[%s6736 + $0x188] sm:$0xff]
    %v6787 = vld [vmem:[%s6736 + $0x190] sm:$0xff]
    %v6788 = vld [vmem:[%s6736 + $0x198] sm:$0xff]
    %v6789 = vld [vmem:[%s6736 + $0x1a0] sm:$0xff]
    %v6790 = vld [vmem:[%s6736 + $0x1a8] sm:$0xff]
    %v6791 = vld [vmem:[%s6736 + $0x1b0] sm:$0xff]
    %v6792 = vld [vmem:[%s6736 + $0x1b8] sm:$0xff]
    %v6793 = vld [vmem:[%s6736 + $0x1c0] sm:$0xff]
    %v6794 = vld [vmem:[%s6736 + $0x1c8] sm:$0xff]
    %v6795 = vld [vmem:[%s6736 + $0x1d0] sm:$0xff]
    %v6796 = vld [vmem:[%s6736 + $0x1d8] sm:$0xff]
    %v6797 = vld [vmem:[%s6736 + $0x1e0] sm:$0xff]
    %v6798 = vld [vmem:[%s6736 + $0x1e8] sm:$0xff]
    %v6799 = vld [vmem:[%s6736 + $0x1f0] sm:$0xff]
    %v6800 = vld [vmem:[%s6736 + $0x1f8] sm:$0xff]
    %v6801 = vld [vmem:[%s6736 + $0x200] sm:$0xff]
    %v6802 = vld [vmem:[%s6736 + $0x208] sm:$0xff]
    %v6803 = vld [vmem:[%s6736 + $0x210] sm:$0xff]
    %v6804 = vld [vmem:[%s6736 + $0x218] sm:$0xff]
    %v6805 = vld [vmem:[%s6736 + $0x220] sm:$0xff]
    %v6806 = vld [vmem:[%s6736 + $0x228] sm:$0xff]
    %v6807 = vld [vmem:[%s6736 + $0x230] sm:$0xff]
    %v6808 = vld [vmem:[%s6736 + $0x238] sm:$0xff]
    %v6809 = vld [vmem:[%s6736 + $0x240] sm:$0xff]
    %v6810 = vld [vmem:[%s6736 + $0x248] sm:$0xff]
    %v6811 = vld [vmem:[%s6736 + $0x250] sm:$0xff]
    %v6812 = vld [vmem:[%s6736 + $0x258] sm:$0xff]
    %v6813 = vld [vmem:[%s6736 + $0x260] sm:$0xff]
    %v6814 = vld [vmem:[%s6736 + $0x268] sm:$0xff]
    %v6815 = vld [vmem:[%s6736 + $0x270] sm:$0xff]
    %v6816 = vld [vmem:[%s6736 + $0x278] sm:$0xff]
    %v6817 = vld [vmem:[%s6736 + $0x280] sm:$0xff]
    %v6818 = vld [vmem:[%s6736 + $0x288] sm:$0xff]
    %v6819 = vld [vmem:[%s6736 + $0x290] sm:$0xff]
    %v6820 = vld [vmem:[%s6736 + $0x298] sm:$0xff]
    %v6821 = vld [vmem:[%s6736 + $0x2a0] sm:$0xff]
    %v6822 = vld [vmem:[%s6736 + $0x2a8] sm:$0xff]
    %v6823 = vld [vmem:[%s6736 + $0x2b0] sm:$0xff]
    %v6824 = vld [vmem:[%s6736 + $0x2b8] sm:$0xff]
    %v6825 = vld [vmem:[%s6736 + $0x2c0] sm:$0xff]
    %v6826 = vld [vmem:[%s6736 + $0x2c8] sm:$0xff]
    %v6827 = vld [vmem:[%s6736 + $0x2d0] sm:$0xff]
    %v6828 = vld [vmem:[%s6736 + $0x2d8] sm:$0xff]
    %v6829 = vld [vmem:[%s6736 + $0x2e0] sm:$0xff]
    %v6830 = vld [vmem:[%s6736 + $0x2e8] sm:$0xff]
    %v6831 = vld [vmem:[%s6736 + $0x2f0] sm:$0xff]
    %v6832 = vld [vmem:[%s6736 + $0x2f8] sm:$0xff]
    %v6833 = vld [vmem:[%s6736 + $0x300] sm:$0xff]
    %v6834 = vld [vmem:[%s6736 + $0x308] sm:$0xff]
    %v6835 = vld [vmem:[%s6736 + $0x310] sm:$0xff]
    %v6836 = vld [vmem:[%s6736 + $0x318] sm:$0xff]
    %v6837 = vld [vmem:[%s6736 + $0x320] sm:$0xff]
    %v6838 = vld [vmem:[%s6736 + $0x328] sm:$0xff]
    %v6839 = vld [vmem:[%s6736 + $0x330] sm:$0xff]
    %v6840 = vld [vmem:[%s6736 + $0x338] sm:$0xff]
    %v6841 = vld [vmem:[%s6736 + $0x340] sm:$0xff]
    %v6842 = vld [vmem:[%s6736 + $0x348] sm:$0xff]
    %v6843 = vld [vmem:[%s6736 + $0x350] sm:$0xff]
    %v6844 = vld [vmem:[%s6736 + $0x358] sm:$0xff]
    %v6845 = vld [vmem:[%s6736 + $0x360] sm:$0xff]
    %v6846 = vld [vmem:[%s6736 + $0x368] sm:$0xff]
    %v6847 = vld [vmem:[%s6736 + $0x370] sm:$0xff]
    %v6848 = vld [vmem:[%s6736 + $0x378] sm:$0xff]
    %v6849 = vld [vmem:[%s6736 + $0x380] sm:$0xff]
    %v6850 = vld [vmem:[%s6736 + $0x388] sm:$0xff]
    %v6851 = vld [vmem:[%s6736 + $0x390] sm:$0xff]
    %v6852 = vld [vmem:[%s6736 + $0x398] sm:$0xff]
    %v6853 = vld [vmem:[%s6736 + $0x3a0] sm:$0xff]
    %v6854 = vld [vmem:[%s6736 + $0x3a8] sm:$0xff]
    %v6855 = vld [vmem:[%s6736 + $0x3b0] sm:$0xff]
    %v6856 = vld [vmem:[%s6736 + $0x3b8] sm:$0xff]
    %v6857 = vld [vmem:[%s6736 + $0x3c0] sm:$0xff]
    %v6858 = vld [vmem:[%s6736 + $0x3c8] sm:$0xff]
    %v6859 = vld [vmem:[%s6736 + $0x3d0] sm:$0xff]
    %v6860 = vld [vmem:[%s6736 + $0x3d8] sm:$0xff]
    %v6861 = vld [vmem:[%s6736 + $0x3e0] sm:$0xff]
    %v6862 = vld [vmem:[%s6736 + $0x3e8] sm:$0xff]
    %v6863 = vld [vmem:[%s6736 + $0x3f0] sm:$0xff]
    %v6864 = vld [vmem:[%s6736 + $0x3f8] sm:$0xff]
    %6865 = vmatprep.subr.mxu0 %v6738
    %6866 = vmatpush1.msra.mxu0 %v6737
    %6867 = vmatprep.subr.mxu0 %v6740
    %6868 = vmatpush1.msra.mxu0 %v6739
    %6869 = vmatprep.subr.mxu0 %v6742
    %6870 = vmatpush1.msra.mxu0 %v6741
    %6871 = vmatprep.subr.mxu0 %v6744
    %6872 = vmatpush1.msra.mxu0 %v6743
    %6873 = vmatprep.subr.mxu0 %v6746
    %6874 = vmatpush1.msra.mxu0 %v6745
    %6875 = vmatprep.subr.mxu0 %v6748
    %6876 = vmatpush1.msra.mxu0 %v6747
    %6877 = vmatprep.subr.mxu0 %v6750
    %6878 = vmatpush1.msra.mxu0 %v6749
    %6879 = vmatprep.subr.mxu0 %v6752
    %6880 = vmatpush1.msra.mxu0 %v6751
    %6881 = vmatprep.subr.mxu0 %v6754
    %6882 = vmatpush1.msra.mxu0 %v6753
    %6883 = vmatprep.subr.mxu0 %v6756
    %6884 = vmatpush1.msra.mxu0 %v6755
    %6885 = vmatprep.subr.mxu0 %v6758
    %6886 = vmatpush1.msra.mxu0 %v6757
    %6887 = vmatprep.subr.mxu0 %v6760
    %6888 = vmatpush1.msra.mxu0 %v6759
    %6889 = vmatprep.subr.mxu0 %v6762
    %6890 = vmatpush1.msra.mxu0 %v6761
    %6891 = vmatprep.subr.mxu0 %v6764
    %6892 = vmatpush1.msra.mxu0 %v6763
    %6893 = vmatprep.subr.mxu0 %v6766
    %6894 = vmatpush1.msra.mxu0 %v6765
    %6895 = vmatprep.subr.mxu0 %v6768
    %6896 = vmatpush1.msra.mxu0 %v6767
    %6897 = vmatprep.subr.mxu0 %v6770
    %6898 = vmatpush1.msra.mxu0 %v6769
    %6899 = vmatprep.subr.mxu0 %v6772
    %6900 = vmatpush1.msra.mxu0 %v6771
    %6901 = vmatprep.subr.mxu0 %v6774
    %6902 = vmatpush1.msra.mxu0 %v6773
    %6903 = vmatprep.subr.mxu0 %v6776
    %6904 = vmatpush1.msra.mxu0 %v6775
    %6905 = vmatprep.subr.mxu0 %v6778
    %6906 = vmatpush1.msra.mxu0 %v6777
    %6907 = vmatprep.subr.mxu0 %v6780
    %6908 = vmatpush1.msra.mxu0 %v6779
    %6909 = vmatprep.subr.mxu0 %v6782
    %6910 = vmatpush1.msra.mxu0 %v6781
    %6911 = vmatprep.subr.mxu0 %v6784
    %6912 = vmatpush1.msra.mxu0 %v6783
    %6913 = vmatprep.subr.mxu0 %v6786
    %6914 = vmatpush1.msra.mxu0 %v6785
    %6915 = vmatprep.subr.mxu0 %v6788
    %6916 = vmatpush1.msra.mxu0 %v6787
    %6917 = vmatprep.subr.mxu0 %v6790
    %6918 = vmatpush1.msra.mxu0 %v6789
    %6919 = vmatprep.subr.mxu0 %v6792
    %6920 = vmatpush1.msra.mxu0 %v6791
    %6921 = vmatprep.subr.mxu0 %v6794
    %6922 = vmatpush1.msra.mxu0 %v6793
    %6923 = vmatprep.subr.mxu0 %v6796
    %6924 = vmatpush1.msra.mxu0 %v6795
    %6925 = vmatprep.subr.mxu0 %v6798
    %6926 = vmatpush1.msra.mxu0 %v6797
    %6927 = vmatprep.subr.mxu0 %v6800
    %6928 = vmatpush1.msra.mxu0 %v6799
    %6929 = vmatprep.mubr.f32.mxu0 %v6663
    %6930 = vmatmul.mubr.f32.gmra.mrb[0].mxu0 %v6661
    %v6931 = vpop.f32.mrb[0].mxu0
    %v6932 = vadd.f32 0.0, %v6931
    %v6933 = vpop.f32.mrb[0].mxu0
    %v6934 = vadd.f32 0.0, %v6933
    %6935 = vdwg.mxu0
    %6936 = vmatprep.subr.mxu0 %v6802
    %6937 = vmatpush1.msra.mxu0 %v6801
    %6938 = vmatprep.subr.mxu0 %v6804
    %6939 = vmatpush1.msra.mxu0 %v6803
    %6940 = vmatprep.subr.mxu0 %v6806
    %6941 = vmatpush1.msra.mxu0 %v6805
    %6942 = vmatprep.subr.mxu0 %v6808
    %6943 = vmatpush1.msra.mxu0 %v6807
    %6944 = vmatprep.subr.mxu0 %v6810
    %6945 = vmatpush1.msra.mxu0 %v6809
    %6946 = vmatprep.subr.mxu0 %v6812
    %6947 = vmatpush1.msra.mxu0 %v6811
    %6948 = vmatprep.subr.mxu0 %v6814
    %6949 = vmatpush1.msra.mxu0 %v6813
    %6950 = vmatprep.subr.mxu0 %v6816
    %6951 = vmatpush1.msra.mxu0 %v6815
    %6952 = vmatprep.subr.mxu0 %v6818
    %6953 = vmatpush1.msra.mxu0 %v6817
    %6954 = vmatprep.subr.mxu0 %v6820
    %6955 = vmatpush1.msra.mxu0 %v6819
    %6956 = vmatprep.subr.mxu0 %v6822
    %6957 = vmatpush1.msra.mxu0 %v6821
    %6958 = vmatprep.subr.mxu0 %v6824
    %6959 = vmatpush1.msra.mxu0 %v6823
    %6960 = vmatprep.subr.mxu0 %v6826
    %6961 = vmatpush1.msra.mxu0 %v6825
    %6962 = vmatprep.subr.mxu0 %v6828
    %6963 = vmatpush1.msra.mxu0 %v6827
    %6964 = vmatprep.subr.mxu0 %v6830
    %6965 = vmatpush1.msra.mxu0 %v6829
    %6966 = vmatprep.subr.mxu0 %v6832
    %6967 = vmatpush1.msra.mxu0 %v6831
    %6968 = vmatprep.subr.mxu0 %v6834
    %6969 = vmatpush1.msra.mxu0 %v6833
    %6970 = vmatprep.subr.mxu0 %v6836
    %6971 = vmatpush1.msra.mxu0 %v6835
    %6972 = vmatprep.subr.mxu0 %v6838
    %6973 = vmatpush1.msra.mxu0 %v6837
    %6974 = vmatprep.subr.mxu0 %v6840
    %6975 = vmatpush1.msra.mxu0 %v6839
    %6976 = vmatprep.subr.mxu0 %v6842
    %6977 = vmatpush1.msra.mxu0 %v6841
    %6978 = vmatprep.subr.mxu0 %v6844
    %6979 = vmatpush1.msra.mxu0 %v6843
    %6980 = vmatprep.subr.mxu0 %v6846
    %6981 = vmatpush1.msra.mxu0 %v6845
    %6982 = vmatprep.subr.mxu0 %v6848
    %6983 = vmatpush1.msra.mxu0 %v6847
    %6984 = vmatprep.subr.mxu0 %v6850
    %6985 = vmatpush1.msra.mxu0 %v6849
    %6986 = vmatprep.subr.mxu0 %v6852
    %6987 = vmatpush1.msra.mxu0 %v6851
    %6988 = vmatprep.subr.mxu0 %v6854
    %6989 = vmatpush1.msra.mxu0 %v6853
    %6990 = vmatprep.subr.mxu0 %v6856
    %6991 = vmatpush1.msra.mxu0 %v6855
    %6992 = vmatprep.subr.mxu0 %v6858
    %6993 = vmatpush1.msra.mxu0 %v6857
    %6994 = vmatprep.subr.mxu0 %v6860
    %6995 = vmatpush1.msra.mxu0 %v6859
    %6996 = vmatprep.subr.mxu0 %v6862
    %6997 = vmatpush1.msra.mxu0 %v6861
    %6998 = vmatprep.subr.mxu0 %v6864
    %6999 = vmatpush1.msra.mxu0 %v6863
    %7000 = vmatprep.mubr.f32.mxu0 %v6734
    %7001 = vmatmul.mubr.f32.gmra.mrb[0].mxu0 %v6732
    %v7002 = vpop.f32.mrb[0].mxu0
    %v7003 = vadd.f32 %v6932, %v7002
    %v7004 = vpop.f32.mrb[0].mxu0
    %v7005 = vadd.f32 %v6934, %v7004
    %7006 = vdwg.mxu0
    %v7007 = vadd.f32 %v6585, %v7003
    %v7008 = vadd.f32 %v6587, %v7005
    %v7009 = vld [vmem:[#allocation35] sm:$0x3]
    %v7011 = vlaneseq
    %v7012 = vshrl.u32 %v7011, 7
    %v7013 = vsub.s32 0, %v7012
    %v7014 = vrot.slane %v7009, %v7013
    %v7015 = vlaneseq
    %v7016 = vshrl.u32 %v7015, 7
    %v7017 = vsub.s32 1, %v7016
    %v7018 = vrot.slane %v7009, %v7017
    %v7021 = vadd.f32 %v7007, %v7014
    %v7022 = vadd.f32 %v7008, %v7018
    %v7023 = vmax.f32 %v7021, 0.0
    %v7024 = vmax.f32 %v7022, 0.0
    %v7025 = vld [vmem:[%s49] sm:$0xff]
    %v7026 = vld [vmem:[%s49 + $0x8] sm:$0xff]
    %v7028 = vsel %vm5755, %v7025, 0
    %v7031 = vsel %vm5755, %v7026, 0
    %7033 = vmatprep.subr.mxu0 %v7024
    %7034 = vmatpush1.msra.mxu0 %v7023
    %7035 = vmatprep.subr.mxu0 0.0
    %7036 = vmatpush1.msra.mxu0 0.0
    %7037 = vmatprep.subr.mxu0 0.0
    %7038 = vmatpush1.msra.mxu0 0.0
    %7039 = vmatprep.subr.mxu0 0.0
    %7040 = vmatpush1.msra.mxu0 0.0
    %7041 = vmatprep.subr.mxu0 0.0
    %7042 = vmatpush1.msra.mxu0 0.0
    %7043 = vmatprep.subr.mxu0 0.0
    %7044 = vmatpush1.msra.mxu0 0.0
    %7045 = vmatprep.subr.mxu0 0.0
    %7046 = vmatpush1.msra.mxu0 0.0
    %7047 = vmatprep.subr.mxu0 0.0
    %7048 = vmatpush1.msra.mxu0 0.0
    %7049 = vmatprep.subr.mxu0 0.0
    %7050 = vmatpush1.msra.mxu0 0.0
    %7051 = vmatprep.subr.mxu0 0.0
    %7052 = vmatpush1.msra.mxu0 0.0
    %7053 = vmatprep.subr.mxu0 0.0
    %7054 = vmatpush1.msra.mxu0 0.0
    %7055 = vmatprep.subr.mxu0 0.0
    %7056 = vmatpush1.msra.mxu0 0.0
    %7057 = vmatprep.subr.mxu0 0.0
    %7058 = vmatpush1.msra.mxu0 0.0
    %7059 = vmatprep.subr.mxu0 0.0
    %7060 = vmatpush1.msra.mxu0 0.0
    %7061 = vmatprep.subr.mxu0 0.0
    %7062 = vmatpush1.msra.mxu0 0.0
    %7063 = vmatprep.subr.mxu0 0.0
    %7064 = vmatpush1.msra.mxu0 0.0
    %7065 = vmatprep.subr.mxu0 0.0
    %7066 = vmatpush1.msra.mxu0 0.0
    %7067 = vmatprep.subr.mxu0 0.0
    %7068 = vmatpush1.msra.mxu0 0.0
    %7069 = vmatprep.subr.mxu0 0.0
    %7070 = vmatpush1.msra.mxu0 0.0
    %7071 = vmatprep.subr.mxu0 0.0
    %7072 = vmatpush1.msra.mxu0 0.0
    %7073 = vmatprep.subr.mxu0 0.0
    %7074 = vmatpush1.msra.mxu0 0.0
    %7075 = vmatprep.subr.mxu0 0.0
    %7076 = vmatpush1.msra.mxu0 0.0
    %7077 = vmatprep.subr.mxu0 0.0
    %7078 = vmatpush1.msra.mxu0 0.0
    %7079 = vmatprep.subr.mxu0 0.0
    %7080 = vmatpush1.msra.mxu0 0.0
    %7081 = vmatprep.subr.mxu0 0.0
    %7082 = vmatpush1.msra.mxu0 0.0
    %7083 = vmatprep.subr.mxu0 0.0
    %7084 = vmatpush1.msra.mxu0 0.0
    %7085 = vmatprep.subr.mxu0 0.0
    %7086 = vmatpush1.msra.mxu0 0.0
    %7087 = vmatprep.subr.mxu0 0.0
    %7088 = vmatpush1.msra.mxu0 0.0
    %7089 = vmatprep.subr.mxu0 0.0
    %7090 = vmatpush1.msra.mxu0 0.0
    %7091 = vmatprep.subr.mxu0 0.0
    %7092 = vmatpush1.msra.mxu0 0.0
    %7093 = vmatprep.subr.mxu0 0.0
    %7094 = vmatpush1.msra.mxu0 0.0
    %7095 = vmatprep.subr.mxu0 0.0
    %7096 = vmatpush1.msra.mxu0 0.0
    %7097 = vmatprep.mubr.f32.mxu0 0.0
    %7098 = vmatmul.mubr.f32.gmra.mrb[0].mxu0 %v7028
    %v7099 = vpop.f32.mrb[0].mxu0
    %v7100 = vadd.f32 0.0, %v7099
    %v7101 = vpop.f32.mrb[0].mxu0
    %v7102 = vadd.f32 0.0, %v7101
    %7103 = vmatprep.mubr.f32.mxu0 0.0
    %7104 = vmatmul.mubr.f32.gmra.mrb[0].mxu0 %v7031
    %v7105 = vpop.f32.mrb[0].mxu0
    %v7106 = vadd.f32 0.0, %v7105
    %v7107 = vpop.f32.mrb[0].mxu0
    %v7108 = vadd.f32 0.0, %v7107
    %7109 = vdwg.mxu0
    %v7110 = vld [vmem:[#allocation37] sm:$0xff]
    %v7111 = vld [vmem:[#allocation37 + $0x8] sm:$0xff]
    %v7112 = vld [vmem:[#allocation37 + $0x10] sm:$0xff]
    %v7113 = vld [vmem:[#allocation37 + $0x18] sm:$0xff]
    %v7114 = vld [vmem:[#allocation37 + $0x20] sm:$0xff]
    %v7115 = vld [vmem:[#allocation37 + $0x28] sm:$0xff]
    %v7116 = vld [vmem:[#allocation37 + $0x30] sm:$0xff]
    %v7117 = vld [vmem:[#allocation37 + $0x38] sm:$0xff]
    %v7118 = vld [vmem:[#allocation37 + $0x40] sm:$0xff]
    %v7119 = vld [vmem:[#allocation37 + $0x48] sm:$0xff]
    %v7120 = vld [vmem:[#allocation37 + $0x50] sm:$0xff]
    %v7121 = vld [vmem:[#allocation37 + $0x58] sm:$0xff]
    %v7122 = vld [vmem:[#allocation37 + $0x60] sm:$0xff]
    %v7123 = vld [vmem:[#allocation37 + $0x68] sm:$0xff]
    %v7124 = vld [vmem:[#allocation37 + $0x70] sm:$0xff]
    %v7125 = vld [vmem:[#allocation37 + $0x78] sm:$0xff]
    %v7126 = vld [vmem:[#allocation37 + $0x80] sm:$0xff]
    %v7127 = vld [vmem:[#allocation37 + $0x88] sm:$0xff]
    %v7128 = vld [vmem:[#allocation37 + $0x90] sm:$0xff]
    %v7129 = vld [vmem:[#allocation37 + $0x98] sm:$0xff]
    %v7130 = vld [vmem:[#allocation37 + $0xa0] sm:$0xff]
    %v7131 = vld [vmem:[#allocation37 + $0xa8] sm:$0xff]
    %v7132 = vld [vmem:[#allocation37 + $0xb0] sm:$0xff]
    %v7133 = vld [vmem:[#allocation37 + $0xb8] sm:$0xff]
    %v7134 = vld [vmem:[#allocation37 + $0xc0] sm:$0xff]
    %v7135 = vld [vmem:[#allocation37 + $0xc8] sm:$0xff]
    %v7136 = vld [vmem:[#allocation37 + $0xd0] sm:$0xff]
    %v7137 = vld [vmem:[#allocation37 + $0xd8] sm:$0xff]
    %v7138 = vld [vmem:[#allocation37 + $0xe0] sm:$0xff]
    %v7139 = vld [vmem:[#allocation37 + $0xe8] sm:$0xff]
    %v7140 = vld [vmem:[#allocation37 + $0xf0] sm:$0xff]
    %v7141 = vld [vmem:[#allocation37 + $0xf8] sm:$0xff]
    %v7142 = vld [vmem:[#allocation37 + $0x100] sm:$0xff]
    %v7143 = vld [vmem:[#allocation37 + $0x108] sm:$0xff]
    %v7144 = vld [vmem:[#allocation37 + $0x110] sm:$0xff]
    %v7145 = vld [vmem:[#allocation37 + $0x118] sm:$0xff]
    %v7146 = vld [vmem:[#allocation37 + $0x120] sm:$0xff]
    %v7147 = vld [vmem:[#allocation37 + $0x128] sm:$0xff]
    %v7148 = vld [vmem:[#allocation37 + $0x130] sm:$0xff]
    %v7149 = vld [vmem:[#allocation37 + $0x138] sm:$0xff]
    %v7150 = vld [vmem:[#allocation37 + $0x140] sm:$0xff]
    %v7151 = vld [vmem:[#allocation37 + $0x148] sm:$0xff]
    %v7152 = vld [vmem:[#allocation37 + $0x150] sm:$0xff]
    %v7153 = vld [vmem:[#allocation37 + $0x158] sm:$0xff]
    %v7154 = vld [vmem:[#allocation37 + $0x160] sm:$0xff]
    %v7155 = vld [vmem:[#allocation37 + $0x168] sm:$0xff]
    %v7156 = vld [vmem:[#allocation37 + $0x170] sm:$0xff]
    %v7157 = vld [vmem:[#allocation37 + $0x178] sm:$0xff]
    %v7158 = vld [vmem:[#allocation37 + $0x180] sm:$0xff]
    %v7159 = vld [vmem:[#allocation37 + $0x188] sm:$0xff]
    %v7160 = vld [vmem:[#allocation37 + $0x190] sm:$0xff]
    %v7161 = vld [vmem:[#allocation37 + $0x198] sm:$0xff]
    %v7162 = vld [vmem:[#allocation37 + $0x1a0] sm:$0xff]
    %v7163 = vld [vmem:[#allocation37 + $0x1a8] sm:$0xff]
    %v7164 = vld [vmem:[#allocation37 + $0x1b0] sm:$0xff]
    %v7165 = vld [vmem:[#allocation37 + $0x1b8] sm:$0xff]
    %v7166 = vld [vmem:[#allocation37 + $0x1c0] sm:$0xff]
    %v7167 = vld [vmem:[#allocation37 + $0x1c8] sm:$0xff]
    %v7168 = vld [vmem:[#allocation37 + $0x1d0] sm:$0xff]
    %v7169 = vld [vmem:[#allocation37 + $0x1d8] sm:$0xff]
    %v7170 = vld [vmem:[#allocation37 + $0x1e0] sm:$0xff]
    %v7171 = vld [vmem:[#allocation37 + $0x1e8] sm:$0xff]
    %v7172 = vld [vmem:[#allocation37 + $0x1f0] sm:$0xff]
    %v7173 = vld [vmem:[#allocation37 + $0x1f8] sm:$0xff]
    %s7174 = scalar_lea.vmem %s49, 16
    %v7175 = vld [vmem:[%s7174] sm:$0xff]
    %v7176 = vld [vmem:[%s7174 + $0x8] sm:$0xff]
    %v7178 = vsel %vm5755, %v7175, 0
    %v7181 = vsel %vm5755, %v7176, 0
    %7183 = vmatprep.subr.mxu0 %v7024
    %7184 = vmatpush1.msra.mxu0 %v7023
    %7185 = vmatprep.subr.mxu0 0.0
    %7186 = vmatpush1.msra.mxu0 0.0
    %7187 = vmatprep.subr.mxu0 0.0
    %7188 = vmatpush1.msra.mxu0 0.0
    %7189 = vmatprep.subr.mxu0 0.0
    %7190 = vmatpush1.msra.mxu0 0.0
    %7191 = vmatprep.subr.mxu0 0.0
    %7192 = vmatpush1.msra.mxu0 0.0
    %7193 = vmatprep.subr.mxu0 0.0
    %7194 = vmatpush1.msra.mxu0 0.0
    %7195 = vmatprep.subr.mxu0 0.0
    %7196 = vmatpush1.msra.mxu0 0.0
    %7197 = vmatprep.subr.mxu0 0.0
    %7198 = vmatpush1.msra.mxu0 0.0
    %7199 = vmatprep.subr.mxu0 0.0
    %7200 = vmatpush1.msra.mxu0 0.0
    %7201 = vmatprep.subr.mxu0 0.0
    %7202 = vmatpush1.msra.mxu0 0.0
    %7203 = vmatprep.subr.mxu0 0.0
    %7204 = vmatpush1.msra.mxu0 0.0
    %7205 = vmatprep.subr.mxu0 0.0
    %7206 = vmatpush1.msra.mxu0 0.0
    %7207 = vmatprep.subr.mxu0 0.0
    %7208 = vmatpush1.msra.mxu0 0.0
    %7209 = vmatprep.subr.mxu0 0.0
    %7210 = vmatpush1.msra.mxu0 0.0
    %7211 = vmatprep.subr.mxu0 0.0
    %7212 = vmatpush1.msra.mxu0 0.0
    %7213 = vmatprep.subr.mxu0 0.0
    %7214 = vmatpush1.msra.mxu0 0.0
    %7215 = vmatprep.subr.mxu0 0.0
    %7216 = vmatpush1.msra.mxu0 0.0
    %7217 = vmatprep.subr.mxu0 0.0
    %7218 = vmatpush1.msra.mxu0 0.0
    %7219 = vmatprep.subr.mxu0 0.0
    %7220 = vmatpush1.msra.mxu0 0.0
    %7221 = vmatprep.subr.mxu0 0.0
    %7222 = vmatpush1.msra.mxu0 0.0
    %7223 = vmatprep.subr.mxu0 0.0
    %7224 = vmatpush1.msra.mxu0 0.0
    %7225 = vmatprep.subr.mxu0 0.0
    %7226 = vmatpush1.msra.mxu0 0.0
    %7227 = vmatprep.subr.mxu0 0.0
    %7228 = vmatpush1.msra.mxu0 0.0
    %7229 = vmatprep.subr.mxu0 0.0
    %7230 = vmatpush1.msra.mxu0 0.0
    %7231 = vmatprep.subr.mxu0 0.0
    %7232 = vmatpush1.msra.mxu0 0.0
    %7233 = vmatprep.subr.mxu0 0.0
    %7234 = vmatpush1.msra.mxu0 0.0
    %7235 = vmatprep.subr.mxu0 0.0
    %7236 = vmatpush1.msra.mxu0 0.0
    %7237 = vmatprep.subr.mxu0 0.0
    %7238 = vmatpush1.msra.mxu0 0.0
    %7239 = vmatprep.subr.mxu0 0.0
    %7240 = vmatpush1.msra.mxu0 0.0
    %7241 = vmatprep.subr.mxu0 0.0
    %7242 = vmatpush1.msra.mxu0 0.0
    %7243 = vmatprep.subr.mxu0 0.0
    %7244 = vmatpush1.msra.mxu0 0.0
    %7245 = vmatprep.subr.mxu0 0.0
    %7246 = vmatpush1.msra.mxu0 0.0
    %7247 = vmatprep.mubr.f32.mxu0 0.0
    %7248 = vmatmul.mubr.f32.gmra.mrb[0].mxu0 %v7178
    %v7249 = vpop.f32.mrb[0].mxu0
    %v7250 = vadd.f32 0.0, %v7249
    %v7251 = vpop.f32.mrb[0].mxu0
    %v7252 = vadd.f32 0.0, %v7251
    %7253 = vmatprep.mubr.f32.mxu0 0.0
    %7254 = vmatmul.mubr.f32.gmra.mrb[0].mxu0 %v7181
    %v7255 = vpop.f32.mrb[0].mxu0
    %v7256 = vadd.f32 0.0, %v7255
    %v7257 = vpop.f32.mrb[0].mxu0
    %v7258 = vadd.f32 0.0, %v7257
    %7259 = vdwg.mxu0
    %s7260 = scalar_lea.vmem [#allocation37], 512
    %v7261 = vld [vmem:[%s7260] sm:$0xff]
    %v7262 = vld [vmem:[%s7260 + $0x8] sm:$0xff]
    %v7263 = vld [vmem:[%s7260 + $0x10] sm:$0xff]
    %v7264 = vld [vmem:[%s7260 + $0x18] sm:$0xff]
    %v7265 = vld [vmem:[%s7260 + $0x20] sm:$0xff]
    %v7266 = vld [vmem:[%s7260 + $0x28] sm:$0xff]
    %v7267 = vld [vmem:[%s7260 + $0x30] sm:$0xff]
    %v7268 = vld [vmem:[%s7260 + $0x38] sm:$0xff]
    %v7269 = vld [vmem:[%s7260 + $0x40] sm:$0xff]
    %v7270 = vld [vmem:[%s7260 + $0x48] sm:$0xff]
    %v7271 = vld [vmem:[%s7260 + $0x50] sm:$0xff]
    %v7272 = vld [vmem:[%s7260 + $0x58] sm:$0xff]
    %v7273 = vld [vmem:[%s7260 + $0x60] sm:$0xff]
    %v7274 = vld [vmem:[%s7260 + $0x68] sm:$0xff]
    %v7275 = vld [vmem:[%s7260 + $0x70] sm:$0xff]
    %v7276 = vld [vmem:[%s7260 + $0x78] sm:$0xff]
    %v7277 = vld [vmem:[%s7260 + $0x80] sm:$0xff]
    %v7278 = vld [vmem:[%s7260 + $0x88] sm:$0xff]
    %v7279 = vld [vmem:[%s7260 + $0x90] sm:$0xff]
    %v7280 = vld [vmem:[%s7260 + $0x98] sm:$0xff]
    %v7281 = vld [vmem:[%s7260 + $0xa0] sm:$0xff]
    %v7282 = vld [vmem:[%s7260 + $0xa8] sm:$0xff]
    %v7283 = vld [vmem:[%s7260 + $0xb0] sm:$0xff]
    %v7284 = vld [vmem:[%s7260 + $0xb8] sm:$0xff]
    %v7285 = vld [vmem:[%s7260 + $0xc0] sm:$0xff]
    %v7286 = vld [vmem:[%s7260 + $0xc8] sm:$0xff]
    %v7287 = vld [vmem:[%s7260 + $0xd0] sm:$0xff]
    %v7288 = vld [vmem:[%s7260 + $0xd8] sm:$0xff]
    %v7289 = vld [vmem:[%s7260 + $0xe0] sm:$0xff]
    %v7290 = vld [vmem:[%s7260 + $0xe8] sm:$0xff]
    %v7291 = vld [vmem:[%s7260 + $0xf0] sm:$0xff]
    %v7292 = vld [vmem:[%s7260 + $0xf8] sm:$0xff]
    %v7293 = vld [vmem:[%s7260 + $0x100] sm:$0xff]
    %v7294 = vld [vmem:[%s7260 + $0x108] sm:$0xff]
    %v7295 = vld [vmem:[%s7260 + $0x110] sm:$0xff]
    %v7296 = vld [vmem:[%s7260 + $0x118] sm:$0xff]
    %v7297 = vld [vmem:[%s7260 + $0x120] sm:$0xff]
    %v7298 = vld [vmem:[%s7260 + $0x128] sm:$0xff]
    %v7299 = vld [vmem:[%s7260 + $0x130] sm:$0xff]
    %v7300 = vld [vmem:[%s7260 + $0x138] sm:$0xff]
    %v7301 = vld [vmem:[%s7260 + $0x140] sm:$0xff]
    %v7302 = vld [vmem:[%s7260 + $0x148] sm:$0xff]
    %v7303 = vld [vmem:[%s7260 + $0x150] sm:$0xff]
    %v7304 = vld [vmem:[%s7260 + $0x158] sm:$0xff]
    %v7305 = vld [vmem:[%s7260 + $0x160] sm:$0xff]
    %v7306 = vld [vmem:[%s7260 + $0x168] sm:$0xff]
    %v7307 = vld [vmem:[%s7260 + $0x170] sm:$0xff]
    %v7308 = vld [vmem:[%s7260 + $0x178] sm:$0xff]
    %v7309 = vld [vmem:[%s7260 + $0x180] sm:$0xff]
    %v7310 = vld [vmem:[%s7260 + $0x188] sm:$0xff]
    %v7311 = vld [vmem:[%s7260 + $0x190] sm:$0xff]
    %v7312 = vld [vmem:[%s7260 + $0x198] sm:$0xff]
    %v7313 = vld [vmem:[%s7260 + $0x1a0] sm:$0xff]
    %v7314 = vld [vmem:[%s7260 + $0x1a8] sm:$0xff]
    %v7315 = vld [vmem:[%s7260 + $0x1b0] sm:$0xff]
    %v7316 = vld [vmem:[%s7260 + $0x1b8] sm:$0xff]
    %v7317 = vld [vmem:[%s7260 + $0x1c0] sm:$0xff]
    %v7318 = vld [vmem:[%s7260 + $0x1c8] sm:$0xff]
    %v7319 = vld [vmem:[%s7260 + $0x1d0] sm:$0xff]
    %v7320 = vld [vmem:[%s7260 + $0x1d8] sm:$0xff]
    %v7321 = vld [vmem:[%s7260 + $0x1e0] sm:$0xff]
    %v7322 = vld [vmem:[%s7260 + $0x1e8] sm:$0xff]
    %v7323 = vld [vmem:[%s7260 + $0x1f0] sm:$0xff]
    %v7324 = vld [vmem:[%s7260 + $0x1f8] sm:$0xff]
    %7325 = vmatprep.subr.mxu0 %v7262
    %7326 = vmatpush1.msra.mxu0 %v7261
    %7327 = vmatprep.subr.mxu0 %v7264
    %7328 = vmatpush1.msra.mxu0 %v7263
    %7329 = vmatprep.subr.mxu0 %v7266
    %7330 = vmatpush1.msra.mxu0 %v7265
    %7331 = vmatprep.subr.mxu0 %v7268
    %7332 = vmatpush1.msra.mxu0 %v7267
    %7333 = vmatprep.subr.mxu0 %v7270
    %7334 = vmatpush1.msra.mxu0 %v7269
    %7335 = vmatprep.subr.mxu0 %v7272
    %7336 = vmatpush1.msra.mxu0 %v7271
    %7337 = vmatprep.subr.mxu0 %v7274
    %7338 = vmatpush1.msra.mxu0 %v7273
    %7339 = vmatprep.subr.mxu0 %v7276
    %7340 = vmatpush1.msra.mxu0 %v7275
    %7341 = vmatprep.subr.mxu0 %v7278
    %7342 = vmatpush1.msra.mxu0 %v7277
    %7343 = vmatprep.subr.mxu0 %v7280
    %7344 = vmatpush1.msra.mxu0 %v7279
    %7345 = vmatprep.subr.mxu0 %v7282
    %7346 = vmatpush1.msra.mxu0 %v7281
    %7347 = vmatprep.subr.mxu0 %v7284
    %7348 = vmatpush1.msra.mxu0 %v7283
    %7349 = vmatprep.subr.mxu0 %v7286
    %7350 = vmatpush1.msra.mxu0 %v7285
    %7351 = vmatprep.subr.mxu0 %v7288
    %7352 = vmatpush1.msra.mxu0 %v7287
    %7353 = vmatprep.subr.mxu0 %v7290
    %7354 = vmatpush1.msra.mxu0 %v7289
    %7355 = vmatprep.subr.mxu0 %v7292
    %7356 = vmatpush1.msra.mxu0 %v7291
    %7357 = vmatprep.subr.mxu0 %v7294
    %7358 = vmatpush1.msra.mxu0 %v7293
    %7359 = vmatprep.subr.mxu0 %v7296
    %7360 = vmatpush1.msra.mxu0 %v7295
    %7361 = vmatprep.subr.mxu0 %v7298
    %7362 = vmatpush1.msra.mxu0 %v7297
    %7363 = vmatprep.subr.mxu0 %v7300
    %7364 = vmatpush1.msra.mxu0 %v7299
    %7365 = vmatprep.subr.mxu0 %v7302
    %7366 = vmatpush1.msra.mxu0 %v7301
    %7367 = vmatprep.subr.mxu0 %v7304
    %7368 = vmatpush1.msra.mxu0 %v7303
    %7369 = vmatprep.subr.mxu0 %v7306
    %7370 = vmatpush1.msra.mxu0 %v7305
    %7371 = vmatprep.subr.mxu0 %v7308
    %7372 = vmatpush1.msra.mxu0 %v7307
    %7373 = vmatprep.subr.mxu0 %v7310
    %7374 = vmatpush1.msra.mxu0 %v7309
    %7375 = vmatprep.subr.mxu0 %v7312
    %7376 = vmatpush1.msra.mxu0 %v7311
    %7377 = vmatprep.subr.mxu0 %v7314
    %7378 = vmatpush1.msra.mxu0 %v7313
    %7379 = vmatprep.subr.mxu0 %v7316
    %7380 = vmatpush1.msra.mxu0 %v7315
    %7381 = vmatprep.subr.mxu0 %v7318
    %7382 = vmatpush1.msra.mxu0 %v7317
    %7383 = vmatprep.subr.mxu0 %v7320
    %7384 = vmatpush1.msra.mxu0 %v7319
    %7385 = vmatprep.subr.mxu0 %v7322
    %7386 = vmatpush1.msra.mxu0 %v7321
    %7387 = vmatprep.subr.mxu0 %v7324
    %7388 = vmatpush1.msra.mxu0 %v7323
    %7389 = vmatprep.mubr.f32.mxu0 %v7252
    %7390 = vmatmul.mubr.f32.gmra.mrb[0].mxu0 %v7250
    %v7391 = vpop.f32.mrb[0].mxu0
    %v7392 = vadd.f32 0.0, %v7391
    %v7393 = vpop.f32.mrb[0].mxu0
    %v7394 = vadd.f32 0.0, %v7393
    %7395 = vmatprep.mubr.f32.mxu0 %v7258
    %7396 = vmatmul.mubr.f32.gmra.mrb[0].mxu0 %v7256
    %v7397 = vpop.f32.mrb[0].mxu0
    %v7398 = vadd.f32 0.0, %v7397
    %v7399 = vpop.f32.mrb[0].mxu0
    %v7400 = vadd.f32 0.0, %v7399
    %7401 = vdwg.mxu0
    %7402 = vmatprep.subr.mxu0 %v7111
    %7403 = vmatpush1.msra.mxu0 %v7110
    %7404 = vmatprep.subr.mxu0 %v7113
    %7405 = vmatpush1.msra.mxu0 %v7112
    %7406 = vmatprep.subr.mxu0 %v7115
    %7407 = vmatpush1.msra.mxu0 %v7114
    %7408 = vmatprep.subr.mxu0 %v7117
    %7409 = vmatpush1.msra.mxu0 %v7116
    %7410 = vmatprep.subr.mxu0 %v7119
    %7411 = vmatpush1.msra.mxu0 %v7118
    %7412 = vmatprep.subr.mxu0 %v7121
    %7413 = vmatpush1.msra.mxu0 %v7120
    %7414 = vmatprep.subr.mxu0 %v7123
    %7415 = vmatpush1.msra.mxu0 %v7122
    %7416 = vmatprep.subr.mxu0 %v7125
    %7417 = vmatpush1.msra.mxu0 %v7124
    %7418 = vmatprep.subr.mxu0 %v7127
    %7419 = vmatpush1.msra.mxu0 %v7126
    %7420 = vmatprep.subr.mxu0 %v7129
    %7421 = vmatpush1.msra.mxu0 %v7128
    %7422 = vmatprep.subr.mxu0 %v7131
    %7423 = vmatpush1.msra.mxu0 %v7130
    %7424 = vmatprep.subr.mxu0 %v7133
    %7425 = vmatpush1.msra.mxu0 %v7132
    %7426 = vmatprep.subr.mxu0 %v7135
    %7427 = vmatpush1.msra.mxu0 %v7134
    %7428 = vmatprep.subr.mxu0 %v7137
    %7429 = vmatpush1.msra.mxu0 %v7136
    %7430 = vmatprep.subr.mxu0 %v7139
    %7431 = vmatpush1.msra.mxu0 %v7138
    %7432 = vmatprep.subr.mxu0 %v7141
    %7433 = vmatpush1.msra.mxu0 %v7140
    %7434 = vmatprep.subr.mxu0 %v7143
    %7435 = vmatpush1.msra.mxu0 %v7142
    %7436 = vmatprep.subr.mxu0 %v7145
    %7437 = vmatpush1.msra.mxu0 %v7144
    %7438 = vmatprep.subr.mxu0 %v7147
    %7439 = vmatpush1.msra.mxu0 %v7146
    %7440 = vmatprep.subr.mxu0 %v7149
    %7441 = vmatpush1.msra.mxu0 %v7148
    %7442 = vmatprep.subr.mxu0 %v7151
    %7443 = vmatpush1.msra.mxu0 %v7150
    %7444 = vmatprep.subr.mxu0 %v7153
    %7445 = vmatpush1.msra.mxu0 %v7152
    %7446 = vmatprep.subr.mxu0 %v7155
    %7447 = vmatpush1.msra.mxu0 %v7154
    %7448 = vmatprep.subr.mxu0 %v7157
    %7449 = vmatpush1.msra.mxu0 %v7156
    %7450 = vmatprep.subr.mxu0 %v7159
    %7451 = vmatpush1.msra.mxu0 %v7158
    %7452 = vmatprep.subr.mxu0 %v7161
    %7453 = vmatpush1.msra.mxu0 %v7160
    %7454 = vmatprep.subr.mxu0 %v7163
    %7455 = vmatpush1.msra.mxu0 %v7162
    %7456 = vmatprep.subr.mxu0 %v7165
    %7457 = vmatpush1.msra.mxu0 %v7164
    %7458 = vmatprep.subr.mxu0 %v7167
    %7459 = vmatpush1.msra.mxu0 %v7166
    %7460 = vmatprep.subr.mxu0 %v7169
    %7461 = vmatpush1.msra.mxu0 %v7168
    %7462 = vmatprep.subr.mxu0 %v7171
    %7463 = vmatpush1.msra.mxu0 %v7170
    %7464 = vmatprep.subr.mxu0 %v7173
    %7465 = vmatpush1.msra.mxu0 %v7172
    %7466 = vmatprep.mubr.f32.mxu0 %v7102
    %7467 = vmatmul.mubr.f32.gmra.mrb[0].mxu0 %v7100
    %v7468 = vpop.f32.mrb[0].mxu0
    %v7469 = vadd.f32 %v7392, %v7468
    %v7470 = vpop.f32.mrb[0].mxu0
    %v7471 = vadd.f32 %v7394, %v7470
    %7472 = vmatprep.mubr.f32.mxu0 %v7108
    %7473 = vmatmul.mubr.f32.gmra.mrb[0].mxu0 %v7106
    %v7474 = vpop.f32.mrb[0].mxu0
    %v7475 = vadd.f32 %v7398, %v7474
    %v7476 = vpop.f32.mrb[0].mxu0
    %v7477 = vadd.f32 %v7400, %v7476
    %7478 = vdwg.mxu0
    %s7479 = scalar_lea.vmem %s49, 32
    %v7480 = vld [vmem:[%s7479] sm:$0xff]
    %v7481 = vld [vmem:[%s7479 + $0x8] sm:$0xff]
    %v7483 = vsel %vm5755, %v7480, 0
    %v7486 = vsel %vm5755, %v7481, 0
    %7488 = vmatprep.subr.mxu0 %v7024
    %7489 = vmatpush1.msra.mxu0 %v7023
    %7490 = vmatprep.subr.mxu0 0.0
    %7491 = vmatpush1.msra.mxu0 0.0
    %7492 = vmatprep.subr.mxu0 0.0
    %7493 = vmatpush1.msra.mxu0 0.0
    %7494 = vmatprep.subr.mxu0 0.0
    %7495 = vmatpush1.msra.mxu0 0.0
    %7496 = vmatprep.subr.mxu0 0.0
    %7497 = vmatpush1.msra.mxu0 0.0
    %7498 = vmatprep.subr.mxu0 0.0
    %7499 = vmatpush1.msra.mxu0 0.0
    %7500 = vmatprep.subr.mxu0 0.0
    %7501 = vmatpush1.msra.mxu0 0.0
    %7502 = vmatprep.subr.mxu0 0.0
    %7503 = vmatpush1.msra.mxu0 0.0
    %7504 = vmatprep.subr.mxu0 0.0
    %7505 = vmatpush1.msra.mxu0 0.0
    %7506 = vmatprep.subr.mxu0 0.0
    %7507 = vmatpush1.msra.mxu0 0.0
    %7508 = vmatprep.subr.mxu0 0.0
    %7509 = vmatpush1.msra.mxu0 0.0
    %7510 = vmatprep.subr.mxu0 0.0
    %7511 = vmatpush1.msra.mxu0 0.0
    %7512 = vmatprep.subr.mxu0 0.0
    %7513 = vmatpush1.msra.mxu0 0.0
    %7514 = vmatprep.subr.mxu0 0.0
    %7515 = vmatpush1.msra.mxu0 0.0
    %7516 = vmatprep.subr.mxu0 0.0
    %7517 = vmatpush1.msra.mxu0 0.0
    %7518 = vmatprep.subr.mxu0 0.0
    %7519 = vmatpush1.msra.mxu0 0.0
    %7520 = vmatprep.subr.mxu0 0.0
    %7521 = vmatpush1.msra.mxu0 0.0
    %7522 = vmatprep.subr.mxu0 0.0
    %7523 = vmatpush1.msra.mxu0 0.0
    %7524 = vmatprep.subr.mxu0 0.0
    %7525 = vmatpush1.msra.mxu0 0.0
    %7526 = vmatprep.subr.mxu0 0.0
    %7527 = vmatpush1.msra.mxu0 0.0
    %7528 = vmatprep.subr.mxu0 0.0
    %7529 = vmatpush1.msra.mxu0 0.0
    %7530 = vmatprep.subr.mxu0 0.0
    %7531 = vmatpush1.msra.mxu0 0.0
    %7532 = vmatprep.subr.mxu0 0.0
    %7533 = vmatpush1.msra.mxu0 0.0
    %7534 = vmatprep.subr.mxu0 0.0
    %7535 = vmatpush1.msra.mxu0 0.0
    %7536 = vmatprep.subr.mxu0 0.0
    %7537 = vmatpush1.msra.mxu0 0.0
    %7538 = vmatprep.subr.mxu0 0.0
    %7539 = vmatpush1.msra.mxu0 0.0
    %7540 = vmatprep.subr.mxu0 0.0
    %7541 = vmatpush1.msra.mxu0 0.0
    %7542 = vmatprep.subr.mxu0 0.0
    %7543 = vmatpush1.msra.mxu0 0.0
    %7544 = vmatprep.subr.mxu0 0.0
    %7545 = vmatpush1.msra.mxu0 0.0
    %7546 = vmatprep.subr.mxu0 0.0
    %7547 = vmatpush1.msra.mxu0 0.0
    %7548 = vmatprep.subr.mxu0 0.0
    %7549 = vmatpush1.msra.mxu0 0.0
    %7550 = vmatprep.subr.mxu0 0.0
    %7551 = vmatpush1.msra.mxu0 0.0
    %7552 = vmatprep.mubr.f32.mxu0 0.0
    %7553 = vmatmul.mubr.f32.gmra.mrb[0].mxu0 %v7483
    %v7554 = vpop.f32.mrb[0].mxu0
    %v7555 = vadd.f32 0.0, %v7554
    %v7556 = vpop.f32.mrb[0].mxu0
    %v7557 = vadd.f32 0.0, %v7556
    %7558 = vmatprep.mubr.f32.mxu0 0.0
    %7559 = vmatmul.mubr.f32.gmra.mrb[0].mxu0 %v7486
    %v7560 = vpop.f32.mrb[0].mxu0
    %v7561 = vadd.f32 0.0, %v7560
    %v7562 = vpop.f32.mrb[0].mxu0
    %v7563 = vadd.f32 0.0, %v7562
    %7564 = vdwg.mxu0
    %s7565 = scalar_lea.vmem [#allocation37], 1024
    %v7566 = vld [vmem:[%s7565] sm:$0xff]
    %v7567 = vld [vmem:[%s7565 + $0x8] sm:$0xff]
    %v7568 = vld [vmem:[%s7565 + $0x10] sm:$0xff]
    %v7569 = vld [vmem:[%s7565 + $0x18] sm:$0xff]
    %v7570 = vld [vmem:[%s7565 + $0x20] sm:$0xff]
    %v7571 = vld [vmem:[%s7565 + $0x28] sm:$0xff]
    %v7572 = vld [vmem:[%s7565 + $0x30] sm:$0xff]
    %v7573 = vld [vmem:[%s7565 + $0x38] sm:$0xff]
    %v7574 = vld [vmem:[%s7565 + $0x40] sm:$0xff]
    %v7575 = vld [vmem:[%s7565 + $0x48] sm:$0xff]
    %v7576 = vld [vmem:[%s7565 + $0x50] sm:$0xff]
    %v7577 = vld [vmem:[%s7565 + $0x58] sm:$0xff]
    %v7578 = vld [vmem:[%s7565 + $0x60] sm:$0xff]
    %v7579 = vld [vmem:[%s7565 + $0x68] sm:$0xff]
    %v7580 = vld [vmem:[%s7565 + $0x70] sm:$0xff]
    %v7581 = vld [vmem:[%s7565 + $0x78] sm:$0xff]
    %v7582 = vld [vmem:[%s7565 + $0x80] sm:$0xff]
    %v7583 = vld [vmem:[%s7565 + $0x88] sm:$0xff]
    %v7584 = vld [vmem:[%s7565 + $0x90] sm:$0xff]
    %v7585 = vld [vmem:[%s7565 + $0x98] sm:$0xff]
    %v7586 = vld [vmem:[%s7565 + $0xa0] sm:$0xff]
    %v7587 = vld [vmem:[%s7565 + $0xa8] sm:$0xff]
    %v7588 = vld [vmem:[%s7565 + $0xb0] sm:$0xff]
    %v7589 = vld [vmem:[%s7565 + $0xb8] sm:$0xff]
    %v7590 = vld [vmem:[%s7565 + $0xc0] sm:$0xff]
    %v7591 = vld [vmem:[%s7565 + $0xc8] sm:$0xff]
    %v7592 = vld [vmem:[%s7565 + $0xd0] sm:$0xff]
    %v7593 = vld [vmem:[%s7565 + $0xd8] sm:$0xff]
    %v7594 = vld [vmem:[%s7565 + $0xe0] sm:$0xff]
    %v7595 = vld [vmem:[%s7565 + $0xe8] sm:$0xff]
    %v7596 = vld [vmem:[%s7565 + $0xf0] sm:$0xff]
    %v7597 = vld [vmem:[%s7565 + $0xf8] sm:$0xff]
    %v7598 = vld [vmem:[%s7565 + $0x100] sm:$0xff]
    %v7599 = vld [vmem:[%s7565 + $0x108] sm:$0xff]
    %v7600 = vld [vmem:[%s7565 + $0x110] sm:$0xff]
    %v7601 = vld [vmem:[%s7565 + $0x118] sm:$0xff]
    %v7602 = vld [vmem:[%s7565 + $0x120] sm:$0xff]
    %v7603 = vld [vmem:[%s7565 + $0x128] sm:$0xff]
    %v7604 = vld [vmem:[%s7565 + $0x130] sm:$0xff]
    %v7605 = vld [vmem:[%s7565 + $0x138] sm:$0xff]
    %v7606 = vld [vmem:[%s7565 + $0x140] sm:$0xff]
    %v7607 = vld [vmem:[%s7565 + $0x148] sm:$0xff]
    %v7608 = vld [vmem:[%s7565 + $0x150] sm:$0xff]
    %v7609 = vld [vmem:[%s7565 + $0x158] sm:$0xff]
    %v7610 = vld [vmem:[%s7565 + $0x160] sm:$0xff]
    %v7611 = vld [vmem:[%s7565 + $0x168] sm:$0xff]
    %v7612 = vld [vmem:[%s7565 + $0x170] sm:$0xff]
    %v7613 = vld [vmem:[%s7565 + $0x178] sm:$0xff]
    %v7614 = vld [vmem:[%s7565 + $0x180] sm:$0xff]
    %v7615 = vld [vmem:[%s7565 + $0x188] sm:$0xff]
    %v7616 = vld [vmem:[%s7565 + $0x190] sm:$0xff]
    %v7617 = vld [vmem:[%s7565 + $0x198] sm:$0xff]
    %v7618 = vld [vmem:[%s7565 + $0x1a0] sm:$0xff]
    %v7619 = vld [vmem:[%s7565 + $0x1a8] sm:$0xff]
    %v7620 = vld [vmem:[%s7565 + $0x1b0] sm:$0xff]
    %v7621 = vld [vmem:[%s7565 + $0x1b8] sm:$0xff]
    %v7622 = vld [vmem:[%s7565 + $0x1c0] sm:$0xff]
    %v7623 = vld [vmem:[%s7565 + $0x1c8] sm:$0xff]
    %v7624 = vld [vmem:[%s7565 + $0x1d0] sm:$0xff]
    %v7625 = vld [vmem:[%s7565 + $0x1d8] sm:$0xff]
    %v7626 = vld [vmem:[%s7565 + $0x1e0] sm:$0xff]
    %v7627 = vld [vmem:[%s7565 + $0x1e8] sm:$0xff]
    %v7628 = vld [vmem:[%s7565 + $0x1f0] sm:$0xff]
    %v7629 = vld [vmem:[%s7565 + $0x1f8] sm:$0xff]
    %7630 = vmatprep.subr.mxu0 %v7567
    %7631 = vmatpush1.msra.mxu0 %v7566
    %7632 = vmatprep.subr.mxu0 %v7569
    %7633 = vmatpush1.msra.mxu0 %v7568
    %7634 = vmatprep.subr.mxu0 %v7571
    %7635 = vmatpush1.msra.mxu0 %v7570
    %7636 = vmatprep.subr.mxu0 %v7573
    %7637 = vmatpush1.msra.mxu0 %v7572
    %7638 = vmatprep.subr.mxu0 %v7575
    %7639 = vmatpush1.msra.mxu0 %v7574
    %7640 = vmatprep.subr.mxu0 %v7577
    %7641 = vmatpush1.msra.mxu0 %v7576
    %7642 = vmatprep.subr.mxu0 %v7579
    %7643 = vmatpush1.msra.mxu0 %v7578
    %7644 = vmatprep.subr.mxu0 %v7581
    %7645 = vmatpush1.msra.mxu0 %v7580
    %7646 = vmatprep.subr.mxu0 %v7583
    %7647 = vmatpush1.msra.mxu0 %v7582
    %7648 = vmatprep.subr.mxu0 %v7585
    %7649 = vmatpush1.msra.mxu0 %v7584
    %7650 = vmatprep.subr.mxu0 %v7587
    %7651 = vmatpush1.msra.mxu0 %v7586
    %7652 = vmatprep.subr.mxu0 %v7589
    %7653 = vmatpush1.msra.mxu0 %v7588
    %7654 = vmatprep.subr.mxu0 %v7591
    %7655 = vmatpush1.msra.mxu0 %v7590
    %7656 = vmatprep.subr.mxu0 %v7593
    %7657 = vmatpush1.msra.mxu0 %v7592
    %7658 = vmatprep.subr.mxu0 %v7595
    %7659 = vmatpush1.msra.mxu0 %v7594
    %7660 = vmatprep.subr.mxu0 %v7597
    %7661 = vmatpush1.msra.mxu0 %v7596
    %7662 = vmatprep.subr.mxu0 %v7599
    %7663 = vmatpush1.msra.mxu0 %v7598
    %7664 = vmatprep.subr.mxu0 %v7601
    %7665 = vmatpush1.msra.mxu0 %v7600
    %7666 = vmatprep.subr.mxu0 %v7603
    %7667 = vmatpush1.msra.mxu0 %v7602
    %7668 = vmatprep.subr.mxu0 %v7605
    %7669 = vmatpush1.msra.mxu0 %v7604
    %7670 = vmatprep.subr.mxu0 %v7607
    %7671 = vmatpush1.msra.mxu0 %v7606
    %7672 = vmatprep.subr.mxu0 %v7609
    %7673 = vmatpush1.msra.mxu0 %v7608
    %7674 = vmatprep.subr.mxu0 %v7611
    %7675 = vmatpush1.msra.mxu0 %v7610
    %7676 = vmatprep.subr.mxu0 %v7613
    %7677 = vmatpush1.msra.mxu0 %v7612
    %7678 = vmatprep.subr.mxu0 %v7615
    %7679 = vmatpush1.msra.mxu0 %v7614
    %7680 = vmatprep.subr.mxu0 %v7617
    %7681 = vmatpush1.msra.mxu0 %v7616
    %7682 = vmatprep.subr.mxu0 %v7619
    %7683 = vmatpush1.msra.mxu0 %v7618
    %7684 = vmatprep.subr.mxu0 %v7621
    %7685 = vmatpush1.msra.mxu0 %v7620
    %7686 = vmatprep.subr.mxu0 %v7623
    %7687 = vmatpush1.msra.mxu0 %v7622
    %7688 = vmatprep.subr.mxu0 %v7625
    %7689 = vmatpush1.msra.mxu0 %v7624
    %7690 = vmatprep.subr.mxu0 %v7627
    %7691 = vmatpush1.msra.mxu0 %v7626
    %7692 = vmatprep.subr.mxu0 %v7629
    %7693 = vmatpush1.msra.mxu0 %v7628
    %7694 = vmatprep.mubr.f32.mxu0 %v7557
    %7695 = vmatmul.mubr.f32.gmra.mrb[0].mxu0 %v7555
    %v7696 = vpop.f32.mrb[0].mxu0
    %v7697 = vadd.f32 0.0, %v7696
    %v7698 = vpop.f32.mrb[0].mxu0
    %v7699 = vadd.f32 0.0, %v7698
    %7700 = vmatprep.mubr.f32.mxu0 %v7563
    %7701 = vmatmul.mubr.f32.gmra.mrb[0].mxu0 %v7561
    %v7702 = vpop.f32.mrb[0].mxu0
    %v7703 = vadd.f32 0.0, %v7702
    %v7704 = vpop.f32.mrb[0].mxu0
    %v7705 = vadd.f32 0.0, %v7704
    %7706 = vdwg.mxu0
    %v7707 = vadd.f32 %v7469, %v7697
    %v7708 = vadd.f32 %v7471, %v7699
    %v7709 = vadd.f32 %v7475, %v7703
    %v7710 = vadd.f32 %v7477, %v7705
    %v7711 = vld [vmem:[#allocation38] sm:$0x3]
    %v7713 = vlaneseq
    %v7714 = vshrl.u32 %v7713, 7
    %v7715 = vsub.s32 0, %v7714
    %v7716 = vrot.slane %v7711, %v7715
    %v7717 = vlaneseq
    %v7718 = vshrl.u32 %v7717, 7
    %v7719 = vsub.s32 1, %v7718
    %v7720 = vrot.slane %v7711, %v7719
    %v7723 = vadd.f32 %v7707, %v7716
    %v7724 = vadd.f32 %v7708, %v7720
    %v7725 = vadd.f32 %v7709, %v7716
    %v7726 = vadd.f32 %v7710, %v7720
    %v7727 = vmax.f32 %v7723, 0.0
    %v7728 = vmax.f32 %v7724, 0.0
    %v7729 = vmax.f32 %v7725, 0.0
    %v7730 = vmax.f32 %v7726, 0.0
    %v7731 = vld [vmem:[%s55] sm:$0xff]
    %v7732 = vld [vmem:[%s55 + $0x8] sm:$0xff]
    %v7733 = vld [vmem:[%s55 + $0x10] sm:$0xff]
    %v7734 = vld [vmem:[%s55 + $0x18] sm:$0xff]
    %v7736 = vsel %vm3494, %v7731, 0
    %v7739 = vsel %vm3494, %v7732, 0
    %v7742 = vsel %vm3494, %v7733, 0
    %v7745 = vsel %vm3494, %v7734, 0
    %7747 = vmatprep.subr.mxu0 %v7728
    %7748 = vmatpush1.msra.mxu0 %v7727
    %7749 = vmatprep.subr.mxu0 %v7730
    %7750 = vmatpush1.msra.mxu0 %v7729
    %7751 = vmatprep.subr.mxu0 0.0
    %7752 = vmatpush1.msra.mxu0 0.0
    %7753 = vmatprep.subr.mxu0 0.0
    %7754 = vmatpush1.msra.mxu0 0.0
    %7755 = vmatprep.subr.mxu0 0.0
    %7756 = vmatpush1.msra.mxu0 0.0
    %7757 = vmatprep.subr.mxu0 0.0
    %7758 = vmatpush1.msra.mxu0 0.0
    %7759 = vmatprep.subr.mxu0 0.0
    %7760 = vmatpush1.msra.mxu0 0.0
    %7761 = vmatprep.subr.mxu0 0.0
    %7762 = vmatpush1.msra.mxu0 0.0
    %7763 = vmatprep.subr.mxu0 0.0
    %7764 = vmatpush1.msra.mxu0 0.0
    %7765 = vmatprep.subr.mxu0 0.0
    %7766 = vmatpush1.msra.mxu0 0.0
    %7767 = vmatprep.subr.mxu0 0.0
    %7768 = vmatpush1.msra.mxu0 0.0
    %7769 = vmatprep.subr.mxu0 0.0
    %7770 = vmatpush1.msra.mxu0 0.0
    %7771 = vmatprep.subr.mxu0 0.0
    %7772 = vmatpush1.msra.mxu0 0.0
    %7773 = vmatprep.subr.mxu0 0.0
    %7774 = vmatpush1.msra.mxu0 0.0
    %7775 = vmatprep.subr.mxu0 0.0
    %7776 = vmatpush1.msra.mxu0 0.0
    %7777 = vmatprep.subr.mxu0 0.0
    %7778 = vmatpush1.msra.mxu0 0.0
    %7779 = vmatprep.subr.mxu0 0.0
    %7780 = vmatpush1.msra.mxu0 0.0
    %7781 = vmatprep.subr.mxu0 0.0
    %7782 = vmatpush1.msra.mxu0 0.0
    %7783 = vmatprep.subr.mxu0 0.0
    %7784 = vmatpush1.msra.mxu0 0.0
    %7785 = vmatprep.subr.mxu0 0.0
    %7786 = vmatpush1.msra.mxu0 0.0
    %7787 = vmatprep.subr.mxu0 0.0
    %7788 = vmatpush1.msra.mxu0 0.0
    %7789 = vmatprep.subr.mxu0 0.0
    %7790 = vmatpush1.msra.mxu0 0.0
    %7791 = vmatprep.subr.mxu0 0.0
    %7792 = vmatpush1.msra.mxu0 0.0
    %7793 = vmatprep.subr.mxu0 0.0
    %7794 = vmatpush1.msra.mxu0 0.0
    %7795 = vmatprep.subr.mxu0 0.0
    %7796 = vmatpush1.msra.mxu0 0.0
    %7797 = vmatprep.subr.mxu0 0.0
    %7798 = vmatpush1.msra.mxu0 0.0
    %7799 = vmatprep.subr.mxu0 0.0
    %7800 = vmatpush1.msra.mxu0 0.0
    %7801 = vmatprep.subr.mxu0 0.0
    %7802 = vmatpush1.msra.mxu0 0.0
    %7803 = vmatprep.subr.mxu0 0.0
    %7804 = vmatpush1.msra.mxu0 0.0
    %7805 = vmatprep.subr.mxu0 0.0
    %7806 = vmatpush1.msra.mxu0 0.0
    %7807 = vmatprep.subr.mxu0 0.0
    %7808 = vmatpush1.msra.mxu0 0.0
    %7809 = vmatprep.subr.mxu0 0.0
    %7810 = vmatpush1.msra.mxu0 0.0
    %7811 = vmatprep.mubr.f32.mxu0 0.0
    %7812 = vmatmul.mubr.f32.gmra.mrb[0].mxu0 %v7736
    %v7813 = vpop.f32.mrb[0].mxu0
    %v7814 = vadd.f32 0.0, %v7813
    %v7815 = vpop.f32.mrb[0].mxu0
    %v7816 = vadd.f32 0.0, %v7815
    %7817 = vmatprep.mubr.f32.mxu0 0.0
    %7818 = vmatmul.mubr.f32.gmra.mrb[0].mxu0 %v7739
    %v7819 = vpop.f32.mrb[0].mxu0
    %v7820 = vadd.f32 0.0, %v7819
    %v7821 = vpop.f32.mrb[0].mxu0
    %v7822 = vadd.f32 0.0, %v7821
    %7823 = vmatprep.mubr.f32.mxu0 0.0
    %7824 = vmatmul.mubr.f32.gmra.mrb[0].mxu0 %v7742
    %v7825 = vpop.f32.mrb[0].mxu0
    %v7826 = vadd.f32 0.0, %v7825
    %v7827 = vpop.f32.mrb[0].mxu0
    %v7828 = vadd.f32 0.0, %v7827
    %7829 = vmatprep.mubr.f32.mxu0 0.0
    %7830 = vmatmul.mubr.f32.gmra.mrb[0].mxu0 %v7745
    %v7831 = vpop.f32.mrb[0].mxu0
    %v7832 = vadd.f32 0.0, %v7831
    %v7833 = vpop.f32.mrb[0].mxu0
    %v7834 = vadd.f32 0.0, %v7833
    %7835 = vdwg.mxu0
    %v7836 = vld [vmem:[#allocation40] sm:$0xff]
    %v7837 = vld [vmem:[#allocation40 + $0x8] sm:$0xff]
    %v7838 = vld [vmem:[#allocation40 + $0x10] sm:$0xff]
    %v7839 = vld [vmem:[#allocation40 + $0x18] sm:$0xff]
    %v7840 = vld [vmem:[#allocation40 + $0x20] sm:$0xff]
    %v7841 = vld [vmem:[#allocation40 + $0x28] sm:$0xff]
    %v7842 = vld [vmem:[#allocation40 + $0x30] sm:$0xff]
    %v7843 = vld [vmem:[#allocation40 + $0x38] sm:$0xff]
    %v7844 = vld [vmem:[#allocation40 + $0x40] sm:$0xff]
    %v7845 = vld [vmem:[#allocation40 + $0x48] sm:$0xff]
    %v7846 = vld [vmem:[#allocation40 + $0x50] sm:$0xff]
    %v7847 = vld [vmem:[#allocation40 + $0x58] sm:$0xff]
    %v7848 = vld [vmem:[#allocation40 + $0x60] sm:$0xff]
    %v7849 = vld [vmem:[#allocation40 + $0x68] sm:$0xff]
    %v7850 = vld [vmem:[#allocation40 + $0x70] sm:$0xff]
    %v7851 = vld [vmem:[#allocation40 + $0x78] sm:$0xff]
    %v7852 = vld [vmem:[#allocation40 + $0x80] sm:$0xff]
    %v7853 = vld [vmem:[#allocation40 + $0x88] sm:$0xff]
    %v7854 = vld [vmem:[#allocation40 + $0x90] sm:$0xff]
    %v7855 = vld [vmem:[#allocation40 + $0x98] sm:$0xff]
    %v7856 = vld [vmem:[#allocation40 + $0xa0] sm:$0xff]
    %v7857 = vld [vmem:[#allocation40 + $0xa8] sm:$0xff]
    %v7858 = vld [vmem:[#allocation40 + $0xb0] sm:$0xff]
    %v7859 = vld [vmem:[#allocation40 + $0xb8] sm:$0xff]
    %v7860 = vld [vmem:[#allocation40 + $0xc0] sm:$0xff]
    %v7861 = vld [vmem:[#allocation40 + $0xc8] sm:$0xff]
    %v7862 = vld [vmem:[#allocation40 + $0xd0] sm:$0xff]
    %v7863 = vld [vmem:[#allocation40 + $0xd8] sm:$0xff]
    %v7864 = vld [vmem:[#allocation40 + $0xe0] sm:$0xff]
    %v7865 = vld [vmem:[#allocation40 + $0xe8] sm:$0xff]
    %v7866 = vld [vmem:[#allocation40 + $0xf0] sm:$0xff]
    %v7867 = vld [vmem:[#allocation40 + $0xf8] sm:$0xff]
    %s7868 = scalar_lea.vmem %s55, 32
    %v7869 = vld [vmem:[%s7868] sm:$0xff]
    %v7870 = vld [vmem:[%s7868 + $0x8] sm:$0xff]
    %v7871 = vld [vmem:[%s7868 + $0x10] sm:$0xff]
    %v7872 = vld [vmem:[%s7868 + $0x18] sm:$0xff]
    %v7874 = vsel %vm3494, %v7869, 0
    %v7877 = vsel %vm3494, %v7870, 0
    %v7880 = vsel %vm3494, %v7871, 0
    %v7883 = vsel %vm3494, %v7872, 0
    %7885 = vmatprep.subr.mxu0 %v7728
    %7886 = vmatpush1.msra.mxu0 %v7727
    %7887 = vmatprep.subr.mxu0 %v7730
    %7888 = vmatpush1.msra.mxu0 %v7729
    %7889 = vmatprep.subr.mxu0 0.0
    %7890 = vmatpush1.msra.mxu0 0.0
    %7891 = vmatprep.subr.mxu0 0.0
    %7892 = vmatpush1.msra.mxu0 0.0
    %7893 = vmatprep.subr.mxu0 0.0
    %7894 = vmatpush1.msra.mxu0 0.0
    %7895 = vmatprep.subr.mxu0 0.0
    %7896 = vmatpush1.msra.mxu0 0.0
    %7897 = vmatprep.subr.mxu0 0.0
    %7898 = vmatpush1.msra.mxu0 0.0
    %7899 = vmatprep.subr.mxu0 0.0
    %7900 = vmatpush1.msra.mxu0 0.0
    %7901 = vmatprep.subr.mxu0 0.0
    %7902 = vmatpush1.msra.mxu0 0.0
    %7903 = vmatprep.subr.mxu0 0.0
    %7904 = vmatpush1.msra.mxu0 0.0
    %7905 = vmatprep.subr.mxu0 0.0
    %7906 = vmatpush1.msra.mxu0 0.0
    %7907 = vmatprep.subr.mxu0 0.0
    %7908 = vmatpush1.msra.mxu0 0.0
    %7909 = vmatprep.subr.mxu0 0.0
    %7910 = vmatpush1.msra.mxu0 0.0
    %7911 = vmatprep.subr.mxu0 0.0
    %7912 = vmatpush1.msra.mxu0 0.0
    %7913 = vmatprep.subr.mxu0 0.0
    %7914 = vmatpush1.msra.mxu0 0.0
    %7915 = vmatprep.subr.mxu0 0.0
    %7916 = vmatpush1.msra.mxu0 0.0
    %7917 = vmatprep.subr.mxu0 0.0
    %7918 = vmatpush1.msra.mxu0 0.0
    %7919 = vmatprep.subr.mxu0 0.0
    %7920 = vmatpush1.msra.mxu0 0.0
    %7921 = vmatprep.subr.mxu0 0.0
    %7922 = vmatpush1.msra.mxu0 0.0
    %7923 = vmatprep.subr.mxu0 0.0
    %7924 = vmatpush1.msra.mxu0 0.0
    %7925 = vmatprep.subr.mxu0 0.0
    %7926 = vmatpush1.msra.mxu0 0.0
    %7927 = vmatprep.subr.mxu0 0.0
    %7928 = vmatpush1.msra.mxu0 0.0
    %7929 = vmatprep.subr.mxu0 0.0
    %7930 = vmatpush1.msra.mxu0 0.0
    %7931 = vmatprep.subr.mxu0 0.0
    %7932 = vmatpush1.msra.mxu0 0.0
    %7933 = vmatprep.subr.mxu0 0.0
    %7934 = vmatpush1.msra.mxu0 0.0
    %7935 = vmatprep.subr.mxu0 0.0
    %7936 = vmatpush1.msra.mxu0 0.0
    %7937 = vmatprep.subr.mxu0 0.0
    %7938 = vmatpush1.msra.mxu0 0.0
    %7939 = vmatprep.subr.mxu0 0.0
    %7940 = vmatpush1.msra.mxu0 0.0
    %7941 = vmatprep.subr.mxu0 0.0
    %7942 = vmatpush1.msra.mxu0 0.0
    %7943 = vmatprep.subr.mxu0 0.0
    %7944 = vmatpush1.msra.mxu0 0.0
    %7945 = vmatprep.subr.mxu0 0.0
    %7946 = vmatpush1.msra.mxu0 0.0
    %7947 = vmatprep.subr.mxu0 0.0
    %7948 = vmatpush1.msra.mxu0 0.0
    %7949 = vmatprep.mubr.f32.mxu0 0.0
    %7950 = vmatmul.mubr.f32.gmra.mrb[0].mxu0 %v7874
    %v7951 = vpop.f32.mrb[0].mxu0
    %v7952 = vadd.f32 0.0, %v7951
    %v7953 = vpop.f32.mrb[0].mxu0
    %v7954 = vadd.f32 0.0, %v7953
    %7955 = vmatprep.mubr.f32.mxu0 0.0
    %7956 = vmatmul.mubr.f32.gmra.mrb[0].mxu0 %v7877
    %v7957 = vpop.f32.mrb[0].mxu0
    %v7958 = vadd.f32 0.0, %v7957
    %v7959 = vpop.f32.mrb[0].mxu0
    %v7960 = vadd.f32 0.0, %v7959
    %7961 = vmatprep.mubr.f32.mxu0 0.0
    %7962 = vmatmul.mubr.f32.gmra.mrb[0].mxu0 %v7880
    %v7963 = vpop.f32.mrb[0].mxu0
    %v7964 = vadd.f32 0.0, %v7963
    %v7965 = vpop.f32.mrb[0].mxu0
    %v7966 = vadd.f32 0.0, %v7965
    %7967 = vmatprep.mubr.f32.mxu0 0.0
    %7968 = vmatmul.mubr.f32.gmra.mrb[0].mxu0 %v7883
    %v7969 = vpop.f32.mrb[0].mxu0
    %v7970 = vadd.f32 0.0, %v7969
    %v7971 = vpop.f32.mrb[0].mxu0
    %v7972 = vadd.f32 0.0, %v7971
    %7973 = vdwg.mxu0
    %s7974 = scalar_lea.vmem [#allocation40], 256
    %v7975 = vld [vmem:[%s7974] sm:$0xff]
    %v7976 = vld [vmem:[%s7974 + $0x8] sm:$0xff]
    %v7977 = vld [vmem:[%s7974 + $0x10] sm:$0xff]
    %v7978 = vld [vmem:[%s7974 + $0x18] sm:$0xff]
    %v7979 = vld [vmem:[%s7974 + $0x20] sm:$0xff]
    %v7980 = vld [vmem:[%s7974 + $0x28] sm:$0xff]
    %v7981 = vld [vmem:[%s7974 + $0x30] sm:$0xff]
    %v7982 = vld [vmem:[%s7974 + $0x38] sm:$0xff]
    %v7983 = vld [vmem:[%s7974 + $0x40] sm:$0xff]
    %v7984 = vld [vmem:[%s7974 + $0x48] sm:$0xff]
    %v7985 = vld [vmem:[%s7974 + $0x50] sm:$0xff]
    %v7986 = vld [vmem:[%s7974 + $0x58] sm:$0xff]
    %v7987 = vld [vmem:[%s7974 + $0x60] sm:$0xff]
    %v7988 = vld [vmem:[%s7974 + $0x68] sm:$0xff]
    %v7989 = vld [vmem:[%s7974 + $0x70] sm:$0xff]
    %v7990 = vld [vmem:[%s7974 + $0x78] sm:$0xff]
    %v7991 = vld [vmem:[%s7974 + $0x80] sm:$0xff]
    %v7992 = vld [vmem:[%s7974 + $0x88] sm:$0xff]
    %v7993 = vld [vmem:[%s7974 + $0x90] sm:$0xff]
    %v7994 = vld [vmem:[%s7974 + $0x98] sm:$0xff]
    %v7995 = vld [vmem:[%s7974 + $0xa0] sm:$0xff]
    %v7996 = vld [vmem:[%s7974 + $0xa8] sm:$0xff]
    %v7997 = vld [vmem:[%s7974 + $0xb0] sm:$0xff]
    %v7998 = vld [vmem:[%s7974 + $0xb8] sm:$0xff]
    %v7999 = vld [vmem:[%s7974 + $0xc0] sm:$0xff]
    %v8000 = vld [vmem:[%s7974 + $0xc8] sm:$0xff]
    %v8001 = vld [vmem:[%s7974 + $0xd0] sm:$0xff]
    %v8002 = vld [vmem:[%s7974 + $0xd8] sm:$0xff]
    %v8003 = vld [vmem:[%s7974 + $0xe0] sm:$0xff]
    %v8004 = vld [vmem:[%s7974 + $0xe8] sm:$0xff]
    %v8005 = vld [vmem:[%s7974 + $0xf0] sm:$0xff]
    %v8006 = vld [vmem:[%s7974 + $0xf8] sm:$0xff]
    %8007 = vmatprep.subr.mxu0 0.0
    %8008 = vmatpush1.msra.mxu0 %v7975
    %8009 = vmatprep.subr.mxu0 0.0
    %8010 = vmatpush1.msra.mxu0 %v7976
    %8011 = vmatprep.subr.mxu0 0.0
    %8012 = vmatpush1.msra.mxu0 %v7977
    %8013 = vmatprep.subr.mxu0 0.0
    %8014 = vmatpush1.msra.mxu0 %v7978
    %8015 = vmatprep.subr.mxu0 0.0
    %8016 = vmatpush1.msra.mxu0 %v7979
    %8017 = vmatprep.subr.mxu0 0.0
    %8018 = vmatpush1.msra.mxu0 %v7980
    %8019 = vmatprep.subr.mxu0 0.0
    %8020 = vmatpush1.msra.mxu0 %v7981
    %8021 = vmatprep.subr.mxu0 0.0
    %8022 = vmatpush1.msra.mxu0 %v7982
    %8023 = vmatprep.subr.mxu0 0.0
    %8024 = vmatpush1.msra.mxu0 %v7983
    %8025 = vmatprep.subr.mxu0 0.0
    %8026 = vmatpush1.msra.mxu0 %v7984
    %8027 = vmatprep.subr.mxu0 0.0
    %8028 = vmatpush1.msra.mxu0 %v7985
    %8029 = vmatprep.subr.mxu0 0.0
    %8030 = vmatpush1.msra.mxu0 %v7986
    %8031 = vmatprep.subr.mxu0 0.0
    %8032 = vmatpush1.msra.mxu0 %v7987
    %8033 = vmatprep.subr.mxu0 0.0
    %8034 = vmatpush1.msra.mxu0 %v7988
    %8035 = vmatprep.subr.mxu0 0.0
    %8036 = vmatpush1.msra.mxu0 %v7989
    %8037 = vmatprep.subr.mxu0 0.0
    %8038 = vmatpush1.msra.mxu0 %v7990
    %8039 = vmatprep.subr.mxu0 0.0
    %8040 = vmatpush1.msra.mxu0 %v7991
    %8041 = vmatprep.subr.mxu0 0.0
    %8042 = vmatpush1.msra.mxu0 %v7992
    %8043 = vmatprep.subr.mxu0 0.0
    %8044 = vmatpush1.msra.mxu0 %v7993
    %8045 = vmatprep.subr.mxu0 0.0
    %8046 = vmatpush1.msra.mxu0 %v7994
    %8047 = vmatprep.subr.mxu0 0.0
    %8048 = vmatpush1.msra.mxu0 %v7995
    %8049 = vmatprep.subr.mxu0 0.0
    %8050 = vmatpush1.msra.mxu0 %v7996
    %8051 = vmatprep.subr.mxu0 0.0
    %8052 = vmatpush1.msra.mxu0 %v7997
    %8053 = vmatprep.subr.mxu0 0.0
    %8054 = vmatpush1.msra.mxu0 %v7998
    %8055 = vmatprep.subr.mxu0 0.0
    %8056 = vmatpush1.msra.mxu0 %v7999
    %8057 = vmatprep.subr.mxu0 0.0
    %8058 = vmatpush1.msra.mxu0 %v8000
    %8059 = vmatprep.subr.mxu0 0.0
    %8060 = vmatpush1.msra.mxu0 %v8001
    %8061 = vmatprep.subr.mxu0 0.0
    %8062 = vmatpush1.msra.mxu0 %v8002
    %8063 = vmatprep.subr.mxu0 0.0
    %8064 = vmatpush1.msra.mxu0 %v8003
    %8065 = vmatprep.subr.mxu0 0.0
    %8066 = vmatpush1.msra.mxu0 %v8004
    %8067 = vmatprep.subr.mxu0 0.0
    %8068 = vmatpush1.msra.mxu0 %v8005
    %8069 = vmatprep.subr.mxu0 0.0
    %8070 = vmatpush1.msra.mxu0 %v8006
    %8071 = vmatprep.mubr.f32.mxu0 %v7954
    %8072 = vmatmul.mubr.f32.gmra.mrb[0].mxu0 %v7952
    %v8073 = vpop.f32.mrb[0].mxu0
    %v8074 = vadd.f32 0.0, %v8073
    %v8075 = vpop.f32.mrb[0].mxu0
    %8076 = vmatprep.mubr.f32.mxu0 %v7960
    %8077 = vmatmul.mubr.f32.gmra.mrb[0].mxu0 %v7958
    %v8078 = vpop.f32.mrb[0].mxu0
    %v8079 = vadd.f32 0.0, %v8078
    %v8080 = vpop.f32.mrb[0].mxu0
    %8081 = vmatprep.mubr.f32.mxu0 %v7966
    %8082 = vmatmul.mubr.f32.gmra.mrb[0].mxu0 %v7964
    %v8083 = vpop.f32.mrb[0].mxu0
    %v8084 = vadd.f32 0.0, %v8083
    %v8085 = vpop.f32.mrb[0].mxu0
    %8086 = vmatprep.mubr.f32.mxu0 %v7972
    %8087 = vmatmul.mubr.f32.gmra.mrb[0].mxu0 %v7970
    %v8088 = vpop.f32.mrb[0].mxu0
    %v8089 = vadd.f32 0.0, %v8088
    %v8090 = vpop.f32.mrb[0].mxu0
    %8091 = vdwg.mxu0
    %8092 = vmatprep.subr.mxu0 0.0
    %8093 = vmatpush1.msra.mxu0 %v7836
    %8094 = vmatprep.subr.mxu0 0.0
    %8095 = vmatpush1.msra.mxu0 %v7837
    %8096 = vmatprep.subr.mxu0 0.0
    %8097 = vmatpush1.msra.mxu0 %v7838
    %8098 = vmatprep.subr.mxu0 0.0
    %8099 = vmatpush1.msra.mxu0 %v7839
    %8100 = vmatprep.subr.mxu0 0.0
    %8101 = vmatpush1.msra.mxu0 %v7840
    %8102 = vmatprep.subr.mxu0 0.0
    %8103 = vmatpush1.msra.mxu0 %v7841
    %8104 = vmatprep.subr.mxu0 0.0
    %8105 = vmatpush1.msra.mxu0 %v7842
    %8106 = vmatprep.subr.mxu0 0.0
    %8107 = vmatpush1.msra.mxu0 %v7843
    %8108 = vmatprep.subr.mxu0 0.0
    %8109 = vmatpush1.msra.mxu0 %v7844
    %8110 = vmatprep.subr.mxu0 0.0
    %8111 = vmatpush1.msra.mxu0 %v7845
    %8112 = vmatprep.subr.mxu0 0.0
    %8113 = vmatpush1.msra.mxu0 %v7846
    %8114 = vmatprep.subr.mxu0 0.0
    %8115 = vmatpush1.msra.mxu0 %v7847
    %8116 = vmatprep.subr.mxu0 0.0
    %8117 = vmatpush1.msra.mxu0 %v7848
    %8118 = vmatprep.subr.mxu0 0.0
    %8119 = vmatpush1.msra.mxu0 %v7849
    %8120 = vmatprep.subr.mxu0 0.0
    %8121 = vmatpush1.msra.mxu0 %v7850
    %8122 = vmatprep.subr.mxu0 0.0
    %8123 = vmatpush1.msra.mxu0 %v7851
    %8124 = vmatprep.subr.mxu0 0.0
    %8125 = vmatpush1.msra.mxu0 %v7852
    %8126 = vmatprep.subr.mxu0 0.0
    %8127 = vmatpush1.msra.mxu0 %v7853
    %8128 = vmatprep.subr.mxu0 0.0
    %8129 = vmatpush1.msra.mxu0 %v7854
    %8130 = vmatprep.subr.mxu0 0.0
    %8131 = vmatpush1.msra.mxu0 %v7855
    %8132 = vmatprep.subr.mxu0 0.0
    %8133 = vmatpush1.msra.mxu0 %v7856
    %8134 = vmatprep.subr.mxu0 0.0
    %8135 = vmatpush1.msra.mxu0 %v7857
    %8136 = vmatprep.subr.mxu0 0.0
    %8137 = vmatpush1.msra.mxu0 %v7858
    %8138 = vmatprep.subr.mxu0 0.0
    %8139 = vmatpush1.msra.mxu0 %v7859
    %8140 = vmatprep.subr.mxu0 0.0
    %8141 = vmatpush1.msra.mxu0 %v7860
    %8142 = vmatprep.subr.mxu0 0.0
    %8143 = vmatpush1.msra.mxu0 %v7861
    %8144 = vmatprep.subr.mxu0 0.0
    %8145 = vmatpush1.msra.mxu0 %v7862
    %8146 = vmatprep.subr.mxu0 0.0
    %8147 = vmatpush1.msra.mxu0 %v7863
    %8148 = vmatprep.subr.mxu0 0.0
    %8149 = vmatpush1.msra.mxu0 %v7864
    %8150 = vmatprep.subr.mxu0 0.0
    %8151 = vmatpush1.msra.mxu0 %v7865
    %8152 = vmatprep.subr.mxu0 0.0
    %8153 = vmatpush1.msra.mxu0 %v7866
    %8154 = vmatprep.subr.mxu0 0.0
    %8155 = vmatpush1.msra.mxu0 %v7867
    %8156 = vmatprep.mubr.f32.mxu0 %v7816
    %8157 = vmatmul.mubr.f32.gmra.mrb[0].mxu0 %v7814
    %v8158 = vpop.f32.mrb[0].mxu0
    %v8159 = vadd.f32 %v8074, %v8158
    %v8160 = vpop.f32.mrb[0].mxu0
    %8161 = vmatprep.mubr.f32.mxu0 %v7822
    %8162 = vmatmul.mubr.f32.gmra.mrb[0].mxu0 %v7820
    %v8163 = vpop.f32.mrb[0].mxu0
    %v8164 = vadd.f32 %v8079, %v8163
    %v8165 = vpop.f32.mrb[0].mxu0
    %8166 = vmatprep.mubr.f32.mxu0 %v7828
    %8167 = vmatmul.mubr.f32.gmra.mrb[0].mxu0 %v7826
    %v8168 = vpop.f32.mrb[0].mxu0
    %v8169 = vadd.f32 %v8084, %v8168
    %v8170 = vpop.f32.mrb[0].mxu0
    %8171 = vmatprep.mubr.f32.mxu0 %v7834
    %8172 = vmatmul.mubr.f32.gmra.mrb[0].mxu0 %v7832
    %v8173 = vpop.f32.mrb[0].mxu0
    %v8174 = vadd.f32 %v8089, %v8173
    %v8175 = vpop.f32.mrb[0].mxu0
    %8176 = vdwg.mxu0
    %s8177 = scalar_lea.vmem %s55, 64
    %v8178 = vld [vmem:[%s8177] sm:$0xff]
    %v8179 = vld [vmem:[%s8177 + $0x8] sm:$0xff]
    %v8180 = vld [vmem:[%s8177 + $0x10] sm:$0xff]
    %v8181 = vld [vmem:[%s8177 + $0x18] sm:$0xff]
    %v8183 = vsel %vm3494, %v8178, 0
    %v8186 = vsel %vm3494, %v8179, 0
    %v8189 = vsel %vm3494, %v8180, 0
    %v8192 = vsel %vm3494, %v8181, 0
    %8194 = vmatprep.subr.mxu0 %v7728
    %8195 = vmatpush1.msra.mxu0 %v7727
    %8196 = vmatprep.subr.mxu0 %v7730
    %8197 = vmatpush1.msra.mxu0 %v7729
    %8198 = vmatprep.subr.mxu0 0.0
    %8199 = vmatpush1.msra.mxu0 0.0
    %8200 = vmatprep.subr.mxu0 0.0
    %8201 = vmatpush1.msra.mxu0 0.0
    %8202 = vmatprep.subr.mxu0 0.0
    %8203 = vmatpush1.msra.mxu0 0.0
    %8204 = vmatprep.subr.mxu0 0.0
    %8205 = vmatpush1.msra.mxu0 0.0
    %8206 = vmatprep.subr.mxu0 0.0
    %8207 = vmatpush1.msra.mxu0 0.0
    %8208 = vmatprep.subr.mxu0 0.0
    %8209 = vmatpush1.msra.mxu0 0.0
    %8210 = vmatprep.subr.mxu0 0.0
    %8211 = vmatpush1.msra.mxu0 0.0
    %8212 = vmatprep.subr.mxu0 0.0
    %8213 = vmatpush1.msra.mxu0 0.0
    %8214 = vmatprep.subr.mxu0 0.0
    %8215 = vmatpush1.msra.mxu0 0.0
    %8216 = vmatprep.subr.mxu0 0.0
    %8217 = vmatpush1.msra.mxu0 0.0
    %8218 = vmatprep.subr.mxu0 0.0
    %8219 = vmatpush1.msra.mxu0 0.0
    %8220 = vmatprep.subr.mxu0 0.0
    %8221 = vmatpush1.msra.mxu0 0.0
    %8222 = vmatprep.subr.mxu0 0.0
    %8223 = vmatpush1.msra.mxu0 0.0
    %8224 = vmatprep.subr.mxu0 0.0
    %8225 = vmatpush1.msra.mxu0 0.0
    %8226 = vmatprep.subr.mxu0 0.0
    %8227 = vmatpush1.msra.mxu0 0.0
    %8228 = vmatprep.subr.mxu0 0.0
    %8229 = vmatpush1.msra.mxu0 0.0
    %8230 = vmatprep.subr.mxu0 0.0
    %8231 = vmatpush1.msra.mxu0 0.0
    %8232 = vmatprep.subr.mxu0 0.0
    %8233 = vmatpush1.msra.mxu0 0.0
    %8234 = vmatprep.subr.mxu0 0.0
    %8235 = vmatpush1.msra.mxu0 0.0
    %8236 = vmatprep.subr.mxu0 0.0
    %8237 = vmatpush1.msra.mxu0 0.0
    %8238 = vmatprep.subr.mxu0 0.0
    %8239 = vmatpush1.msra.mxu0 0.0
    %8240 = vmatprep.subr.mxu0 0.0
    %8241 = vmatpush1.msra.mxu0 0.0
    %8242 = vmatprep.subr.mxu0 0.0
    %8243 = vmatpush1.msra.mxu0 0.0
    %8244 = vmatprep.subr.mxu0 0.0
    %8245 = vmatpush1.msra.mxu0 0.0
    %8246 = vmatprep.subr.mxu0 0.0
    %8247 = vmatpush1.msra.mxu0 0.0
    %8248 = vmatprep.subr.mxu0 0.0
    %8249 = vmatpush1.msra.mxu0 0.0
    %8250 = vmatprep.subr.mxu0 0.0
    %8251 = vmatpush1.msra.mxu0 0.0
    %8252 = vmatprep.subr.mxu0 0.0
    %8253 = vmatpush1.msra.mxu0 0.0
    %8254 = vmatprep.subr.mxu0 0.0
    %8255 = vmatpush1.msra.mxu0 0.0
    %8256 = vmatprep.subr.mxu0 0.0
    %8257 = vmatpush1.msra.mxu0 0.0
    %8258 = vmatprep.mubr.f32.mxu0 0.0
    %8259 = vmatmul.mubr.f32.gmra.mrb[0].mxu0 %v8183
    %v8260 = vpop.f32.mrb[0].mxu0
    %v8261 = vadd.f32 0.0, %v8260
    %v8262 = vpop.f32.mrb[0].mxu0
    %v8263 = vadd.f32 0.0, %v8262
    %8264 = vmatprep.mubr.f32.mxu0 0.0
    %8265 = vmatmul.mubr.f32.gmra.mrb[0].mxu0 %v8186
    %v8266 = vpop.f32.mrb[0].mxu0
    %v8267 = vadd.f32 0.0, %v8266
    %v8268 = vpop.f32.mrb[0].mxu0
    %v8269 = vadd.f32 0.0, %v8268
    %8270 = vmatprep.mubr.f32.mxu0 0.0
    %8271 = vmatmul.mubr.f32.gmra.mrb[0].mxu0 %v8189
    %v8272 = vpop.f32.mrb[0].mxu0
    %v8273 = vadd.f32 0.0, %v8272
    %v8274 = vpop.f32.mrb[0].mxu0
    %v8275 = vadd.f32 0.0, %v8274
    %8276 = vmatprep.mubr.f32.mxu0 0.0
    %8277 = vmatmul.mubr.f32.gmra.mrb[0].mxu0 %v8192
    %v8278 = vpop.f32.mrb[0].mxu0
    %v8279 = vadd.f32 0.0, %v8278
    %v8280 = vpop.f32.mrb[0].mxu0
    %v8281 = vadd.f32 0.0, %v8280
    %8282 = vdwg.mxu0
    %s8283 = scalar_lea.vmem [#allocation40], 512
    %v8284 = vld [vmem:[%s8283] sm:$0xff]
    %v8285 = vld [vmem:[%s8283 + $0x8] sm:$0xff]
    %v8286 = vld [vmem:[%s8283 + $0x10] sm:$0xff]
    %v8287 = vld [vmem:[%s8283 + $0x18] sm:$0xff]
    %v8288 = vld [vmem:[%s8283 + $0x20] sm:$0xff]
    %v8289 = vld [vmem:[%s8283 + $0x28] sm:$0xff]
    %v8290 = vld [vmem:[%s8283 + $0x30] sm:$0xff]
    %v8291 = vld [vmem:[%s8283 + $0x38] sm:$0xff]
    %v8292 = vld [vmem:[%s8283 + $0x40] sm:$0xff]
    %v8293 = vld [vmem:[%s8283 + $0x48] sm:$0xff]
    %v8294 = vld [vmem:[%s8283 + $0x50] sm:$0xff]
    %v8295 = vld [vmem:[%s8283 + $0x58] sm:$0xff]
    %v8296 = vld [vmem:[%s8283 + $0x60] sm:$0xff]
    %v8297 = vld [vmem:[%s8283 + $0x68] sm:$0xff]
    %v8298 = vld [vmem:[%s8283 + $0x70] sm:$0xff]
    %v8299 = vld [vmem:[%s8283 + $0x78] sm:$0xff]
    %v8300 = vld [vmem:[%s8283 + $0x80] sm:$0xff]
    %v8301 = vld [vmem:[%s8283 + $0x88] sm:$0xff]
    %v8302 = vld [vmem:[%s8283 + $0x90] sm:$0xff]
    %v8303 = vld [vmem:[%s8283 + $0x98] sm:$0xff]
    %v8304 = vld [vmem:[%s8283 + $0xa0] sm:$0xff]
    %v8305 = vld [vmem:[%s8283 + $0xa8] sm:$0xff]
    %v8306 = vld [vmem:[%s8283 + $0xb0] sm:$0xff]
    %v8307 = vld [vmem:[%s8283 + $0xb8] sm:$0xff]
    %v8308 = vld [vmem:[%s8283 + $0xc0] sm:$0xff]
    %v8309 = vld [vmem:[%s8283 + $0xc8] sm:$0xff]
    %v8310 = vld [vmem:[%s8283 + $0xd0] sm:$0xff]
    %v8311 = vld [vmem:[%s8283 + $0xd8] sm:$0xff]
    %v8312 = vld [vmem:[%s8283 + $0xe0] sm:$0xff]
    %v8313 = vld [vmem:[%s8283 + $0xe8] sm:$0xff]
    %v8314 = vld [vmem:[%s8283 + $0xf0] sm:$0xff]
    %v8315 = vld [vmem:[%s8283 + $0xf8] sm:$0xff]
    %8316 = vmatprep.subr.mxu0 0.0
    %8317 = vmatpush1.msra.mxu0 %v8284
    %8318 = vmatprep.subr.mxu0 0.0
    %8319 = vmatpush1.msra.mxu0 %v8285
    %8320 = vmatprep.subr.mxu0 0.0
    %8321 = vmatpush1.msra.mxu0 %v8286
    %8322 = vmatprep.subr.mxu0 0.0
    %8323 = vmatpush1.msra.mxu0 %v8287
    %8324 = vmatprep.subr.mxu0 0.0
    %8325 = vmatpush1.msra.mxu0 %v8288
    %8326 = vmatprep.subr.mxu0 0.0
    %8327 = vmatpush1.msra.mxu0 %v8289
    %8328 = vmatprep.subr.mxu0 0.0
    %8329 = vmatpush1.msra.mxu0 %v8290
    %8330 = vmatprep.subr.mxu0 0.0
    %8331 = vmatpush1.msra.mxu0 %v8291
    %8332 = vmatprep.subr.mxu0 0.0
    %8333 = vmatpush1.msra.mxu0 %v8292
    %8334 = vmatprep.subr.mxu0 0.0
    %8335 = vmatpush1.msra.mxu0 %v8293
    %8336 = vmatprep.subr.mxu0 0.0
    %8337 = vmatpush1.msra.mxu0 %v8294
    %8338 = vmatprep.subr.mxu0 0.0
    %8339 = vmatpush1.msra.mxu0 %v8295
    %8340 = vmatprep.subr.mxu0 0.0
    %8341 = vmatpush1.msra.mxu0 %v8296
    %8342 = vmatprep.subr.mxu0 0.0
    %8343 = vmatpush1.msra.mxu0 %v8297
    %8344 = vmatprep.subr.mxu0 0.0
    %8345 = vmatpush1.msra.mxu0 %v8298
    %8346 = vmatprep.subr.mxu0 0.0
    %8347 = vmatpush1.msra.mxu0 %v8299
    %8348 = vmatprep.subr.mxu0 0.0
    %8349 = vmatpush1.msra.mxu0 %v8300
    %8350 = vmatprep.subr.mxu0 0.0
    %8351 = vmatpush1.msra.mxu0 %v8301
    %8352 = vmatprep.subr.mxu0 0.0
    %8353 = vmatpush1.msra.mxu0 %v8302
    %8354 = vmatprep.subr.mxu0 0.0
    %8355 = vmatpush1.msra.mxu0 %v8303
    %8356 = vmatprep.subr.mxu0 0.0
    %8357 = vmatpush1.msra.mxu0 %v8304
    %8358 = vmatprep.subr.mxu0 0.0
    %8359 = vmatpush1.msra.mxu0 %v8305
    %8360 = vmatprep.subr.mxu0 0.0
    %8361 = vmatpush1.msra.mxu0 %v8306
    %8362 = vmatprep.subr.mxu0 0.0
    %8363 = vmatpush1.msra.mxu0 %v8307
    %8364 = vmatprep.subr.mxu0 0.0
    %8365 = vmatpush1.msra.mxu0 %v8308
    %8366 = vmatprep.subr.mxu0 0.0
    %8367 = vmatpush1.msra.mxu0 %v8309
    %8368 = vmatprep.subr.mxu0 0.0
    %8369 = vmatpush1.msra.mxu0 %v8310
    %8370 = vmatprep.subr.mxu0 0.0
    %8371 = vmatpush1.msra.mxu0 %v8311
    %8372 = vmatprep.subr.mxu0 0.0
    %8373 = vmatpush1.msra.mxu0 %v8312
    %8374 = vmatprep.subr.mxu0 0.0
    %8375 = vmatpush1.msra.mxu0 %v8313
    %8376 = vmatprep.subr.mxu0 0.0
    %8377 = vmatpush1.msra.mxu0 %v8314
    %8378 = vmatprep.subr.mxu0 0.0
    %8379 = vmatpush1.msra.mxu0 %v8315
    %8380 = vmatprep.mubr.f32.mxu0 %v8263
    %8381 = vmatmul.mubr.f32.gmra.mrb[0].mxu0 %v8261
    %v8382 = vpop.f32.mrb[0].mxu0
    %v8383 = vadd.f32 0.0, %v8382
    %v8384 = vpop.f32.mrb[0].mxu0
    %8385 = vmatprep.mubr.f32.mxu0 %v8269
    %8386 = vmatmul.mubr.f32.gmra.mrb[0].mxu0 %v8267
    %v8387 = vpop.f32.mrb[0].mxu0
    %v8388 = vadd.f32 0.0, %v8387
    %v8389 = vpop.f32.mrb[0].mxu0
    %8390 = vmatprep.mubr.f32.mxu0 %v8275
    %8391 = vmatmul.mubr.f32.gmra.mrb[0].mxu0 %v8273
    %v8392 = vpop.f32.mrb[0].mxu0
    %v8393 = vadd.f32 0.0, %v8392
    %v8394 = vpop.f32.mrb[0].mxu0
    %8395 = vmatprep.mubr.f32.mxu0 %v8281
    %8396 = vmatmul.mubr.f32.gmra.mrb[0].mxu0 %v8279
    %v8397 = vpop.f32.mrb[0].mxu0
    %v8398 = vadd.f32 0.0, %v8397
    %v8399 = vpop.f32.mrb[0].mxu0
    %8400 = vdwg.mxu0
    %v8401 = vadd.f32 %v8159, %v8383
    %v8402 = vadd.f32 %v8164, %v8388
    %v8403 = vadd.f32 %v8169, %v8393
    %v8404 = vadd.f32 %v8174, %v8398
    %v8405 = vld [vmem:[#allocation41] sm:$0x1]
    %v8407 = vlaneseq
    %v8408 = vshrl.u32 %v8407, 7
    %v8409 = vsub.s32 0, %v8408
    %v8410 = vrot.slane %v8405, %v8409
    %v8412 = vadd.f32 %v8401, %v8410
    %v8413 = vadd.f32 %v8402, %v8410
    %v8414 = vadd.f32 %v8403, %v8410
    %v8415 = vadd.f32 %v8404, %v8410
    %8416 = vst [vmem:[#allocation43] sm:$0xff] %v8412
    %8417 = vst [vmem:[#allocation43 + $0x8] sm:$0xff] %v8413
    %8418 = vst [vmem:[#allocation43 + $0x10] sm:$0xff] %v8414
    %8419 = vst [vmem:[#allocation43 + $0x18] sm:$0xff] %v8415
    // Predicated region
    $region226: #{tpu_custom_call.1} parent=1 // pred_check
      _
    $region227: #{tpu_custom_call.1} parent=1 // pred_check_branch
      %8421 = sbr.rel (0) target = $region229
    $region228: #{tpu_custom_call.1} parent=1 // pred_region
      %s8423 = ssub.s32 512, 512
      %8424 = vsyncadd [#allocation4], %s8423
      %s8425 = sshll.u32 [#allocation43], 4
      %s8426 = int_to_ptr.vmem [resolvable:$true] %s8425
      %8431 = dma.vmem_to_hbm [thread:$0]  %s8426, 512, %s61, [#allocation4], 128, 128, 8
    $region229: #{tpu_custom_call.1} parent=1 // pred_fallthru
      _
    // Predicated region
    $region230: #{tpu_custom_call.1} parent=1 // pred_check
      _
    $region231: #{tpu_custom_call.1} parent=1 // pred_check_branch
      %8433 = sbr.rel (0) target = $region233
    $region232: #{tpu_custom_call.1} parent=1 // pred_region
      %8434 = dma.done [#allocation4], 512
    $region233: #{tpu_custom_call.1} parent=1 // pred_fallthru
      _
    %8435 = vsyncpa [#allocation3], 1
    %8436 = vsyncpa [#allocation6], 1
    %8437 = vsyncpa [#allocation9], 1
    %8438 = vsyncpa [#allocation12], 1
    %8439 = vsyncpa [#allocation15], 1
    %8440 = vsyncpa [#allocation18], 1
    %8441 = vsyncpa [#allocation21], 1
    %8442 = vsyncpa [#allocation24], 1
    %8443 = vsyncpa [#allocation27], 1
    %8444 = vsyncpa [#allocation30], 1
    %8445 = vsyncpa [#allocation33], 1
    %8446 = vsyncpa [#allocation36], 1
    %8447 = vsyncpa [#allocation39], 1
    %8448 = vsyncpa [#allocation42], 1
    %8449 = vsyncpa [#allocation4], 1

</llo_original>
